<compile_context>
chip_gen: v5e
topology: v5e:2x2
jax: 0.10.0
libtpu: 0.0.40
codegen_flags: <defaults>
</compile_context>

<pallas_src>
import functools

import jax
import jax.numpy as jnp
from jax.experimental import pallas as pl
from jax.experimental.pallas import tpu as pltpu

EPS = 1e-5  # nn.InstanceNorm1d default eps


def _dmg_tcm_kernel(x_ref, wc_ref, wm_ref, wg_ref, wo_ref, par_ref,
                    seg_ref, segt_ref, o_ref, stack_m_ref, stack_g_ref,
                    *, kernel_size, dilation, t_len):
    """One grid step: nb batch elements folded into the lane (N) axis.

    x_ref    : (C_in, nb*T)     f32   activations, batch folded into lanes
    wc_ref   : (C_out, C_in)    bf16  1x1 compress conv
    wm_ref   : (C_out, K*C_out) bf16  main dilated conv (taps stacked on cols)
    wg_ref   : (C_out, K*C_out) bf16  gate dilated conv (taps stacked on cols)
    wo_ref   : (C_in, C_out)    bf16  1x1 out conv
    par_ref  : (C_out, 9)       f32   [a_m,g_m,b_m, a_g,g_g,b_g, a_o,g_o,b_o]
    seg_ref  : (nb*T, nseg)     f32   segment (batch element) indicator
    segt_ref : (nseg, nb*T)     f32   its transpose (broadcast-back)
    o_ref    : (C_in, nb*T)     f32
    stack_*  : (K*C_out, nb*T)  bf16  persistent im2col scratch
    """
    c_out = wc_ref.shape[0]
    nbt = x_ref.shape[1]
    inv_t = 1.0 / t_len

    wc = wc_ref[...]
    wo = wo_ref[...]

    # Per-channel parameters as (C_out, 1) sublane vectors.
    par = par_ref[...]
    a_m, g_m, b_m = par[:, 0:1], par[:, 1:2], par[:, 2:3]
    a_g, g_g, b_g = par[:, 3:4], par[:, 4:5], par[:, 5:6]
    a_o, g_o, b_o = par[:, 6:7], par[:, 7:8], par[:, 8:9]

    seg = seg_ref[...]       # (nbt, nseg)  0/1 segment indicator
    seg_t = segt_ref[...]    # (nseg, nbt)

    # Time-within-segment lane index + causal masks, hoisted once and shared
    # by both dilated-conv branches (JAX does not CSE broadcasts).
    lane_t = jax.lax.broadcasted_iota(jnp.int32, (c_out, nbt), 1) % t_len
    shifts = [(kernel_size - 1 - k) * dilation for k in range(kernel_size)]
    masks = {s: lane_t >= s for s in sorted(set(shifts)) if s > 0}

    def prelu(y, a):
        return jnp.where(y >= 0, y, a * y)

    def inorm(y, g, b):
        # Segmented (per batch element) InstanceNorm1d.  Stats and the
        # broadcast-back both go through the MXU (segment-indicator matmuls)
        # so the XLU only carries the causal rolls.
        s1 = jnp.dot(y, seg, preferred_element_type=jnp.float32)      # (C,nseg)
        s2 = jnp.dot(y * y, seg, preferred_element_type=jnp.float32)  # (C,nseg)
        mean = s1 * inv_t
        var = jnp.maximum(s2 * inv_t - mean * mean, 0.0)  # guard cancellation
        scale = g * jax.lax.rsqrt(var + EPS)                          # (C,nseg)
        shift = b - mean * scale                                      # (C,nseg)
        scale_f = jnp.dot(scale, seg_t, preferred_element_type=jnp.float32)
        shift_f = jnp.dot(shift, seg_t, preferred_element_type=jnp.float32)
        return y * scale_f + shift_f                                  # (C,nbt)

    def build_stack(y, stack_ref):
        # im2col: K causally shifted copies of y written straight into a
        # persistent bf16 VMEM scratch (no materialized concat); a single
        # wide-contraction (K*C_out) matmul then consumes it.
        for k, s in enumerate(shifts):
            if s == 0:
                tap = y
            else:
                rolled = pltpu.roll(y, shift=s, axis=1)  # rolled[:,p] = y[:,p-s]
                tap = jnp.where(masks[s], rolled, 0.0)   # zero where (p%T) < s
            stack_ref[k * c_out:(k + 1) * c_out, :] = tap.astype(jnp.bfloat16)

    # 1x1 compress conv: (C_out, C_in) @ (C_in, nb*T), bf16 MXU, f32 acc.
    h = jnp.dot(wc, x_ref[...].astype(jnp.bfloat16),
                preferred_element_type=jnp.float32)

    # Main / gate branches: PReLU -> InstanceNorm -> causal dilated conv.
    ym = inorm(prelu(h, a_m), g_m, b_m)
    build_stack(ym, stack_m_ref)
    main = jnp.dot(wm_ref[...], stack_m_ref[...],
                   preferred_element_type=jnp.float32)

    yg = inorm(prelu(h, a_g), g_g, b_g)
    build_stack(yg, stack_g_ref)
    gate = jnp.dot(wg_ref[...], stack_g_ref[...],
                   preferred_element_type=jnp.float32)

    z = main * jax.nn.sigmoid(gate)
    z = inorm(prelu(z, a_o), g_o, b_o)

    # 1x1 out conv + residual add.
    out = jnp.dot(wo, z.astype(jnp.bfloat16), preferred_element_type=jnp.float32)
    o_ref[...] = out + x_ref[...]


def dmg_tcm(x, wc, wm, wg, wo, params, *, kernel_size, dilation,
            batch_block=None):
    """DMG_TCM forward.

    x: (B, C_in, T) f32, wc: (C_out, C_in), wm/wg: (K, C_out, C_out),
    wo: (C_in, C_out), params: (C_out, 9).  Returns (B, C_in, T) f32.
    """
    B, c_in, T = x.shape
    c_out = wc.shape[0]

    if batch_block is None:
        # Fewest, fattest steps while keeping >= 2 steps where possible so the
        # "parallel" grid axis can still split across v7x's two TensorCores.
        batch_block = 4 if B > 4 else max(1, (B + 1) // 2)
    nb = batch_block
    b_pad = pl.cdiv(B, nb) * nb
    assert (nb * T) % 128 == 0 or b_pad == nb, (
        "nb*T must be a multiple of 128 unless one step covers the whole batch")
    nbt = nb * T
    nseg = max(nb, 8)  # pad segment dim to the f32 sublane granule

    # Fold batch into the lane (matmul N) axis: (B, C, T) -> (C, B_pad*T).
    x_t = jnp.transpose(x, (1, 0, 2))                     # (C_in, B, T)
    if b_pad != B:
        x_t = jnp.pad(x_t, ((0, 0), (0, b_pad - B), (0, 0)))
    x_flat = x_t.reshape(c_in, b_pad * T)
    # TODO(synk): for production (memory-bound) shapes, cast x/out to bf16 at
    # this boundary to halve HBM traffic; keep the residual add in f32.

    # Segment-indicator matrices for the in-kernel segmented InstanceNorm.
    pos_seg = jnp.arange(nbt, dtype=jnp.int32) // T                       # (nbt,)
    seg_ids = jnp.arange(nseg, dtype=jnp.int32)                           # (nseg,)
    seg = (pos_seg[:, None] == seg_ids[None, :]).astype(jnp.float32)      # (nbt,nseg)
    seg_t = (seg_ids[:, None] == pos_seg[None, :]).astype(jnp.float32)    # (nseg,nbt)

    # Pre-stack dilated-conv taps: (K, C_out, C_out) -> (C_out, K*C_out) so the
    # K taps become one wide-contraction matmul.  All matmul weights go to bf16
    # (f32 accumulation happens inside the kernel via preferred_element_type).
    def stack_taps(w):
        return jnp.transpose(w, (1, 0, 2)).reshape(c_out, kernel_size * c_out)

    wm_s = stack_taps(wm).astype(jnp.bfloat16)
    wg_s = stack_taps(wg).astype(jnp.bfloat16)
    wc_b = wc.astype(jnp.bfloat16)
    wo_b = wo.astype(jnp.bfloat16)

    kern = functools.partial(_dmg_tcm_kernel, kernel_size=kernel_size,
                             dilation=dilation, t_len=T)

    # VMEM per step: ~1 MiB of double-buffered I/O + 2 x 320 KiB bf16 im2col
    # scratch -> < 2 MiB, well inside every generation's scoped window.
    # TODO(synk): for long T add a T grid axis with a (K-1)*dilation halo and a
    # two-pass InstanceNorm; re-derive the T tile against 64 MiB VMEM on v7x.
    out_flat = pl.pallas_call(
        kern,
        out_shape=jax.ShapeDtypeStruct((c_in, b_pad * T), jnp.float32),
        grid_spec=pltpu.PrefetchScalarGridSpec(
            num_scalar_prefetch=0,
            grid=(b_pad // nb,),
            in_specs=[
                pl.BlockSpec((c_in, nbt), lambda b: (0, b)),
                pl.BlockSpec((c_out, c_in), lambda b: (0, 0)),
                pl.BlockSpec((c_out, kernel_size * c_out), lambda b: (0, 0)),
                pl.BlockSpec((c_out, kernel_size * c_out), lambda b: (0, 0)),
                pl.BlockSpec((c_in, c_out), lambda b: (0, 0)),
                pl.BlockSpec((c_out, 9), lambda b: (0, 0)),
                pl.BlockSpec((nbt, nseg), lambda b: (0, 0)),
                pl.BlockSpec((nseg, nbt), lambda b: (0, 0)),
            ],
            out_specs=pl.BlockSpec((c_in, nbt), lambda b: (0, b)),
            scratch_shapes=[
                pltpu.VMEM((kernel_size * c_out, nbt), jnp.bfloat16),
                pltpu.VMEM((kernel_size * c_out, nbt), jnp.bfloat16),
            ],
        ),
        compiler_params=pltpu.CompilerParams(
            dimension_semantics=("parallel",),   # batch blocks are independent
            vmem_limit_bytes=32 * 1024 * 1024,
        ),
    )(x_flat, wc_b, wm_s, wg_s, wo_b, params, seg, seg_t)

    out = out_flat.reshape(c_in, b_pad, T)[:, :B, :]
    return jnp.transpose(out, (1, 0, 2))


def reference(x, wc, wm, wg, wo, params, *, kernel_size, dilation,
              matmul_dtype=jnp.float32):
    """Pure-JAX reference mirroring the PyTorch forward.

    With matmul_dtype=jnp.bfloat16 the matmul operands are cast exactly like
    the kernel's MXU inputs (f32 accumulation), isolating kernel structure from
    the deliberate bf16 precision choice.
    """
    B, c_in, T = x.shape
    a_m, g_m, b_m, a_g, g_g, b_g, a_o, g_o, b_o = [params[:, i] for i in range(9)]

    def mm(w, y):
        return jnp.einsum('oc,bct->bot', w.astype(matmul_dtype),
                          y.astype(matmul_dtype),
                          preferred_element_type=jnp.float32)

    def prelu(y, a):
        return jnp.where(y >= 0, y, a[None, :, None] * y)

    def inorm(y, g, b):
        m = y.mean(-1, keepdims=True)
        v = ((y - m) ** 2).mean(-1, keepdims=True)
        return (y - m) / jnp.sqrt(v + EPS) * g[None, :, None] + b[None, :, None]

    def branch(y, a, g, b, w):
        y = inorm(prelu(y, a), g, b)
        pad = (kernel_size - 1) * dilation
        yp = jnp.pad(y, ((0, 0), (0, 0), (pad, 0)))
        acc = jnp.zeros((B, y.shape[1], T), jnp.float32)
        for k in range(kernel_size):
            acc = acc + mm(w[k], yp[:, :, k * dilation:k * dilation + T])
        return acc

    h = mm(wc, x)
    main = branch(h, a_m, g_m, b_m, wm)
    gate = branch(h, a_g, g_g, b_g, wg)
    z = main * jax.nn.sigmoid(gate)
    z = inorm(prelu(z, a_o), g_o, b_o)
    return mm(wo, z) + x


if __name__ == "__main__":
    # nn.PReLU(64) inside the module pins out_channels to 64.
    B, C_IN, C_OUT, T = 8, 32, 64, 128
    K, DIL = 5, 2

    key = jax.random.PRNGKey(0)
    ks = jax.random.split(key, 7)
    x = jax.random.normal(ks[0], (B, C_IN, T), jnp.float32)
    wc = jax.random.normal(ks[1], (C_OUT, C_IN), jnp.float32) * 0.1       # compress 1x1
    wm = jax.random.normal(ks[2], (K, C_OUT, C_OUT), jnp.float32) * 0.05  # main dilated
    wg = jax.random.normal(ks[3], (K, C_OUT, C_OUT), jnp.float32) * 0.05  # gate dilated
    wo = jax.random.normal(ks[4], (C_IN, C_OUT), jnp.float32) * 0.1       # out 1x1

    prelu_a = jnp.full((C_OUT, 3), 0.25, jnp.float32)  # PyTorch PReLU default
    gamma = 1.0 + 0.1 * jax.random.normal(ks[5], (C_OUT, 3), jnp.float32)
    beta = 0.1 * jax.random.normal(ks[6], (C_OUT, 3), jnp.float32)
    # params columns: [prelu_m, gamma_m, beta_m, prelu_g, gamma_g, beta_g,
    #                  prelu_o, gamma_o, beta_o]
    params = jnp.stack([prelu_a[:, 0], gamma[:, 0], beta[:, 0],
                        prelu_a[:, 1], gamma[:, 1], beta[:, 1],
                        prelu_a[:, 2], gamma[:, 2], beta[:, 2]], axis=1)

    # nb=4 -> 2 grid steps (even, >= 2: v7x megacore-friendly), N = 512 lanes.
    out = dmg_tcm(x, wc, wm, wg, wo, params,
                  kernel_size=K, dilation=DIL, batch_block=4)
    out = jax.block_until_ready(out)

    # Validate against a reference that mirrors the kernel's bf16 MXU operands
    # (f32 accumulation); the bf16 cast is a deliberate precision choice.
    ref = reference(x, wc, wm, wg, wo, params, kernel_size=K, dilation=DIL,
                    matmul_dtype=jnp.bfloat16)
    assert out.shape == (B, C_IN, T)
    max_err = float(jnp.abs(out - ref).max())
    assert jnp.allclose(out, ref, atol=1e-2, rtol=1e-2), max_err
    print("KERNEL_OK")
</pallas_src>

<mosaic_0001>
module attributes {stable_mosaic.version = 11 : i64} {
  func.func @_dmg_tcm_kernel(%arg0: i32, %arg1: memref<32x512xf32, #tpu.memory_space<vmem>>, %arg2: memref<64x32xbf16, #tpu.memory_space<vmem>>, %arg3: memref<64x320xbf16, #tpu.memory_space<vmem>>, %arg4: memref<64x320xbf16, #tpu.memory_space<vmem>>, %arg5: memref<32x64xbf16, #tpu.memory_space<vmem>>, %arg6: memref<64x9xf32, #tpu.memory_space<vmem>>, %arg7: memref<512x8xf32, #tpu.memory_space<vmem>>, %arg8: memref<8x512xf32, #tpu.memory_space<vmem>>, %arg9: memref<32x512xf32, #tpu.memory_space<vmem>>, %arg10: memref<320x512xbf16, #tpu.memory_space<vmem>>, %arg11: memref<320x512xbf16, #tpu.memory_space<vmem>>) attributes {dimension_semantics = [#tpu.dimension_semantics<parallel>], iteration_bounds = array<i64: 2>, scalar_prefetch = 0 : i64, scratch_operands = 2 : i64, tpu.core_type = #tpu.core_type<tc>, window_params = [{transform_indices = @transform_0, window_bounds = array<i64: 32, 512>}, {pipeline_mode = #tpu.pipeline_mode<synchronous>, transform_indices = @transform_1, window_bounds = array<i64: 64, 32>}, {pipeline_mode = #tpu.pipeline_mode<synchronous>, transform_indices = @transform_2, window_bounds = array<i64: 64, 320>}, {pipeline_mode = #tpu.pipeline_mode<synchronous>, transform_indices = @transform_3, window_bounds = array<i64: 64, 320>}, {pipeline_mode = #tpu.pipeline_mode<synchronous>, transform_indices = @transform_4, window_bounds = array<i64: 32, 64>}, {pipeline_mode = #tpu.pipeline_mode<synchronous>, transform_indices = @transform_5, window_bounds = array<i64: 64, 9>}, {pipeline_mode = #tpu.pipeline_mode<synchronous>, transform_indices = @transform_6, window_bounds = array<i64: 512, 8>}, {pipeline_mode = #tpu.pipeline_mode<synchronous>, transform_indices = @transform_7, window_bounds = array<i64: 8, 512>}, {transform_indices = @transform_8, window_bounds = array<i64: 32, 512>}]} {
    %c0 = arith.constant 0 : index
    %c0_0 = arith.constant 0 : index
    %0 = vector.load %arg2[%c0, %c0_0] : memref<64x32xbf16, #tpu.memory_space<vmem>>, vector<64x32xbf16>
    %c0_1 = arith.constant 0 : index
    %c0_2 = arith.constant 0 : index
    %1 = vector.load %arg5[%c0_1, %c0_2] : memref<32x64xbf16, #tpu.memory_space<vmem>>, vector<32x64xbf16>
    %c0_3 = arith.constant 0 : index
    %c0_4 = arith.constant 0 : index
    %2 = vector.load %arg6[%c0_3, %c0_4] : memref<64x9xf32, #tpu.memory_space<vmem>>, vector<64x9xf32>
    %3 = vector.extract_strided_slice %2 {offsets = [0, 0], sizes = [64, 1], strides = [1, 1]} : vector<64x9xf32> to vector<64x1xf32>
    %4 = vector.extract_strided_slice %2 {offsets = [0, 1], sizes = [64, 1], strides = [1, 1]} : vector<64x9xf32> to vector<64x1xf32>
    %5 = vector.extract_strided_slice %2 {offsets = [0, 2], sizes = [64, 1], strides = [1, 1]} : vector<64x9xf32> to vector<64x1xf32>
    %6 = vector.extract_strided_slice %2 {offsets = [0, 3], sizes = [64, 1], strides = [1, 1]} : vector<64x9xf32> to vector<64x1xf32>
    %7 = vector.extract_strided_slice %2 {offsets = [0, 4], sizes = [64, 1], strides = [1, 1]} : vector<64x9xf32> to vector<64x1xf32>
    %8 = vector.extract_strided_slice %2 {offsets = [0, 5], sizes = [64, 1], strides = [1, 1]} : vector<64x9xf32> to vector<64x1xf32>
    %9 = vector.extract_strided_slice %2 {offsets = [0, 6], sizes = [64, 1], strides = [1, 1]} : vector<64x9xf32> to vector<64x1xf32>
    %10 = vector.extract_strided_slice %2 {offsets = [0, 7], sizes = [64, 1], strides = [1, 1]} : vector<64x9xf32> to vector<64x1xf32>
    %11 = vector.extract_strided_slice %2 {offsets = [0, 8], sizes = [64, 1], strides = [1, 1]} : vector<64x9xf32> to vector<64x1xf32>
    %c0_5 = arith.constant 0 : index
    %c0_6 = arith.constant 0 : index
    %12 = vector.load %arg7[%c0_5, %c0_6] : memref<512x8xf32, #tpu.memory_space<vmem>>, vector<512x8xf32>
    %c0_7 = arith.constant 0 : index
    %c0_8 = arith.constant 0 : index
    %13 = vector.load %arg8[%c0_7, %c0_8] : memref<8x512xf32, #tpu.memory_space<vmem>>, vector<8x512xf32>
    %14 = tpu.iota {dimensions = array<i32: 1>} : vector<64x512xi32>
    %c128_i32 = arith.constant 128 : i32
    %c0_i32 = arith.constant 0 : i32
    %15 = arith.cmpi eq, %c128_i32, %c0_i32 : i32
    %c1_i32 = arith.constant 1 : i32
    %16 = arith.select %15, %c1_i32, %c128_i32 : i32
    %17 = vector.broadcast %16 : i32 to vector<64x512xi32>
    %18 = arith.remsi %14, %17 : vector<64x512xi32>
    %c0_i32_9 = arith.constant 0 : i32
    %19 = vector.broadcast %c0_i32_9 : i32 to vector<64x512xi32>
    %20 = arith.cmpi ne, %18, %19 : vector<64x512xi32>
    %c0_i32_10 = arith.constant 0 : i32
    %21 = vector.broadcast %c0_i32_10 : i32 to vector<64x512xi32>
    %22 = arith.cmpi slt, %18, %21 : vector<64x512xi32>
    %c0_i32_11 = arith.constant 0 : i32
    %23 = arith.cmpi slt, %16, %c0_i32_11 : i32
    %24 = vector.broadcast %23 : i1 to vector<64x512xi1>
    %25 = vector.broadcast %24 : vector<64x512xi1> to vector<64x512xi1>
    %26 = arith.xori %22, %25 : vector<64x512xi1>
    %27 = arith.andi %26, %20 : vector<64x512xi1>
    %28 = vector.broadcast %16 : i32 to vector<64x512xi32>
    %29 = arith.addi %18, %28 : vector<64x512xi32>
    %30 = arith.select %27, %29, %18 : vector<64x512xi1>, vector<64x512xi32>
    %c2_i32 = arith.constant 2 : i32
    %31 = vector.broadcast %c2_i32 : i32 to vector<64x512xi32>
    %32 = arith.cmpi sge, %30, %31 : vector<64x512xi32>
    %c4_i32 = arith.constant 4 : i32
    %33 = vector.broadcast %c4_i32 : i32 to vector<64x512xi32>
    %34 = arith.cmpi sge, %30, %33 : vector<64x512xi32>
    %c6_i32 = arith.constant 6 : i32
    %35 = vector.broadcast %c6_i32 : i32 to vector<64x512xi32>
    %36 = arith.cmpi sge, %30, %35 : vector<64x512xi32>
    %c8_i32 = arith.constant 8 : i32
    %37 = vector.broadcast %c8_i32 : i32 to vector<64x512xi32>
    %38 = arith.cmpi sge, %30, %37 : vector<64x512xi32>
    %c0_12 = arith.constant 0 : index
    %c0_13 = arith.constant 0 : index
    %39 = vector.load %arg1[%c0_12, %c0_13] : memref<32x512xf32, #tpu.memory_space<vmem>>, vector<32x512xf32>
    %40 = arith.truncf %39 : vector<32x512xf32> to vector<32x512xbf16>
    %cst = arith.constant dense<0.000000e+00> : vector<64x512xf32>
    %41 = tpu.matmul %0, %40, %cst {dimension_numbers = #tpu.dot_dimension_numbers<[1], [0], [0], [1], [0, 0, 1, 1], [], []>} : vector<64x32xbf16>, vector<32x512xbf16>, vector<64x512xf32> -> vector<64x512xf32>
    %cst_14 = arith.constant 0.000000e+00 : f32
    %42 = vector.broadcast %cst_14 : f32 to vector<64x512xf32>
    %43 = arith.cmpf oge, %41, %42 : vector<64x512xf32>
    %44 = vector.broadcast %3 : vector<64x1xf32> to vector<64x512xf32>
    %45 = arith.mulf %44, %41 : vector<64x512xf32>
    %46 = arith.select %43, %41, %45 : vector<64x512xi1>, vector<64x512xf32>
    %cst_15 = arith.constant dense<0.000000e+00> : vector<64x8xf32>
    %47 = tpu.matmul %46, %12, %cst_15 {dimension_numbers = #tpu.dot_dimension_numbers<[1], [0], [0], [1], [0, 0, 1, 1], [], []>} : vector<64x512xf32>, vector<512x8xf32>, vector<64x8xf32> -> vector<64x8xf32>
    %48 = arith.mulf %46, %46 : vector<64x512xf32>
    %cst_16 = arith.constant dense<0.000000e+00> : vector<64x8xf32>
    %49 = tpu.matmul %48, %12, %cst_16 {dimension_numbers = #tpu.dot_dimension_numbers<[1], [0], [0], [1], [0, 0, 1, 1], [], []>} : vector<64x512xf32>, vector<512x8xf32>, vector<64x8xf32> -> vector<64x8xf32>
    %cst_17 = arith.constant 7.812500e-03 : f32
    %50 = vector.broadcast %cst_17 : f32 to vector<64x8xf32>
    %51 = arith.mulf %47, %50 : vector<64x8xf32>
    %cst_18 = arith.constant 7.812500e-03 : f32
    %52 = vector.broadcast %cst_18 : f32 to vector<64x8xf32>
    %53 = arith.mulf %49, %52 : vector<64x8xf32>
    %54 = arith.mulf %51, %51 : vector<64x8xf32>
    %55 = arith.subf %53, %54 : vector<64x8xf32>
    %cst_19 = arith.constant 0.000000e+00 : f32
    %56 = vector.broadcast %cst_19 : f32 to vector<64x8xf32>
    %57 = arith.maximumf %55, %56 : vector<64x8xf32>
    %cst_20 = arith.constant 9.99999974E-6 : f32
    %58 = vector.broadcast %cst_20 : f32 to vector<64x8xf32>
    %59 = arith.addf %57, %58 : vector<64x8xf32>
    %60 = math.rsqrt %59 : vector<64x8xf32>
    %61 = vector.broadcast %4 : vector<64x1xf32> to vector<64x8xf32>
    %62 = arith.mulf %61, %60 : vector<64x8xf32>
    %63 = arith.mulf %51, %62 : vector<64x8xf32>
    %64 = vector.broadcast %5 : vector<64x1xf32> to vector<64x8xf32>
    %65 = arith.subf %64, %63 : vector<64x8xf32>
    %cst_21 = arith.constant dense<0.000000e+00> : vector<64x512xf32>
    %66 = tpu.matmul %62, %13, %cst_21 {dimension_numbers = #tpu.dot_dimension_numbers<[1], [0], [0], [1], [0, 0, 1, 1], [], []>} : vector<64x8xf32>, vector<8x512xf32>, vector<64x512xf32> -> vector<64x512xf32>
    %cst_22 = arith.constant dense<0.000000e+00> : vector<64x512xf32>
    %67 = tpu.matmul %65, %13, %cst_22 {dimension_numbers = #tpu.dot_dimension_numbers<[1], [0], [0], [1], [0, 0, 1, 1], [], []>} : vector<64x8xf32>, vector<8x512xf32>, vector<64x512xf32> -> vector<64x512xf32>
    %68 = arith.mulf %46, %66 : vector<64x512xf32>
    %69 = arith.addf %68, %67 : vector<64x512xf32>
    %c8_i32_23 = arith.constant 8 : i32
    %70 = tpu.dynamic_rotate %69 by %c8_i32_23 dim 1 : vector<64x512xf32>, i32 -> vector<64x512xf32>
    %cst_24 = arith.constant 0.000000e+00 : f32
    %71 = vector.broadcast %cst_24 : f32 to vector<64x512xf32>
    %72 = arith.select %38, %70, %71 : vector<64x512xi1>, vector<64x512xf32>
    %73 = arith.truncf %72 : vector<64x512xf32> to vector<64x512xbf16>
    %c0_25 = arith.constant 0 : index
    %c0_26 = arith.constant 0 : index
    %74 = vector.load %arg10[%c0_25, %c0_26] : memref<320x512xbf16, #tpu.memory_space<vmem>>, vector<64x512xbf16>
    tpu.vector_store %arg10[%c0_25, %c0_26], %73 {strides = array<i32>} : memref<320x512xbf16, #tpu.memory_space<vmem>>, vector<64x512xbf16>,
    %c6_i32_27 = arith.constant 6 : i32
    %75 = tpu.dynamic_rotate %69 by %c6_i32_27 dim 1 : vector<64x512xf32>, i32 -> vector<64x512xf32>
    %cst_28 = arith.constant 0.000000e+00 : f32
    %76 = vector.broadcast %cst_28 : f32 to vector<64x512xf32>
    %77 = arith.select %36, %75, %76 : vector<64x512xi1>, vector<64x512xf32>
    %78 = arith.truncf %77 : vector<64x512xf32> to vector<64x512xbf16>
    %c64 = arith.constant 64 : index
    %c0_29 = arith.constant 0 : index
    %79 = vector.load %arg10[%c64, %c0_29] : memref<320x512xbf16, #tpu.memory_space<vmem>>, vector<64x512xbf16>
    tpu.vector_store %arg10[%c64, %c0_29], %78 {strides = array<i32>} : memref<320x512xbf16, #tpu.memory_space<vmem>>, vector<64x512xbf16>,
    %c4_i32_30 = arith.constant 4 : i32
    %80 = tpu.dynamic_rotate %69 by %c4_i32_30 dim 1 : vector<64x512xf32>, i32 -> vector<64x512xf32>
    %cst_31 = arith.constant 0.000000e+00 : f32
    %81 = vector.broadcast %cst_31 : f32 to vector<64x512xf32>
    %82 = arith.select %34, %80, %81 : vector<64x512xi1>, vector<64x512xf32>
    %83 = arith.truncf %82 : vector<64x512xf32> to vector<64x512xbf16>
    %c128 = arith.constant 128 : index
    %c0_32 = arith.constant 0 : index
    %84 = vector.load %arg10[%c128, %c0_32] : memref<320x512xbf16, #tpu.memory_space<vmem>>, vector<64x512xbf16>
    tpu.vector_store %arg10[%c128, %c0_32], %83 {strides = array<i32>} : memref<320x512xbf16, #tpu.memory_space<vmem>>, vector<64x512xbf16>,
    %c2_i32_33 = arith.constant 2 : i32
    %85 = tpu.dynamic_rotate %69 by %c2_i32_33 dim 1 : vector<64x512xf32>, i32 -> vector<64x512xf32>
    %cst_34 = arith.constant 0.000000e+00 : f32
    %86 = vector.broadcast %cst_34 : f32 to vector<64x512xf32>
    %87 = arith.select %32, %85, %86 : vector<64x512xi1>, vector<64x512xf32>
    %88 = arith.truncf %87 : vector<64x512xf32> to vector<64x512xbf16>
    %c192 = arith.constant 192 : index
    %c0_35 = arith.constant 0 : index
    %89 = vector.load %arg10[%c192, %c0_35] : memref<320x512xbf16, #tpu.memory_space<vmem>>, vector<64x512xbf16>
    tpu.vector_store %arg10[%c192, %c0_35], %88 {strides = array<i32>} : memref<320x512xbf16, #tpu.memory_space<vmem>>, vector<64x512xbf16>,
    %90 = arith.truncf %69 : vector<64x512xf32> to vector<64x512xbf16>
    %c256 = arith.constant 256 : index
    %c0_36 = arith.constant 0 : index
    %91 = vector.load %arg10[%c256, %c0_36] : memref<320x512xbf16, #tpu.memory_space<vmem>>, vector<64x512xbf16>
    tpu.vector_store %arg10[%c256, %c0_36], %90 {strides = array<i32>} : memref<320x512xbf16, #tpu.memory_space<vmem>>, vector<64x512xbf16>,
    %c0_37 = arith.constant 0 : index
    %c0_38 = arith.constant 0 : index
    %92 = vector.load %arg3[%c0_37, %c0_38] : memref<64x320xbf16, #tpu.memory_space<vmem>>, vector<64x320xbf16>
    %c0_39 = arith.constant 0 : index
    %c0_40 = arith.constant 0 : index
    %93 = vector.load %arg10[%c0_39, %c0_40] : memref<320x512xbf16, #tpu.memory_space<vmem>>, vector<320x512xbf16>
    %cst_41 = arith.constant dense<0.000000e+00> : vector<64x512xf32>
    %94 = tpu.matmul %92, %93, %cst_41 {dimension_numbers = #tpu.dot_dimension_numbers<[1], [0], [0], [1], [0, 0, 1, 1], [], []>} : vector<64x320xbf16>, vector<320x512xbf16>, vector<64x512xf32> -> vector<64x512xf32>
    %cst_42 = arith.constant 0.000000e+00 : f32
    %95 = vector.broadcast %cst_42 : f32 to vector<64x512xf32>
    %96 = arith.cmpf oge, %41, %95 : vector<64x512xf32>
    %97 = vector.broadcast %6 : vector<64x1xf32> to vector<64x512xf32>
    %98 = arith.mulf %97, %41 : vector<64x512xf32>
    %99 = arith.select %96, %41, %98 : vector<64x512xi1>, vector<64x512xf32>
    %cst_43 = arith.constant dense<0.000000e+00> : vector<64x8xf32>
    %100 = tpu.matmul %99, %12, %cst_43 {dimension_numbers = #tpu.dot_dimension_numbers<[1], [0], [0], [1], [0, 0, 1, 1], [], []>} : vector<64x512xf32>, vector<512x8xf32>, vector<64x8xf32> -> vector<64x8xf32>
    %101 = arith.mulf %99, %99 : vector<64x512xf32>
    %cst_44 = arith.constant dense<0.000000e+00> : vector<64x8xf32>
    %102 = tpu.matmul %101, %12, %cst_44 {dimension_numbers = #tpu.dot_dimension_numbers<[1], [0], [0], [1], [0, 0, 1, 1], [], []>} : vector<64x512xf32>, vector<512x8xf32>, vector<64x8xf32> -> vector<64x8xf32>
    %cst_45 = arith.constant 7.812500e-03 : f32
    %103 = vector.broadcast %cst_45 : f32 to vector<64x8xf32>
    %104 = arith.mulf %100, %103 : vector<64x8xf32>
    %cst_46 = arith.constant 7.812500e-03 : f32
    %105 = vector.broadcast %cst_46 : f32 to vector<64x8xf32>
    %106 = arith.mulf %102, %105 : vector<64x8xf32>
    %107 = arith.mulf %104, %104 : vector<64x8xf32>
    %108 = arith.subf %106, %107 : vector<64x8xf32>
    %cst_47 = arith.constant 0.000000e+00 : f32
    %109 = vector.broadcast %cst_47 : f32 to vector<64x8xf32>
    %110 = arith.maximumf %108, %109 : vector<64x8xf32>
    %cst_48 = arith.constant 9.99999974E-6 : f32
    %111 = vector.broadcast %cst_48 : f32 to vector<64x8xf32>
    %112 = arith.addf %110, %111 : vector<64x8xf32>
    %113 = math.rsqrt %112 : vector<64x8xf32>
    %114 = vector.broadcast %7 : vector<64x1xf32> to vector<64x8xf32>
    %115 = arith.mulf %114, %113 : vector<64x8xf32>
    %116 = arith.mulf %104, %115 : vector<64x8xf32>
    %117 = vector.broadcast %8 : vector<64x1xf32> to vector<64x8xf32>
    %118 = arith.subf %117, %116 : vector<64x8xf32>
    %cst_49 = arith.constant dense<0.000000e+00> : vector<64x512xf32>
    %119 = tpu.matmul %115, %13, %cst_49 {dimension_numbers = #tpu.dot_dimension_numbers<[1], [0], [0], [1], [0, 0, 1, 1], [], []>} : vector<64x8xf32>, vector<8x512xf32>, vector<64x512xf32> -> vector<64x512xf32>
    %cst_50 = arith.constant dense<0.000000e+00> : vector<64x512xf32>
    %120 = tpu.matmul %118, %13, %cst_50 {dimension_numbers = #tpu.dot_dimension_numbers<[1], [0], [0], [1], [0, 0, 1, 1], [], []>} : vector<64x8xf32>, vector<8x512xf32>, vector<64x512xf32> -> vector<64x512xf32>
    %121 = arith.mulf %99, %119 : vector<64x512xf32>
    %122 = arith.addf %121, %120 : vector<64x512xf32>
    %c8_i32_51 = arith.constant 8 : i32
    %123 = tpu.dynamic_rotate %122 by %c8_i32_51 dim 1 : vector<64x512xf32>, i32 -> vector<64x512xf32>
    %cst_52 = arith.constant 0.000000e+00 : f32
    %124 = vector.broadcast %cst_52 : f32 to vector<64x512xf32>
    %125 = arith.select %38, %123, %124 : vector<64x512xi1>, vector<64x512xf32>
    %126 = arith.truncf %125 : vector<64x512xf32> to vector<64x512xbf16>
    %c0_53 = arith.constant 0 : index
    %c0_54 = arith.constant 0 : index
    %127 = vector.load %arg11[%c0_53, %c0_54] : memref<320x512xbf16, #tpu.memory_space<vmem>>, vector<64x512xbf16>
    tpu.vector_store %arg11[%c0_53, %c0_54], %126 {strides = array<i32>} : memref<320x512xbf16, #tpu.memory_space<vmem>>, vector<64x512xbf16>,
    %c6_i32_55 = arith.constant 6 : i32
    %128 = tpu.dynamic_rotate %122 by %c6_i32_55 dim 1 : vector<64x512xf32>, i32 -> vector<64x512xf32>
    %cst_56 = arith.constant 0.000000e+00 : f32
    %129 = vector.broadcast %cst_56 : f32 to vector<64x512xf32>
    %130 = arith.select %36, %128, %129 : vector<64x512xi1>, vector<64x512xf32>
    %131 = arith.truncf %130 : vector<64x512xf32> to vector<64x512xbf16>
    %c64_57 = arith.constant 64 : index
    %c0_58 = arith.constant 0 : index
    %132 = vector.load %arg11[%c64_57, %c0_58] : memref<320x512xbf16, #tpu.memory_space<vmem>>, vector<64x512xbf16>
    tpu.vector_store %arg11[%c64_57, %c0_58], %131 {strides = array<i32>} : memref<320x512xbf16, #tpu.memory_space<vmem>>, vector<64x512xbf16>,
    %c4_i32_59 = arith.constant 4 : i32
    %133 = tpu.dynamic_rotate %122 by %c4_i32_59 dim 1 : vector<64x512xf32>, i32 -> vector<64x512xf32>
    %cst_60 = arith.constant 0.000000e+00 : f32
    %134 = vector.broadcast %cst_60 : f32 to vector<64x512xf32>
    %135 = arith.select %34, %133, %134 : vector<64x512xi1>, vector<64x512xf32>
    %136 = arith.truncf %135 : vector<64x512xf32> to vector<64x512xbf16>
    %c128_61 = arith.constant 128 : index
    %c0_62 = arith.constant 0 : index
    %137 = vector.load %arg11[%c128_61, %c0_62] : memref<320x512xbf16, #tpu.memory_space<vmem>>, vector<64x512xbf16>
    tpu.vector_store %arg11[%c128_61, %c0_62], %136 {strides = array<i32>} : memref<320x512xbf16, #tpu.memory_space<vmem>>, vector<64x512xbf16>,
    %c2_i32_63 = arith.constant 2 : i32
    %138 = tpu.dynamic_rotate %122 by %c2_i32_63 dim 1 : vector<64x512xf32>, i32 -> vector<64x512xf32>
    %cst_64 = arith.constant 0.000000e+00 : f32
    %139 = vector.broadcast %cst_64 : f32 to vector<64x512xf32>
    %140 = arith.select %32, %138, %139 : vector<64x512xi1>, vector<64x512xf32>
    %141 = arith.truncf %140 : vector<64x512xf32> to vector<64x512xbf16>
    %c192_65 = arith.constant 192 : index
    %c0_66 = arith.constant 0 : index
    %142 = vector.load %arg11[%c192_65, %c0_66] : memref<320x512xbf16, #tpu.memory_space<vmem>>, vector<64x512xbf16>
    tpu.vector_store %arg11[%c192_65, %c0_66], %141 {strides = array<i32>} : memref<320x512xbf16, #tpu.memory_space<vmem>>, vector<64x512xbf16>,
    %143 = arith.truncf %122 : vector<64x512xf32> to vector<64x512xbf16>
    %c256_67 = arith.constant 256 : index
    %c0_68 = arith.constant 0 : index
    %144 = vector.load %arg11[%c256_67, %c0_68] : memref<320x512xbf16, #tpu.memory_space<vmem>>, vector<64x512xbf16>
    tpu.vector_store %arg11[%c256_67, %c0_68], %143 {strides = array<i32>} : memref<320x512xbf16, #tpu.memory_space<vmem>>, vector<64x512xbf16>,
    %c0_69 = arith.constant 0 : index
    %c0_70 = arith.constant 0 : index
    %145 = vector.load %arg4[%c0_69, %c0_70] : memref<64x320xbf16, #tpu.memory_space<vmem>>, vector<64x320xbf16>
    %c0_71 = arith.constant 0 : index
    %c0_72 = arith.constant 0 : index
    %146 = vector.load %arg11[%c0_71, %c0_72] : memref<320x512xbf16, #tpu.memory_space<vmem>>, vector<320x512xbf16>
    %cst_73 = arith.constant dense<0.000000e+00> : vector<64x512xf32>
    %147 = tpu.matmul %145, %146, %cst_73 {dimension_numbers = #tpu.dot_dimension_numbers<[1], [0], [0], [1], [0, 0, 1, 1], [], []>} : vector<64x320xbf16>, vector<320x512xbf16>, vector<64x512xf32> -> vector<64x512xf32>
    %148 = arith.negf %147 : vector<64x512xf32>
    %149 = math.exp %148 : vector<64x512xf32>
    %cst_74 = arith.constant 1.000000e+00 : f32
    %150 = vector.broadcast %cst_74 : f32 to vector<64x512xf32>
    %151 = arith.addf %150, %149 : vector<64x512xf32>
    %152 = arith.divf %150, %151 : vector<64x512xf32>
    %153 = arith.mulf %94, %152 : vector<64x512xf32>
    %cst_75 = arith.constant 0.000000e+00 : f32
    %154 = vector.broadcast %cst_75 : f32 to vector<64x512xf32>
    %155 = arith.cmpf oge, %153, %154 : vector<64x512xf32>
    %156 = vector.broadcast %9 : vector<64x1xf32> to vector<64x512xf32>
    %157 = arith.mulf %156, %153 : vector<64x512xf32>
    %158 = arith.select %155, %153, %157 : vector<64x512xi1>, vector<64x512xf32>
    %cst_76 = arith.constant dense<0.000000e+00> : vector<64x8xf32>
    %159 = tpu.matmul %158, %12, %cst_76 {dimension_numbers = #tpu.dot_dimension_numbers<[1], [0], [0], [1], [0, 0, 1, 1], [], []>} : vector<64x512xf32>, vector<512x8xf32>, vector<64x8xf32> -> vector<64x8xf32>
    %160 = arith.mulf %158, %158 : vector<64x512xf32>
    %cst_77 = arith.constant dense<0.000000e+00> : vector<64x8xf32>
    %161 = tpu.matmul %160, %12, %cst_77 {dimension_numbers = #tpu.dot_dimension_numbers<[1], [0], [0], [1], [0, 0, 1, 1], [], []>} : vector<64x512xf32>, vector<512x8xf32>, vector<64x8xf32> -> vector<64x8xf32>
    %cst_78 = arith.constant 7.812500e-03 : f32
    %162 = vector.broadcast %cst_78 : f32 to vector<64x8xf32>
    %163 = arith.mulf %159, %162 : vector<64x8xf32>
    %cst_79 = arith.constant 7.812500e-03 : f32
    %164 = vector.broadcast %cst_79 : f32 to vector<64x8xf32>
    %165 = arith.mulf %161, %164 : vector<64x8xf32>
    %166 = arith.mulf %163, %163 : vector<64x8xf32>
    %167 = arith.subf %165, %166 : vector<64x8xf32>
    %cst_80 = arith.constant 0.000000e+00 : f32
    %168 = vector.broadcast %cst_80 : f32 to vector<64x8xf32>
    %169 = arith.maximumf %167, %168 : vector<64x8xf32>
    %cst_81 = arith.constant 9.99999974E-6 : f32
    %170 = vector.broadcast %cst_81 : f32 to vector<64x8xf32>
    %171 = arith.addf %169, %170 : vector<64x8xf32>
    %172 = math.rsqrt %171 : vector<64x8xf32>
    %173 = vector.broadcast %10 : vector<64x1xf32> to vector<64x8xf32>
    %174 = arith.mulf %173, %172 : vector<64x8xf32>
    %175 = arith.mulf %163, %174 : vector<64x8xf32>
    %176 = vector.broadcast %11 : vector<64x1xf32> to vector<64x8xf32>
    %177 = arith.subf %176, %175 : vector<64x8xf32>
    %cst_82 = arith.constant dense<0.000000e+00> : vector<64x512xf32>
    %178 = tpu.matmul %174, %13, %cst_82 {dimension_numbers = #tpu.dot_dimension_numbers<[1], [0], [0], [1], [0, 0, 1, 1], [], []>} : vector<64x8xf32>, vector<8x512xf32>, vector<64x512xf32> -> vector<64x512xf32>
    %cst_83 = arith.constant dense<0.000000e+00> : vector<64x512xf32>
    %179 = tpu.matmul %177, %13, %cst_83 {dimension_numbers = #tpu.dot_dimension_numbers<[1], [0], [0], [1], [0, 0, 1, 1], [], []>} : vector<64x8xf32>, vector<8x512xf32>, vector<64x512xf32> -> vector<64x512xf32>
    %180 = arith.mulf %158, %178 : vector<64x512xf32>
    %181 = arith.addf %180, %179 : vector<64x512xf32>
    %182 = arith.truncf %181 : vector<64x512xf32> to vector<64x512xbf16>
    %cst_84 = arith.constant dense<0.000000e+00> : vector<32x512xf32>
    %183 = tpu.matmul %1, %182, %cst_84 {dimension_numbers = #tpu.dot_dimension_numbers<[1], [0], [0], [1], [0, 0, 1, 1], [], []>} : vector<32x64xbf16>, vector<64x512xbf16>, vector<32x512xf32> -> vector<32x512xf32>
    %c0_85 = arith.constant 0 : index
    %c0_86 = arith.constant 0 : index
    %184 = vector.load %arg1[%c0_85, %c0_86] : memref<32x512xf32, #tpu.memory_space<vmem>>, vector<32x512xf32>
    %185 = arith.addf %183, %184 : vector<32x512xf32>
    %c0_87 = arith.constant 0 : index
    %c0_88 = arith.constant 0 : index
    %186 = vector.load %arg9[%c0_87, %c0_88] : memref<32x512xf32, #tpu.memory_space<vmem>>, vector<32x512xf32>
    tpu.vector_store %arg9[%c0_87, %c0_88], %185 {strides = array<i32>} : memref<32x512xf32, #tpu.memory_space<vmem>>, vector<32x512xf32>,
    return
  }
  func.func @transform_0(%arg0: i32) -> (i32, i32) {
    %c0_i32 = arith.constant 0 : i32
    %c0_i32_0 = arith.constant 0 : i32
    return %c0_i32, %arg0 : i32, i32
  }
  func.func @transform_1(%arg0: i32) -> (i32, i32) {
    %c0_i32 = arith.constant 0 : i32
    %c0_i32_0 = arith.constant 0 : i32
    %c0_i32_1 = arith.constant 0 : i32
    return %c0_i32, %c0_i32_0 : i32, i32
  }
  func.func @transform_2(%arg0: i32) -> (i32, i32) {
    %c0_i32 = arith.constant 0 : i32
    %c0_i32_0 = arith.constant 0 : i32
    %c0_i32_1 = arith.constant 0 : i32
    return %c0_i32, %c0_i32_0 : i32, i32
  }
  func.func @transform_3(%arg0: i32) -> (i32, i32) {
    %c0_i32 = arith.constant 0 : i32
    %c0_i32_0 = arith.constant 0 : i32
    %c0_i32_1 = arith.constant 0 : i32
    return %c0_i32, %c0_i32_0 : i32, i32
  }
  func.func @transform_4(%arg0: i32) -> (i32, i32) {
    %c0_i32 = arith.constant 0 : i32
    %c0_i32_0 = arith.constant 0 : i32
    %c0_i32_1 = arith.constant 0 : i32
    return %c0_i32, %c0_i32_0 : i32, i32
  }
  func.func @transform_5(%arg0: i32) -> (i32, i32) {
    %c0_i32 = arith.constant 0 : i32
    %c0_i32_0 = arith.constant 0 : i32
    %c0_i32_1 = arith.constant 0 : i32
    return %c0_i32, %c0_i32_0 : i32, i32
  }
  func.func @transform_6(%arg0: i32) -> (i32, i32) {
    %c0_i32 = arith.constant 0 : i32
    %c0_i32_0 = arith.constant 0 : i32
    %c0_i32_1 = arith.constant 0 : i32
    return %c0_i32, %c0_i32_0 : i32, i32
  }
  func.func @transform_7(%arg0: i32) -> (i32, i32) {
    %c0_i32 = arith.constant 0 : i32
    %c0_i32_0 = arith.constant 0 : i32
    %c0_i32_1 = arith.constant 0 : i32
    return %c0_i32, %c0_i32_0 : i32, i32
  }
  func.func @transform_8(%arg0: i32) -> (i32, i32) {
    %c0_i32 = arith.constant 0 : i32
    %c0_i32_0 = arith.constant 0 : i32
    return %c0_i32, %arg0 : i32, i32
  }
}

</mosaic_0001>

<llo_original>
// kernel: tpu_custom_call.1
$region0: #{tpu_custom_call.1}
  #allocation0 [shape = 'u32[]', space=smem, size = 0x4, offset = 0x4, fixed_abs, tag = 'smem constant byte address 0x4 - core index']
  #allocation1 [shape = 'u32[72,128]{1,0:T(1,128)}', space=vmem, size = 0x9000, scoped, tag = 'internal scratch']
  #allocation2 [shape = 'bf16[320,512]{1,0:T(8,128)(2,1)}', space=vmem, size = 0x50000, scoped, tag = 'scratch operand']
  #allocation3 [shape = 'bf16[320,512]{1,0:T(8,128)(2,1)}', space=vmem, size = 0x50000, scoped, tag = 'scratch operand']
  %s0 = inlined_call_operand.vmem [shape: f32[32,1024], index: 0, kind: input, shape index: {}]
  %s1 = inlined_call_operand.vmem [shape: bf16[64,32], index: 1, kind: input, shape index: {}]
  %s2 = inlined_call_operand.vmem [shape: bf16[64,320], index: 2, kind: input, shape index: {}]
  %s3 = inlined_call_operand.vmem [shape: bf16[64,320], index: 3, kind: input, shape index: {}]
  %s4 = inlined_call_operand.vmem [shape: bf16[32,64], index: 4, kind: input, shape index: {}]
  %s5 = inlined_call_operand.vmem [shape: f32[64,9], index: 5, kind: input, shape index: {}]
  %s6 = inlined_call_operand.vmem [shape: f32[512,8], index: 6, kind: input, shape index: {}]
  %s7 = inlined_call_operand.vmem [shape: f32[8,512], index: 7, kind: input, shape index: {}]
  %s8 = inlined_call_operand.hbm [shape: f32[32,1024], index: 8, kind: output, shape index: {}]
  %s9 = sld [smem:[#allocation0]]
  $region88: #{tpu_custom_call.1} parent=0
    _
  %s11 = ssub.s32 1, %s9
  %s12 = scalar_select 0, %s11, %s9
  $region1: #{tpu_custom_call.1} parent=0
    #allocation4 [shape = 'u8[131072]{0}', space=vmem, size = 0x20000, scoped, tag = 'input window, operand 0']
    #allocation5 [shape = 'u8[131072]{0}', space=vmem, size = 0x20000, scoped, tag = 'output window, operand 0']
    #allocation6 [shape = 's32[2]{0}', space=sflag, size = 0x8, scoped, tag = 'scoped memory for tpu_custom_call.1']
    %13 = vsyncpa [#allocation6], 0
    %s14 = scalar_lea.sflag [#allocation6], 1
    %15 = vsyncpa %s14, 0
    loop: start=0, step=1, limit=4
    $region2: #{tpu_custom_call.1} parent=1 // loop_pre_header
      _
    $region3: #{tpu_custom_call.1} parent=1 // loop_header
      %s17 = sphi 0, %s21
      %p18 = scmp.ge.s32.totalorder %s17, 4
      %s27 = sphi 0, %s29
      %s30 = sphi 0, %s27
      %s31 = sphi 0, %s30
      %s47 = sphi 0, %s31
      %s51 = sphi 0, %s51
      %s53 = sphi 0, %s51
      %s54 = sphi 0, %s53
      %s68 = sphi 0, %s54
      %s72 = sphi 0, %s72
      %s74 = sphi 0, %s72
      %s75 = sphi 0, %s74
      %s89 = sphi 0, %s75
      %s93 = sphi 0, %s93
      %s95 = sphi 0, %s93
      %s96 = sphi 0, %s95
      %s110 = sphi 0, %s96
      %s114 = sphi 0, %s114
      %s116 = sphi 0, %s114
      %s117 = sphi 0, %s116
      %s131 = sphi 0, %s117
      %s135 = sphi 0, %s135
      %s137 = sphi 0, %s135
      %s138 = sphi 0, %s137
      %s152 = sphi 0, %s138
      %s156 = sphi 0, %s156
      %s158 = sphi 0, %s156
      %s159 = sphi 0, %s158
      %s173 = sphi 0, %s159
      %s177 = sphi 0, %s177
      %s179 = sphi 0, %s177
      %s180 = sphi 0, %s179
      %s194 = sphi 0, %s180
      %s200 = sphi 0, %s202
      %s203 = sphi 0, %s200
      %s204 = sphi 0, %s203
      %s220 = sphi 0, %s204
    $region4: #{tpu_custom_call.1} parent=1 // loop_header_branch
      %20 = sbr.rel (%p18) target = $region8
    $region5: #{tpu_custom_call.1} parent=1 // loop_body
      %s22 = ssub.s32 %s17, 1
      %s23 = ssub.s32 %s17, 2
      %s24 = sadd.s32 %s17, 1
      %s25 = ssub.s32 %s17, %s24
      %p26 = scmp.eq.s32.totalorder %s25, 0
      %s28 = sadd.s32 %s27, 1
      %s29 = scalar_select %p26, %s27, %s28
      %p32 = pneg %p26
      %p33 = scmp.eq.s32.totalorder %s17, 1
      %p34 = por %p32, %p33
      %p35 = scmp.ne.s32.totalorder %s27, %s30
      %p36 = scmp.eq.s32.totalorder %s17, 0
      %p37 = por %p35, %p36
      %p38 = scmp.ne.s32.totalorder %s27, %s30
      %p39 = scmp.eq.s32.totalorder %s22, 1
      %p40 = por %p38, %p39
      %p41 = scmp.ne.s32.totalorder %s30, %s31
      %p42 = scmp.eq.s32.totalorder %s22, 0
      %p43 = por %p41, %p42
      %p44 = scmp.ne.s32.totalorder %s30, %s31
      %p45 = scmp.eq.s32.totalorder %s23, 1
      %p46 = por %p44, %p45
      %p48 = scmp.ne.s32.totalorder %s31, %s47
      %p49 = scmp.eq.s32.totalorder %s23, 0
      %p50 = por %p48, %p49
      %s52 = sadd.s32 %s51, 1
      %p55 = scmp.eq.s32.totalorder %s17, 1
      %p56 = scmp.ne.s32.totalorder %s51, %s53
      %p57 = scmp.eq.s32.totalorder %s17, 0
      %p58 = por %p56, %p57
      %p59 = scmp.ne.s32.totalorder %s51, %s53
      %p60 = scmp.eq.s32.totalorder %s22, 1
      %p61 = por %p59, %p60
      %p62 = scmp.ne.s32.totalorder %s53, %s54
      %p63 = scmp.eq.s32.totalorder %s22, 0
      %p64 = por %p62, %p63
      %p65 = scmp.ne.s32.totalorder %s53, %s54
      %p66 = scmp.eq.s32.totalorder %s23, 1
      %p67 = por %p65, %p66
      %p69 = scmp.ne.s32.totalorder %s54, %s68
      %p70 = scmp.eq.s32.totalorder %s23, 0
      %p71 = por %p69, %p70
      %s73 = sadd.s32 %s72, 1
      %p76 = scmp.eq.s32.totalorder %s17, 1
      %p77 = scmp.ne.s32.totalorder %s72, %s74
      %p78 = scmp.eq.s32.totalorder %s17, 0
      %p79 = por %p77, %p78
      %p80 = scmp.ne.s32.totalorder %s72, %s74
      %p81 = scmp.eq.s32.totalorder %s22, 1
      %p82 = por %p80, %p81
      %p83 = scmp.ne.s32.totalorder %s74, %s75
      %p84 = scmp.eq.s32.totalorder %s22, 0
      %p85 = por %p83, %p84
      %p86 = scmp.ne.s32.totalorder %s74, %s75
      %p87 = scmp.eq.s32.totalorder %s23, 1
      %p88 = por %p86, %p87
      %p90 = scmp.ne.s32.totalorder %s75, %s89
      %p91 = scmp.eq.s32.totalorder %s23, 0
      %p92 = por %p90, %p91
      %s94 = sadd.s32 %s93, 1
      %p97 = scmp.eq.s32.totalorder %s17, 1
      %p98 = scmp.ne.s32.totalorder %s93, %s95
      %p99 = scmp.eq.s32.totalorder %s17, 0
      %p100 = por %p98, %p99
      %p101 = scmp.ne.s32.totalorder %s93, %s95
      %p102 = scmp.eq.s32.totalorder %s22, 1
      %p103 = por %p101, %p102
      %p104 = scmp.ne.s32.totalorder %s95, %s96
      %p105 = scmp.eq.s32.totalorder %s22, 0
      %p106 = por %p104, %p105
      %p107 = scmp.ne.s32.totalorder %s95, %s96
      %p108 = scmp.eq.s32.totalorder %s23, 1
      %p109 = por %p107, %p108
      %p111 = scmp.ne.s32.totalorder %s96, %s110
      %p112 = scmp.eq.s32.totalorder %s23, 0
      %p113 = por %p111, %p112
      %s115 = sadd.s32 %s114, 1
      %p118 = scmp.eq.s32.totalorder %s17, 1
      %p119 = scmp.ne.s32.totalorder %s114, %s116
      %p120 = scmp.eq.s32.totalorder %s17, 0
      %p121 = por %p119, %p120
      %p122 = scmp.ne.s32.totalorder %s114, %s116
      %p123 = scmp.eq.s32.totalorder %s22, 1
      %p124 = por %p122, %p123
      %p125 = scmp.ne.s32.totalorder %s116, %s117
      %p126 = scmp.eq.s32.totalorder %s22, 0
      %p127 = por %p125, %p126
      %p128 = scmp.ne.s32.totalorder %s116, %s117
      %p129 = scmp.eq.s32.totalorder %s23, 1
      %p130 = por %p128, %p129
      %p132 = scmp.ne.s32.totalorder %s117, %s131
      %p133 = scmp.eq.s32.totalorder %s23, 0
      %p134 = por %p132, %p133
      %s136 = sadd.s32 %s135, 1
      %p139 = scmp.eq.s32.totalorder %s17, 1
      %p140 = scmp.ne.s32.totalorder %s135, %s137
      %p141 = scmp.eq.s32.totalorder %s17, 0
      %p142 = por %p140, %p141
      %p143 = scmp.ne.s32.totalorder %s135, %s137
      %p144 = scmp.eq.s32.totalorder %s22, 1
      %p145 = por %p143, %p144
      %p146 = scmp.ne.s32.totalorder %s137, %s138
      %p147 = scmp.eq.s32.totalorder %s22, 0
      %p148 = por %p146, %p147
      %p149 = scmp.ne.s32.totalorder %s137, %s138
      %p150 = scmp.eq.s32.totalorder %s23, 1
      %p151 = por %p149, %p150
      %p153 = scmp.ne.s32.totalorder %s138, %s152
      %p154 = scmp.eq.s32.totalorder %s23, 0
      %p155 = por %p153, %p154
      %s157 = sadd.s32 %s156, 1
      %p160 = scmp.eq.s32.totalorder %s17, 1
      %p161 = scmp.ne.s32.totalorder %s156, %s158
      %p162 = scmp.eq.s32.totalorder %s17, 0
      %p163 = por %p161, %p162
      %p164 = scmp.ne.s32.totalorder %s156, %s158
      %p165 = scmp.eq.s32.totalorder %s22, 1
      %p166 = por %p164, %p165
      %p167 = scmp.ne.s32.totalorder %s158, %s159
      %p168 = scmp.eq.s32.totalorder %s22, 0
      %p169 = por %p167, %p168
      %p170 = scmp.ne.s32.totalorder %s158, %s159
      %p171 = scmp.eq.s32.totalorder %s23, 1
      %p172 = por %p170, %p171
      %p174 = scmp.ne.s32.totalorder %s159, %s173
      %p175 = scmp.eq.s32.totalorder %s23, 0
      %p176 = por %p174, %p175
      %s178 = sadd.s32 %s177, 1
      %p181 = scmp.eq.s32.totalorder %s17, 1
      %p182 = scmp.ne.s32.totalorder %s177, %s179
      %p183 = scmp.eq.s32.totalorder %s17, 0
      %p184 = por %p182, %p183
      %p185 = scmp.ne.s32.totalorder %s177, %s179
      %p186 = scmp.eq.s32.totalorder %s22, 1
      %p187 = por %p185, %p186
      %p188 = scmp.ne.s32.totalorder %s179, %s180
      %p189 = scmp.eq.s32.totalorder %s22, 0
      %p190 = por %p188, %p189
      %p191 = scmp.ne.s32.totalorder %s179, %s180
      %p192 = scmp.eq.s32.totalorder %s23, 1
      %p193 = por %p191, %p192
      %p195 = scmp.ne.s32.totalorder %s180, %s194
      %p196 = scmp.eq.s32.totalorder %s23, 0
      %p197 = por %p195, %p196
      %s198 = ssub.s32 %s17, %s24
      %p199 = scmp.eq.s32.totalorder %s198, 0
      %s201 = sadd.s32 %s200, 1
      %s202 = scalar_select %p199, %s200, %s201
      %p205 = pneg %p199
      %p206 = scmp.eq.s32.totalorder %s17, 1
      %p207 = por %p205, %p206
      %p208 = scmp.ne.s32.totalorder %s200, %s203
      %p209 = scmp.eq.s32.totalorder %s17, 0
      %p210 = por %p208, %p209
      %p211 = scmp.ne.s32.totalorder %s200, %s203
      %p212 = scmp.eq.s32.totalorder %s22, 1
      %p213 = por %p211, %p212
      %p214 = scmp.ne.s32.totalorder %s203, %s204
      %p215 = scmp.eq.s32.totalorder %s22, 0
      %p216 = por %p214, %p215
      %p217 = scmp.ne.s32.totalorder %s203, %s204
      %p218 = scmp.eq.s32.totalorder %s23, 1
      %p219 = por %p217, %p218
      %p221 = scmp.ne.s32.totalorder %s204, %s220
      %p222 = scmp.eq.s32.totalorder %s23, 0
      %p223 = por %p221, %p222
      %p224 = scmp.le.s32.totalorder 1, %s17
      %p225 = scmp.lt.s32.totalorder %s17, 3
      %p226 = pnand %p224, %p225
      %p227 = pneg %p226
      // Predicated region
      $region9: #{tpu_custom_call.1} parent=5 // pred_check
        _
      $region10: #{tpu_custom_call.1} parent=5 // pred_check_branch
        %229 = sbr.rel (%p226) target = $region12
      $region11: #{tpu_custom_call.1} parent=5 // pred_region
        %s230 = ssub.s32 %s17, 1
        // Predicated region
        $region13: #{tpu_custom_call.1} parent=11 // pred_check
          %p231 = pneg %p64
        $region14: #{tpu_custom_call.1} parent=11 // pred_check_branch
          %233 = sbr.rel (%p231) target = $region16
        $region15: #{tpu_custom_call.1} parent=11 // pred_region
          _
        $region16: #{tpu_custom_call.1} parent=11 // pred_fallthru
          _
        // Predicated region
        $region17: #{tpu_custom_call.1} parent=11 // pred_check
          %p234 = pneg %p85
        $region18: #{tpu_custom_call.1} parent=11 // pred_check_branch
          %236 = sbr.rel (%p234) target = $region20
        $region19: #{tpu_custom_call.1} parent=11 // pred_region
          _
        $region20: #{tpu_custom_call.1} parent=11 // pred_fallthru
          _
        // Predicated region
        $region21: #{tpu_custom_call.1} parent=11 // pred_check
          %p237 = pneg %p106
        $region22: #{tpu_custom_call.1} parent=11 // pred_check_branch
          %239 = sbr.rel (%p237) target = $region24
        $region23: #{tpu_custom_call.1} parent=11 // pred_region
          _
        $region24: #{tpu_custom_call.1} parent=11 // pred_fallthru
          _
        // Predicated region
        $region25: #{tpu_custom_call.1} parent=11 // pred_check
          %p240 = pneg %p127
        $region26: #{tpu_custom_call.1} parent=11 // pred_check_branch
          %242 = sbr.rel (%p240) target = $region28
        $region27: #{tpu_custom_call.1} parent=11 // pred_region
          _
        $region28: #{tpu_custom_call.1} parent=11 // pred_fallthru
          _
        // Predicated region
        $region29: #{tpu_custom_call.1} parent=11 // pred_check
          %p243 = pneg %p148
        $region30: #{tpu_custom_call.1} parent=11 // pred_check_branch
          %245 = sbr.rel (%p243) target = $region32
        $region31: #{tpu_custom_call.1} parent=11 // pred_region
          _
        $region32: #{tpu_custom_call.1} parent=11 // pred_fallthru
          _
        // Predicated region
        $region33: #{tpu_custom_call.1} parent=11 // pred_check
          %p246 = pneg %p169
        $region34: #{tpu_custom_call.1} parent=11 // pred_check_branch
          %248 = sbr.rel (%p246) target = $region36
        $region35: #{tpu_custom_call.1} parent=11 // pred_region
          _
        $region36: #{tpu_custom_call.1} parent=11 // pred_fallthru
          _
        // Predicated region
        $region37: #{tpu_custom_call.1} parent=11 // pred_check
          %p249 = pneg %p190
        $region38: #{tpu_custom_call.1} parent=11 // pred_check_branch
          %251 = sbr.rel (%p249) target = $region40
        $region39: #{tpu_custom_call.1} parent=11 // pred_region
          _
        $region40: #{tpu_custom_call.1} parent=11 // pred_fallthru
          _
      $region12: #{tpu_custom_call.1} parent=5 // pred_fallthru
        _
      %p252 = scmp.lt.s32.totalorder %s17, 2
      // Predicated region
      $region41: #{tpu_custom_call.1} parent=5 // pred_check
        %p253 = pneg %p252
      $region42: #{tpu_custom_call.1} parent=5 // pred_check_branch
        %255 = sbr.rel (%p253) target = $region44
      $region43: #{tpu_custom_call.1} parent=5 // pred_region
        // Predicated region
        $region45: #{tpu_custom_call.1} parent=43 // pred_check
          %p256 = pneg %p37
        $region46: #{tpu_custom_call.1} parent=43 // pred_check_branch
          %258 = sbr.rel (%p256) target = $region48
        $region47: #{tpu_custom_call.1} parent=43 // pred_region
          %s259 = sand.u32 %s27, 1
          %s260 = sand.u32 %s27, 1
          %s261 = smul.addr %s260, 128
          %s262 = scalar_lea.vmem [#allocation4], %s261
          %s263 = smul.u32 4, %s17
          %s264 = smul.addr %s263, 8
          %s265 = scalar_lea.vmem %s0, %s264
          // Predicated region
          $region49: #{tpu_custom_call.1} parent=47 // pred_check
            _
          $region50: #{tpu_custom_call.1} parent=47 // pred_check_branch
            %267 = sbr.rel (0) target = $region52
          $region51: #{tpu_custom_call.1} parent=47 // pred_region
            // Predicated region
            $region53: #{tpu_custom_call.1} parent=51 // pred_check
              _
            $region54: #{tpu_custom_call.1} parent=51 // pred_check_branch
              %269 = sbr.rel (0) target = $region56
            $region55: #{tpu_custom_call.1} parent=51 // pred_region
              loop: start=0, step=1, limit=1
              $region57: #{tpu_custom_call.1} parent=55 // loop_pre_header
                _
              $region58: #{tpu_custom_call.1} parent=55 // loop_header
                %s271 = sphi 0, %s275
                %p272 = scmp.ge.s32.totalorder %s271, 1
                %s276 = sphi %s265, %s265
                %s277 = sphi %s262, %s262
              $region59: #{tpu_custom_call.1} parent=55 // loop_header_branch
                %274 = sbr.rel (%p272) target = $region63
              $region60: #{tpu_custom_call.1} parent=55 // loop_body
                %v278 = vld [vmem:[%s276] sm:$0xff]
                %279 = vst [vmem:[%s277] sm:$0xff] %v278
                %v280 = vld [vmem:[%s276 + $0x8] sm:$0xff]
                %281 = vst [vmem:[%s277 + $0x8] sm:$0xff] %v280
                %v282 = vld [vmem:[%s276 + $0x10] sm:$0xff]
                %283 = vst [vmem:[%s277 + $0x10] sm:$0xff] %v282
                %v284 = vld [vmem:[%s276 + $0x18] sm:$0xff]
                %285 = vst [vmem:[%s277 + $0x18] sm:$0xff] %v284
                %v286 = vld [vmem:[%s276 + $0x40] sm:$0xff]
                %287 = vst [vmem:[%s277 + $0x20] sm:$0xff] %v286
                %v288 = vld [vmem:[%s276 + $0x48] sm:$0xff]
                %289 = vst [vmem:[%s277 + $0x28] sm:$0xff] %v288
                %v290 = vld [vmem:[%s276 + $0x50] sm:$0xff]
                %291 = vst [vmem:[%s277 + $0x30] sm:$0xff] %v290
                %v292 = vld [vmem:[%s276 + $0x58] sm:$0xff]
                %293 = vst [vmem:[%s277 + $0x38] sm:$0xff] %v292
                %v294 = vld [vmem:[%s276 + $0x80] sm:$0xff]
                %295 = vst [vmem:[%s277 + $0x40] sm:$0xff] %v294
                %v296 = vld [vmem:[%s276 + $0x88] sm:$0xff]
                %297 = vst [vmem:[%s277 + $0x48] sm:$0xff] %v296
                %v298 = vld [vmem:[%s276 + $0x90] sm:$0xff]
                %299 = vst [vmem:[%s277 + $0x50] sm:$0xff] %v298
                %v300 = vld [vmem:[%s276 + $0x98] sm:$0xff]
                %301 = vst [vmem:[%s277 + $0x58] sm:$0xff] %v300
                %v302 = vld [vmem:[%s276 + $0xc0] sm:$0xff]
                %303 = vst [vmem:[%s277 + $0x60] sm:$0xff] %v302
                %v304 = vld [vmem:[%s276 + $0xc8] sm:$0xff]
                %305 = vst [vmem:[%s277 + $0x68] sm:$0xff] %v304
                %v306 = vld [vmem:[%s276 + $0xd0] sm:$0xff]
                %307 = vst [vmem:[%s277 + $0x70] sm:$0xff] %v306
                %v308 = vld [vmem:[%s276 + $0xd8] sm:$0xff]
                %309 = vst [vmem:[%s277 + $0x78] sm:$0xff] %v308
              $region61: #{tpu_custom_call.1} parent=55 // loop_footer
                %s275 = sadd.s32 1, %s271
              $region62: #{tpu_custom_call.1} parent=55 // loop_footer_branch
                %270 = sbr.rel target = $region58
              $region63: #{tpu_custom_call.1} parent=55 // loop_exit
                _
            $region56: #{tpu_custom_call.1} parent=51 // pred_fallthru
              _
            // Predicated region
            $region64: #{tpu_custom_call.1} parent=51 // pred_check
              _
            $region65: #{tpu_custom_call.1} parent=51 // pred_check_branch
              %311 = sbr.rel target = $region67
            $region66: #{tpu_custom_call.1} parent=51 // pred_region
              _
            $region67: #{tpu_custom_call.1} parent=51 // pred_fallthru
              _
          $region52: #{tpu_custom_call.1} parent=47 // pred_fallthru
            _
          %312 = vnop
        $region48: #{tpu_custom_call.1} parent=43 // pred_fallthru
          _
      $region44: #{tpu_custom_call.1} parent=5 // pred_fallthru
        _
      %p313 = scmp.le.s32.totalorder 1, %s17
      %p314 = scmp.lt.s32.totalorder %s17, 3
      %p315 = pnand %p313, %p314
      %p316 = pneg %p315
      // Predicated region
      $region68: #{tpu_custom_call.1} parent=5 // pred_check
        _
      $region69: #{tpu_custom_call.1} parent=5 // pred_check_branch
        %318 = sbr.rel (%p315) target = $region71
      $region70: #{tpu_custom_call.1} parent=5 // pred_region
        %s319 = ssub.s32 %s17, 1
        %s320 = sand.u32 %s30, 1
        %s321 = sand.u32 %s30, 1
        %s322 = smul.addr %s321, 128
        %s323 = scalar_lea.vmem [#allocation4], %s322
        // Predicated region
        $region72: #{tpu_custom_call.1} parent=70 // pred_check
          %p324 = pneg %p43
        $region73: #{tpu_custom_call.1} parent=70 // pred_check_branch
          %326 = sbr.rel (%p324) target = $region75
        $region74: #{tpu_custom_call.1} parent=70 // pred_region
          _
        $region75: #{tpu_custom_call.1} parent=70 // pred_fallthru
          _
        %s327 = sand.u32 %s30, 1
        %s328 = sand.u32 %s30, 1
        %s329 = smul.addr %s328, 128
        %s330 = scalar_lea.vmem [#allocation4], %s329
        %p331 = pneg %p43
        %p332 = pneg %p40
        %p333 = pneg %p64
        %p334 = pneg %p61
        %p335 = pneg %p85
        %p336 = pneg %p82
        %p337 = pneg %p106
        %p338 = pneg %p103
        %p339 = pneg %p127
        %p340 = pneg %p124
        %p341 = pneg %p148
        %p342 = pneg %p145
        %p343 = pneg %p169
        %p344 = pneg %p166
        %p345 = pneg %p190
        %p346 = pneg %p187
        %p347 = pneg %p216
        %p348 = pneg %p213
        %s349 = sand.u32 %s203, 1
        %s350 = scalar_lea.sflag [#allocation6], %s349
        %s351 = sand.u32 %s203, 1
        %s352 = smul.addr %s351, 128
        %s353 = scalar_lea.vmem [#allocation5], %s352
        %s354 = smul.u32 4, %s22
        %s355 = smul.u32 4, %s22
        %v357 = vld [vmem:[%s1] sm:$0xf]
        %v358 = vld [vmem:[%s1 + $0x4] sm:$0xf]
        %v359 = vld [vmem:[%s1 + $0x8] sm:$0xf]
        %v360 = vld [vmem:[%s1 + $0xc] sm:$0xf]
        %v361 = vld [vmem:[%s1 + $0x10] sm:$0xf]
        %v362 = vld [vmem:[%s1 + $0x14] sm:$0xf]
        %v363 = vld [vmem:[%s1 + $0x18] sm:$0xf]
        %v364 = vld [vmem:[%s1 + $0x1c] sm:$0xf]
        %v365 = vld [vmem:[%s4] sm:$0xf]
        %v366 = vld [vmem:[%s4 + $0x4] sm:$0xf]
        %v367 = vld [vmem:[%s4 + $0x8] sm:$0xf]
        %v368 = vld [vmem:[%s4 + $0xc] sm:$0xf]
        %v369 = vld [vmem:[%s5] sm:$0xff]
        %v370 = vld [vmem:[%s5 + $0x8] sm:$0xff]
        %v371 = vld [vmem:[%s5 + $0x10] sm:$0xff]
        %v372 = vld [vmem:[%s5 + $0x18] sm:$0xff]
        %v373 = vld [vmem:[%s5 + $0x20] sm:$0xff]
        %v374 = vld [vmem:[%s5 + $0x28] sm:$0xff]
        %v375 = vld [vmem:[%s5 + $0x30] sm:$0xff]
        %v376 = vld [vmem:[%s5 + $0x38] sm:$0xff]
        %v377 = vld [vmem:[%s6] sm:$0xff]
        %v378 = vld [vmem:[%s6 + $0x8] sm:$0xff]
        %v379 = vld [vmem:[%s6 + $0x10] sm:$0xff]
        %v380 = vld [vmem:[%s6 + $0x18] sm:$0xff]
        %v381 = vld [vmem:[%s6 + $0x20] sm:$0xff]
        %v382 = vld [vmem:[%s6 + $0x28] sm:$0xff]
        %v383 = vld [vmem:[%s6 + $0x30] sm:$0xff]
        %v384 = vld [vmem:[%s6 + $0x38] sm:$0xff]
        %v385 = vld [vmem:[%s6 + $0x40] sm:$0xff]
        %v386 = vld [vmem:[%s6 + $0x48] sm:$0xff]
        %v387 = vld [vmem:[%s6 + $0x50] sm:$0xff]
        %v388 = vld [vmem:[%s6 + $0x58] sm:$0xff]
        %v389 = vld [vmem:[%s6 + $0x60] sm:$0xff]
        %v390 = vld [vmem:[%s6 + $0x68] sm:$0xff]
        %v391 = vld [vmem:[%s6 + $0x70] sm:$0xff]
        %v392 = vld [vmem:[%s6 + $0x78] sm:$0xff]
        %v393 = vld [vmem:[%s6 + $0x80] sm:$0xff]
        %v394 = vld [vmem:[%s6 + $0x88] sm:$0xff]
        %v395 = vld [vmem:[%s6 + $0x90] sm:$0xff]
        %v396 = vld [vmem:[%s6 + $0x98] sm:$0xff]
        %v397 = vld [vmem:[%s6 + $0xa0] sm:$0xff]
        %v398 = vld [vmem:[%s6 + $0xa8] sm:$0xff]
        %v399 = vld [vmem:[%s6 + $0xb0] sm:$0xff]
        %v400 = vld [vmem:[%s6 + $0xb8] sm:$0xff]
        %v401 = vld [vmem:[%s6 + $0xc0] sm:$0xff]
        %v402 = vld [vmem:[%s6 + $0xc8] sm:$0xff]
        %v403 = vld [vmem:[%s6 + $0xd0] sm:$0xff]
        %v404 = vld [vmem:[%s6 + $0xd8] sm:$0xff]
        %v405 = vld [vmem:[%s6 + $0xe0] sm:$0xff]
        %v406 = vld [vmem:[%s6 + $0xe8] sm:$0xff]
        %v407 = vld [vmem:[%s6 + $0xf0] sm:$0xff]
        %v408 = vld [vmem:[%s6 + $0xf8] sm:$0xff]
        %v409 = vld [vmem:[%s6 + $0x100] sm:$0xff]
        %v410 = vld [vmem:[%s6 + $0x108] sm:$0xff]
        %v411 = vld [vmem:[%s6 + $0x110] sm:$0xff]
        %v412 = vld [vmem:[%s6 + $0x118] sm:$0xff]
        %v413 = vld [vmem:[%s6 + $0x120] sm:$0xff]
        %v414 = vld [vmem:[%s6 + $0x128] sm:$0xff]
        %v415 = vld [vmem:[%s6 + $0x130] sm:$0xff]
        %v416 = vld [vmem:[%s6 + $0x138] sm:$0xff]
        %v417 = vld [vmem:[%s6 + $0x140] sm:$0xff]
        %v418 = vld [vmem:[%s6 + $0x148] sm:$0xff]
        %v419 = vld [vmem:[%s6 + $0x150] sm:$0xff]
        %v420 = vld [vmem:[%s6 + $0x158] sm:$0xff]
        %v421 = vld [vmem:[%s6 + $0x160] sm:$0xff]
        %v422 = vld [vmem:[%s6 + $0x168] sm:$0xff]
        %v423 = vld [vmem:[%s6 + $0x170] sm:$0xff]
        %v424 = vld [vmem:[%s6 + $0x178] sm:$0xff]
        %v425 = vld [vmem:[%s6 + $0x180] sm:$0xff]
        %v426 = vld [vmem:[%s6 + $0x188] sm:$0xff]
        %v427 = vld [vmem:[%s6 + $0x190] sm:$0xff]
        %v428 = vld [vmem:[%s6 + $0x198] sm:$0xff]
        %v429 = vld [vmem:[%s6 + $0x1a0] sm:$0xff]
        %v430 = vld [vmem:[%s6 + $0x1a8] sm:$0xff]
        %v431 = vld [vmem:[%s6 + $0x1b0] sm:$0xff]
        %v432 = vld [vmem:[%s6 + $0x1b8] sm:$0xff]
        %v433 = vld [vmem:[%s6 + $0x1c0] sm:$0xff]
        %v434 = vld [vmem:[%s6 + $0x1c8] sm:$0xff]
        %v435 = vld [vmem:[%s6 + $0x1d0] sm:$0xff]
        %v436 = vld [vmem:[%s6 + $0x1d8] sm:$0xff]
        %v437 = vld [vmem:[%s6 + $0x1e0] sm:$0xff]
        %v438 = vld [vmem:[%s6 + $0x1e8] sm:$0xff]
        %v439 = vld [vmem:[%s6 + $0x1f0] sm:$0xff]
        %v440 = vld [vmem:[%s6 + $0x1f8] sm:$0xff]
        %v441 = vld [vmem:[%s7] sm:$0xff]
        %v442 = vld [vmem:[%s7 + $0x8] sm:$0xff]
        %v443 = vld [vmem:[%s7 + $0x10] sm:$0xff]
        %v444 = vld [vmem:[%s7 + $0x18] sm:$0xff]
        %v445 = vlaneseq
        %v446 = vand.u32 %v445, 127
        %v447 = vadd.s32 %v446, 128
        %v448 = vadd.s32 %v446, 256
        %v449 = vadd.s32 %v446, 384
        %vm450 = vcmp.lt.s32.totalorder %v446, 0
        %v451 = vsub.s32 0, %v446
        %v452 = vsel %vm450, %v451, %v446
        %v453 = vshrl.u32 %v452, 7
        %v454 = vand.u32 %v452, 127
        %v455 = vsub.s32 0, %v454
        %v456 = vsel %vm450, %v455, %v454
        %vm457 = vcmp.lt.s32.totalorder %v447, 0
        %v458 = vsub.s32 0, %v447
        %v459 = vsel %vm457, %v458, %v447
        %v460 = vshrl.u32 %v459, 7
        %v461 = vand.u32 %v459, 127
        %v462 = vsub.s32 0, %v461
        %v463 = vsel %vm457, %v462, %v461
        %vm464 = vcmp.lt.s32.totalorder %v448, 0
        %v465 = vsub.s32 0, %v448
        %v466 = vsel %vm464, %v465, %v448
        %v467 = vshrl.u32 %v466, 7
        %v468 = vand.u32 %v466, 127
        %v469 = vsub.s32 0, %v468
        %v470 = vsel %vm464, %v469, %v468
        %vm471 = vcmp.lt.s32.totalorder %v449, 0
        %v472 = vsub.s32 0, %v449
        %v473 = vsel %vm471, %v472, %v449
        %v474 = vshrl.u32 %v473, 7
        %v475 = vand.u32 %v473, 127
        %v476 = vsub.s32 0, %v475
        %v477 = vsel %vm471, %v476, %v475
        %vm478 = vcmp.ne.s32.totalorder %v456, 0
        %vm479 = vcmp.ne.s32.totalorder %v463, 0
        %vm480 = vcmp.ne.s32.totalorder %v470, 0
        %vm481 = vcmp.ne.s32.totalorder %v477, 0
        %vm482 = vcmp.lt.s32.totalorder %v456, 0
        %vm483 = vcmp.lt.s32.totalorder %v463, 0
        %vm484 = vcmp.lt.s32.totalorder %v470, 0
        %vm485 = vcmp.lt.s32.totalorder %v477, 0
        %vm486 = vmand %vm482, %vm478
        %vm487 = vmand %vm483, %vm479
        %vm488 = vmand %vm484, %vm480
        %vm489 = vmand %vm485, %vm481
        %v490 = vadd.s32 %v456, 128
        %v491 = vadd.s32 %v463, 128
        %v492 = vadd.s32 %v470, 128
        %v493 = vadd.s32 %v477, 128
        %v494 = vsel %vm486, %v490, %v456
        %v495 = vsel %vm487, %v491, %v463
        %v496 = vsel %vm488, %v492, %v470
        %v497 = vsel %vm489, %v493, %v477
        %vm498 = vcmp.ge.s32.totalorder %v494, 2
        %vm499 = vcmp.ge.s32.totalorder %v495, 2
        %vm500 = vcmp.ge.s32.totalorder %v496, 2
        %vm501 = vcmp.ge.s32.totalorder %v497, 2
        %vm502 = vcmp.ge.s32.totalorder %v494, 4
        %vm503 = vcmp.ge.s32.totalorder %v495, 4
        %vm504 = vcmp.ge.s32.totalorder %v496, 4
        %vm505 = vcmp.ge.s32.totalorder %v497, 4
        %vm506 = vcmp.ge.s32.totalorder %v494, 6
        %vm507 = vcmp.ge.s32.totalorder %v495, 6
        %vm508 = vcmp.ge.s32.totalorder %v496, 6
        %vm509 = vcmp.ge.s32.totalorder %v497, 6
        %vm510 = vcmp.ge.s32.totalorder %v494, 8
        %vm511 = vcmp.ge.s32.totalorder %v495, 8
        %vm512 = vcmp.ge.s32.totalorder %v496, 8
        %vm513 = vcmp.ge.s32.totalorder %v497, 8
        %v514 = vld [vmem:[%s323] sm:$0xff]
        %v515 = vld [vmem:[%s323 + $0x8] sm:$0xff]
        %v516 = vld [vmem:[%s323 + $0x10] sm:$0xff]
        %v517 = vld [vmem:[%s323 + $0x18] sm:$0xff]
        %v518 = vld [vmem:[%s323 + $0x20] sm:$0xff]
        %v519 = vld [vmem:[%s323 + $0x28] sm:$0xff]
        %v520 = vld [vmem:[%s323 + $0x30] sm:$0xff]
        %v521 = vld [vmem:[%s323 + $0x38] sm:$0xff]
        %v522 = vld [vmem:[%s323 + $0x40] sm:$0xff]
        %v523 = vld [vmem:[%s323 + $0x48] sm:$0xff]
        %v524 = vld [vmem:[%s323 + $0x50] sm:$0xff]
        %v525 = vld [vmem:[%s323 + $0x58] sm:$0xff]
        %v526 = vld [vmem:[%s323 + $0x60] sm:$0xff]
        %v527 = vld [vmem:[%s323 + $0x68] sm:$0xff]
        %v528 = vld [vmem:[%s323 + $0x70] sm:$0xff]
        %v529 = vld [vmem:[%s323 + $0x78] sm:$0xff]
        %v530 = vpack.c.bf16 %v518, %v514
        %v531 = vpack.c.bf16 %v519, %v515
        %v532 = vpack.c.bf16 %v520, %v516
        %v533 = vpack.c.bf16 %v521, %v517
        %v534 = vpack.c.bf16 %v526, %v522
        %v535 = vpack.c.bf16 %v527, %v523
        %v536 = vpack.c.bf16 %v528, %v524
        %v537 = vpack.c.bf16 %v529, %v525
        %v546 = vunpack.c.l.b16 %v357
        %v547 = vunpack.c.l.b16 %v358
        %v548 = vunpack.c.l.b16 %v359
        %v549 = vunpack.c.l.b16 %v360
        %v550 = vunpack.c.l.b16 %v361
        %v551 = vunpack.c.l.b16 %v362
        %v552 = vunpack.c.l.b16 %v363
        %v553 = vunpack.c.l.b16 %v364
        %v554 = vpack.c.b16 %v547, %v546
        %v555 = vpack.c.b16 %v549, %v548
        %v556 = vpack.c.b16 %v551, %v550
        %v557 = vpack.c.b16 %v553, %v552
        %vm558 = vcmask 261120
        %v560 = vsel %vm558, %v554, 0
        %v563 = vsel %vm558, %v555, 0
        %v566 = vsel %vm558, %v556, 0
        %v569 = vsel %vm558, %v557, 0
        %571 = vmatpush.bf16.msra.mxu0 0
        %572 = vmatpush.bf16.msra.mxu0 0
        %573 = vmatpush.bf16.msra.mxu0 0
        %574 = vmatpush.bf16.msra.mxu0 0
        %575 = vmatpush.bf16.msra.mxu0 0
        %576 = vmatpush.bf16.msra.mxu0 0
        %577 = vmatpush.bf16.msra.mxu0 %v534
        %578 = vmatpush.bf16.msra.mxu0 %v530
        %579 = vmatmul.bf16.gmra.mxu0 %v560
        %v580 = vpop.f32.mrf.mxu0
        %v581 = vadd.f32 0.0, %v580
        %v582 = vpop.f32.mrf.mxu0
        %v583 = vadd.f32 0.0, %v582
        %584 = vmatmul.bf16.gmra.mxu0 %v563
        %v585 = vpop.f32.mrf.mxu0
        %v586 = vadd.f32 0.0, %v585
        %v587 = vpop.f32.mrf.mxu0
        %v588 = vadd.f32 0.0, %v587
        %589 = vmatmul.bf16.gmra.mxu0 %v566
        %v590 = vpop.f32.mrf.mxu0
        %v591 = vadd.f32 0.0, %v590
        %v592 = vpop.f32.mrf.mxu0
        %v593 = vadd.f32 0.0, %v592
        %594 = vmatmul.bf16.gmra.mxu0 %v569
        %v595 = vpop.f32.mrf.mxu0
        %v596 = vadd.f32 0.0, %v595
        %v597 = vpop.f32.mrf.mxu0
        %v598 = vadd.f32 0.0, %v597
        %599 = vdwg.mxu0
        %600 = vmatpush.bf16.msra.mxu0 0
        %601 = vmatpush.bf16.msra.mxu0 0
        %602 = vmatpush.bf16.msra.mxu0 0
        %603 = vmatpush.bf16.msra.mxu0 0
        %604 = vmatpush.bf16.msra.mxu0 0
        %605 = vmatpush.bf16.msra.mxu0 0
        %606 = vmatpush.bf16.msra.mxu0 %v535
        %607 = vmatpush.bf16.msra.mxu0 %v531
        %608 = vmatmul.bf16.gmra.mxu0 %v560
        %v609 = vpop.f32.mrf.mxu0
        %v610 = vadd.f32 0.0, %v609
        %v611 = vpop.f32.mrf.mxu0
        %v612 = vadd.f32 0.0, %v611
        %613 = vmatmul.bf16.gmra.mxu0 %v563
        %v614 = vpop.f32.mrf.mxu0
        %v615 = vadd.f32 0.0, %v614
        %v616 = vpop.f32.mrf.mxu0
        %v617 = vadd.f32 0.0, %v616
        %618 = vmatmul.bf16.gmra.mxu0 %v566
        %v619 = vpop.f32.mrf.mxu0
        %v620 = vadd.f32 0.0, %v619
        %v621 = vpop.f32.mrf.mxu0
        %v622 = vadd.f32 0.0, %v621
        %623 = vmatmul.bf16.gmra.mxu0 %v569
        %v624 = vpop.f32.mrf.mxu0
        %v625 = vadd.f32 0.0, %v624
        %v626 = vpop.f32.mrf.mxu0
        %v627 = vadd.f32 0.0, %v626
        %628 = vdwg.mxu0
        %629 = vmatpush.bf16.msra.mxu0 0
        %630 = vmatpush.bf16.msra.mxu0 0
        %631 = vmatpush.bf16.msra.mxu0 0
        %632 = vmatpush.bf16.msra.mxu0 0
        %633 = vmatpush.bf16.msra.mxu0 0
        %634 = vmatpush.bf16.msra.mxu0 0
        %635 = vmatpush.bf16.msra.mxu0 %v536
        %636 = vmatpush.bf16.msra.mxu0 %v532
        %637 = vmatmul.bf16.gmra.mxu0 %v560
        %v638 = vpop.f32.mrf.mxu0
        %v639 = vadd.f32 0.0, %v638
        %v640 = vpop.f32.mrf.mxu0
        %v641 = vadd.f32 0.0, %v640
        %642 = vmatmul.bf16.gmra.mxu0 %v563
        %v643 = vpop.f32.mrf.mxu0
        %v644 = vadd.f32 0.0, %v643
        %v645 = vpop.f32.mrf.mxu0
        %v646 = vadd.f32 0.0, %v645
        %647 = vmatmul.bf16.gmra.mxu0 %v566
        %v648 = vpop.f32.mrf.mxu0
        %v649 = vadd.f32 0.0, %v648
        %v650 = vpop.f32.mrf.mxu0
        %v651 = vadd.f32 0.0, %v650
        %652 = vmatmul.bf16.gmra.mxu0 %v569
        %v653 = vpop.f32.mrf.mxu0
        %v654 = vadd.f32 0.0, %v653
        %v655 = vpop.f32.mrf.mxu0
        %v656 = vadd.f32 0.0, %v655
        %657 = vdwg.mxu0
        %658 = vmatpush.bf16.msra.mxu0 0
        %659 = vmatpush.bf16.msra.mxu0 0
        %660 = vmatpush.bf16.msra.mxu0 0
        %661 = vmatpush.bf16.msra.mxu0 0
        %662 = vmatpush.bf16.msra.mxu0 0
        %663 = vmatpush.bf16.msra.mxu0 0
        %664 = vmatpush.bf16.msra.mxu0 %v537
        %665 = vmatpush.bf16.msra.mxu0 %v533
        %666 = vmatmul.bf16.gmra.mxu0 %v560
        %v667 = vpop.f32.mrf.mxu0
        %v668 = vadd.f32 0.0, %v667
        %v669 = vpop.f32.mrf.mxu0
        %v670 = vadd.f32 0.0, %v669
        %671 = vmatmul.bf16.gmra.mxu0 %v563
        %v672 = vpop.f32.mrf.mxu0
        %v673 = vadd.f32 0.0, %v672
        %v674 = vpop.f32.mrf.mxu0
        %v675 = vadd.f32 0.0, %v674
        %676 = vmatmul.bf16.gmra.mxu0 %v566
        %v677 = vpop.f32.mrf.mxu0
        %v678 = vadd.f32 0.0, %v677
        %v679 = vpop.f32.mrf.mxu0
        %v680 = vadd.f32 0.0, %v679
        %681 = vmatmul.bf16.gmra.mxu0 %v569
        %v682 = vpop.f32.mrf.mxu0
        %v683 = vadd.f32 0.0, %v682
        %v684 = vpop.f32.mrf.mxu0
        %v685 = vadd.f32 0.0, %v684
        %686 = vdwg.mxu0
        %vm687 = vcmp.ge.f32.partialorder %v581, 0.0
        %vm688 = vcmp.ge.f32.partialorder %v610, 0.0
        %vm689 = vcmp.ge.f32.partialorder %v639, 0.0
        %vm690 = vcmp.ge.f32.partialorder %v668, 0.0
        %vm691 = vcmp.ge.f32.partialorder %v583, 0.0
        %vm692 = vcmp.ge.f32.partialorder %v612, 0.0
        %vm693 = vcmp.ge.f32.partialorder %v641, 0.0
        %vm694 = vcmp.ge.f32.partialorder %v670, 0.0
        %vm695 = vcmp.ge.f32.partialorder %v586, 0.0
        %vm696 = vcmp.ge.f32.partialorder %v615, 0.0
        %vm697 = vcmp.ge.f32.partialorder %v644, 0.0
        %vm698 = vcmp.ge.f32.partialorder %v673, 0.0
        %vm699 = vcmp.ge.f32.partialorder %v588, 0.0
        %vm700 = vcmp.ge.f32.partialorder %v617, 0.0
        %vm701 = vcmp.ge.f32.partialorder %v646, 0.0
        %vm702 = vcmp.ge.f32.partialorder %v675, 0.0
        %vm703 = vcmp.ge.f32.partialorder %v591, 0.0
        %vm704 = vcmp.ge.f32.partialorder %v620, 0.0
        %vm705 = vcmp.ge.f32.partialorder %v649, 0.0
        %vm706 = vcmp.ge.f32.partialorder %v678, 0.0
        %vm707 = vcmp.ge.f32.partialorder %v593, 0.0
        %vm708 = vcmp.ge.f32.partialorder %v622, 0.0
        %vm709 = vcmp.ge.f32.partialorder %v651, 0.0
        %vm710 = vcmp.ge.f32.partialorder %v680, 0.0
        %vm711 = vcmp.ge.f32.partialorder %v596, 0.0
        %vm712 = vcmp.ge.f32.partialorder %v625, 0.0
        %vm713 = vcmp.ge.f32.partialorder %v654, 0.0
        %vm714 = vcmp.ge.f32.partialorder %v683, 0.0
        %vm715 = vcmp.ge.f32.partialorder %v598, 0.0
        %vm716 = vcmp.ge.f32.partialorder %v627, 0.0
        %vm717 = vcmp.ge.f32.partialorder %v656, 0.0
        %vm718 = vcmp.ge.f32.partialorder %v685, 0.0
        %720 = vset.pattern.permute.xlu0 0
        %721 = vperm.xlu0 %720, %v369
        %v722 = vpop.permute.xlu0 %721
        %725 = vset.pattern.permute.xlu0 0
        %726 = vperm.xlu0 %725, %v370
        %v727 = vpop.permute.xlu0 %726
        %730 = vset.pattern.permute.xlu0 0
        %731 = vperm.xlu0 %730, %v371
        %v732 = vpop.permute.xlu0 %731
        %735 = vset.pattern.permute.xlu0 0
        %736 = vperm.xlu0 %735, %v372
        %v737 = vpop.permute.xlu0 %736
        %740 = vset.pattern.permute.xlu0 0
        %741 = vperm.xlu0 %740, %v373
        %v742 = vpop.permute.xlu0 %741
        %745 = vset.pattern.permute.xlu0 0
        %746 = vperm.xlu0 %745, %v374
        %v747 = vpop.permute.xlu0 %746
        %750 = vset.pattern.permute.xlu0 0
        %751 = vperm.xlu0 %750, %v375
        %v752 = vpop.permute.xlu0 %751
        %755 = vset.pattern.permute.xlu0 0
        %756 = vperm.xlu0 %755, %v376
        %v757 = vpop.permute.xlu0 %756
        %v759 = vmul.f32 %v722, %v581
        %v760 = vmul.f32 %v722, %v610
        %v761 = vmul.f32 %v722, %v639
        %v762 = vmul.f32 %v722, %v668
        %v763 = vmul.f32 %v727, %v583
        %v764 = vmul.f32 %v727, %v612
        %v765 = vmul.f32 %v727, %v641
        %v766 = vmul.f32 %v727, %v670
        %v767 = vmul.f32 %v732, %v586
        %v768 = vmul.f32 %v732, %v615
        %v769 = vmul.f32 %v732, %v644
        %v770 = vmul.f32 %v732, %v673
        %v771 = vmul.f32 %v737, %v588
        %v772 = vmul.f32 %v737, %v617
        %v773 = vmul.f32 %v737, %v646
        %v774 = vmul.f32 %v737, %v675
        %v775 = vmul.f32 %v742, %v591
        %v776 = vmul.f32 %v742, %v620
        %v777 = vmul.f32 %v742, %v649
        %v778 = vmul.f32 %v742, %v678
        %v779 = vmul.f32 %v747, %v593
        %v780 = vmul.f32 %v747, %v622
        %v781 = vmul.f32 %v747, %v651
        %v782 = vmul.f32 %v747, %v680
        %v783 = vmul.f32 %v752, %v596
        %v784 = vmul.f32 %v752, %v625
        %v785 = vmul.f32 %v752, %v654
        %v786 = vmul.f32 %v752, %v683
        %v787 = vmul.f32 %v757, %v598
        %v788 = vmul.f32 %v757, %v627
        %v789 = vmul.f32 %v757, %v656
        %v790 = vmul.f32 %v757, %v685
        %v791 = vsel %vm687, %v581, %v759
        %v792 = vsel %vm688, %v610, %v760
        %v793 = vsel %vm689, %v639, %v761
        %v794 = vsel %vm690, %v668, %v762
        %v795 = vsel %vm691, %v583, %v763
        %v796 = vsel %vm692, %v612, %v764
        %v797 = vsel %vm693, %v641, %v765
        %v798 = vsel %vm694, %v670, %v766
        %v799 = vsel %vm695, %v586, %v767
        %v800 = vsel %vm696, %v615, %v768
        %v801 = vsel %vm697, %v644, %v769
        %v802 = vsel %vm698, %v673, %v770
        %v803 = vsel %vm699, %v588, %v771
        %v804 = vsel %vm700, %v617, %v772
        %v805 = vsel %vm701, %v646, %v773
        %v806 = vsel %vm702, %v675, %v774
        %v807 = vsel %vm703, %v591, %v775
        %v808 = vsel %vm704, %v620, %v776
        %v809 = vsel %vm705, %v649, %v777
        %v810 = vsel %vm706, %v678, %v778
        %v811 = vsel %vm707, %v593, %v779
        %v812 = vsel %vm708, %v622, %v780
        %v813 = vsel %vm709, %v651, %v781
        %v814 = vsel %vm710, %v680, %v782
        %v815 = vsel %vm711, %v596, %v783
        %v816 = vsel %vm712, %v625, %v784
        %v817 = vsel %vm713, %v654, %v785
        %v818 = vsel %vm714, %v683, %v786
        %v819 = vsel %vm715, %v598, %v787
        %v820 = vsel %vm716, %v627, %v788
        %v821 = vsel %vm717, %v656, %v789
        %v822 = vsel %vm718, %v685, %v790
        %823 = vmatpush.msra.mxu0 %v392
        %824 = vmatpush.msra.mxu0 %v391
        %825 = vmatpush.msra.mxu0 %v390
        %826 = vmatpush.msra.mxu0 %v389
        %827 = vmatpush.msra.mxu0 %v388
        %828 = vmatpush.msra.mxu0 %v387
        %829 = vmatpush.msra.mxu0 %v386
        %830 = vmatpush.msra.mxu0 %v385
        %831 = vmatpush.msra.mxu0 %v384
        %832 = vmatpush.msra.mxu0 %v383
        %833 = vmatpush.msra.mxu0 %v382
        %834 = vmatpush.msra.mxu0 %v381
        %835 = vmatpush.msra.mxu0 %v380
        %836 = vmatpush.msra.mxu0 %v379
        %837 = vmatpush.msra.mxu0 %v378
        %838 = vmatpush.msra.mxu0 %v377
        %839 = vmatmul.f32.gmra.mxu0 %v791
        %v840 = vpop.f32.mrf.mxu0
        %v841 = vadd.f32 0.0, %v840
        %842 = vmatmul.f32.gmra.mxu0 %v795
        %v843 = vpop.f32.mrf.mxu0
        %v844 = vadd.f32 0.0, %v843
        %845 = vmatmul.f32.gmra.mxu0 %v799
        %v846 = vpop.f32.mrf.mxu0
        %v847 = vadd.f32 0.0, %v846
        %848 = vmatmul.f32.gmra.mxu0 %v803
        %v849 = vpop.f32.mrf.mxu0
        %v850 = vadd.f32 0.0, %v849
        %851 = vmatmul.f32.gmra.mxu0 %v807
        %v852 = vpop.f32.mrf.mxu0
        %v853 = vadd.f32 0.0, %v852
        %854 = vmatmul.f32.gmra.mxu0 %v811
        %v855 = vpop.f32.mrf.mxu0
        %v856 = vadd.f32 0.0, %v855
        %857 = vmatmul.f32.gmra.mxu0 %v815
        %v858 = vpop.f32.mrf.mxu0
        %v859 = vadd.f32 0.0, %v858
        %860 = vmatmul.f32.gmra.mxu0 %v819
        %v861 = vpop.f32.mrf.mxu0
        %v862 = vadd.f32 0.0, %v861
        %863 = vdwg.mxu0
        %864 = vmatpush.msra.mxu0 %v408
        %865 = vmatpush.msra.mxu0 %v407
        %866 = vmatpush.msra.mxu0 %v406
        %867 = vmatpush.msra.mxu0 %v405
        %868 = vmatpush.msra.mxu0 %v404
        %869 = vmatpush.msra.mxu0 %v403
        %870 = vmatpush.msra.mxu0 %v402
        %871 = vmatpush.msra.mxu0 %v401
        %872 = vmatpush.msra.mxu0 %v400
        %873 = vmatpush.msra.mxu0 %v399
        %874 = vmatpush.msra.mxu0 %v398
        %875 = vmatpush.msra.mxu0 %v397
        %876 = vmatpush.msra.mxu0 %v396
        %877 = vmatpush.msra.mxu0 %v395
        %878 = vmatpush.msra.mxu0 %v394
        %879 = vmatpush.msra.mxu0 %v393
        %880 = vmatmul.f32.gmra.mxu0 %v792
        %v881 = vpop.f32.mrf.mxu0
        %v882 = vadd.f32 %v841, %v881
        %883 = vmatmul.f32.gmra.mxu0 %v796
        %v884 = vpop.f32.mrf.mxu0
        %v885 = vadd.f32 %v844, %v884
        %886 = vmatmul.f32.gmra.mxu0 %v800
        %v887 = vpop.f32.mrf.mxu0
        %v888 = vadd.f32 %v847, %v887
        %889 = vmatmul.f32.gmra.mxu0 %v804
        %v890 = vpop.f32.mrf.mxu0
        %v891 = vadd.f32 %v850, %v890
        %892 = vmatmul.f32.gmra.mxu0 %v808
        %v893 = vpop.f32.mrf.mxu0
        %v894 = vadd.f32 %v853, %v893
        %895 = vmatmul.f32.gmra.mxu0 %v812
        %v896 = vpop.f32.mrf.mxu0
        %v897 = vadd.f32 %v856, %v896
        %898 = vmatmul.f32.gmra.mxu0 %v816
        %v899 = vpop.f32.mrf.mxu0
        %v900 = vadd.f32 %v859, %v899
        %901 = vmatmul.f32.gmra.mxu0 %v820
        %v902 = vpop.f32.mrf.mxu0
        %v903 = vadd.f32 %v862, %v902
        %904 = vdwg.mxu0
        %905 = vmatpush.msra.mxu0 %v424
        %906 = vmatpush.msra.mxu0 %v423
        %907 = vmatpush.msra.mxu0 %v422
        %908 = vmatpush.msra.mxu0 %v421
        %909 = vmatpush.msra.mxu0 %v420
        %910 = vmatpush.msra.mxu0 %v419
        %911 = vmatpush.msra.mxu0 %v418
        %912 = vmatpush.msra.mxu0 %v417
        %913 = vmatpush.msra.mxu0 %v416
        %914 = vmatpush.msra.mxu0 %v415
        %915 = vmatpush.msra.mxu0 %v414
        %916 = vmatpush.msra.mxu0 %v413
        %917 = vmatpush.msra.mxu0 %v412
        %918 = vmatpush.msra.mxu0 %v411
        %919 = vmatpush.msra.mxu0 %v410
        %920 = vmatpush.msra.mxu0 %v409
        %921 = vmatmul.f32.gmra.mxu0 %v793
        %v922 = vpop.f32.mrf.mxu0
        %v923 = vadd.f32 %v882, %v922
        %924 = vmatmul.f32.gmra.mxu0 %v797
        %v925 = vpop.f32.mrf.mxu0
        %v926 = vadd.f32 %v885, %v925
        %927 = vmatmul.f32.gmra.mxu0 %v801
        %v928 = vpop.f32.mrf.mxu0
        %v929 = vadd.f32 %v888, %v928
        %930 = vmatmul.f32.gmra.mxu0 %v805
        %v931 = vpop.f32.mrf.mxu0
        %v932 = vadd.f32 %v891, %v931
        %933 = vmatmul.f32.gmra.mxu0 %v809
        %v934 = vpop.f32.mrf.mxu0
        %v935 = vadd.f32 %v894, %v934
        %936 = vmatmul.f32.gmra.mxu0 %v813
        %v937 = vpop.f32.mrf.mxu0
        %v938 = vadd.f32 %v897, %v937
        %939 = vmatmul.f32.gmra.mxu0 %v817
        %v940 = vpop.f32.mrf.mxu0
        %v941 = vadd.f32 %v900, %v940
        %942 = vmatmul.f32.gmra.mxu0 %v821
        %v943 = vpop.f32.mrf.mxu0
        %v944 = vadd.f32 %v903, %v943
        %945 = vdwg.mxu0
        %946 = vmatpush.msra.mxu0 %v440
        %947 = vmatpush.msra.mxu0 %v439
        %948 = vmatpush.msra.mxu0 %v438
        %949 = vmatpush.msra.mxu0 %v437
        %950 = vmatpush.msra.mxu0 %v436
        %951 = vmatpush.msra.mxu0 %v435
        %952 = vmatpush.msra.mxu0 %v434
        %953 = vmatpush.msra.mxu0 %v433
        %954 = vmatpush.msra.mxu0 %v432
        %955 = vmatpush.msra.mxu0 %v431
        %956 = vmatpush.msra.mxu0 %v430
        %957 = vmatpush.msra.mxu0 %v429
        %958 = vmatpush.msra.mxu0 %v428
        %959 = vmatpush.msra.mxu0 %v427
        %960 = vmatpush.msra.mxu0 %v426
        %961 = vmatpush.msra.mxu0 %v425
        %962 = vmatmul.f32.gmra.mxu0 %v794
        %v963 = vpop.f32.mrf.mxu0
        %v964 = vadd.f32 %v923, %v963
        %965 = vmatmul.f32.gmra.mxu0 %v798
        %v966 = vpop.f32.mrf.mxu0
        %v967 = vadd.f32 %v926, %v966
        %968 = vmatmul.f32.gmra.mxu0 %v802
        %v969 = vpop.f32.mrf.mxu0
        %v970 = vadd.f32 %v929, %v969
        %971 = vmatmul.f32.gmra.mxu0 %v806
        %v972 = vpop.f32.mrf.mxu0
        %v973 = vadd.f32 %v932, %v972
        %974 = vmatmul.f32.gmra.mxu0 %v810
        %v975 = vpop.f32.mrf.mxu0
        %v976 = vadd.f32 %v935, %v975
        %977 = vmatmul.f32.gmra.mxu0 %v814
        %v978 = vpop.f32.mrf.mxu0
        %v979 = vadd.f32 %v938, %v978
        %980 = vmatmul.f32.gmra.mxu0 %v818
        %v981 = vpop.f32.mrf.mxu0
        %v982 = vadd.f32 %v941, %v981
        %983 = vmatmul.f32.gmra.mxu0 %v822
        %v984 = vpop.f32.mrf.mxu0
        %v985 = vadd.f32 %v944, %v984
        %986 = vdwg.mxu0
        %v987 = vmul.f32 %v791, %v791
        %v988 = vmul.f32 %v792, %v792
        %v989 = vmul.f32 %v793, %v793
        %v990 = vmul.f32 %v794, %v794
        %v991 = vmul.f32 %v795, %v795
        %v992 = vmul.f32 %v796, %v796
        %v993 = vmul.f32 %v797, %v797
        %v994 = vmul.f32 %v798, %v798
        %v995 = vmul.f32 %v799, %v799
        %v996 = vmul.f32 %v800, %v800
        %v997 = vmul.f32 %v801, %v801
        %v998 = vmul.f32 %v802, %v802
        %v999 = vmul.f32 %v803, %v803
        %v1000 = vmul.f32 %v804, %v804
        %v1001 = vmul.f32 %v805, %v805
        %v1002 = vmul.f32 %v806, %v806
        %v1003 = vmul.f32 %v807, %v807
        %v1004 = vmul.f32 %v808, %v808
        %v1005 = vmul.f32 %v809, %v809
        %v1006 = vmul.f32 %v810, %v810
        %v1007 = vmul.f32 %v811, %v811
        %v1008 = vmul.f32 %v812, %v812
        %v1009 = vmul.f32 %v813, %v813
        %v1010 = vmul.f32 %v814, %v814
        %v1011 = vmul.f32 %v815, %v815
        %v1012 = vmul.f32 %v816, %v816
        %v1013 = vmul.f32 %v817, %v817
        %v1014 = vmul.f32 %v818, %v818
        %v1015 = vmul.f32 %v819, %v819
        %v1016 = vmul.f32 %v820, %v820
        %v1017 = vmul.f32 %v821, %v821
        %v1018 = vmul.f32 %v822, %v822
        %1019 = vmatpush.msra.mxu0 %v392
        %1020 = vmatpush.msra.mxu0 %v391
        %1021 = vmatpush.msra.mxu0 %v390
        %1022 = vmatpush.msra.mxu0 %v389
        %1023 = vmatpush.msra.mxu0 %v388
        %1024 = vmatpush.msra.mxu0 %v387
        %1025 = vmatpush.msra.mxu0 %v386
        %1026 = vmatpush.msra.mxu0 %v385
        %1027 = vmatpush.msra.mxu0 %v384
        %1028 = vmatpush.msra.mxu0 %v383
        %1029 = vmatpush.msra.mxu0 %v382
        %1030 = vmatpush.msra.mxu0 %v381
        %1031 = vmatpush.msra.mxu0 %v380
        %1032 = vmatpush.msra.mxu0 %v379
        %1033 = vmatpush.msra.mxu0 %v378
        %1034 = vmatpush.msra.mxu0 %v377
        %1035 = vmatmul.f32.gmra.mxu0 %v987
        %v1036 = vpop.f32.mrf.mxu0
        %v1037 = vadd.f32 0.0, %v1036
        %1038 = vmatmul.f32.gmra.mxu0 %v991
        %v1039 = vpop.f32.mrf.mxu0
        %v1040 = vadd.f32 0.0, %v1039
        %1041 = vmatmul.f32.gmra.mxu0 %v995
        %v1042 = vpop.f32.mrf.mxu0
        %v1043 = vadd.f32 0.0, %v1042
        %1044 = vmatmul.f32.gmra.mxu0 %v999
        %v1045 = vpop.f32.mrf.mxu0
        %v1046 = vadd.f32 0.0, %v1045
        %1047 = vmatmul.f32.gmra.mxu0 %v1003
        %v1048 = vpop.f32.mrf.mxu0
        %v1049 = vadd.f32 0.0, %v1048
        %1050 = vmatmul.f32.gmra.mxu0 %v1007
        %v1051 = vpop.f32.mrf.mxu0
        %v1052 = vadd.f32 0.0, %v1051
        %1053 = vmatmul.f32.gmra.mxu0 %v1011
        %v1054 = vpop.f32.mrf.mxu0
        %v1055 = vadd.f32 0.0, %v1054
        %1056 = vmatmul.f32.gmra.mxu0 %v1015
        %v1057 = vpop.f32.mrf.mxu0
        %v1058 = vadd.f32 0.0, %v1057
        %1059 = vdwg.mxu0
        %1060 = vmatpush.msra.mxu0 %v408
        %1061 = vmatpush.msra.mxu0 %v407
        %1062 = vmatpush.msra.mxu0 %v406
        %1063 = vmatpush.msra.mxu0 %v405
        %1064 = vmatpush.msra.mxu0 %v404
        %1065 = vmatpush.msra.mxu0 %v403
        %1066 = vmatpush.msra.mxu0 %v402
        %1067 = vmatpush.msra.mxu0 %v401
        %1068 = vmatpush.msra.mxu0 %v400
        %1069 = vmatpush.msra.mxu0 %v399
        %1070 = vmatpush.msra.mxu0 %v398
        %1071 = vmatpush.msra.mxu0 %v397
        %1072 = vmatpush.msra.mxu0 %v396
        %1073 = vmatpush.msra.mxu0 %v395
        %1074 = vmatpush.msra.mxu0 %v394
        %1075 = vmatpush.msra.mxu0 %v393
        %1076 = vmatmul.f32.gmra.mxu0 %v988
        %v1077 = vpop.f32.mrf.mxu0
        %v1078 = vadd.f32 %v1037, %v1077
        %1079 = vmatmul.f32.gmra.mxu0 %v992
        %v1080 = vpop.f32.mrf.mxu0
        %v1081 = vadd.f32 %v1040, %v1080
        %1082 = vmatmul.f32.gmra.mxu0 %v996
        %v1083 = vpop.f32.mrf.mxu0
        %v1084 = vadd.f32 %v1043, %v1083
        %1085 = vmatmul.f32.gmra.mxu0 %v1000
        %v1086 = vpop.f32.mrf.mxu0
        %v1087 = vadd.f32 %v1046, %v1086
        %1088 = vmatmul.f32.gmra.mxu0 %v1004
        %v1089 = vpop.f32.mrf.mxu0
        %v1090 = vadd.f32 %v1049, %v1089
        %1091 = vmatmul.f32.gmra.mxu0 %v1008
        %v1092 = vpop.f32.mrf.mxu0
        %v1093 = vadd.f32 %v1052, %v1092
        %1094 = vmatmul.f32.gmra.mxu0 %v1012
        %v1095 = vpop.f32.mrf.mxu0
        %v1096 = vadd.f32 %v1055, %v1095
        %1097 = vmatmul.f32.gmra.mxu0 %v1016
        %v1098 = vpop.f32.mrf.mxu0
        %v1099 = vadd.f32 %v1058, %v1098
        %1100 = vdwg.mxu0
        %1101 = vmatpush.msra.mxu0 %v424
        %1102 = vmatpush.msra.mxu0 %v423
        %1103 = vmatpush.msra.mxu0 %v422
        %1104 = vmatpush.msra.mxu0 %v421
        %1105 = vmatpush.msra.mxu0 %v420
        %1106 = vmatpush.msra.mxu0 %v419
        %1107 = vmatpush.msra.mxu0 %v418
        %1108 = vmatpush.msra.mxu0 %v417
        %1109 = vmatpush.msra.mxu0 %v416
        %1110 = vmatpush.msra.mxu0 %v415
        %1111 = vmatpush.msra.mxu0 %v414
        %1112 = vmatpush.msra.mxu0 %v413
        %1113 = vmatpush.msra.mxu0 %v412
        %1114 = vmatpush.msra.mxu0 %v411
        %1115 = vmatpush.msra.mxu0 %v410
        %1116 = vmatpush.msra.mxu0 %v409
        %1117 = vmatmul.f32.gmra.mxu0 %v989
        %v1118 = vpop.f32.mrf.mxu0
        %v1119 = vadd.f32 %v1078, %v1118
        %1120 = vmatmul.f32.gmra.mxu0 %v993
        %v1121 = vpop.f32.mrf.mxu0
        %v1122 = vadd.f32 %v1081, %v1121
        %1123 = vmatmul.f32.gmra.mxu0 %v997
        %v1124 = vpop.f32.mrf.mxu0
        %v1125 = vadd.f32 %v1084, %v1124
        %1126 = vmatmul.f32.gmra.mxu0 %v1001
        %v1127 = vpop.f32.mrf.mxu0
        %v1128 = vadd.f32 %v1087, %v1127
        %1129 = vmatmul.f32.gmra.mxu0 %v1005
        %v1130 = vpop.f32.mrf.mxu0
        %v1131 = vadd.f32 %v1090, %v1130
        %1132 = vmatmul.f32.gmra.mxu0 %v1009
        %v1133 = vpop.f32.mrf.mxu0
        %v1134 = vadd.f32 %v1093, %v1133
        %1135 = vmatmul.f32.gmra.mxu0 %v1013
        %v1136 = vpop.f32.mrf.mxu0
        %v1137 = vadd.f32 %v1096, %v1136
        %1138 = vmatmul.f32.gmra.mxu0 %v1017
        %v1139 = vpop.f32.mrf.mxu0
        %v1140 = vadd.f32 %v1099, %v1139
        %1141 = vdwg.mxu0
        %1142 = vmatpush.msra.mxu0 %v440
        %1143 = vmatpush.msra.mxu0 %v439
        %1144 = vmatpush.msra.mxu0 %v438
        %1145 = vmatpush.msra.mxu0 %v437
        %1146 = vmatpush.msra.mxu0 %v436
        %1147 = vmatpush.msra.mxu0 %v435
        %1148 = vmatpush.msra.mxu0 %v434
        %1149 = vmatpush.msra.mxu0 %v433
        %1150 = vmatpush.msra.mxu0 %v432
        %1151 = vmatpush.msra.mxu0 %v431
        %1152 = vmatpush.msra.mxu0 %v430
        %1153 = vmatpush.msra.mxu0 %v429
        %1154 = vmatpush.msra.mxu0 %v428
        %1155 = vmatpush.msra.mxu0 %v427
        %1156 = vmatpush.msra.mxu0 %v426
        %1157 = vmatpush.msra.mxu0 %v425
        %1158 = vmatmul.f32.gmra.mxu0 %v990
        %v1159 = vpop.f32.mrf.mxu0
        %v1160 = vadd.f32 %v1119, %v1159
        %1161 = vmatmul.f32.gmra.mxu0 %v994
        %v1162 = vpop.f32.mrf.mxu0
        %v1163 = vadd.f32 %v1122, %v1162
        %1164 = vmatmul.f32.gmra.mxu0 %v998
        %v1165 = vpop.f32.mrf.mxu0
        %v1166 = vadd.f32 %v1125, %v1165
        %1167 = vmatmul.f32.gmra.mxu0 %v1002
        %v1168 = vpop.f32.mrf.mxu0
        %v1169 = vadd.f32 %v1128, %v1168
        %1170 = vmatmul.f32.gmra.mxu0 %v1006
        %v1171 = vpop.f32.mrf.mxu0
        %v1172 = vadd.f32 %v1131, %v1171
        %1173 = vmatmul.f32.gmra.mxu0 %v1010
        %v1174 = vpop.f32.mrf.mxu0
        %v1175 = vadd.f32 %v1134, %v1174
        %1176 = vmatmul.f32.gmra.mxu0 %v1014
        %v1177 = vpop.f32.mrf.mxu0
        %v1178 = vadd.f32 %v1137, %v1177
        %1179 = vmatmul.f32.gmra.mxu0 %v1018
        %v1180 = vpop.f32.mrf.mxu0
        %v1181 = vadd.f32 %v1140, %v1180
        %1182 = vdwg.mxu0
        %v1183 = vmul.f32 %v964, 0.0078125
        %v1184 = vmul.f32 %v967, 0.0078125
        %v1185 = vmul.f32 %v970, 0.0078125
        %v1186 = vmul.f32 %v973, 0.0078125
        %v1187 = vmul.f32 %v976, 0.0078125
        %v1188 = vmul.f32 %v979, 0.0078125
        %v1189 = vmul.f32 %v982, 0.0078125
        %v1190 = vmul.f32 %v985, 0.0078125
        %v1191 = vmul.f32 %v1160, 0.0078125
        %v1192 = vmul.f32 %v1163, 0.0078125
        %v1193 = vmul.f32 %v1166, 0.0078125
        %v1194 = vmul.f32 %v1169, 0.0078125
        %v1195 = vmul.f32 %v1172, 0.0078125
        %v1196 = vmul.f32 %v1175, 0.0078125
        %v1197 = vmul.f32 %v1178, 0.0078125
        %v1198 = vmul.f32 %v1181, 0.0078125
        %v1199 = vmul.f32 %v1183, %v1183
        %v1200 = vmul.f32 %v1184, %v1184
        %v1201 = vmul.f32 %v1185, %v1185
        %v1202 = vmul.f32 %v1186, %v1186
        %v1203 = vmul.f32 %v1187, %v1187
        %v1204 = vmul.f32 %v1188, %v1188
        %v1205 = vmul.f32 %v1189, %v1189
        %v1206 = vmul.f32 %v1190, %v1190
        %v1207 = vsub.f32 %v1191, %v1199
        %v1208 = vsub.f32 %v1192, %v1200
        %v1209 = vsub.f32 %v1193, %v1201
        %v1210 = vsub.f32 %v1194, %v1202
        %v1211 = vsub.f32 %v1195, %v1203
        %v1212 = vsub.f32 %v1196, %v1204
        %v1213 = vsub.f32 %v1197, %v1205
        %v1214 = vsub.f32 %v1198, %v1206
        %v1215 = vmax.f32 %v1207, 0.0
        %v1216 = vmax.f32 %v1208, 0.0
        %v1217 = vmax.f32 %v1209, 0.0
        %v1218 = vmax.f32 %v1210, 0.0
        %v1219 = vmax.f32 %v1211, 0.0
        %v1220 = vmax.f32 %v1212, 0.0
        %v1221 = vmax.f32 %v1213, 0.0
        %v1222 = vmax.f32 %v1214, 0.0
        %v1223 = vadd.f32 %v1215, 1e-05
        %v1224 = vadd.f32 %v1216, 1e-05
        %v1225 = vadd.f32 %v1217, 1e-05
        %v1226 = vadd.f32 %v1218, 1e-05
        %v1227 = vadd.f32 %v1219, 1e-05
        %v1228 = vadd.f32 %v1220, 1e-05
        %v1229 = vadd.f32 %v1221, 1e-05
        %v1230 = vadd.f32 %v1222, 1e-05
        %v1231 = vrsqrt.pop %v1223
        %v1232 = vmul.f32 %v1231, %v1223
        %v1233 = vmul.f32 %v1232, %v1231
        %v1234 = vmul.f32 0.5, %v1233
        %v1235 = vsub.f32 1.5, %v1234
        %v1236 = vmul.f32 %v1231, %v1235
        %vm1237 = vweird.f32 %v1223
        %vm1238 = vweird.f32 %v1231
        %vm1239 = vmor %vm1237, %vm1238
        %v1240 = vsel %vm1239, %v1231, %v1236
        %v1241 = vrsqrt.pop %v1224
        %v1242 = vmul.f32 %v1241, %v1224
        %v1243 = vmul.f32 %v1242, %v1241
        %v1244 = vmul.f32 0.5, %v1243
        %v1245 = vsub.f32 1.5, %v1244
        %v1246 = vmul.f32 %v1241, %v1245
        %vm1247 = vweird.f32 %v1224
        %vm1248 = vweird.f32 %v1241
        %vm1249 = vmor %vm1247, %vm1248
        %v1250 = vsel %vm1249, %v1241, %v1246
        %v1251 = vrsqrt.pop %v1225
        %v1252 = vmul.f32 %v1251, %v1225
        %v1253 = vmul.f32 %v1252, %v1251
        %v1254 = vmul.f32 0.5, %v1253
        %v1255 = vsub.f32 1.5, %v1254
        %v1256 = vmul.f32 %v1251, %v1255
        %vm1257 = vweird.f32 %v1225
        %vm1258 = vweird.f32 %v1251
        %vm1259 = vmor %vm1257, %vm1258
        %v1260 = vsel %vm1259, %v1251, %v1256
        %v1261 = vrsqrt.pop %v1226
        %v1262 = vmul.f32 %v1261, %v1226
        %v1263 = vmul.f32 %v1262, %v1261
        %v1264 = vmul.f32 0.5, %v1263
        %v1265 = vsub.f32 1.5, %v1264
        %v1266 = vmul.f32 %v1261, %v1265
        %vm1267 = vweird.f32 %v1226
        %vm1268 = vweird.f32 %v1261
        %vm1269 = vmor %vm1267, %vm1268
        %v1270 = vsel %vm1269, %v1261, %v1266
        %v1271 = vrsqrt.pop %v1227
        %v1272 = vmul.f32 %v1271, %v1227
        %v1273 = vmul.f32 %v1272, %v1271
        %v1274 = vmul.f32 0.5, %v1273
        %v1275 = vsub.f32 1.5, %v1274
        %v1276 = vmul.f32 %v1271, %v1275
        %vm1277 = vweird.f32 %v1227
        %vm1278 = vweird.f32 %v1271
        %vm1279 = vmor %vm1277, %vm1278
        %v1280 = vsel %vm1279, %v1271, %v1276
        %v1281 = vrsqrt.pop %v1228
        %v1282 = vmul.f32 %v1281, %v1228
        %v1283 = vmul.f32 %v1282, %v1281
        %v1284 = vmul.f32 0.5, %v1283
        %v1285 = vsub.f32 1.5, %v1284
        %v1286 = vmul.f32 %v1281, %v1285
        %vm1287 = vweird.f32 %v1228
        %vm1288 = vweird.f32 %v1281
        %vm1289 = vmor %vm1287, %vm1288
        %v1290 = vsel %vm1289, %v1281, %v1286
        %v1291 = vrsqrt.pop %v1229
        %v1292 = vmul.f32 %v1291, %v1229
        %v1293 = vmul.f32 %v1292, %v1291
        %v1294 = vmul.f32 0.5, %v1293
        %v1295 = vsub.f32 1.5, %v1294
        %v1296 = vmul.f32 %v1291, %v1295
        %vm1297 = vweird.f32 %v1229
        %vm1298 = vweird.f32 %v1291
        %vm1299 = vmor %vm1297, %vm1298
        %v1300 = vsel %vm1299, %v1291, %v1296
        %v1301 = vrsqrt.pop %v1230
        %v1302 = vmul.f32 %v1301, %v1230
        %v1303 = vmul.f32 %v1302, %v1301
        %v1304 = vmul.f32 0.5, %v1303
        %v1305 = vsub.f32 1.5, %v1304
        %v1306 = vmul.f32 %v1301, %v1305
        %vm1307 = vweird.f32 %v1230
        %vm1308 = vweird.f32 %v1301
        %vm1309 = vmor %vm1307, %vm1308
        %v1310 = vsel %vm1309, %v1301, %v1306
        %1311 = vset.pattern.permute.xlu0 1
        %1312 = vperm.xlu0 %1311, %v369
        %v1313 = vpop.permute.xlu0 %1312
        %1315 = vset.pattern.permute.xlu0 1
        %1316 = vperm.xlu0 %1315, %v370
        %v1317 = vpop.permute.xlu0 %1316
        %1319 = vset.pattern.permute.xlu0 1
        %1320 = vperm.xlu0 %1319, %v371
        %v1321 = vpop.permute.xlu0 %1320
        %1323 = vset.pattern.permute.xlu0 1
        %1324 = vperm.xlu0 %1323, %v372
        %v1325 = vpop.permute.xlu0 %1324
        %1327 = vset.pattern.permute.xlu0 1
        %1328 = vperm.xlu0 %1327, %v373
        %v1329 = vpop.permute.xlu0 %1328
        %1331 = vset.pattern.permute.xlu0 1
        %1332 = vperm.xlu0 %1331, %v374
        %v1333 = vpop.permute.xlu0 %1332
        %1335 = vset.pattern.permute.xlu0 1
        %1336 = vperm.xlu0 %1335, %v375
        %v1337 = vpop.permute.xlu0 %1336
        %1339 = vset.pattern.permute.xlu0 1
        %1340 = vperm.xlu0 %1339, %v376
        %v1341 = vpop.permute.xlu0 %1340
        %v1343 = vmul.f32 %v1313, %v1240
        %v1344 = vmul.f32 %v1317, %v1250
        %v1345 = vmul.f32 %v1321, %v1260
        %v1346 = vmul.f32 %v1325, %v1270
        %v1347 = vmul.f32 %v1329, %v1280
        %v1348 = vmul.f32 %v1333, %v1290
        %v1349 = vmul.f32 %v1337, %v1300
        %v1350 = vmul.f32 %v1341, %v1310
        %v1351 = vmul.f32 %v1183, %v1343
        %v1352 = vmul.f32 %v1184, %v1344
        %v1353 = vmul.f32 %v1185, %v1345
        %v1354 = vmul.f32 %v1186, %v1346
        %v1355 = vmul.f32 %v1187, %v1347
        %v1356 = vmul.f32 %v1188, %v1348
        %v1357 = vmul.f32 %v1189, %v1349
        %v1358 = vmul.f32 %v1190, %v1350
        %1359 = vset.pattern.permute.xlu0 2
        %1360 = vperm.xlu0 %1359, %v369
        %v1361 = vpop.permute.xlu0 %1360
        %1363 = vset.pattern.permute.xlu0 2
        %1364 = vperm.xlu0 %1363, %v370
        %v1365 = vpop.permute.xlu0 %1364
        %1367 = vset.pattern.permute.xlu0 2
        %1368 = vperm.xlu0 %1367, %v371
        %v1369 = vpop.permute.xlu0 %1368
        %1371 = vset.pattern.permute.xlu0 2
        %1372 = vperm.xlu0 %1371, %v372
        %v1373 = vpop.permute.xlu0 %1372
        %1375 = vset.pattern.permute.xlu0 2
        %1376 = vperm.xlu0 %1375, %v373
        %v1377 = vpop.permute.xlu0 %1376
        %1379 = vset.pattern.permute.xlu0 2
        %1380 = vperm.xlu0 %1379, %v374
        %v1381 = vpop.permute.xlu0 %1380
        %1383 = vset.pattern.permute.xlu0 2
        %1384 = vperm.xlu0 %1383, %v375
        %v1385 = vpop.permute.xlu0 %1384
        %1387 = vset.pattern.permute.xlu0 2
        %1388 = vperm.xlu0 %1387, %v376
        %v1389 = vpop.permute.xlu0 %1388
        %v1391 = vsub.f32 %v1361, %v1351
        %v1392 = vsub.f32 %v1365, %v1352
        %v1393 = vsub.f32 %v1369, %v1353
        %v1394 = vsub.f32 %v1373, %v1354
        %v1395 = vsub.f32 %v1377, %v1355
        %v1396 = vsub.f32 %v1381, %v1356
        %v1397 = vsub.f32 %v1385, %v1357
        %v1398 = vsub.f32 %v1389, %v1358
        %vm1399 = vcmask 64512
        %v1401 = vsel %vm1399, %v1343, 0
        %v1404 = vsel %vm1399, %v1344, 0
        %v1407 = vsel %vm1399, %v1345, 0
        %v1410 = vsel %vm1399, %v1346, 0
        %v1413 = vsel %vm1399, %v1347, 0
        %v1416 = vsel %vm1399, %v1348, 0
        %v1419 = vsel %vm1399, %v1349, 0
        %v1422 = vsel %vm1399, %v1350, 0
        %1424 = vmatpush.msra.mxu0 0.0
        %1425 = vmatpush.msra.mxu0 0.0
        %1426 = vmatpush.msra.mxu0 0.0
        %1427 = vmatpush.msra.mxu0 0.0
        %1428 = vmatpush.msra.mxu0 0.0
        %1429 = vmatpush.msra.mxu0 0.0
        %1430 = vmatpush.msra.mxu0 0.0
        %1431 = vmatpush.msra.mxu0 0.0
        %1432 = vmatpush.msra.mxu0 0.0
        %1433 = vmatpush.msra.mxu0 0.0
        %1434 = vmatpush.msra.mxu0 0.0
        %1435 = vmatpush.msra.mxu0 0.0
        %1436 = vmatpush.msra.mxu0 0.0
        %1437 = vmatpush.msra.mxu0 0.0
        %1438 = vmatpush.msra.mxu0 0.0
        %1439 = vmatpush.msra.mxu0 %v441
        %1440 = vmatmul.f32.gmra.mxu0 %v1401
        %v1441 = vpop.f32.mrf.mxu0
        %v1442 = vadd.f32 0.0, %v1441
        %1443 = vmatmul.f32.gmra.mxu0 %v1404
        %v1444 = vpop.f32.mrf.mxu0
        %v1445 = vadd.f32 0.0, %v1444
        %1446 = vmatmul.f32.gmra.mxu0 %v1407
        %v1447 = vpop.f32.mrf.mxu0
        %v1448 = vadd.f32 0.0, %v1447
        %1449 = vmatmul.f32.gmra.mxu0 %v1410
        %v1450 = vpop.f32.mrf.mxu0
        %v1451 = vadd.f32 0.0, %v1450
        %1452 = vmatmul.f32.gmra.mxu0 %v1413
        %v1453 = vpop.f32.mrf.mxu0
        %v1454 = vadd.f32 0.0, %v1453
        %1455 = vmatmul.f32.gmra.mxu0 %v1416
        %v1456 = vpop.f32.mrf.mxu0
        %v1457 = vadd.f32 0.0, %v1456
        %1458 = vmatmul.f32.gmra.mxu0 %v1419
        %v1459 = vpop.f32.mrf.mxu0
        %v1460 = vadd.f32 0.0, %v1459
        %1461 = vmatmul.f32.gmra.mxu0 %v1422
        %v1462 = vpop.f32.mrf.mxu0
        %v1463 = vadd.f32 0.0, %v1462
        %1464 = vdwg.mxu0
        %1465 = vmatpush.msra.mxu0 0.0
        %1466 = vmatpush.msra.mxu0 0.0
        %1467 = vmatpush.msra.mxu0 0.0
        %1468 = vmatpush.msra.mxu0 0.0
        %1469 = vmatpush.msra.mxu0 0.0
        %1470 = vmatpush.msra.mxu0 0.0
        %1471 = vmatpush.msra.mxu0 0.0
        %1472 = vmatpush.msra.mxu0 0.0
        %1473 = vmatpush.msra.mxu0 0.0
        %1474 = vmatpush.msra.mxu0 0.0
        %1475 = vmatpush.msra.mxu0 0.0
        %1476 = vmatpush.msra.mxu0 0.0
        %1477 = vmatpush.msra.mxu0 0.0
        %1478 = vmatpush.msra.mxu0 0.0
        %1479 = vmatpush.msra.mxu0 0.0
        %1480 = vmatpush.msra.mxu0 %v442
        %1481 = vmatmul.f32.gmra.mxu0 %v1401
        %v1482 = vpop.f32.mrf.mxu0
        %v1483 = vadd.f32 0.0, %v1482
        %1484 = vmatmul.f32.gmra.mxu0 %v1404
        %v1485 = vpop.f32.mrf.mxu0
        %v1486 = vadd.f32 0.0, %v1485
        %1487 = vmatmul.f32.gmra.mxu0 %v1407
        %v1488 = vpop.f32.mrf.mxu0
        %v1489 = vadd.f32 0.0, %v1488
        %1490 = vmatmul.f32.gmra.mxu0 %v1410
        %v1491 = vpop.f32.mrf.mxu0
        %v1492 = vadd.f32 0.0, %v1491
        %1493 = vmatmul.f32.gmra.mxu0 %v1413
        %v1494 = vpop.f32.mrf.mxu0
        %v1495 = vadd.f32 0.0, %v1494
        %1496 = vmatmul.f32.gmra.mxu0 %v1416
        %v1497 = vpop.f32.mrf.mxu0
        %v1498 = vadd.f32 0.0, %v1497
        %1499 = vmatmul.f32.gmra.mxu0 %v1419
        %v1500 = vpop.f32.mrf.mxu0
        %v1501 = vadd.f32 0.0, %v1500
        %1502 = vmatmul.f32.gmra.mxu0 %v1422
        %v1503 = vpop.f32.mrf.mxu0
        %v1504 = vadd.f32 0.0, %v1503
        %1505 = vdwg.mxu0
        %1506 = vmatpush.msra.mxu0 0.0
        %1507 = vmatpush.msra.mxu0 0.0
        %1508 = vmatpush.msra.mxu0 0.0
        %1509 = vmatpush.msra.mxu0 0.0
        %1510 = vmatpush.msra.mxu0 0.0
        %1511 = vmatpush.msra.mxu0 0.0
        %1512 = vmatpush.msra.mxu0 0.0
        %1513 = vmatpush.msra.mxu0 0.0
        %1514 = vmatpush.msra.mxu0 0.0
        %1515 = vmatpush.msra.mxu0 0.0
        %1516 = vmatpush.msra.mxu0 0.0
        %1517 = vmatpush.msra.mxu0 0.0
        %1518 = vmatpush.msra.mxu0 0.0
        %1519 = vmatpush.msra.mxu0 0.0
        %1520 = vmatpush.msra.mxu0 0.0
        %1521 = vmatpush.msra.mxu0 %v443
        %1522 = vmatmul.f32.gmra.mxu0 %v1401
        %v1523 = vpop.f32.mrf.mxu0
        %v1524 = vadd.f32 0.0, %v1523
        %1525 = vmatmul.f32.gmra.mxu0 %v1404
        %v1526 = vpop.f32.mrf.mxu0
        %v1527 = vadd.f32 0.0, %v1526
        %1528 = vmatmul.f32.gmra.mxu0 %v1407
        %v1529 = vpop.f32.mrf.mxu0
        %v1530 = vadd.f32 0.0, %v1529
        %1531 = vmatmul.f32.gmra.mxu0 %v1410
        %v1532 = vpop.f32.mrf.mxu0
        %v1533 = vadd.f32 0.0, %v1532
        %1534 = vmatmul.f32.gmra.mxu0 %v1413
        %v1535 = vpop.f32.mrf.mxu0
        %v1536 = vadd.f32 0.0, %v1535
        %1537 = vmatmul.f32.gmra.mxu0 %v1416
        %v1538 = vpop.f32.mrf.mxu0
        %v1539 = vadd.f32 0.0, %v1538
        %1540 = vmatmul.f32.gmra.mxu0 %v1419
        %v1541 = vpop.f32.mrf.mxu0
        %v1542 = vadd.f32 0.0, %v1541
        %1543 = vmatmul.f32.gmra.mxu0 %v1422
        %v1544 = vpop.f32.mrf.mxu0
        %v1545 = vadd.f32 0.0, %v1544
        %1546 = vdwg.mxu0
        %1547 = vmatpush.msra.mxu0 0.0
        %1548 = vmatpush.msra.mxu0 0.0
        %1549 = vmatpush.msra.mxu0 0.0
        %1550 = vmatpush.msra.mxu0 0.0
        %1551 = vmatpush.msra.mxu0 0.0
        %1552 = vmatpush.msra.mxu0 0.0
        %1553 = vmatpush.msra.mxu0 0.0
        %1554 = vmatpush.msra.mxu0 0.0
        %1555 = vmatpush.msra.mxu0 0.0
        %1556 = vmatpush.msra.mxu0 0.0
        %1557 = vmatpush.msra.mxu0 0.0
        %1558 = vmatpush.msra.mxu0 0.0
        %1559 = vmatpush.msra.mxu0 0.0
        %1560 = vmatpush.msra.mxu0 0.0
        %1561 = vmatpush.msra.mxu0 0.0
        %1562 = vmatpush.msra.mxu0 %v444
        %1563 = vmatmul.f32.gmra.mxu0 %v1401
        %v1564 = vpop.f32.mrf.mxu0
        %v1565 = vadd.f32 0.0, %v1564
        %1566 = vmatmul.f32.gmra.mxu0 %v1404
        %v1567 = vpop.f32.mrf.mxu0
        %v1568 = vadd.f32 0.0, %v1567
        %1569 = vmatmul.f32.gmra.mxu0 %v1407
        %v1570 = vpop.f32.mrf.mxu0
        %v1571 = vadd.f32 0.0, %v1570
        %1572 = vmatmul.f32.gmra.mxu0 %v1410
        %v1573 = vpop.f32.mrf.mxu0
        %v1574 = vadd.f32 0.0, %v1573
        %1575 = vmatmul.f32.gmra.mxu0 %v1413
        %v1576 = vpop.f32.mrf.mxu0
        %v1577 = vadd.f32 0.0, %v1576
        %1578 = vmatmul.f32.gmra.mxu0 %v1416
        %v1579 = vpop.f32.mrf.mxu0
        %v1580 = vadd.f32 0.0, %v1579
        %1581 = vmatmul.f32.gmra.mxu0 %v1419
        %v1582 = vpop.f32.mrf.mxu0
        %v1583 = vadd.f32 0.0, %v1582
        %1584 = vmatmul.f32.gmra.mxu0 %v1422
        %v1585 = vpop.f32.mrf.mxu0
        %v1586 = vadd.f32 0.0, %v1585
        %1587 = vdwg.mxu0
        %v1589 = vsel %vm1399, %v1391, 0
        %v1592 = vsel %vm1399, %v1392, 0
        %v1595 = vsel %vm1399, %v1393, 0
        %v1598 = vsel %vm1399, %v1394, 0
        %v1601 = vsel %vm1399, %v1395, 0
        %v1604 = vsel %vm1399, %v1396, 0
        %v1607 = vsel %vm1399, %v1397, 0
        %v1610 = vsel %vm1399, %v1398, 0
        %1612 = vmatpush.msra.mxu0 0.0
        %1613 = vmatpush.msra.mxu0 0.0
        %1614 = vmatpush.msra.mxu0 0.0
        %1615 = vmatpush.msra.mxu0 0.0
        %1616 = vmatpush.msra.mxu0 0.0
        %1617 = vmatpush.msra.mxu0 0.0
        %1618 = vmatpush.msra.mxu0 0.0
        %1619 = vmatpush.msra.mxu0 0.0
        %1620 = vmatpush.msra.mxu0 0.0
        %1621 = vmatpush.msra.mxu0 0.0
        %1622 = vmatpush.msra.mxu0 0.0
        %1623 = vmatpush.msra.mxu0 0.0
        %1624 = vmatpush.msra.mxu0 0.0
        %1625 = vmatpush.msra.mxu0 0.0
        %1626 = vmatpush.msra.mxu0 0.0
        %1627 = vmatpush.msra.mxu0 %v441
        %1628 = vmatmul.f32.gmra.mxu0 %v1589
        %v1629 = vpop.f32.mrf.mxu0
        %v1630 = vadd.f32 0.0, %v1629
        %1631 = vmatmul.f32.gmra.mxu0 %v1592
        %v1632 = vpop.f32.mrf.mxu0
        %v1633 = vadd.f32 0.0, %v1632
        %1634 = vmatmul.f32.gmra.mxu0 %v1595
        %v1635 = vpop.f32.mrf.mxu0
        %v1636 = vadd.f32 0.0, %v1635
        %1637 = vmatmul.f32.gmra.mxu0 %v1598
        %v1638 = vpop.f32.mrf.mxu0
        %v1639 = vadd.f32 0.0, %v1638
        %1640 = vmatmul.f32.gmra.mxu0 %v1601
        %v1641 = vpop.f32.mrf.mxu0
        %v1642 = vadd.f32 0.0, %v1641
        %1643 = vmatmul.f32.gmra.mxu0 %v1604
        %v1644 = vpop.f32.mrf.mxu0
        %v1645 = vadd.f32 0.0, %v1644
        %1646 = vmatmul.f32.gmra.mxu0 %v1607
        %v1647 = vpop.f32.mrf.mxu0
        %v1648 = vadd.f32 0.0, %v1647
        %1649 = vmatmul.f32.gmra.mxu0 %v1610
        %v1650 = vpop.f32.mrf.mxu0
        %v1651 = vadd.f32 0.0, %v1650
        %1652 = vdwg.mxu0
        %1653 = vmatpush.msra.mxu0 0.0
        %1654 = vmatpush.msra.mxu0 0.0
        %1655 = vmatpush.msra.mxu0 0.0
        %1656 = vmatpush.msra.mxu0 0.0
        %1657 = vmatpush.msra.mxu0 0.0
        %1658 = vmatpush.msra.mxu0 0.0
        %1659 = vmatpush.msra.mxu0 0.0
        %1660 = vmatpush.msra.mxu0 0.0
        %1661 = vmatpush.msra.mxu0 0.0
        %1662 = vmatpush.msra.mxu0 0.0
        %1663 = vmatpush.msra.mxu0 0.0
        %1664 = vmatpush.msra.mxu0 0.0
        %1665 = vmatpush.msra.mxu0 0.0
        %1666 = vmatpush.msra.mxu0 0.0
        %1667 = vmatpush.msra.mxu0 0.0
        %1668 = vmatpush.msra.mxu0 %v442
        %1669 = vmatmul.f32.gmra.mxu0 %v1589
        %v1670 = vpop.f32.mrf.mxu0
        %v1671 = vadd.f32 0.0, %v1670
        %1672 = vmatmul.f32.gmra.mxu0 %v1592
        %v1673 = vpop.f32.mrf.mxu0
        %v1674 = vadd.f32 0.0, %v1673
        %1675 = vmatmul.f32.gmra.mxu0 %v1595
        %v1676 = vpop.f32.mrf.mxu0
        %v1677 = vadd.f32 0.0, %v1676
        %1678 = vmatmul.f32.gmra.mxu0 %v1598
        %v1679 = vpop.f32.mrf.mxu0
        %v1680 = vadd.f32 0.0, %v1679
        %1681 = vmatmul.f32.gmra.mxu0 %v1601
        %v1682 = vpop.f32.mrf.mxu0
        %v1683 = vadd.f32 0.0, %v1682
        %1684 = vmatmul.f32.gmra.mxu0 %v1604
        %v1685 = vpop.f32.mrf.mxu0
        %v1686 = vadd.f32 0.0, %v1685
        %1687 = vmatmul.f32.gmra.mxu0 %v1607
        %v1688 = vpop.f32.mrf.mxu0
        %v1689 = vadd.f32 0.0, %v1688
        %1690 = vmatmul.f32.gmra.mxu0 %v1610
        %v1691 = vpop.f32.mrf.mxu0
        %v1692 = vadd.f32 0.0, %v1691
        %1693 = vdwg.mxu0
        %1694 = vmatpush.msra.mxu0 0.0
        %1695 = vmatpush.msra.mxu0 0.0
        %1696 = vmatpush.msra.mxu0 0.0
        %1697 = vmatpush.msra.mxu0 0.0
        %1698 = vmatpush.msra.mxu0 0.0
        %1699 = vmatpush.msra.mxu0 0.0
        %1700 = vmatpush.msra.mxu0 0.0
        %1701 = vmatpush.msra.mxu0 0.0
        %1702 = vmatpush.msra.mxu0 0.0
        %1703 = vmatpush.msra.mxu0 0.0
        %1704 = vmatpush.msra.mxu0 0.0
        %1705 = vmatpush.msra.mxu0 0.0
        %1706 = vmatpush.msra.mxu0 0.0
        %1707 = vmatpush.msra.mxu0 0.0
        %1708 = vmatpush.msra.mxu0 0.0
        %1709 = vmatpush.msra.mxu0 %v443
        %1710 = vmatmul.f32.gmra.mxu0 %v1589
        %v1711 = vpop.f32.mrf.mxu0
        %v1712 = vadd.f32 0.0, %v1711
        %1713 = vmatmul.f32.gmra.mxu0 %v1592
        %v1714 = vpop.f32.mrf.mxu0
        %v1715 = vadd.f32 0.0, %v1714
        %1716 = vmatmul.f32.gmra.mxu0 %v1595
        %v1717 = vpop.f32.mrf.mxu0
        %v1718 = vadd.f32 0.0, %v1717
        %1719 = vmatmul.f32.gmra.mxu0 %v1598
        %v1720 = vpop.f32.mrf.mxu0
        %v1721 = vadd.f32 0.0, %v1720
        %1722 = vmatmul.f32.gmra.mxu0 %v1601
        %v1723 = vpop.f32.mrf.mxu0
        %v1724 = vadd.f32 0.0, %v1723
        %1725 = vmatmul.f32.gmra.mxu0 %v1604
        %v1726 = vpop.f32.mrf.mxu0
        %v1727 = vadd.f32 0.0, %v1726
        %1728 = vmatmul.f32.gmra.mxu0 %v1607
        %v1729 = vpop.f32.mrf.mxu0
        %v1730 = vadd.f32 0.0, %v1729
        %1731 = vmatmul.f32.gmra.mxu0 %v1610
        %v1732 = vpop.f32.mrf.mxu0
        %v1733 = vadd.f32 0.0, %v1732
        %1734 = vdwg.mxu0
        %1735 = vmatpush.msra.mxu0 0.0
        %1736 = vmatpush.msra.mxu0 0.0
        %1737 = vmatpush.msra.mxu0 0.0
        %1738 = vmatpush.msra.mxu0 0.0
        %1739 = vmatpush.msra.mxu0 0.0
        %1740 = vmatpush.msra.mxu0 0.0
        %1741 = vmatpush.msra.mxu0 0.0
        %1742 = vmatpush.msra.mxu0 0.0
        %1743 = vmatpush.msra.mxu0 0.0
        %1744 = vmatpush.msra.mxu0 0.0
        %1745 = vmatpush.msra.mxu0 0.0
        %1746 = vmatpush.msra.mxu0 0.0
        %1747 = vmatpush.msra.mxu0 0.0
        %1748 = vmatpush.msra.mxu0 0.0
        %1749 = vmatpush.msra.mxu0 0.0
        %1750 = vmatpush.msra.mxu0 %v444
        %1751 = vmatmul.f32.gmra.mxu0 %v1589
        %v1752 = vpop.f32.mrf.mxu0
        %v1753 = vadd.f32 0.0, %v1752
        %1754 = vmatmul.f32.gmra.mxu0 %v1592
        %v1755 = vpop.f32.mrf.mxu0
        %v1756 = vadd.f32 0.0, %v1755
        %1757 = vmatmul.f32.gmra.mxu0 %v1595
        %v1758 = vpop.f32.mrf.mxu0
        %v1759 = vadd.f32 0.0, %v1758
        %1760 = vmatmul.f32.gmra.mxu0 %v1598
        %v1761 = vpop.f32.mrf.mxu0
        %v1762 = vadd.f32 0.0, %v1761
        %1763 = vmatmul.f32.gmra.mxu0 %v1601
        %v1764 = vpop.f32.mrf.mxu0
        %v1765 = vadd.f32 0.0, %v1764
        %1766 = vmatmul.f32.gmra.mxu0 %v1604
        %v1767 = vpop.f32.mrf.mxu0
        %v1768 = vadd.f32 0.0, %v1767
        %1769 = vmatmul.f32.gmra.mxu0 %v1607
        %v1770 = vpop.f32.mrf.mxu0
        %v1771 = vadd.f32 0.0, %v1770
        %1772 = vmatmul.f32.gmra.mxu0 %v1610
        %v1773 = vpop.f32.mrf.mxu0
        %v1774 = vadd.f32 0.0, %v1773
        %1775 = vdwg.mxu0
        %v1776 = vmul.f32 %v791, %v1442
        %v1777 = vmul.f32 %v792, %v1483
        %v1778 = vmul.f32 %v793, %v1524
        %v1779 = vmul.f32 %v794, %v1565
        %v1780 = vmul.f32 %v795, %v1445
        %v1781 = vmul.f32 %v796, %v1486
        %v1782 = vmul.f32 %v797, %v1527
        %v1783 = vmul.f32 %v798, %v1568
        %v1784 = vmul.f32 %v799, %v1448
        %v1785 = vmul.f32 %v800, %v1489
        %v1786 = vmul.f32 %v801, %v1530
        %v1787 = vmul.f32 %v802, %v1571
        %v1788 = vmul.f32 %v803, %v1451
        %v1789 = vmul.f32 %v804, %v1492
        %v1790 = vmul.f32 %v805, %v1533
        %v1791 = vmul.f32 %v806, %v1574
        %v1792 = vmul.f32 %v807, %v1454
        %v1793 = vmul.f32 %v808, %v1495
        %v1794 = vmul.f32 %v809, %v1536
        %v1795 = vmul.f32 %v810, %v1577
        %v1796 = vmul.f32 %v811, %v1457
        %v1797 = vmul.f32 %v812, %v1498
        %v1798 = vmul.f32 %v813, %v1539
        %v1799 = vmul.f32 %v814, %v1580
        %v1800 = vmul.f32 %v815, %v1460
        %v1801 = vmul.f32 %v816, %v1501
        %v1802 = vmul.f32 %v817, %v1542
        %v1803 = vmul.f32 %v818, %v1583
        %v1804 = vmul.f32 %v819, %v1463
        %v1805 = vmul.f32 %v820, %v1504
        %v1806 = vmul.f32 %v821, %v1545
        %v1807 = vmul.f32 %v822, %v1586
        %v1808 = vadd.f32 %v1776, %v1630
        %v1809 = vadd.f32 %v1777, %v1671
        %v1810 = vadd.f32 %v1778, %v1712
        %v1811 = vadd.f32 %v1779, %v1753
        %v1812 = vadd.f32 %v1780, %v1633
        %v1813 = vadd.f32 %v1781, %v1674
        %v1814 = vadd.f32 %v1782, %v1715
        %v1815 = vadd.f32 %v1783, %v1756
        %v1816 = vadd.f32 %v1784, %v1636
        %v1817 = vadd.f32 %v1785, %v1677
        %v1818 = vadd.f32 %v1786, %v1718
        %v1819 = vadd.f32 %v1787, %v1759
        %v1820 = vadd.f32 %v1788, %v1639
        %v1821 = vadd.f32 %v1789, %v1680
        %v1822 = vadd.f32 %v1790, %v1721
        %v1823 = vadd.f32 %v1791, %v1762
        %v1824 = vadd.f32 %v1792, %v1642
        %v1825 = vadd.f32 %v1793, %v1683
        %v1826 = vadd.f32 %v1794, %v1724
        %v1827 = vadd.f32 %v1795, %v1765
        %v1828 = vadd.f32 %v1796, %v1645
        %v1829 = vadd.f32 %v1797, %v1686
        %v1830 = vadd.f32 %v1798, %v1727
        %v1831 = vadd.f32 %v1799, %v1768
        %v1832 = vadd.f32 %v1800, %v1648
        %v1833 = vadd.f32 %v1801, %v1689
        %v1834 = vadd.f32 %v1802, %v1730
        %v1835 = vadd.f32 %v1803, %v1771
        %v1836 = vadd.f32 %v1804, %v1651
        %v1837 = vadd.f32 %v1805, %v1692
        %v1838 = vadd.f32 %v1806, %v1733
        %v1839 = vadd.f32 %v1807, %v1774
        %1840 = vrot.lane.b32.xlu0 %v1808, 8
        %v1841 = vpop.permute.xlu0 %1840
        %1842 = vrot.lane.b32.xlu0 %v1812, 8
        %v1843 = vpop.permute.xlu0 %1842
        %1844 = vrot.lane.b32.xlu0 %v1816, 8
        %v1845 = vpop.permute.xlu0 %1844
        %1846 = vrot.lane.b32.xlu0 %v1820, 8
        %v1847 = vpop.permute.xlu0 %1846
        %1848 = vrot.lane.b32.xlu0 %v1824, 8
        %v1849 = vpop.permute.xlu0 %1848
        %1850 = vrot.lane.b32.xlu0 %v1828, 8
        %v1851 = vpop.permute.xlu0 %1850
        %1852 = vrot.lane.b32.xlu0 %v1832, 8
        %v1853 = vpop.permute.xlu0 %1852
        %1854 = vrot.lane.b32.xlu0 %v1836, 8
        %v1855 = vpop.permute.xlu0 %1854
        %1856 = vrot.lane.b32.xlu0 %v1809, 8
        %v1857 = vpop.permute.xlu0 %1856
        %1858 = vrot.lane.b32.xlu0 %v1813, 8
        %v1859 = vpop.permute.xlu0 %1858
        %1860 = vrot.lane.b32.xlu0 %v1817, 8
        %v1861 = vpop.permute.xlu0 %1860
        %1862 = vrot.lane.b32.xlu0 %v1821, 8
        %v1863 = vpop.permute.xlu0 %1862
        %1864 = vrot.lane.b32.xlu0 %v1825, 8
        %v1865 = vpop.permute.xlu0 %1864
        %1866 = vrot.lane.b32.xlu0 %v1829, 8
        %v1867 = vpop.permute.xlu0 %1866
        %1868 = vrot.lane.b32.xlu0 %v1833, 8
        %v1869 = vpop.permute.xlu0 %1868
        %1870 = vrot.lane.b32.xlu0 %v1837, 8
        %v1871 = vpop.permute.xlu0 %1870
        %1872 = vrot.lane.b32.xlu0 %v1810, 8
        %v1873 = vpop.permute.xlu0 %1872
        %1874 = vrot.lane.b32.xlu0 %v1814, 8
        %v1875 = vpop.permute.xlu0 %1874
        %1876 = vrot.lane.b32.xlu0 %v1818, 8
        %v1877 = vpop.permute.xlu0 %1876
        %1878 = vrot.lane.b32.xlu0 %v1822, 8
        %v1879 = vpop.permute.xlu0 %1878
        %1880 = vrot.lane.b32.xlu0 %v1826, 8
        %v1881 = vpop.permute.xlu0 %1880
        %1882 = vrot.lane.b32.xlu0 %v1830, 8
        %v1883 = vpop.permute.xlu0 %1882
        %1884 = vrot.lane.b32.xlu0 %v1834, 8
        %v1885 = vpop.permute.xlu0 %1884
        %1886 = vrot.lane.b32.xlu0 %v1838, 8
        %v1887 = vpop.permute.xlu0 %1886
        %1888 = vrot.lane.b32.xlu0 %v1811, 8
        %v1889 = vpop.permute.xlu0 %1888
        %1890 = vrot.lane.b32.xlu0 %v1815, 8
        %v1891 = vpop.permute.xlu0 %1890
        %1892 = vrot.lane.b32.xlu0 %v1819, 8
        %v1893 = vpop.permute.xlu0 %1892
        %1894 = vrot.lane.b32.xlu0 %v1823, 8
        %v1895 = vpop.permute.xlu0 %1894
        %1896 = vrot.lane.b32.xlu0 %v1827, 8
        %v1897 = vpop.permute.xlu0 %1896
        %1898 = vrot.lane.b32.xlu0 %v1831, 8
        %v1899 = vpop.permute.xlu0 %1898
        %1900 = vrot.lane.b32.xlu0 %v1835, 8
        %v1901 = vpop.permute.xlu0 %1900
        %1902 = vrot.lane.b32.xlu0 %v1839, 8
        %v1903 = vpop.permute.xlu0 %1902
        %vm1904 = vcmp.lt.s32.totalorder %v446, 8
        %v1905 = vsel %vm1904, %v1873, %v1889
        %v1906 = vsel %vm1904, %v1875, %v1891
        %v1907 = vsel %vm1904, %v1877, %v1893
        %v1908 = vsel %vm1904, %v1879, %v1895
        %v1909 = vsel %vm1904, %v1881, %v1897
        %v1910 = vsel %vm1904, %v1883, %v1899
        %v1911 = vsel %vm1904, %v1885, %v1901
        %v1912 = vsel %vm1904, %v1887, %v1903
        %v1913 = vsel %vm1904, %v1857, %v1873
        %v1914 = vsel %vm1904, %v1859, %v1875
        %v1915 = vsel %vm1904, %v1861, %v1877
        %v1916 = vsel %vm1904, %v1863, %v1879
        %v1917 = vsel %vm1904, %v1865, %v1881
        %v1918 = vsel %vm1904, %v1867, %v1883
        %v1919 = vsel %vm1904, %v1869, %v1885
        %v1920 = vsel %vm1904, %v1871, %v1887
        %v1921 = vsel %vm1904, %v1841, %v1857
        %v1922 = vsel %vm1904, %v1843, %v1859
        %v1923 = vsel %vm1904, %v1845, %v1861
        %v1924 = vsel %vm1904, %v1847, %v1863
        %v1925 = vsel %vm1904, %v1849, %v1865
        %v1926 = vsel %vm1904, %v1851, %v1867
        %v1927 = vsel %vm1904, %v1853, %v1869
        %v1928 = vsel %vm1904, %v1855, %v1871
        %v1929 = vsel %vm1904, %v1889, %v1841
        %v1930 = vsel %vm1904, %v1891, %v1843
        %v1931 = vsel %vm1904, %v1893, %v1845
        %v1932 = vsel %vm1904, %v1895, %v1847
        %v1933 = vsel %vm1904, %v1897, %v1849
        %v1934 = vsel %vm1904, %v1899, %v1851
        %v1935 = vsel %vm1904, %v1901, %v1853
        %v1936 = vsel %vm1904, %v1903, %v1855
        %v1937 = vsel %vm510, %v1929, 0.0
        %v1938 = vsel %vm511, %v1921, 0.0
        %v1939 = vsel %vm512, %v1913, 0.0
        %v1940 = vsel %vm513, %v1905, 0.0
        %v1941 = vsel %vm510, %v1930, 0.0
        %v1942 = vsel %vm511, %v1922, 0.0
        %v1943 = vsel %vm512, %v1914, 0.0
        %v1944 = vsel %vm513, %v1906, 0.0
        %v1945 = vsel %vm510, %v1931, 0.0
        %v1946 = vsel %vm511, %v1923, 0.0
        %v1947 = vsel %vm512, %v1915, 0.0
        %v1948 = vsel %vm513, %v1907, 0.0
        %v1949 = vsel %vm510, %v1932, 0.0
        %v1950 = vsel %vm511, %v1924, 0.0
        %v1951 = vsel %vm512, %v1916, 0.0
        %v1952 = vsel %vm513, %v1908, 0.0
        %v1953 = vsel %vm510, %v1933, 0.0
        %v1954 = vsel %vm511, %v1925, 0.0
        %v1955 = vsel %vm512, %v1917, 0.0
        %v1956 = vsel %vm513, %v1909, 0.0
        %v1957 = vsel %vm510, %v1934, 0.0
        %v1958 = vsel %vm511, %v1926, 0.0
        %v1959 = vsel %vm512, %v1918, 0.0
        %v1960 = vsel %vm513, %v1910, 0.0
        %v1961 = vsel %vm510, %v1935, 0.0
        %v1962 = vsel %vm511, %v1927, 0.0
        %v1963 = vsel %vm512, %v1919, 0.0
        %v1964 = vsel %vm513, %v1911, 0.0
        %v1965 = vsel %vm510, %v1936, 0.0
        %v1966 = vsel %vm511, %v1928, 0.0
        %v1967 = vsel %vm512, %v1920, 0.0
        %v1968 = vsel %vm513, %v1912, 0.0
        %v1969 = vpack.c.bf16 %v1938, %v1937
        %v1970 = vpack.c.bf16 %v1940, %v1939
        %v1971 = vpack.c.bf16 %v1942, %v1941
        %v1972 = vpack.c.bf16 %v1944, %v1943
        %v1973 = vpack.c.bf16 %v1946, %v1945
        %v1974 = vpack.c.bf16 %v1948, %v1947
        %v1975 = vpack.c.bf16 %v1950, %v1949
        %v1976 = vpack.c.bf16 %v1952, %v1951
        %v1977 = vpack.c.bf16 %v1954, %v1953
        %v1978 = vpack.c.bf16 %v1956, %v1955
        %v1979 = vpack.c.bf16 %v1958, %v1957
        %v1980 = vpack.c.bf16 %v1960, %v1959
        %v1981 = vpack.c.bf16 %v1962, %v1961
        %v1982 = vpack.c.bf16 %v1964, %v1963
        %v1983 = vpack.c.bf16 %v1966, %v1965
        %v1984 = vpack.c.bf16 %v1968, %v1967
        %1985 = vst [vmem:[#allocation2] sm:$0xff] %v1969
        %1986 = vst [vmem:[#allocation2 + $0x8] sm:$0xff] %v1970
        %1987 = vst [vmem:[#allocation2 + $0x10] sm:$0xff] %v1971
        %1988 = vst [vmem:[#allocation2 + $0x18] sm:$0xff] %v1972
        %1989 = vst [vmem:[#allocation2 + $0x20] sm:$0xff] %v1973
        %1990 = vst [vmem:[#allocation2 + $0x28] sm:$0xff] %v1974
        %1991 = vst [vmem:[#allocation2 + $0x30] sm:$0xff] %v1975
        %1992 = vst [vmem:[#allocation2 + $0x38] sm:$0xff] %v1976
        %1993 = vst [vmem:[#allocation2 + $0x40] sm:$0xff] %v1977
        %1994 = vst [vmem:[#allocation2 + $0x48] sm:$0xff] %v1978
        %1995 = vst [vmem:[#allocation2 + $0x50] sm:$0xff] %v1979
        %1996 = vst [vmem:[#allocation2 + $0x58] sm:$0xff] %v1980
        %1997 = vst [vmem:[#allocation2 + $0x60] sm:$0xff] %v1981
        %1998 = vst [vmem:[#allocation2 + $0x68] sm:$0xff] %v1982
        %1999 = vst [vmem:[#allocation2 + $0x70] sm:$0xff] %v1983
        %2000 = vst [vmem:[#allocation2 + $0x78] sm:$0xff] %v1984
        %2001 = vrot.lane.b32.xlu0 %v1808, 6
        %v2002 = vpop.permute.xlu0 %2001
        %2003 = vrot.lane.b32.xlu0 %v1812, 6
        %v2004 = vpop.permute.xlu0 %2003
        %2005 = vrot.lane.b32.xlu0 %v1816, 6
        %v2006 = vpop.permute.xlu0 %2005
        %2007 = vrot.lane.b32.xlu0 %v1820, 6
        %v2008 = vpop.permute.xlu0 %2007
        %2009 = vrot.lane.b32.xlu0 %v1824, 6
        %v2010 = vpop.permute.xlu0 %2009
        %2011 = vrot.lane.b32.xlu0 %v1828, 6
        %v2012 = vpop.permute.xlu0 %2011
        %2013 = vrot.lane.b32.xlu0 %v1832, 6
        %v2014 = vpop.permute.xlu0 %2013
        %2015 = vrot.lane.b32.xlu0 %v1836, 6
        %v2016 = vpop.permute.xlu0 %2015
        %2017 = vrot.lane.b32.xlu0 %v1809, 6
        %v2018 = vpop.permute.xlu0 %2017
        %2019 = vrot.lane.b32.xlu0 %v1813, 6
        %v2020 = vpop.permute.xlu0 %2019
        %2021 = vrot.lane.b32.xlu0 %v1817, 6
        %v2022 = vpop.permute.xlu0 %2021
        %2023 = vrot.lane.b32.xlu0 %v1821, 6
        %v2024 = vpop.permute.xlu0 %2023
        %2025 = vrot.lane.b32.xlu0 %v1825, 6
        %v2026 = vpop.permute.xlu0 %2025
        %2027 = vrot.lane.b32.xlu0 %v1829, 6
        %v2028 = vpop.permute.xlu0 %2027
        %2029 = vrot.lane.b32.xlu0 %v1833, 6
        %v2030 = vpop.permute.xlu0 %2029
        %2031 = vrot.lane.b32.xlu0 %v1837, 6
        %v2032 = vpop.permute.xlu0 %2031
        %2033 = vrot.lane.b32.xlu0 %v1810, 6
        %v2034 = vpop.permute.xlu0 %2033
        %2035 = vrot.lane.b32.xlu0 %v1814, 6
        %v2036 = vpop.permute.xlu0 %2035
        %2037 = vrot.lane.b32.xlu0 %v1818, 6
        %v2038 = vpop.permute.xlu0 %2037
        %2039 = vrot.lane.b32.xlu0 %v1822, 6
        %v2040 = vpop.permute.xlu0 %2039
        %2041 = vrot.lane.b32.xlu0 %v1826, 6
        %v2042 = vpop.permute.xlu0 %2041
        %2043 = vrot.lane.b32.xlu0 %v1830, 6
        %v2044 = vpop.permute.xlu0 %2043
        %2045 = vrot.lane.b32.xlu0 %v1834, 6
        %v2046 = vpop.permute.xlu0 %2045
        %2047 = vrot.lane.b32.xlu0 %v1838, 6
        %v2048 = vpop.permute.xlu0 %2047
        %2049 = vrot.lane.b32.xlu0 %v1811, 6
        %v2050 = vpop.permute.xlu0 %2049
        %2051 = vrot.lane.b32.xlu0 %v1815, 6
        %v2052 = vpop.permute.xlu0 %2051
        %2053 = vrot.lane.b32.xlu0 %v1819, 6
        %v2054 = vpop.permute.xlu0 %2053
        %2055 = vrot.lane.b32.xlu0 %v1823, 6
        %v2056 = vpop.permute.xlu0 %2055
        %2057 = vrot.lane.b32.xlu0 %v1827, 6
        %v2058 = vpop.permute.xlu0 %2057
        %2059 = vrot.lane.b32.xlu0 %v1831, 6
        %v2060 = vpop.permute.xlu0 %2059
        %2061 = vrot.lane.b32.xlu0 %v1835, 6
        %v2062 = vpop.permute.xlu0 %2061
        %2063 = vrot.lane.b32.xlu0 %v1839, 6
        %v2064 = vpop.permute.xlu0 %2063
        %vm2065 = vcmp.lt.s32.totalorder %v446, 6
        %v2066 = vsel %vm2065, %v2034, %v2050
        %v2067 = vsel %vm2065, %v2036, %v2052
        %v2068 = vsel %vm2065, %v2038, %v2054
        %v2069 = vsel %vm2065, %v2040, %v2056
        %v2070 = vsel %vm2065, %v2042, %v2058
        %v2071 = vsel %vm2065, %v2044, %v2060
        %v2072 = vsel %vm2065, %v2046, %v2062
        %v2073 = vsel %vm2065, %v2048, %v2064
        %v2074 = vsel %vm2065, %v2018, %v2034
        %v2075 = vsel %vm2065, %v2020, %v2036
        %v2076 = vsel %vm2065, %v2022, %v2038
        %v2077 = vsel %vm2065, %v2024, %v2040
        %v2078 = vsel %vm2065, %v2026, %v2042
        %v2079 = vsel %vm2065, %v2028, %v2044
        %v2080 = vsel %vm2065, %v2030, %v2046
        %v2081 = vsel %vm2065, %v2032, %v2048
        %v2082 = vsel %vm2065, %v2002, %v2018
        %v2083 = vsel %vm2065, %v2004, %v2020
        %v2084 = vsel %vm2065, %v2006, %v2022
        %v2085 = vsel %vm2065, %v2008, %v2024
        %v2086 = vsel %vm2065, %v2010, %v2026
        %v2087 = vsel %vm2065, %v2012, %v2028
        %v2088 = vsel %vm2065, %v2014, %v2030
        %v2089 = vsel %vm2065, %v2016, %v2032
        %v2090 = vsel %vm2065, %v2050, %v2002
        %v2091 = vsel %vm2065, %v2052, %v2004
        %v2092 = vsel %vm2065, %v2054, %v2006
        %v2093 = vsel %vm2065, %v2056, %v2008
        %v2094 = vsel %vm2065, %v2058, %v2010
        %v2095 = vsel %vm2065, %v2060, %v2012
        %v2096 = vsel %vm2065, %v2062, %v2014
        %v2097 = vsel %vm2065, %v2064, %v2016
        %v2098 = vsel %vm506, %v2090, 0.0
        %v2099 = vsel %vm507, %v2082, 0.0
        %v2100 = vsel %vm508, %v2074, 0.0
        %v2101 = vsel %vm509, %v2066, 0.0
        %v2102 = vsel %vm506, %v2091, 0.0
        %v2103 = vsel %vm507, %v2083, 0.0
        %v2104 = vsel %vm508, %v2075, 0.0
        %v2105 = vsel %vm509, %v2067, 0.0
        %v2106 = vsel %vm506, %v2092, 0.0
        %v2107 = vsel %vm507, %v2084, 0.0
        %v2108 = vsel %vm508, %v2076, 0.0
        %v2109 = vsel %vm509, %v2068, 0.0
        %v2110 = vsel %vm506, %v2093, 0.0
        %v2111 = vsel %vm507, %v2085, 0.0
        %v2112 = vsel %vm508, %v2077, 0.0
        %v2113 = vsel %vm509, %v2069, 0.0
        %v2114 = vsel %vm506, %v2094, 0.0
        %v2115 = vsel %vm507, %v2086, 0.0
        %v2116 = vsel %vm508, %v2078, 0.0
        %v2117 = vsel %vm509, %v2070, 0.0
        %v2118 = vsel %vm506, %v2095, 0.0
        %v2119 = vsel %vm507, %v2087, 0.0
        %v2120 = vsel %vm508, %v2079, 0.0
        %v2121 = vsel %vm509, %v2071, 0.0
        %v2122 = vsel %vm506, %v2096, 0.0
        %v2123 = vsel %vm507, %v2088, 0.0
        %v2124 = vsel %vm508, %v2080, 0.0
        %v2125 = vsel %vm509, %v2072, 0.0
        %v2126 = vsel %vm506, %v2097, 0.0
        %v2127 = vsel %vm507, %v2089, 0.0
        %v2128 = vsel %vm508, %v2081, 0.0
        %v2129 = vsel %vm509, %v2073, 0.0
        %v2130 = vpack.c.bf16 %v2099, %v2098
        %v2131 = vpack.c.bf16 %v2101, %v2100
        %v2132 = vpack.c.bf16 %v2103, %v2102
        %v2133 = vpack.c.bf16 %v2105, %v2104
        %v2134 = vpack.c.bf16 %v2107, %v2106
        %v2135 = vpack.c.bf16 %v2109, %v2108
        %v2136 = vpack.c.bf16 %v2111, %v2110
        %v2137 = vpack.c.bf16 %v2113, %v2112
        %v2138 = vpack.c.bf16 %v2115, %v2114
        %v2139 = vpack.c.bf16 %v2117, %v2116
        %v2140 = vpack.c.bf16 %v2119, %v2118
        %v2141 = vpack.c.bf16 %v2121, %v2120
        %v2142 = vpack.c.bf16 %v2123, %v2122
        %v2143 = vpack.c.bf16 %v2125, %v2124
        %v2144 = vpack.c.bf16 %v2127, %v2126
        %v2145 = vpack.c.bf16 %v2129, %v2128
        %2146 = vst [vmem:[#allocation2 + $0x80] sm:$0xff] %v2130
        %2147 = vst [vmem:[#allocation2 + $0x88] sm:$0xff] %v2131
        %2148 = vst [vmem:[#allocation2 + $0x90] sm:$0xff] %v2132
        %2149 = vst [vmem:[#allocation2 + $0x98] sm:$0xff] %v2133
        %2150 = vst [vmem:[#allocation2 + $0xa0] sm:$0xff] %v2134
        %2151 = vst [vmem:[#allocation2 + $0xa8] sm:$0xff] %v2135
        %2152 = vst [vmem:[#allocation2 + $0xb0] sm:$0xff] %v2136
        %2153 = vst [vmem:[#allocation2 + $0xb8] sm:$0xff] %v2137
        %2154 = vst [vmem:[#allocation2 + $0xc0] sm:$0xff] %v2138
        %2155 = vst [vmem:[#allocation2 + $0xc8] sm:$0xff] %v2139
        %2156 = vst [vmem:[#allocation2 + $0xd0] sm:$0xff] %v2140
        %2157 = vst [vmem:[#allocation2 + $0xd8] sm:$0xff] %v2141
        %2158 = vst [vmem:[#allocation2 + $0xe0] sm:$0xff] %v2142
        %2159 = vst [vmem:[#allocation2 + $0xe8] sm:$0xff] %v2143
        %2160 = vst [vmem:[#allocation2 + $0xf0] sm:$0xff] %v2144
        %2161 = vst [vmem:[#allocation2 + $0xf8] sm:$0xff] %v2145
        %2162 = vrot.lane.b32.xlu0 %v1808, 4
        %v2163 = vpop.permute.xlu0 %2162
        %2164 = vrot.lane.b32.xlu0 %v1812, 4
        %v2165 = vpop.permute.xlu0 %2164
        %2166 = vrot.lane.b32.xlu0 %v1816, 4
        %v2167 = vpop.permute.xlu0 %2166
        %2168 = vrot.lane.b32.xlu0 %v1820, 4
        %v2169 = vpop.permute.xlu0 %2168
        %2170 = vrot.lane.b32.xlu0 %v1824, 4
        %v2171 = vpop.permute.xlu0 %2170
        %2172 = vrot.lane.b32.xlu0 %v1828, 4
        %v2173 = vpop.permute.xlu0 %2172
        %2174 = vrot.lane.b32.xlu0 %v1832, 4
        %v2175 = vpop.permute.xlu0 %2174
        %2176 = vrot.lane.b32.xlu0 %v1836, 4
        %v2177 = vpop.permute.xlu0 %2176
        %2178 = vrot.lane.b32.xlu0 %v1809, 4
        %v2179 = vpop.permute.xlu0 %2178
        %2180 = vrot.lane.b32.xlu0 %v1813, 4
        %v2181 = vpop.permute.xlu0 %2180
        %2182 = vrot.lane.b32.xlu0 %v1817, 4
        %v2183 = vpop.permute.xlu0 %2182
        %2184 = vrot.lane.b32.xlu0 %v1821, 4
        %v2185 = vpop.permute.xlu0 %2184
        %2186 = vrot.lane.b32.xlu0 %v1825, 4
        %v2187 = vpop.permute.xlu0 %2186
        %2188 = vrot.lane.b32.xlu0 %v1829, 4
        %v2189 = vpop.permute.xlu0 %2188
        %2190 = vrot.lane.b32.xlu0 %v1833, 4
        %v2191 = vpop.permute.xlu0 %2190
        %2192 = vrot.lane.b32.xlu0 %v1837, 4
        %v2193 = vpop.permute.xlu0 %2192
        %2194 = vrot.lane.b32.xlu0 %v1810, 4
        %v2195 = vpop.permute.xlu0 %2194
        %2196 = vrot.lane.b32.xlu0 %v1814, 4
        %v2197 = vpop.permute.xlu0 %2196
        %2198 = vrot.lane.b32.xlu0 %v1818, 4
        %v2199 = vpop.permute.xlu0 %2198
        %2200 = vrot.lane.b32.xlu0 %v1822, 4
        %v2201 = vpop.permute.xlu0 %2200
        %2202 = vrot.lane.b32.xlu0 %v1826, 4
        %v2203 = vpop.permute.xlu0 %2202
        %2204 = vrot.lane.b32.xlu0 %v1830, 4
        %v2205 = vpop.permute.xlu0 %2204
        %2206 = vrot.lane.b32.xlu0 %v1834, 4
        %v2207 = vpop.permute.xlu0 %2206
        %2208 = vrot.lane.b32.xlu0 %v1838, 4
        %v2209 = vpop.permute.xlu0 %2208
        %2210 = vrot.lane.b32.xlu0 %v1811, 4
        %v2211 = vpop.permute.xlu0 %2210
        %2212 = vrot.lane.b32.xlu0 %v1815, 4
        %v2213 = vpop.permute.xlu0 %2212
        %2214 = vrot.lane.b32.xlu0 %v1819, 4
        %v2215 = vpop.permute.xlu0 %2214
        %2216 = vrot.lane.b32.xlu0 %v1823, 4
        %v2217 = vpop.permute.xlu0 %2216
        %2218 = vrot.lane.b32.xlu0 %v1827, 4
        %v2219 = vpop.permute.xlu0 %2218
        %2220 = vrot.lane.b32.xlu0 %v1831, 4
        %v2221 = vpop.permute.xlu0 %2220
        %2222 = vrot.lane.b32.xlu0 %v1835, 4
        %v2223 = vpop.permute.xlu0 %2222
        %2224 = vrot.lane.b32.xlu0 %v1839, 4
        %v2225 = vpop.permute.xlu0 %2224
        %vm2226 = vcmp.lt.s32.totalorder %v446, 4
        %v2227 = vsel %vm2226, %v2195, %v2211
        %v2228 = vsel %vm2226, %v2197, %v2213
        %v2229 = vsel %vm2226, %v2199, %v2215
        %v2230 = vsel %vm2226, %v2201, %v2217
        %v2231 = vsel %vm2226, %v2203, %v2219
        %v2232 = vsel %vm2226, %v2205, %v2221
        %v2233 = vsel %vm2226, %v2207, %v2223
        %v2234 = vsel %vm2226, %v2209, %v2225
        %v2235 = vsel %vm2226, %v2179, %v2195
        %v2236 = vsel %vm2226, %v2181, %v2197
        %v2237 = vsel %vm2226, %v2183, %v2199
        %v2238 = vsel %vm2226, %v2185, %v2201
        %v2239 = vsel %vm2226, %v2187, %v2203
        %v2240 = vsel %vm2226, %v2189, %v2205
        %v2241 = vsel %vm2226, %v2191, %v2207
        %v2242 = vsel %vm2226, %v2193, %v2209
        %v2243 = vsel %vm2226, %v2163, %v2179
        %v2244 = vsel %vm2226, %v2165, %v2181
        %v2245 = vsel %vm2226, %v2167, %v2183
        %v2246 = vsel %vm2226, %v2169, %v2185
        %v2247 = vsel %vm2226, %v2171, %v2187
        %v2248 = vsel %vm2226, %v2173, %v2189
        %v2249 = vsel %vm2226, %v2175, %v2191
        %v2250 = vsel %vm2226, %v2177, %v2193
        %v2251 = vsel %vm2226, %v2211, %v2163
        %v2252 = vsel %vm2226, %v2213, %v2165
        %v2253 = vsel %vm2226, %v2215, %v2167
        %v2254 = vsel %vm2226, %v2217, %v2169
        %v2255 = vsel %vm2226, %v2219, %v2171
        %v2256 = vsel %vm2226, %v2221, %v2173
        %v2257 = vsel %vm2226, %v2223, %v2175
        %v2258 = vsel %vm2226, %v2225, %v2177
        %v2259 = vsel %vm502, %v2251, 0.0
        %v2260 = vsel %vm503, %v2243, 0.0
        %v2261 = vsel %vm504, %v2235, 0.0
        %v2262 = vsel %vm505, %v2227, 0.0
        %v2263 = vsel %vm502, %v2252, 0.0
        %v2264 = vsel %vm503, %v2244, 0.0
        %v2265 = vsel %vm504, %v2236, 0.0
        %v2266 = vsel %vm505, %v2228, 0.0
        %v2267 = vsel %vm502, %v2253, 0.0
        %v2268 = vsel %vm503, %v2245, 0.0
        %v2269 = vsel %vm504, %v2237, 0.0
        %v2270 = vsel %vm505, %v2229, 0.0
        %v2271 = vsel %vm502, %v2254, 0.0
        %v2272 = vsel %vm503, %v2246, 0.0
        %v2273 = vsel %vm504, %v2238, 0.0
        %v2274 = vsel %vm505, %v2230, 0.0
        %v2275 = vsel %vm502, %v2255, 0.0
        %v2276 = vsel %vm503, %v2247, 0.0
        %v2277 = vsel %vm504, %v2239, 0.0
        %v2278 = vsel %vm505, %v2231, 0.0
        %v2279 = vsel %vm502, %v2256, 0.0
        %v2280 = vsel %vm503, %v2248, 0.0
        %v2281 = vsel %vm504, %v2240, 0.0
        %v2282 = vsel %vm505, %v2232, 0.0
        %v2283 = vsel %vm502, %v2257, 0.0
        %v2284 = vsel %vm503, %v2249, 0.0
        %v2285 = vsel %vm504, %v2241, 0.0
        %v2286 = vsel %vm505, %v2233, 0.0
        %v2287 = vsel %vm502, %v2258, 0.0
        %v2288 = vsel %vm503, %v2250, 0.0
        %v2289 = vsel %vm504, %v2242, 0.0
        %v2290 = vsel %vm505, %v2234, 0.0
        %v2291 = vpack.c.bf16 %v2260, %v2259
        %v2292 = vpack.c.bf16 %v2262, %v2261
        %v2293 = vpack.c.bf16 %v2264, %v2263
        %v2294 = vpack.c.bf16 %v2266, %v2265
        %v2295 = vpack.c.bf16 %v2268, %v2267
        %v2296 = vpack.c.bf16 %v2270, %v2269
        %v2297 = vpack.c.bf16 %v2272, %v2271
        %v2298 = vpack.c.bf16 %v2274, %v2273
        %v2299 = vpack.c.bf16 %v2276, %v2275
        %v2300 = vpack.c.bf16 %v2278, %v2277
        %v2301 = vpack.c.bf16 %v2280, %v2279
        %v2302 = vpack.c.bf16 %v2282, %v2281
        %v2303 = vpack.c.bf16 %v2284, %v2283
        %v2304 = vpack.c.bf16 %v2286, %v2285
        %v2305 = vpack.c.bf16 %v2288, %v2287
        %v2306 = vpack.c.bf16 %v2290, %v2289
        %2307 = vst [vmem:[#allocation2 + $0x100] sm:$0xff] %v2291
        %2308 = vst [vmem:[#allocation2 + $0x108] sm:$0xff] %v2292
        %2309 = vst [vmem:[#allocation2 + $0x110] sm:$0xff] %v2293
        %2310 = vst [vmem:[#allocation2 + $0x118] sm:$0xff] %v2294
        %2311 = vst [vmem:[#allocation2 + $0x120] sm:$0xff] %v2295
        %2312 = vst [vmem:[#allocation2 + $0x128] sm:$0xff] %v2296
        %2313 = vst [vmem:[#allocation2 + $0x130] sm:$0xff] %v2297
        %2314 = vst [vmem:[#allocation2 + $0x138] sm:$0xff] %v2298
        %2315 = vst [vmem:[#allocation2 + $0x140] sm:$0xff] %v2299
        %2316 = vst [vmem:[#allocation2 + $0x148] sm:$0xff] %v2300
        %2317 = vst [vmem:[#allocation2 + $0x150] sm:$0xff] %v2301
        %2318 = vst [vmem:[#allocation2 + $0x158] sm:$0xff] %v2302
        %2319 = vst [vmem:[#allocation2 + $0x160] sm:$0xff] %v2303
        %2320 = vst [vmem:[#allocation2 + $0x168] sm:$0xff] %v2304
        %2321 = vst [vmem:[#allocation2 + $0x170] sm:$0xff] %v2305
        %2322 = vst [vmem:[#allocation2 + $0x178] sm:$0xff] %v2306
        %2323 = vrot.lane.b32.xlu0 %v1808, 2
        %v2324 = vpop.permute.xlu0 %2323
        %2325 = vrot.lane.b32.xlu0 %v1812, 2
        %v2326 = vpop.permute.xlu0 %2325
        %2327 = vrot.lane.b32.xlu0 %v1816, 2
        %v2328 = vpop.permute.xlu0 %2327
        %2329 = vrot.lane.b32.xlu0 %v1820, 2
        %v2330 = vpop.permute.xlu0 %2329
        %2331 = vrot.lane.b32.xlu0 %v1824, 2
        %v2332 = vpop.permute.xlu0 %2331
        %2333 = vrot.lane.b32.xlu0 %v1828, 2
        %v2334 = vpop.permute.xlu0 %2333
        %2335 = vrot.lane.b32.xlu0 %v1832, 2
        %v2336 = vpop.permute.xlu0 %2335
        %2337 = vrot.lane.b32.xlu0 %v1836, 2
        %v2338 = vpop.permute.xlu0 %2337
        %2339 = vrot.lane.b32.xlu0 %v1809, 2
        %v2340 = vpop.permute.xlu0 %2339
        %2341 = vrot.lane.b32.xlu0 %v1813, 2
        %v2342 = vpop.permute.xlu0 %2341
        %2343 = vrot.lane.b32.xlu0 %v1817, 2
        %v2344 = vpop.permute.xlu0 %2343
        %2345 = vrot.lane.b32.xlu0 %v1821, 2
        %v2346 = vpop.permute.xlu0 %2345
        %2347 = vrot.lane.b32.xlu0 %v1825, 2
        %v2348 = vpop.permute.xlu0 %2347
        %2349 = vrot.lane.b32.xlu0 %v1829, 2
        %v2350 = vpop.permute.xlu0 %2349
        %2351 = vrot.lane.b32.xlu0 %v1833, 2
        %v2352 = vpop.permute.xlu0 %2351
        %2353 = vrot.lane.b32.xlu0 %v1837, 2
        %v2354 = vpop.permute.xlu0 %2353
        %2355 = vrot.lane.b32.xlu0 %v1810, 2
        %v2356 = vpop.permute.xlu0 %2355
        %2357 = vrot.lane.b32.xlu0 %v1814, 2
        %v2358 = vpop.permute.xlu0 %2357
        %2359 = vrot.lane.b32.xlu0 %v1818, 2
        %v2360 = vpop.permute.xlu0 %2359
        %2361 = vrot.lane.b32.xlu0 %v1822, 2
        %v2362 = vpop.permute.xlu0 %2361
        %2363 = vrot.lane.b32.xlu0 %v1826, 2
        %v2364 = vpop.permute.xlu0 %2363
        %2365 = vrot.lane.b32.xlu0 %v1830, 2
        %v2366 = vpop.permute.xlu0 %2365
        %2367 = vrot.lane.b32.xlu0 %v1834, 2
        %v2368 = vpop.permute.xlu0 %2367
        %2369 = vrot.lane.b32.xlu0 %v1838, 2
        %v2370 = vpop.permute.xlu0 %2369
        %2371 = vrot.lane.b32.xlu0 %v1811, 2
        %v2372 = vpop.permute.xlu0 %2371
        %2373 = vrot.lane.b32.xlu0 %v1815, 2
        %v2374 = vpop.permute.xlu0 %2373
        %2375 = vrot.lane.b32.xlu0 %v1819, 2
        %v2376 = vpop.permute.xlu0 %2375
        %2377 = vrot.lane.b32.xlu0 %v1823, 2
        %v2378 = vpop.permute.xlu0 %2377
        %2379 = vrot.lane.b32.xlu0 %v1827, 2
        %v2380 = vpop.permute.xlu0 %2379
        %2381 = vrot.lane.b32.xlu0 %v1831, 2
        %v2382 = vpop.permute.xlu0 %2381
        %2383 = vrot.lane.b32.xlu0 %v1835, 2
        %v2384 = vpop.permute.xlu0 %2383
        %2385 = vrot.lane.b32.xlu0 %v1839, 2
        %v2386 = vpop.permute.xlu0 %2385
        %vm2387 = vcmp.lt.s32.totalorder %v446, 2
        %v2388 = vsel %vm2387, %v2356, %v2372
        %v2389 = vsel %vm2387, %v2358, %v2374
        %v2390 = vsel %vm2387, %v2360, %v2376
        %v2391 = vsel %vm2387, %v2362, %v2378
        %v2392 = vsel %vm2387, %v2364, %v2380
        %v2393 = vsel %vm2387, %v2366, %v2382
        %v2394 = vsel %vm2387, %v2368, %v2384
        %v2395 = vsel %vm2387, %v2370, %v2386
        %v2396 = vsel %vm2387, %v2340, %v2356
        %v2397 = vsel %vm2387, %v2342, %v2358
        %v2398 = vsel %vm2387, %v2344, %v2360
        %v2399 = vsel %vm2387, %v2346, %v2362
        %v2400 = vsel %vm2387, %v2348, %v2364
        %v2401 = vsel %vm2387, %v2350, %v2366
        %v2402 = vsel %vm2387, %v2352, %v2368
        %v2403 = vsel %vm2387, %v2354, %v2370
        %v2404 = vsel %vm2387, %v2324, %v2340
        %v2405 = vsel %vm2387, %v2326, %v2342
        %v2406 = vsel %vm2387, %v2328, %v2344
        %v2407 = vsel %vm2387, %v2330, %v2346
        %v2408 = vsel %vm2387, %v2332, %v2348
        %v2409 = vsel %vm2387, %v2334, %v2350
        %v2410 = vsel %vm2387, %v2336, %v2352
        %v2411 = vsel %vm2387, %v2338, %v2354
        %v2412 = vsel %vm2387, %v2372, %v2324
        %v2413 = vsel %vm2387, %v2374, %v2326
        %v2414 = vsel %vm2387, %v2376, %v2328
        %v2415 = vsel %vm2387, %v2378, %v2330
        %v2416 = vsel %vm2387, %v2380, %v2332
        %v2417 = vsel %vm2387, %v2382, %v2334
        %v2418 = vsel %vm2387, %v2384, %v2336
        %v2419 = vsel %vm2387, %v2386, %v2338
        %v2420 = vsel %vm498, %v2412, 0.0
        %v2421 = vsel %vm499, %v2404, 0.0
        %v2422 = vsel %vm500, %v2396, 0.0
        %v2423 = vsel %vm501, %v2388, 0.0
        %v2424 = vsel %vm498, %v2413, 0.0
        %v2425 = vsel %vm499, %v2405, 0.0
        %v2426 = vsel %vm500, %v2397, 0.0
        %v2427 = vsel %vm501, %v2389, 0.0
        %v2428 = vsel %vm498, %v2414, 0.0
        %v2429 = vsel %vm499, %v2406, 0.0
        %v2430 = vsel %vm500, %v2398, 0.0
        %v2431 = vsel %vm501, %v2390, 0.0
        %v2432 = vsel %vm498, %v2415, 0.0
        %v2433 = vsel %vm499, %v2407, 0.0
        %v2434 = vsel %vm500, %v2399, 0.0
        %v2435 = vsel %vm501, %v2391, 0.0
        %v2436 = vsel %vm498, %v2416, 0.0
        %v2437 = vsel %vm499, %v2408, 0.0
        %v2438 = vsel %vm500, %v2400, 0.0
        %v2439 = vsel %vm501, %v2392, 0.0
        %v2440 = vsel %vm498, %v2417, 0.0
        %v2441 = vsel %vm499, %v2409, 0.0
        %v2442 = vsel %vm500, %v2401, 0.0
        %v2443 = vsel %vm501, %v2393, 0.0
        %v2444 = vsel %vm498, %v2418, 0.0
        %v2445 = vsel %vm499, %v2410, 0.0
        %v2446 = vsel %vm500, %v2402, 0.0
        %v2447 = vsel %vm501, %v2394, 0.0
        %v2448 = vsel %vm498, %v2419, 0.0
        %v2449 = vsel %vm499, %v2411, 0.0
        %v2450 = vsel %vm500, %v2403, 0.0
        %v2451 = vsel %vm501, %v2395, 0.0
        %v2452 = vpack.c.bf16 %v2421, %v2420
        %v2453 = vpack.c.bf16 %v2423, %v2422
        %v2454 = vpack.c.bf16 %v2425, %v2424
        %v2455 = vpack.c.bf16 %v2427, %v2426
        %v2456 = vpack.c.bf16 %v2429, %v2428
        %v2457 = vpack.c.bf16 %v2431, %v2430
        %v2458 = vpack.c.bf16 %v2433, %v2432
        %v2459 = vpack.c.bf16 %v2435, %v2434
        %v2460 = vpack.c.bf16 %v2437, %v2436
        %v2461 = vpack.c.bf16 %v2439, %v2438
        %v2462 = vpack.c.bf16 %v2441, %v2440
        %v2463 = vpack.c.bf16 %v2443, %v2442
        %v2464 = vpack.c.bf16 %v2445, %v2444
        %v2465 = vpack.c.bf16 %v2447, %v2446
        %v2466 = vpack.c.bf16 %v2449, %v2448
        %v2467 = vpack.c.bf16 %v2451, %v2450
        %2468 = vst [vmem:[#allocation2 + $0x180] sm:$0xff] %v2452
        %2469 = vst [vmem:[#allocation2 + $0x188] sm:$0xff] %v2453
        %2470 = vst [vmem:[#allocation2 + $0x190] sm:$0xff] %v2454
        %2471 = vst [vmem:[#allocation2 + $0x198] sm:$0xff] %v2455
        %2472 = vst [vmem:[#allocation2 + $0x1a0] sm:$0xff] %v2456
        %2473 = vst [vmem:[#allocation2 + $0x1a8] sm:$0xff] %v2457
        %2474 = vst [vmem:[#allocation2 + $0x1b0] sm:$0xff] %v2458
        %2475 = vst [vmem:[#allocation2 + $0x1b8] sm:$0xff] %v2459
        %2476 = vst [vmem:[#allocation2 + $0x1c0] sm:$0xff] %v2460
        %2477 = vst [vmem:[#allocation2 + $0x1c8] sm:$0xff] %v2461
        %2478 = vst [vmem:[#allocation2 + $0x1d0] sm:$0xff] %v2462
        %2479 = vst [vmem:[#allocation2 + $0x1d8] sm:$0xff] %v2463
        %2480 = vst [vmem:[#allocation2 + $0x1e0] sm:$0xff] %v2464
        %2481 = vst [vmem:[#allocation2 + $0x1e8] sm:$0xff] %v2465
        %2482 = vst [vmem:[#allocation2 + $0x1f0] sm:$0xff] %v2466
        %2483 = vst [vmem:[#allocation2 + $0x1f8] sm:$0xff] %v2467
        %v2484 = vpack.c.bf16 %v1809, %v1808
        %v2485 = vpack.c.bf16 %v1811, %v1810
        %v2486 = vpack.c.bf16 %v1813, %v1812
        %v2487 = vpack.c.bf16 %v1815, %v1814
        %v2488 = vpack.c.bf16 %v1817, %v1816
        %v2489 = vpack.c.bf16 %v1819, %v1818
        %v2490 = vpack.c.bf16 %v1821, %v1820
        %v2491 = vpack.c.bf16 %v1823, %v1822
        %v2492 = vpack.c.bf16 %v1825, %v1824
        %v2493 = vpack.c.bf16 %v1827, %v1826
        %v2494 = vpack.c.bf16 %v1829, %v1828
        %v2495 = vpack.c.bf16 %v1831, %v1830
        %v2496 = vpack.c.bf16 %v1833, %v1832
        %v2497 = vpack.c.bf16 %v1835, %v1834
        %v2498 = vpack.c.bf16 %v1837, %v1836
        %v2499 = vpack.c.bf16 %v1839, %v1838
        %2500 = vst [vmem:[#allocation2 + $0x200] sm:$0xff] %v2484
        %2501 = vst [vmem:[#allocation2 + $0x208] sm:$0xff] %v2485
        %2502 = vst [vmem:[#allocation2 + $0x210] sm:$0xff] %v2486
        %2503 = vst [vmem:[#allocation2 + $0x218] sm:$0xff] %v2487
        %2504 = vst [vmem:[#allocation2 + $0x220] sm:$0xff] %v2488
        %2505 = vst [vmem:[#allocation2 + $0x228] sm:$0xff] %v2489
        %2506 = vst [vmem:[#allocation2 + $0x230] sm:$0xff] %v2490
        %2507 = vst [vmem:[#allocation2 + $0x238] sm:$0xff] %v2491
        %2508 = vst [vmem:[#allocation2 + $0x240] sm:$0xff] %v2492
        %2509 = vst [vmem:[#allocation2 + $0x248] sm:$0xff] %v2493
        %2510 = vst [vmem:[#allocation2 + $0x250] sm:$0xff] %v2494
        %2511 = vst [vmem:[#allocation2 + $0x258] sm:$0xff] %v2495
        %2512 = vst [vmem:[#allocation2 + $0x260] sm:$0xff] %v2496
        %2513 = vst [vmem:[#allocation2 + $0x268] sm:$0xff] %v2497
        %2514 = vst [vmem:[#allocation2 + $0x270] sm:$0xff] %v2498
        %2515 = vst [vmem:[#allocation2 + $0x278] sm:$0xff] %v2499
        %v2516 = vld [vmem:[%s2] sm:$0xff]
        %v2517 = vld [vmem:[%s2 + $0x8] sm:$0xf]
        %v2518 = vld [vmem:[%s2 + $0xc] sm:$0xff]
        %v2519 = vld [vmem:[%s2 + $0x14] sm:$0xf]
        %v2520 = vld [vmem:[%s2 + $0x18] sm:$0xff]
        %v2521 = vld [vmem:[%s2 + $0x20] sm:$0xf]
        %v2522 = vld [vmem:[%s2 + $0x24] sm:$0xff]
        %v2523 = vld [vmem:[%s2 + $0x2c] sm:$0xf]
        %v2524 = vld [vmem:[%s2 + $0x30] sm:$0xff]
        %v2525 = vld [vmem:[%s2 + $0x38] sm:$0xf]
        %v2526 = vld [vmem:[%s2 + $0x3c] sm:$0xff]
        %v2527 = vld [vmem:[%s2 + $0x44] sm:$0xf]
        %v2528 = vld [vmem:[%s2 + $0x48] sm:$0xff]
        %v2529 = vld [vmem:[%s2 + $0x50] sm:$0xf]
        %v2530 = vld [vmem:[%s2 + $0x54] sm:$0xff]
        %v2531 = vld [vmem:[%s2 + $0x5c] sm:$0xf]
        %v2532 = vld [vmem:[#allocation2] sm:$0xff]
        %v2533 = vld [vmem:[#allocation2 + $0x8] sm:$0xff]
        %v2534 = vld [vmem:[#allocation2 + $0x10] sm:$0xff]
        %v2535 = vld [vmem:[#allocation2 + $0x18] sm:$0xff]
        %v2536 = vld [vmem:[#allocation2 + $0x20] sm:$0xff]
        %v2537 = vld [vmem:[#allocation2 + $0x28] sm:$0xff]
        %v2538 = vld [vmem:[#allocation2 + $0x30] sm:$0xff]
        %v2539 = vld [vmem:[#allocation2 + $0x38] sm:$0xff]
        %v2540 = vld [vmem:[#allocation2 + $0x40] sm:$0xff]
        %v2541 = vld [vmem:[#allocation2 + $0x48] sm:$0xff]
        %v2542 = vld [vmem:[#allocation2 + $0x50] sm:$0xff]
        %v2543 = vld [vmem:[#allocation2 + $0x58] sm:$0xff]
        %v2544 = vld [vmem:[#allocation2 + $0x60] sm:$0xff]
        %v2545 = vld [vmem:[#allocation2 + $0x68] sm:$0xff]
        %v2546 = vld [vmem:[#allocation2 + $0x70] sm:$0xff]
        %v2547 = vld [vmem:[#allocation2 + $0x78] sm:$0xff]
        %v2548 = vld [vmem:[#allocation2 + $0x80] sm:$0xff]
        %v2549 = vld [vmem:[#allocation2 + $0x88] sm:$0xff]
        %v2550 = vld [vmem:[#allocation2 + $0x90] sm:$0xff]
        %v2551 = vld [vmem:[#allocation2 + $0x98] sm:$0xff]
        %v2552 = vld [vmem:[#allocation2 + $0xa0] sm:$0xff]
        %v2553 = vld [vmem:[#allocation2 + $0xa8] sm:$0xff]
        %v2554 = vld [vmem:[#allocation2 + $0xb0] sm:$0xff]
        %v2555 = vld [vmem:[#allocation2 + $0xb8] sm:$0xff]
        %v2556 = vld [vmem:[#allocation2 + $0xc0] sm:$0xff]
        %v2557 = vld [vmem:[#allocation2 + $0xc8] sm:$0xff]
        %v2558 = vld [vmem:[#allocation2 + $0xd0] sm:$0xff]
        %v2559 = vld [vmem:[#allocation2 + $0xd8] sm:$0xff]
        %v2560 = vld [vmem:[#allocation2 + $0xe0] sm:$0xff]
        %v2561 = vld [vmem:[#allocation2 + $0xe8] sm:$0xff]
        %v2562 = vld [vmem:[#allocation2 + $0xf0] sm:$0xff]
        %v2563 = vld [vmem:[#allocation2 + $0xf8] sm:$0xff]
        %v2564 = vld [vmem:[#allocation2 + $0x100] sm:$0xff]
        %v2565 = vld [vmem:[#allocation2 + $0x108] sm:$0xff]
        %v2566 = vld [vmem:[#allocation2 + $0x110] sm:$0xff]
        %v2567 = vld [vmem:[#allocation2 + $0x118] sm:$0xff]
        %v2568 = vld [vmem:[#allocation2 + $0x120] sm:$0xff]
        %v2569 = vld [vmem:[#allocation2 + $0x128] sm:$0xff]
        %v2570 = vld [vmem:[#allocation2 + $0x130] sm:$0xff]
        %v2571 = vld [vmem:[#allocation2 + $0x138] sm:$0xff]
        %v2572 = vld [vmem:[#allocation2 + $0x140] sm:$0xff]
        %v2573 = vld [vmem:[#allocation2 + $0x148] sm:$0xff]
        %v2574 = vld [vmem:[#allocation2 + $0x150] sm:$0xff]
        %v2575 = vld [vmem:[#allocation2 + $0x158] sm:$0xff]
        %v2576 = vld [vmem:[#allocation2 + $0x160] sm:$0xff]
        %v2577 = vld [vmem:[#allocation2 + $0x168] sm:$0xff]
        %v2578 = vld [vmem:[#allocation2 + $0x170] sm:$0xff]
        %v2579 = vld [vmem:[#allocation2 + $0x178] sm:$0xff]
        %v2580 = vld [vmem:[#allocation2 + $0x180] sm:$0xff]
        %v2581 = vld [vmem:[#allocation2 + $0x188] sm:$0xff]
        %v2582 = vld [vmem:[#allocation2 + $0x190] sm:$0xff]
        %v2583 = vld [vmem:[#allocation2 + $0x198] sm:$0xff]
        %v2584 = vld [vmem:[#allocation2 + $0x1a0] sm:$0xff]
        %v2585 = vld [vmem:[#allocation2 + $0x1a8] sm:$0xff]
        %v2586 = vld [vmem:[#allocation2 + $0x1b0] sm:$0xff]
        %v2587 = vld [vmem:[#allocation2 + $0x1b8] sm:$0xff]
        %v2588 = vld [vmem:[#allocation2 + $0x1c0] sm:$0xff]
        %v2589 = vld [vmem:[#allocation2 + $0x1c8] sm:$0xff]
        %v2590 = vld [vmem:[#allocation2 + $0x1d0] sm:$0xff]
        %v2591 = vld [vmem:[#allocation2 + $0x1d8] sm:$0xff]
        %v2592 = vld [vmem:[#allocation2 + $0x1e0] sm:$0xff]
        %v2593 = vld [vmem:[#allocation2 + $0x1e8] sm:$0xff]
        %v2594 = vld [vmem:[#allocation2 + $0x1f0] sm:$0xff]
        %v2595 = vld [vmem:[#allocation2 + $0x1f8] sm:$0xff]
        %v2596 = vld [vmem:[#allocation2 + $0x200] sm:$0xff]
        %v2597 = vld [vmem:[#allocation2 + $0x208] sm:$0xff]
        %v2598 = vld [vmem:[#allocation2 + $0x210] sm:$0xff]
        %v2599 = vld [vmem:[#allocation2 + $0x218] sm:$0xff]
        %v2600 = vld [vmem:[#allocation2 + $0x220] sm:$0xff]
        %v2601 = vld [vmem:[#allocation2 + $0x228] sm:$0xff]
        %v2602 = vld [vmem:[#allocation2 + $0x230] sm:$0xff]
        %v2603 = vld [vmem:[#allocation2 + $0x238] sm:$0xff]
        %v2604 = vld [vmem:[#allocation2 + $0x240] sm:$0xff]
        %v2605 = vld [vmem:[#allocation2 + $0x248] sm:$0xff]
        %v2606 = vld [vmem:[#allocation2 + $0x250] sm:$0xff]
        %v2607 = vld [vmem:[#allocation2 + $0x258] sm:$0xff]
        %v2608 = vld [vmem:[#allocation2 + $0x260] sm:$0xff]
        %v2609 = vld [vmem:[#allocation2 + $0x268] sm:$0xff]
        %v2610 = vld [vmem:[#allocation2 + $0x270] sm:$0xff]
        %v2611 = vld [vmem:[#allocation2 + $0x278] sm:$0xff]
        %v2628 = vunpack.c.l.b16 %v2516
        %v2629 = vunpack.c.h.b16 %v2516
        %v2630 = vunpack.c.l.b16 %v2517
        %v2631 = vunpack.c.l.b16 %v2518
        %v2632 = vunpack.c.h.b16 %v2518
        %v2633 = vunpack.c.l.b16 %v2519
        %v2634 = vunpack.c.l.b16 %v2520
        %v2635 = vunpack.c.h.b16 %v2520
        %v2636 = vunpack.c.l.b16 %v2521
        %v2637 = vunpack.c.l.b16 %v2522
        %v2638 = vunpack.c.h.b16 %v2522
        %v2639 = vunpack.c.l.b16 %v2523
        %v2640 = vunpack.c.l.b16 %v2524
        %v2641 = vunpack.c.h.b16 %v2524
        %v2642 = vunpack.c.l.b16 %v2525
        %v2643 = vunpack.c.l.b16 %v2526
        %v2644 = vunpack.c.h.b16 %v2526
        %v2645 = vunpack.c.l.b16 %v2527
        %v2646 = vunpack.c.l.b16 %v2528
        %v2647 = vunpack.c.h.b16 %v2528
        %v2648 = vunpack.c.l.b16 %v2529
        %v2649 = vunpack.c.l.b16 %v2530
        %v2650 = vunpack.c.h.b16 %v2530
        %v2651 = vunpack.c.l.b16 %v2531
        %v2652 = vpack.c.b16 %v2631, %v2628
        %v2653 = vpack.c.b16 %v2632, %v2629
        %v2654 = vpack.c.b16 %v2633, %v2630
        %v2655 = vpack.c.b16 %v2637, %v2634
        %v2656 = vpack.c.b16 %v2638, %v2635
        %v2657 = vpack.c.b16 %v2639, %v2636
        %v2658 = vpack.c.b16 %v2643, %v2640
        %v2659 = vpack.c.b16 %v2644, %v2641
        %v2660 = vpack.c.b16 %v2645, %v2642
        %v2661 = vpack.c.b16 %v2649, %v2646
        %v2662 = vpack.c.b16 %v2650, %v2647
        %v2663 = vpack.c.b16 %v2651, %v2648
        %v2752 = vunpack.c.l.b16 %v2532
        %v2753 = vunpack.c.h.b16 %v2532
        %v2754 = vunpack.c.l.b16 %v2533
        %v2755 = vunpack.c.h.b16 %v2533
        %v2756 = vunpack.c.l.b16 %v2534
        %v2757 = vunpack.c.h.b16 %v2534
        %v2758 = vunpack.c.l.b16 %v2535
        %v2759 = vunpack.c.h.b16 %v2535
        %v2760 = vunpack.c.l.b16 %v2536
        %v2761 = vunpack.c.h.b16 %v2536
        %v2762 = vunpack.c.l.b16 %v2537
        %v2763 = vunpack.c.h.b16 %v2537
        %v2764 = vunpack.c.l.b16 %v2538
        %v2765 = vunpack.c.h.b16 %v2538
        %v2766 = vunpack.c.l.b16 %v2539
        %v2767 = vunpack.c.h.b16 %v2539
        %v2768 = vunpack.c.l.b16 %v2540
        %v2769 = vunpack.c.h.b16 %v2540
        %v2770 = vunpack.c.l.b16 %v2541
        %v2771 = vunpack.c.h.b16 %v2541
        %v2772 = vunpack.c.l.b16 %v2542
        %v2773 = vunpack.c.h.b16 %v2542
        %v2774 = vunpack.c.l.b16 %v2543
        %v2775 = vunpack.c.h.b16 %v2543
        %v2776 = vunpack.c.l.b16 %v2544
        %v2777 = vunpack.c.h.b16 %v2544
        %v2778 = vunpack.c.l.b16 %v2545
        %v2779 = vunpack.c.h.b16 %v2545
        %v2780 = vunpack.c.l.b16 %v2546
        %v2781 = vunpack.c.h.b16 %v2546
        %v2782 = vunpack.c.l.b16 %v2547
        %v2783 = vunpack.c.h.b16 %v2547
        %v2784 = vunpack.c.l.b16 %v2548
        %v2785 = vunpack.c.h.b16 %v2548
        %v2786 = vunpack.c.l.b16 %v2549
        %v2787 = vunpack.c.h.b16 %v2549
        %v2788 = vunpack.c.l.b16 %v2550
        %v2789 = vunpack.c.h.b16 %v2550
        %v2790 = vunpack.c.l.b16 %v2551
        %v2791 = vunpack.c.h.b16 %v2551
        %v2792 = vunpack.c.l.b16 %v2552
        %v2793 = vunpack.c.h.b16 %v2552
        %v2794 = vunpack.c.l.b16 %v2553
        %v2795 = vunpack.c.h.b16 %v2553
        %v2796 = vunpack.c.l.b16 %v2554
        %v2797 = vunpack.c.h.b16 %v2554
        %v2798 = vunpack.c.l.b16 %v2555
        %v2799 = vunpack.c.h.b16 %v2555
        %v2800 = vunpack.c.l.b16 %v2556
        %v2801 = vunpack.c.h.b16 %v2556
        %v2802 = vunpack.c.l.b16 %v2557
        %v2803 = vunpack.c.h.b16 %v2557
        %v2804 = vunpack.c.l.b16 %v2558
        %v2805 = vunpack.c.h.b16 %v2558
        %v2806 = vunpack.c.l.b16 %v2559
        %v2807 = vunpack.c.h.b16 %v2559
        %v2808 = vunpack.c.l.b16 %v2560
        %v2809 = vunpack.c.h.b16 %v2560
        %v2810 = vunpack.c.l.b16 %v2561
        %v2811 = vunpack.c.h.b16 %v2561
        %v2812 = vunpack.c.l.b16 %v2562
        %v2813 = vunpack.c.h.b16 %v2562
        %v2814 = vunpack.c.l.b16 %v2563
        %v2815 = vunpack.c.h.b16 %v2563
        %v2816 = vunpack.c.l.b16 %v2564
        %v2817 = vunpack.c.h.b16 %v2564
        %v2818 = vunpack.c.l.b16 %v2565
        %v2819 = vunpack.c.h.b16 %v2565
        %v2820 = vunpack.c.l.b16 %v2566
        %v2821 = vunpack.c.h.b16 %v2566
        %v2822 = vunpack.c.l.b16 %v2567
        %v2823 = vunpack.c.h.b16 %v2567
        %v2824 = vunpack.c.l.b16 %v2568
        %v2825 = vunpack.c.h.b16 %v2568
        %v2826 = vunpack.c.l.b16 %v2569
        %v2827 = vunpack.c.h.b16 %v2569
        %v2828 = vunpack.c.l.b16 %v2570
        %v2829 = vunpack.c.h.b16 %v2570
        %v2830 = vunpack.c.l.b16 %v2571
        %v2831 = vunpack.c.h.b16 %v2571
        %v2832 = vunpack.c.l.b16 %v2572
        %v2833 = vunpack.c.h.b16 %v2572
        %v2834 = vunpack.c.l.b16 %v2573
        %v2835 = vunpack.c.h.b16 %v2573
        %v2836 = vunpack.c.l.b16 %v2574
        %v2837 = vunpack.c.h.b16 %v2574
        %v2838 = vunpack.c.l.b16 %v2575
        %v2839 = vunpack.c.h.b16 %v2575
        %v2840 = vunpack.c.l.b16 %v2576
        %v2841 = vunpack.c.h.b16 %v2576
        %v2842 = vunpack.c.l.b16 %v2577
        %v2843 = vunpack.c.h.b16 %v2577
        %v2844 = vunpack.c.l.b16 %v2578
        %v2845 = vunpack.c.h.b16 %v2578
        %v2846 = vunpack.c.l.b16 %v2579
        %v2847 = vunpack.c.h.b16 %v2579
        %v2848 = vunpack.c.l.b16 %v2580
        %v2849 = vunpack.c.h.b16 %v2580
        %v2850 = vunpack.c.l.b16 %v2581
        %v2851 = vunpack.c.h.b16 %v2581
        %v2852 = vunpack.c.l.b16 %v2582
        %v2853 = vunpack.c.h.b16 %v2582
        %v2854 = vunpack.c.l.b16 %v2583
        %v2855 = vunpack.c.h.b16 %v2583
        %v2856 = vunpack.c.l.b16 %v2584
        %v2857 = vunpack.c.h.b16 %v2584
        %v2858 = vunpack.c.l.b16 %v2585
        %v2859 = vunpack.c.h.b16 %v2585
        %v2860 = vunpack.c.l.b16 %v2586
        %v2861 = vunpack.c.h.b16 %v2586
        %v2862 = vunpack.c.l.b16 %v2587
        %v2863 = vunpack.c.h.b16 %v2587
        %v2864 = vunpack.c.l.b16 %v2588
        %v2865 = vunpack.c.h.b16 %v2588
        %v2866 = vunpack.c.l.b16 %v2589
        %v2867 = vunpack.c.h.b16 %v2589
        %v2868 = vunpack.c.l.b16 %v2590
        %v2869 = vunpack.c.h.b16 %v2590
        %v2870 = vunpack.c.l.b16 %v2591
        %v2871 = vunpack.c.h.b16 %v2591
        %v2872 = vunpack.c.l.b16 %v2592
        %v2873 = vunpack.c.h.b16 %v2592
        %v2874 = vunpack.c.l.b16 %v2593
        %v2875 = vunpack.c.h.b16 %v2593
        %v2876 = vunpack.c.l.b16 %v2594
        %v2877 = vunpack.c.h.b16 %v2594
        %v2878 = vunpack.c.l.b16 %v2595
        %v2879 = vunpack.c.h.b16 %v2595
        %v2880 = vunpack.c.l.b16 %v2596
        %v2881 = vunpack.c.h.b16 %v2596
        %v2882 = vunpack.c.l.b16 %v2597
        %v2883 = vunpack.c.h.b16 %v2597
        %v2884 = vunpack.c.l.b16 %v2598
        %v2885 = vunpack.c.h.b16 %v2598
        %v2886 = vunpack.c.l.b16 %v2599
        %v2887 = vunpack.c.h.b16 %v2599
        %v2888 = vunpack.c.l.b16 %v2600
        %v2889 = vunpack.c.h.b16 %v2600
        %v2890 = vunpack.c.l.b16 %v2601
        %v2891 = vunpack.c.h.b16 %v2601
        %v2892 = vunpack.c.l.b16 %v2602
        %v2893 = vunpack.c.h.b16 %v2602
        %v2894 = vunpack.c.l.b16 %v2603
        %v2895 = vunpack.c.h.b16 %v2603
        %v2896 = vunpack.c.l.b16 %v2604
        %v2897 = vunpack.c.h.b16 %v2604
        %v2898 = vunpack.c.l.b16 %v2605
        %v2899 = vunpack.c.h.b16 %v2605
        %v2900 = vunpack.c.l.b16 %v2606
        %v2901 = vunpack.c.h.b16 %v2606
        %v2902 = vunpack.c.l.b16 %v2607
        %v2903 = vunpack.c.h.b16 %v2607
        %v2904 = vunpack.c.l.b16 %v2608
        %v2905 = vunpack.c.h.b16 %v2608
        %v2906 = vunpack.c.l.b16 %v2609
        %v2907 = vunpack.c.h.b16 %v2609
        %v2908 = vunpack.c.l.b16 %v2610
        %v2909 = vunpack.c.h.b16 %v2610
        %v2910 = vunpack.c.l.b16 %v2611
        %v2911 = vunpack.c.h.b16 %v2611
        %v2912 = vpack.c.b16 %v2756, %v2752
        %v2913 = vpack.c.b16 %v2757, %v2753
        %v2914 = vpack.c.b16 %v2758, %v2754
        %v2915 = vpack.c.b16 %v2759, %v2755
        %v2916 = vpack.c.b16 %v2764, %v2760
        %v2917 = vpack.c.b16 %v2765, %v2761
        %v2918 = vpack.c.b16 %v2766, %v2762
        %v2919 = vpack.c.b16 %v2767, %v2763
        %v2920 = vpack.c.b16 %v2772, %v2768
        %v2921 = vpack.c.b16 %v2773, %v2769
        %v2922 = vpack.c.b16 %v2774, %v2770
        %v2923 = vpack.c.b16 %v2775, %v2771
        %v2924 = vpack.c.b16 %v2780, %v2776
        %v2925 = vpack.c.b16 %v2781, %v2777
        %v2926 = vpack.c.b16 %v2782, %v2778
        %v2927 = vpack.c.b16 %v2783, %v2779
        %v2928 = vpack.c.b16 %v2788, %v2784
        %v2929 = vpack.c.b16 %v2789, %v2785
        %v2930 = vpack.c.b16 %v2790, %v2786
        %v2931 = vpack.c.b16 %v2791, %v2787
        %v2932 = vpack.c.b16 %v2796, %v2792
        %v2933 = vpack.c.b16 %v2797, %v2793
        %v2934 = vpack.c.b16 %v2798, %v2794
        %v2935 = vpack.c.b16 %v2799, %v2795
        %v2936 = vpack.c.b16 %v2804, %v2800
        %v2937 = vpack.c.b16 %v2805, %v2801
        %v2938 = vpack.c.b16 %v2806, %v2802
        %v2939 = vpack.c.b16 %v2807, %v2803
        %v2940 = vpack.c.b16 %v2812, %v2808
        %v2941 = vpack.c.b16 %v2813, %v2809
        %v2942 = vpack.c.b16 %v2814, %v2810
        %v2943 = vpack.c.b16 %v2815, %v2811
        %v2944 = vpack.c.b16 %v2820, %v2816
        %v2945 = vpack.c.b16 %v2821, %v2817
        %v2946 = vpack.c.b16 %v2822, %v2818
        %v2947 = vpack.c.b16 %v2823, %v2819
        %v2948 = vpack.c.b16 %v2828, %v2824
        %v2949 = vpack.c.b16 %v2829, %v2825
        %v2950 = vpack.c.b16 %v2830, %v2826
        %v2951 = vpack.c.b16 %v2831, %v2827
        %v2952 = vpack.c.b16 %v2836, %v2832
        %v2953 = vpack.c.b16 %v2837, %v2833
        %v2954 = vpack.c.b16 %v2838, %v2834
        %v2955 = vpack.c.b16 %v2839, %v2835
        %v2956 = vpack.c.b16 %v2844, %v2840
        %v2957 = vpack.c.b16 %v2845, %v2841
        %v2958 = vpack.c.b16 %v2846, %v2842
        %v2959 = vpack.c.b16 %v2847, %v2843
        %v2960 = vpack.c.b16 %v2852, %v2848
        %v2961 = vpack.c.b16 %v2853, %v2849
        %v2962 = vpack.c.b16 %v2854, %v2850
        %v2963 = vpack.c.b16 %v2855, %v2851
        %v2964 = vpack.c.b16 %v2860, %v2856
        %v2965 = vpack.c.b16 %v2861, %v2857
        %v2966 = vpack.c.b16 %v2862, %v2858
        %v2967 = vpack.c.b16 %v2863, %v2859
        %v2968 = vpack.c.b16 %v2868, %v2864
        %v2969 = vpack.c.b16 %v2869, %v2865
        %v2970 = vpack.c.b16 %v2870, %v2866
        %v2971 = vpack.c.b16 %v2871, %v2867
        %v2972 = vpack.c.b16 %v2876, %v2872
        %v2973 = vpack.c.b16 %v2877, %v2873
        %v2974 = vpack.c.b16 %v2878, %v2874
        %v2975 = vpack.c.b16 %v2879, %v2875
        %v2976 = vpack.c.b16 %v2884, %v2880
        %v2977 = vpack.c.b16 %v2885, %v2881
        %v2978 = vpack.c.b16 %v2886, %v2882
        %v2979 = vpack.c.b16 %v2887, %v2883
        %v2980 = vpack.c.b16 %v2892, %v2888
        %v2981 = vpack.c.b16 %v2893, %v2889
        %v2982 = vpack.c.b16 %v2894, %v2890
        %v2983 = vpack.c.b16 %v2895, %v2891
        %v2984 = vpack.c.b16 %v2900, %v2896
        %v2985 = vpack.c.b16 %v2901, %v2897
        %v2986 = vpack.c.b16 %v2902, %v2898
        %v2987 = vpack.c.b16 %v2903, %v2899
        %v2988 = vpack.c.b16 %v2908, %v2904
        %v2989 = vpack.c.b16 %v2909, %v2905
        %v2990 = vpack.c.b16 %v2910, %v2906
        %v2991 = vpack.c.b16 %v2911, %v2907
        %vm3072 = vcmask 523264
        %v3074 = vsel %vm3072, %v2654, 0
        %v3077 = vsel %vm3072, %v2657, 0
        %v3080 = vsel %vm3072, %v2660, 0
        %v3083 = vsel %vm3072, %v2663, 0
        %3085 = vmatpush.bf16.msra.mxu0 %v2940
        %3086 = vmatpush.bf16.msra.mxu0 %v2936
        %3087 = vmatpush.bf16.msra.mxu0 %v2932
        %3088 = vmatpush.bf16.msra.mxu0 %v2928
        %3089 = vmatpush.bf16.msra.mxu0 %v2924
        %3090 = vmatpush.bf16.msra.mxu0 %v2920
        %3091 = vmatpush.bf16.msra.mxu0 %v2916
        %3092 = vmatpush.bf16.msra.mxu0 %v2912
        %3093 = vmatmul.bf16.gmra.mxu0 %v2652
        %v3094 = vpop.f32.mrf.mxu0
        %v3095 = vadd.f32 0.0, %v3094
        %v3096 = vpop.f32.mrf.mxu0
        %v3097 = vadd.f32 0.0, %v3096
        %3098 = vmatmul.bf16.gmra.mxu0 %v2655
        %v3099 = vpop.f32.mrf.mxu0
        %v3100 = vadd.f32 0.0, %v3099
        %v3101 = vpop.f32.mrf.mxu0
        %v3102 = vadd.f32 0.0, %v3101
        %3103 = vmatmul.bf16.gmra.mxu0 %v2658
        %v3104 = vpop.f32.mrf.mxu0
        %v3105 = vadd.f32 0.0, %v3104
        %v3106 = vpop.f32.mrf.mxu0
        %v3107 = vadd.f32 0.0, %v3106
        %3108 = vmatmul.bf16.gmra.mxu0 %v2661
        %v3109 = vpop.f32.mrf.mxu0
        %v3110 = vadd.f32 0.0, %v3109
        %v3111 = vpop.f32.mrf.mxu0
        %v3112 = vadd.f32 0.0, %v3111
        %3113 = vdwg.mxu0
        %3114 = vmatpush.bf16.msra.mxu0 %v2972
        %3115 = vmatpush.bf16.msra.mxu0 %v2968
        %3116 = vmatpush.bf16.msra.mxu0 %v2964
        %3117 = vmatpush.bf16.msra.mxu0 %v2960
        %3118 = vmatpush.bf16.msra.mxu0 %v2956
        %3119 = vmatpush.bf16.msra.mxu0 %v2952
        %3120 = vmatpush.bf16.msra.mxu0 %v2948
        %3121 = vmatpush.bf16.msra.mxu0 %v2944
        %3122 = vmatmul.bf16.gmra.mxu0 %v2653
        %v3123 = vpop.f32.mrf.mxu0
        %v3124 = vadd.f32 %v3095, %v3123
        %v3125 = vpop.f32.mrf.mxu0
        %v3126 = vadd.f32 %v3097, %v3125
        %3127 = vmatmul.bf16.gmra.mxu0 %v2656
        %v3128 = vpop.f32.mrf.mxu0
        %v3129 = vadd.f32 %v3100, %v3128
        %v3130 = vpop.f32.mrf.mxu0
        %v3131 = vadd.f32 %v3102, %v3130
        %3132 = vmatmul.bf16.gmra.mxu0 %v2659
        %v3133 = vpop.f32.mrf.mxu0
        %v3134 = vadd.f32 %v3105, %v3133
        %v3135 = vpop.f32.mrf.mxu0
        %v3136 = vadd.f32 %v3107, %v3135
        %3137 = vmatmul.bf16.gmra.mxu0 %v2662
        %v3138 = vpop.f32.mrf.mxu0
        %v3139 = vadd.f32 %v3110, %v3138
        %v3140 = vpop.f32.mrf.mxu0
        %v3141 = vadd.f32 %v3112, %v3140
        %3142 = vdwg.mxu0
        %3143 = vmatpush.bf16.msra.mxu0 0
        %3144 = vmatpush.bf16.msra.mxu0 0
        %3145 = vmatpush.bf16.msra.mxu0 0
        %3146 = vmatpush.bf16.msra.mxu0 0
        %3147 = vmatpush.bf16.msra.mxu0 %v2988
        %3148 = vmatpush.bf16.msra.mxu0 %v2984
        %3149 = vmatpush.bf16.msra.mxu0 %v2980
        %3150 = vmatpush.bf16.msra.mxu0 %v2976
        %3151 = vmatmul.bf16.gmra.mxu0 %v3074
        %v3152 = vpop.f32.mrf.mxu0
        %v3153 = vadd.f32 %v3124, %v3152
        %v3154 = vpop.f32.mrf.mxu0
        %v3155 = vadd.f32 %v3126, %v3154
        %3156 = vmatmul.bf16.gmra.mxu0 %v3077
        %v3157 = vpop.f32.mrf.mxu0
        %v3158 = vadd.f32 %v3129, %v3157
        %v3159 = vpop.f32.mrf.mxu0
        %v3160 = vadd.f32 %v3131, %v3159
        %3161 = vmatmul.bf16.gmra.mxu0 %v3080
        %v3162 = vpop.f32.mrf.mxu0
        %v3163 = vadd.f32 %v3134, %v3162
        %v3164 = vpop.f32.mrf.mxu0
        %v3165 = vadd.f32 %v3136, %v3164
        %3166 = vmatmul.bf16.gmra.mxu0 %v3083
        %v3167 = vpop.f32.mrf.mxu0
        %v3168 = vadd.f32 %v3139, %v3167
        %v3169 = vpop.f32.mrf.mxu0
        %v3170 = vadd.f32 %v3141, %v3169
        %3171 = vdwg.mxu0
        %3172 = vmatpush.bf16.msra.mxu0 %v2941
        %3173 = vmatpush.bf16.msra.mxu0 %v2937
        %3174 = vmatpush.bf16.msra.mxu0 %v2933
        %3175 = vmatpush.bf16.msra.mxu0 %v2929
        %3176 = vmatpush.bf16.msra.mxu0 %v2925
        %3177 = vmatpush.bf16.msra.mxu0 %v2921
        %3178 = vmatpush.bf16.msra.mxu0 %v2917
        %3179 = vmatpush.bf16.msra.mxu0 %v2913
        %3180 = vmatmul.bf16.gmra.mxu0 %v2652
        %v3181 = vpop.f32.mrf.mxu0
        %v3182 = vadd.f32 0.0, %v3181
        %v3183 = vpop.f32.mrf.mxu0
        %v3184 = vadd.f32 0.0, %v3183
        %3185 = vmatmul.bf16.gmra.mxu0 %v2655
        %v3186 = vpop.f32.mrf.mxu0
        %v3187 = vadd.f32 0.0, %v3186
        %v3188 = vpop.f32.mrf.mxu0
        %v3189 = vadd.f32 0.0, %v3188
        %3190 = vmatmul.bf16.gmra.mxu0 %v2658
        %v3191 = vpop.f32.mrf.mxu0
        %v3192 = vadd.f32 0.0, %v3191
        %v3193 = vpop.f32.mrf.mxu0
        %v3194 = vadd.f32 0.0, %v3193
        %3195 = vmatmul.bf16.gmra.mxu0 %v2661
        %v3196 = vpop.f32.mrf.mxu0
        %v3197 = vadd.f32 0.0, %v3196
        %v3198 = vpop.f32.mrf.mxu0
        %v3199 = vadd.f32 0.0, %v3198
        %3200 = vdwg.mxu0
        %3201 = vmatpush.bf16.msra.mxu0 %v2973
        %3202 = vmatpush.bf16.msra.mxu0 %v2969
        %3203 = vmatpush.bf16.msra.mxu0 %v2965
        %3204 = vmatpush.bf16.msra.mxu0 %v2961
        %3205 = vmatpush.bf16.msra.mxu0 %v2957
        %3206 = vmatpush.bf16.msra.mxu0 %v2953
        %3207 = vmatpush.bf16.msra.mxu0 %v2949
        %3208 = vmatpush.bf16.msra.mxu0 %v2945
        %3209 = vmatmul.bf16.gmra.mxu0 %v2653
        %v3210 = vpop.f32.mrf.mxu0
        %v3211 = vadd.f32 %v3182, %v3210
        %v3212 = vpop.f32.mrf.mxu0
        %v3213 = vadd.f32 %v3184, %v3212
        %3214 = vmatmul.bf16.gmra.mxu0 %v2656
        %v3215 = vpop.f32.mrf.mxu0
        %v3216 = vadd.f32 %v3187, %v3215
        %v3217 = vpop.f32.mrf.mxu0
        %v3218 = vadd.f32 %v3189, %v3217
        %3219 = vmatmul.bf16.gmra.mxu0 %v2659
        %v3220 = vpop.f32.mrf.mxu0
        %v3221 = vadd.f32 %v3192, %v3220
        %v3222 = vpop.f32.mrf.mxu0
        %v3223 = vadd.f32 %v3194, %v3222
        %3224 = vmatmul.bf16.gmra.mxu0 %v2662
        %v3225 = vpop.f32.mrf.mxu0
        %v3226 = vadd.f32 %v3197, %v3225
        %v3227 = vpop.f32.mrf.mxu0
        %v3228 = vadd.f32 %v3199, %v3227
        %3229 = vdwg.mxu0
        %3230 = vmatpush.bf16.msra.mxu0 0
        %3231 = vmatpush.bf16.msra.mxu0 0
        %3232 = vmatpush.bf16.msra.mxu0 0
        %3233 = vmatpush.bf16.msra.mxu0 0
        %3234 = vmatpush.bf16.msra.mxu0 %v2989
        %3235 = vmatpush.bf16.msra.mxu0 %v2985
        %3236 = vmatpush.bf16.msra.mxu0 %v2981
        %3237 = vmatpush.bf16.msra.mxu0 %v2977
        %3238 = vmatmul.bf16.gmra.mxu0 %v3074
        %v3239 = vpop.f32.mrf.mxu0
        %v3240 = vadd.f32 %v3211, %v3239
        %v3241 = vpop.f32.mrf.mxu0
        %v3242 = vadd.f32 %v3213, %v3241
        %3243 = vmatmul.bf16.gmra.mxu0 %v3077
        %v3244 = vpop.f32.mrf.mxu0
        %v3245 = vadd.f32 %v3216, %v3244
        %v3246 = vpop.f32.mrf.mxu0
        %v3247 = vadd.f32 %v3218, %v3246
        %3248 = vmatmul.bf16.gmra.mxu0 %v3080
        %v3249 = vpop.f32.mrf.mxu0
        %v3250 = vadd.f32 %v3221, %v3249
        %v3251 = vpop.f32.mrf.mxu0
        %v3252 = vadd.f32 %v3223, %v3251
        %3253 = vmatmul.bf16.gmra.mxu0 %v3083
        %v3254 = vpop.f32.mrf.mxu0
        %v3255 = vadd.f32 %v3226, %v3254
        %v3256 = vpop.f32.mrf.mxu0
        %v3257 = vadd.f32 %v3228, %v3256
        %3258 = vdwg.mxu0
        %3259 = vmatpush.bf16.msra.mxu0 %v2942
        %3260 = vmatpush.bf16.msra.mxu0 %v2938
        %3261 = vmatpush.bf16.msra.mxu0 %v2934
        %3262 = vmatpush.bf16.msra.mxu0 %v2930
        %3263 = vmatpush.bf16.msra.mxu0 %v2926
        %3264 = vmatpush.bf16.msra.mxu0 %v2922
        %3265 = vmatpush.bf16.msra.mxu0 %v2918
        %3266 = vmatpush.bf16.msra.mxu0 %v2914
        %3267 = vmatmul.bf16.gmra.mxu0 %v2652
        %v3268 = vpop.f32.mrf.mxu0
        %v3269 = vadd.f32 0.0, %v3268
        %v3270 = vpop.f32.mrf.mxu0
        %v3271 = vadd.f32 0.0, %v3270
        %3272 = vmatmul.bf16.gmra.mxu0 %v2655
        %v3273 = vpop.f32.mrf.mxu0
        %v3274 = vadd.f32 0.0, %v3273
        %v3275 = vpop.f32.mrf.mxu0
        %v3276 = vadd.f32 0.0, %v3275
        %3277 = vmatmul.bf16.gmra.mxu0 %v2658
        %v3278 = vpop.f32.mrf.mxu0
        %v3279 = vadd.f32 0.0, %v3278
        %v3280 = vpop.f32.mrf.mxu0
        %v3281 = vadd.f32 0.0, %v3280
        %3282 = vmatmul.bf16.gmra.mxu0 %v2661
        %v3283 = vpop.f32.mrf.mxu0
        %v3284 = vadd.f32 0.0, %v3283
        %v3285 = vpop.f32.mrf.mxu0
        %v3286 = vadd.f32 0.0, %v3285
        %3287 = vdwg.mxu0
        %3288 = vmatpush.bf16.msra.mxu0 %v2974
        %3289 = vmatpush.bf16.msra.mxu0 %v2970
        %3290 = vmatpush.bf16.msra.mxu0 %v2966
        %3291 = vmatpush.bf16.msra.mxu0 %v2962
        %3292 = vmatpush.bf16.msra.mxu0 %v2958
        %3293 = vmatpush.bf16.msra.mxu0 %v2954
        %3294 = vmatpush.bf16.msra.mxu0 %v2950
        %3295 = vmatpush.bf16.msra.mxu0 %v2946
        %3296 = vmatmul.bf16.gmra.mxu0 %v2653
        %v3297 = vpop.f32.mrf.mxu0
        %v3298 = vadd.f32 %v3269, %v3297
        %v3299 = vpop.f32.mrf.mxu0
        %v3300 = vadd.f32 %v3271, %v3299
        %3301 = vmatmul.bf16.gmra.mxu0 %v2656
        %v3302 = vpop.f32.mrf.mxu0
        %v3303 = vadd.f32 %v3274, %v3302
        %v3304 = vpop.f32.mrf.mxu0
        %v3305 = vadd.f32 %v3276, %v3304
        %3306 = vmatmul.bf16.gmra.mxu0 %v2659
        %v3307 = vpop.f32.mrf.mxu0
        %v3308 = vadd.f32 %v3279, %v3307
        %v3309 = vpop.f32.mrf.mxu0
        %v3310 = vadd.f32 %v3281, %v3309
        %3311 = vmatmul.bf16.gmra.mxu0 %v2662
        %v3312 = vpop.f32.mrf.mxu0
        %v3313 = vadd.f32 %v3284, %v3312
        %v3314 = vpop.f32.mrf.mxu0
        %v3315 = vadd.f32 %v3286, %v3314
        %3316 = vdwg.mxu0
        %3317 = vmatpush.bf16.msra.mxu0 0
        %3318 = vmatpush.bf16.msra.mxu0 0
        %3319 = vmatpush.bf16.msra.mxu0 0
        %3320 = vmatpush.bf16.msra.mxu0 0
        %3321 = vmatpush.bf16.msra.mxu0 %v2990
        %3322 = vmatpush.bf16.msra.mxu0 %v2986
        %3323 = vmatpush.bf16.msra.mxu0 %v2982
        %3324 = vmatpush.bf16.msra.mxu0 %v2978
        %3325 = vmatmul.bf16.gmra.mxu0 %v3074
        %v3326 = vpop.f32.mrf.mxu0
        %v3327 = vadd.f32 %v3298, %v3326
        %v3328 = vpop.f32.mrf.mxu0
        %v3329 = vadd.f32 %v3300, %v3328
        %3330 = vmatmul.bf16.gmra.mxu0 %v3077
        %v3331 = vpop.f32.mrf.mxu0
        %v3332 = vadd.f32 %v3303, %v3331
        %v3333 = vpop.f32.mrf.mxu0
        %v3334 = vadd.f32 %v3305, %v3333
        %3335 = vmatmul.bf16.gmra.mxu0 %v3080
        %v3336 = vpop.f32.mrf.mxu0
        %v3337 = vadd.f32 %v3308, %v3336
        %v3338 = vpop.f32.mrf.mxu0
        %v3339 = vadd.f32 %v3310, %v3338
        %3340 = vmatmul.bf16.gmra.mxu0 %v3083
        %v3341 = vpop.f32.mrf.mxu0
        %v3342 = vadd.f32 %v3313, %v3341
        %v3343 = vpop.f32.mrf.mxu0
        %v3344 = vadd.f32 %v3315, %v3343
        %3345 = vdwg.mxu0
        %3346 = vmatpush.bf16.msra.mxu0 %v2943
        %3347 = vmatpush.bf16.msra.mxu0 %v2939
        %3348 = vmatpush.bf16.msra.mxu0 %v2935
        %3349 = vmatpush.bf16.msra.mxu0 %v2931
        %3350 = vmatpush.bf16.msra.mxu0 %v2927
        %3351 = vmatpush.bf16.msra.mxu0 %v2923
        %3352 = vmatpush.bf16.msra.mxu0 %v2919
        %3353 = vmatpush.bf16.msra.mxu0 %v2915
        %3354 = vmatmul.bf16.gmra.mxu0 %v2652
        %v3355 = vpop.f32.mrf.mxu0
        %v3356 = vadd.f32 0.0, %v3355
        %v3357 = vpop.f32.mrf.mxu0
        %v3358 = vadd.f32 0.0, %v3357
        %3359 = vmatmul.bf16.gmra.mxu0 %v2655
        %v3360 = vpop.f32.mrf.mxu0
        %v3361 = vadd.f32 0.0, %v3360
        %v3362 = vpop.f32.mrf.mxu0
        %v3363 = vadd.f32 0.0, %v3362
        %3364 = vmatmul.bf16.gmra.mxu0 %v2658
        %v3365 = vpop.f32.mrf.mxu0
        %v3366 = vadd.f32 0.0, %v3365
        %v3367 = vpop.f32.mrf.mxu0
        %v3368 = vadd.f32 0.0, %v3367
        %3369 = vmatmul.bf16.gmra.mxu0 %v2661
        %v3370 = vpop.f32.mrf.mxu0
        %v3371 = vadd.f32 0.0, %v3370
        %v3372 = vpop.f32.mrf.mxu0
        %v3373 = vadd.f32 0.0, %v3372
        %3374 = vdwg.mxu0
        %3375 = vmatpush.bf16.msra.mxu0 %v2975
        %3376 = vmatpush.bf16.msra.mxu0 %v2971
        %3377 = vmatpush.bf16.msra.mxu0 %v2967
        %3378 = vmatpush.bf16.msra.mxu0 %v2963
        %3379 = vmatpush.bf16.msra.mxu0 %v2959
        %3380 = vmatpush.bf16.msra.mxu0 %v2955
        %3381 = vmatpush.bf16.msra.mxu0 %v2951
        %3382 = vmatpush.bf16.msra.mxu0 %v2947
        %3383 = vmatmul.bf16.gmra.mxu0 %v2653
        %v3384 = vpop.f32.mrf.mxu0
        %v3385 = vadd.f32 %v3356, %v3384
        %v3386 = vpop.f32.mrf.mxu0
        %v3387 = vadd.f32 %v3358, %v3386
        %3388 = vmatmul.bf16.gmra.mxu0 %v2656
        %v3389 = vpop.f32.mrf.mxu0
        %v3390 = vadd.f32 %v3361, %v3389
        %v3391 = vpop.f32.mrf.mxu0
        %v3392 = vadd.f32 %v3363, %v3391
        %3393 = vmatmul.bf16.gmra.mxu0 %v2659
        %v3394 = vpop.f32.mrf.mxu0
        %v3395 = vadd.f32 %v3366, %v3394
        %v3396 = vpop.f32.mrf.mxu0
        %v3397 = vadd.f32 %v3368, %v3396
        %3398 = vmatmul.bf16.gmra.mxu0 %v2662
        %v3399 = vpop.f32.mrf.mxu0
        %v3400 = vadd.f32 %v3371, %v3399
        %v3401 = vpop.f32.mrf.mxu0
        %v3402 = vadd.f32 %v3373, %v3401
        %3403 = vdwg.mxu0
        %3404 = vmatpush.bf16.msra.mxu0 0
        %3405 = vmatpush.bf16.msra.mxu0 0
        %3406 = vmatpush.bf16.msra.mxu0 0
        %3407 = vmatpush.bf16.msra.mxu0 0
        %3408 = vmatpush.bf16.msra.mxu0 %v2991
        %3409 = vmatpush.bf16.msra.mxu0 %v2987
        %3410 = vmatpush.bf16.msra.mxu0 %v2983
        %3411 = vmatpush.bf16.msra.mxu0 %v2979
        %3412 = vmatmul.bf16.gmra.mxu0 %v3074
        %v3413 = vpop.f32.mrf.mxu0
        %v3414 = vadd.f32 %v3385, %v3413
        %v3415 = vpop.f32.mrf.mxu0
        %v3416 = vadd.f32 %v3387, %v3415
        %3417 = vmatmul.bf16.gmra.mxu0 %v3077
        %v3418 = vpop.f32.mrf.mxu0
        %v3419 = vadd.f32 %v3390, %v3418
        %v3420 = vpop.f32.mrf.mxu0
        %v3421 = vadd.f32 %v3392, %v3420
        %3422 = vmatmul.bf16.gmra.mxu0 %v3080
        %v3423 = vpop.f32.mrf.mxu0
        %v3424 = vadd.f32 %v3395, %v3423
        %v3425 = vpop.f32.mrf.mxu0
        %v3426 = vadd.f32 %v3397, %v3425
        %3427 = vmatmul.bf16.gmra.mxu0 %v3083
        %v3428 = vpop.f32.mrf.mxu0
        %v3429 = vadd.f32 %v3400, %v3428
        %v3430 = vpop.f32.mrf.mxu0
        %v3431 = vadd.f32 %v3402, %v3430
        %3432 = vdwg.mxu0
        %3433 = vset.pattern.permute.xlu0 3
        %3434 = vperm.xlu0 %3433, %v369
        %v3435 = vpop.permute.xlu0 %3434
        %3437 = vset.pattern.permute.xlu0 3
        %3438 = vperm.xlu0 %3437, %v370
        %v3439 = vpop.permute.xlu0 %3438
        %3441 = vset.pattern.permute.xlu0 3
        %3442 = vperm.xlu0 %3441, %v371
        %v3443 = vpop.permute.xlu0 %3442
        %3445 = vset.pattern.permute.xlu0 3
        %3446 = vperm.xlu0 %3445, %v372
        %v3447 = vpop.permute.xlu0 %3446
        %3449 = vset.pattern.permute.xlu0 3
        %3450 = vperm.xlu0 %3449, %v373
        %v3451 = vpop.permute.xlu0 %3450
        %3453 = vset.pattern.permute.xlu0 3
        %3454 = vperm.xlu0 %3453, %v374
        %v3455 = vpop.permute.xlu0 %3454
        %3457 = vset.pattern.permute.xlu0 3
        %3458 = vperm.xlu0 %3457, %v375
        %v3459 = vpop.permute.xlu0 %3458
        %3461 = vset.pattern.permute.xlu0 3
        %3462 = vperm.xlu0 %3461, %v376
        %v3463 = vpop.permute.xlu0 %3462
        %v3465 = vmul.f32 %v3435, %v581
        %v3466 = vmul.f32 %v3435, %v610
        %v3467 = vmul.f32 %v3435, %v639
        %v3468 = vmul.f32 %v3435, %v668
        %v3469 = vmul.f32 %v3439, %v583
        %v3470 = vmul.f32 %v3439, %v612
        %v3471 = vmul.f32 %v3439, %v641
        %v3472 = vmul.f32 %v3439, %v670
        %v3473 = vmul.f32 %v3443, %v586
        %v3474 = vmul.f32 %v3443, %v615
        %v3475 = vmul.f32 %v3443, %v644
        %v3476 = vmul.f32 %v3443, %v673
        %v3477 = vmul.f32 %v3447, %v588
        %v3478 = vmul.f32 %v3447, %v617
        %v3479 = vmul.f32 %v3447, %v646
        %v3480 = vmul.f32 %v3447, %v675
        %v3481 = vmul.f32 %v3451, %v591
        %v3482 = vmul.f32 %v3451, %v620
        %v3483 = vmul.f32 %v3451, %v649
        %v3484 = vmul.f32 %v3451, %v678
        %v3485 = vmul.f32 %v3455, %v593
        %v3486 = vmul.f32 %v3455, %v622
        %v3487 = vmul.f32 %v3455, %v651
        %v3488 = vmul.f32 %v3455, %v680
        %v3489 = vmul.f32 %v3459, %v596
        %v3490 = vmul.f32 %v3459, %v625
        %v3491 = vmul.f32 %v3459, %v654
        %v3492 = vmul.f32 %v3459, %v683
        %v3493 = vmul.f32 %v3463, %v598
        %v3494 = vmul.f32 %v3463, %v627
        %v3495 = vmul.f32 %v3463, %v656
        %v3496 = vmul.f32 %v3463, %v685
        %v3497 = vsel %vm687, %v581, %v3465
        %v3498 = vsel %vm688, %v610, %v3466
        %v3499 = vsel %vm689, %v639, %v3467
        %v3500 = vsel %vm690, %v668, %v3468
        %v3501 = vsel %vm691, %v583, %v3469
        %v3502 = vsel %vm692, %v612, %v3470
        %v3503 = vsel %vm693, %v641, %v3471
        %v3504 = vsel %vm694, %v670, %v3472
        %v3505 = vsel %vm695, %v586, %v3473
        %v3506 = vsel %vm696, %v615, %v3474
        %v3507 = vsel %vm697, %v644, %v3475
        %v3508 = vsel %vm698, %v673, %v3476
        %v3509 = vsel %vm699, %v588, %v3477
        %v3510 = vsel %vm700, %v617, %v3478
        %v3511 = vsel %vm701, %v646, %v3479
        %v3512 = vsel %vm702, %v675, %v3480
        %v3513 = vsel %vm703, %v591, %v3481
        %v3514 = vsel %vm704, %v620, %v3482
        %v3515 = vsel %vm705, %v649, %v3483
        %v3516 = vsel %vm706, %v678, %v3484
        %v3517 = vsel %vm707, %v593, %v3485
        %v3518 = vsel %vm708, %v622, %v3486
        %v3519 = vsel %vm709, %v651, %v3487
        %v3520 = vsel %vm710, %v680, %v3488
        %v3521 = vsel %vm711, %v596, %v3489
        %v3522 = vsel %vm712, %v625, %v3490
        %v3523 = vsel %vm713, %v654, %v3491
        %v3524 = vsel %vm714, %v683, %v3492
        %v3525 = vsel %vm715, %v598, %v3493
        %v3526 = vsel %vm716, %v627, %v3494
        %v3527 = vsel %vm717, %v656, %v3495
        %v3528 = vsel %vm718, %v685, %v3496
        %3529 = vmatpush.msra.mxu0 %v392
        %3530 = vmatpush.msra.mxu0 %v391
        %3531 = vmatpush.msra.mxu0 %v390
        %3532 = vmatpush.msra.mxu0 %v389
        %3533 = vmatpush.msra.mxu0 %v388
        %3534 = vmatpush.msra.mxu0 %v387
        %3535 = vmatpush.msra.mxu0 %v386
        %3536 = vmatpush.msra.mxu0 %v385
        %3537 = vmatpush.msra.mxu0 %v384
        %3538 = vmatpush.msra.mxu0 %v383
        %3539 = vmatpush.msra.mxu0 %v382
        %3540 = vmatpush.msra.mxu0 %v381
        %3541 = vmatpush.msra.mxu0 %v380
        %3542 = vmatpush.msra.mxu0 %v379
        %3543 = vmatpush.msra.mxu0 %v378
        %3544 = vmatpush.msra.mxu0 %v377
        %3545 = vmatmul.f32.gmra.mxu0 %v3497
        %v3546 = vpop.f32.mrf.mxu0
        %v3547 = vadd.f32 0.0, %v3546
        %3548 = vmatmul.f32.gmra.mxu0 %v3501
        %v3549 = vpop.f32.mrf.mxu0
        %v3550 = vadd.f32 0.0, %v3549
        %3551 = vmatmul.f32.gmra.mxu0 %v3505
        %v3552 = vpop.f32.mrf.mxu0
        %v3553 = vadd.f32 0.0, %v3552
        %3554 = vmatmul.f32.gmra.mxu0 %v3509
        %v3555 = vpop.f32.mrf.mxu0
        %v3556 = vadd.f32 0.0, %v3555
        %3557 = vmatmul.f32.gmra.mxu0 %v3513
        %v3558 = vpop.f32.mrf.mxu0
        %v3559 = vadd.f32 0.0, %v3558
        %3560 = vmatmul.f32.gmra.mxu0 %v3517
        %v3561 = vpop.f32.mrf.mxu0
        %v3562 = vadd.f32 0.0, %v3561
        %3563 = vmatmul.f32.gmra.mxu0 %v3521
        %v3564 = vpop.f32.mrf.mxu0
        %v3565 = vadd.f32 0.0, %v3564
        %3566 = vmatmul.f32.gmra.mxu0 %v3525
        %v3567 = vpop.f32.mrf.mxu0
        %v3568 = vadd.f32 0.0, %v3567
        %3569 = vdwg.mxu0
        %3570 = vmatpush.msra.mxu0 %v408
        %3571 = vmatpush.msra.mxu0 %v407
        %3572 = vmatpush.msra.mxu0 %v406
        %3573 = vmatpush.msra.mxu0 %v405
        %3574 = vmatpush.msra.mxu0 %v404
        %3575 = vmatpush.msra.mxu0 %v403
        %3576 = vmatpush.msra.mxu0 %v402
        %3577 = vmatpush.msra.mxu0 %v401
        %3578 = vmatpush.msra.mxu0 %v400
        %3579 = vmatpush.msra.mxu0 %v399
        %3580 = vmatpush.msra.mxu0 %v398
        %3581 = vmatpush.msra.mxu0 %v397
        %3582 = vmatpush.msra.mxu0 %v396
        %3583 = vmatpush.msra.mxu0 %v395
        %3584 = vmatpush.msra.mxu0 %v394
        %3585 = vmatpush.msra.mxu0 %v393
        %3586 = vmatmul.f32.gmra.mxu0 %v3498
        %v3587 = vpop.f32.mrf.mxu0
        %v3588 = vadd.f32 %v3547, %v3587
        %3589 = vmatmul.f32.gmra.mxu0 %v3502
        %v3590 = vpop.f32.mrf.mxu0
        %v3591 = vadd.f32 %v3550, %v3590
        %3592 = vmatmul.f32.gmra.mxu0 %v3506
        %v3593 = vpop.f32.mrf.mxu0
        %v3594 = vadd.f32 %v3553, %v3593
        %3595 = vmatmul.f32.gmra.mxu0 %v3510
        %v3596 = vpop.f32.mrf.mxu0
        %v3597 = vadd.f32 %v3556, %v3596
        %3598 = vmatmul.f32.gmra.mxu0 %v3514
        %v3599 = vpop.f32.mrf.mxu0
        %v3600 = vadd.f32 %v3559, %v3599
        %3601 = vmatmul.f32.gmra.mxu0 %v3518
        %v3602 = vpop.f32.mrf.mxu0
        %v3603 = vadd.f32 %v3562, %v3602
        %3604 = vmatmul.f32.gmra.mxu0 %v3522
        %v3605 = vpop.f32.mrf.mxu0
        %v3606 = vadd.f32 %v3565, %v3605
        %3607 = vmatmul.f32.gmra.mxu0 %v3526
        %v3608 = vpop.f32.mrf.mxu0
        %v3609 = vadd.f32 %v3568, %v3608
        %3610 = vdwg.mxu0
        %3611 = vmatpush.msra.mxu0 %v424
        %3612 = vmatpush.msra.mxu0 %v423
        %3613 = vmatpush.msra.mxu0 %v422
        %3614 = vmatpush.msra.mxu0 %v421
        %3615 = vmatpush.msra.mxu0 %v420
        %3616 = vmatpush.msra.mxu0 %v419
        %3617 = vmatpush.msra.mxu0 %v418
        %3618 = vmatpush.msra.mxu0 %v417
        %3619 = vmatpush.msra.mxu0 %v416
        %3620 = vmatpush.msra.mxu0 %v415
        %3621 = vmatpush.msra.mxu0 %v414
        %3622 = vmatpush.msra.mxu0 %v413
        %3623 = vmatpush.msra.mxu0 %v412
        %3624 = vmatpush.msra.mxu0 %v411
        %3625 = vmatpush.msra.mxu0 %v410
        %3626 = vmatpush.msra.mxu0 %v409
        %3627 = vmatmul.f32.gmra.mxu0 %v3499
        %v3628 = vpop.f32.mrf.mxu0
        %v3629 = vadd.f32 %v3588, %v3628
        %3630 = vmatmul.f32.gmra.mxu0 %v3503
        %v3631 = vpop.f32.mrf.mxu0
        %v3632 = vadd.f32 %v3591, %v3631
        %3633 = vmatmul.f32.gmra.mxu0 %v3507
        %v3634 = vpop.f32.mrf.mxu0
        %v3635 = vadd.f32 %v3594, %v3634
        %3636 = vmatmul.f32.gmra.mxu0 %v3511
        %v3637 = vpop.f32.mrf.mxu0
        %v3638 = vadd.f32 %v3597, %v3637
        %3639 = vmatmul.f32.gmra.mxu0 %v3515
        %v3640 = vpop.f32.mrf.mxu0
        %v3641 = vadd.f32 %v3600, %v3640
        %3642 = vmatmul.f32.gmra.mxu0 %v3519
        %v3643 = vpop.f32.mrf.mxu0
        %v3644 = vadd.f32 %v3603, %v3643
        %3645 = vmatmul.f32.gmra.mxu0 %v3523
        %v3646 = vpop.f32.mrf.mxu0
        %v3647 = vadd.f32 %v3606, %v3646
        %3648 = vmatmul.f32.gmra.mxu0 %v3527
        %v3649 = vpop.f32.mrf.mxu0
        %v3650 = vadd.f32 %v3609, %v3649
        %3651 = vdwg.mxu0
        %3652 = vmatpush.msra.mxu0 %v440
        %3653 = vmatpush.msra.mxu0 %v439
        %3654 = vmatpush.msra.mxu0 %v438
        %3655 = vmatpush.msra.mxu0 %v437
        %3656 = vmatpush.msra.mxu0 %v436
        %3657 = vmatpush.msra.mxu0 %v435
        %3658 = vmatpush.msra.mxu0 %v434
        %3659 = vmatpush.msra.mxu0 %v433
        %3660 = vmatpush.msra.mxu0 %v432
        %3661 = vmatpush.msra.mxu0 %v431
        %3662 = vmatpush.msra.mxu0 %v430
        %3663 = vmatpush.msra.mxu0 %v429
        %3664 = vmatpush.msra.mxu0 %v428
        %3665 = vmatpush.msra.mxu0 %v427
        %3666 = vmatpush.msra.mxu0 %v426
        %3667 = vmatpush.msra.mxu0 %v425
        %3668 = vmatmul.f32.gmra.mxu0 %v3500
        %v3669 = vpop.f32.mrf.mxu0
        %v3670 = vadd.f32 %v3629, %v3669
        %3671 = vmatmul.f32.gmra.mxu0 %v3504
        %v3672 = vpop.f32.mrf.mxu0
        %v3673 = vadd.f32 %v3632, %v3672
        %3674 = vmatmul.f32.gmra.mxu0 %v3508
        %v3675 = vpop.f32.mrf.mxu0
        %v3676 = vadd.f32 %v3635, %v3675
        %3677 = vmatmul.f32.gmra.mxu0 %v3512
        %v3678 = vpop.f32.mrf.mxu0
        %v3679 = vadd.f32 %v3638, %v3678
        %3680 = vmatmul.f32.gmra.mxu0 %v3516
        %v3681 = vpop.f32.mrf.mxu0
        %v3682 = vadd.f32 %v3641, %v3681
        %3683 = vmatmul.f32.gmra.mxu0 %v3520
        %v3684 = vpop.f32.mrf.mxu0
        %v3685 = vadd.f32 %v3644, %v3684
        %3686 = vmatmul.f32.gmra.mxu0 %v3524
        %v3687 = vpop.f32.mrf.mxu0
        %v3688 = vadd.f32 %v3647, %v3687
        %3689 = vmatmul.f32.gmra.mxu0 %v3528
        %v3690 = vpop.f32.mrf.mxu0
        %v3691 = vadd.f32 %v3650, %v3690
        %3692 = vdwg.mxu0
        %v3693 = vmul.f32 %v3497, %v3497
        %v3694 = vmul.f32 %v3498, %v3498
        %v3695 = vmul.f32 %v3499, %v3499
        %v3696 = vmul.f32 %v3500, %v3500
        %v3697 = vmul.f32 %v3501, %v3501
        %v3698 = vmul.f32 %v3502, %v3502
        %v3699 = vmul.f32 %v3503, %v3503
        %v3700 = vmul.f32 %v3504, %v3504
        %v3701 = vmul.f32 %v3505, %v3505
        %v3702 = vmul.f32 %v3506, %v3506
        %v3703 = vmul.f32 %v3507, %v3507
        %v3704 = vmul.f32 %v3508, %v3508
        %v3705 = vmul.f32 %v3509, %v3509
        %v3706 = vmul.f32 %v3510, %v3510
        %v3707 = vmul.f32 %v3511, %v3511
        %v3708 = vmul.f32 %v3512, %v3512
        %v3709 = vmul.f32 %v3513, %v3513
        %v3710 = vmul.f32 %v3514, %v3514
        %v3711 = vmul.f32 %v3515, %v3515
        %v3712 = vmul.f32 %v3516, %v3516
        %v3713 = vmul.f32 %v3517, %v3517
        %v3714 = vmul.f32 %v3518, %v3518
        %v3715 = vmul.f32 %v3519, %v3519
        %v3716 = vmul.f32 %v3520, %v3520
        %v3717 = vmul.f32 %v3521, %v3521
        %v3718 = vmul.f32 %v3522, %v3522
        %v3719 = vmul.f32 %v3523, %v3523
        %v3720 = vmul.f32 %v3524, %v3524
        %v3721 = vmul.f32 %v3525, %v3525
        %v3722 = vmul.f32 %v3526, %v3526
        %v3723 = vmul.f32 %v3527, %v3527
        %v3724 = vmul.f32 %v3528, %v3528
        %3725 = vmatpush.msra.mxu0 %v392
        %3726 = vmatpush.msra.mxu0 %v391
        %3727 = vmatpush.msra.mxu0 %v390
        %3728 = vmatpush.msra.mxu0 %v389
        %3729 = vmatpush.msra.mxu0 %v388
        %3730 = vmatpush.msra.mxu0 %v387
        %3731 = vmatpush.msra.mxu0 %v386
        %3732 = vmatpush.msra.mxu0 %v385
        %3733 = vmatpush.msra.mxu0 %v384
        %3734 = vmatpush.msra.mxu0 %v383
        %3735 = vmatpush.msra.mxu0 %v382
        %3736 = vmatpush.msra.mxu0 %v381
        %3737 = vmatpush.msra.mxu0 %v380
        %3738 = vmatpush.msra.mxu0 %v379
        %3739 = vmatpush.msra.mxu0 %v378
        %3740 = vmatpush.msra.mxu0 %v377
        %3741 = vmatmul.f32.gmra.mxu0 %v3693
        %v3742 = vpop.f32.mrf.mxu0
        %v3743 = vadd.f32 0.0, %v3742
        %3744 = vmatmul.f32.gmra.mxu0 %v3697
        %v3745 = vpop.f32.mrf.mxu0
        %v3746 = vadd.f32 0.0, %v3745
        %3747 = vmatmul.f32.gmra.mxu0 %v3701
        %v3748 = vpop.f32.mrf.mxu0
        %v3749 = vadd.f32 0.0, %v3748
        %3750 = vmatmul.f32.gmra.mxu0 %v3705
        %v3751 = vpop.f32.mrf.mxu0
        %v3752 = vadd.f32 0.0, %v3751
        %3753 = vmatmul.f32.gmra.mxu0 %v3709
        %v3754 = vpop.f32.mrf.mxu0
        %v3755 = vadd.f32 0.0, %v3754
        %3756 = vmatmul.f32.gmra.mxu0 %v3713
        %v3757 = vpop.f32.mrf.mxu0
        %v3758 = vadd.f32 0.0, %v3757
        %3759 = vmatmul.f32.gmra.mxu0 %v3717
        %v3760 = vpop.f32.mrf.mxu0
        %v3761 = vadd.f32 0.0, %v3760
        %3762 = vmatmul.f32.gmra.mxu0 %v3721
        %v3763 = vpop.f32.mrf.mxu0
        %v3764 = vadd.f32 0.0, %v3763
        %3765 = vdwg.mxu0
        %3766 = vmatpush.msra.mxu0 %v408
        %3767 = vmatpush.msra.mxu0 %v407
        %3768 = vmatpush.msra.mxu0 %v406
        %3769 = vmatpush.msra.mxu0 %v405
        %3770 = vmatpush.msra.mxu0 %v404
        %3771 = vmatpush.msra.mxu0 %v403
        %3772 = vmatpush.msra.mxu0 %v402
        %3773 = vmatpush.msra.mxu0 %v401
        %3774 = vmatpush.msra.mxu0 %v400
        %3775 = vmatpush.msra.mxu0 %v399
        %3776 = vmatpush.msra.mxu0 %v398
        %3777 = vmatpush.msra.mxu0 %v397
        %3778 = vmatpush.msra.mxu0 %v396
        %3779 = vmatpush.msra.mxu0 %v395
        %3780 = vmatpush.msra.mxu0 %v394
        %3781 = vmatpush.msra.mxu0 %v393
        %3782 = vmatmul.f32.gmra.mxu0 %v3694
        %v3783 = vpop.f32.mrf.mxu0
        %v3784 = vadd.f32 %v3743, %v3783
        %3785 = vmatmul.f32.gmra.mxu0 %v3698
        %v3786 = vpop.f32.mrf.mxu0
        %v3787 = vadd.f32 %v3746, %v3786
        %3788 = vmatmul.f32.gmra.mxu0 %v3702
        %v3789 = vpop.f32.mrf.mxu0
        %v3790 = vadd.f32 %v3749, %v3789
        %3791 = vmatmul.f32.gmra.mxu0 %v3706
        %v3792 = vpop.f32.mrf.mxu0
        %v3793 = vadd.f32 %v3752, %v3792
        %3794 = vmatmul.f32.gmra.mxu0 %v3710
        %v3795 = vpop.f32.mrf.mxu0
        %v3796 = vadd.f32 %v3755, %v3795
        %3797 = vmatmul.f32.gmra.mxu0 %v3714
        %v3798 = vpop.f32.mrf.mxu0
        %v3799 = vadd.f32 %v3758, %v3798
        %3800 = vmatmul.f32.gmra.mxu0 %v3718
        %v3801 = vpop.f32.mrf.mxu0
        %v3802 = vadd.f32 %v3761, %v3801
        %3803 = vmatmul.f32.gmra.mxu0 %v3722
        %v3804 = vpop.f32.mrf.mxu0
        %v3805 = vadd.f32 %v3764, %v3804
        %3806 = vdwg.mxu0
        %3807 = vmatpush.msra.mxu0 %v424
        %3808 = vmatpush.msra.mxu0 %v423
        %3809 = vmatpush.msra.mxu0 %v422
        %3810 = vmatpush.msra.mxu0 %v421
        %3811 = vmatpush.msra.mxu0 %v420
        %3812 = vmatpush.msra.mxu0 %v419
        %3813 = vmatpush.msra.mxu0 %v418
        %3814 = vmatpush.msra.mxu0 %v417
        %3815 = vmatpush.msra.mxu0 %v416
        %3816 = vmatpush.msra.mxu0 %v415
        %3817 = vmatpush.msra.mxu0 %v414
        %3818 = vmatpush.msra.mxu0 %v413
        %3819 = vmatpush.msra.mxu0 %v412
        %3820 = vmatpush.msra.mxu0 %v411
        %3821 = vmatpush.msra.mxu0 %v410
        %3822 = vmatpush.msra.mxu0 %v409
        %3823 = vmatmul.f32.gmra.mxu0 %v3695
        %v3824 = vpop.f32.mrf.mxu0
        %v3825 = vadd.f32 %v3784, %v3824
        %3826 = vmatmul.f32.gmra.mxu0 %v3699
        %v3827 = vpop.f32.mrf.mxu0
        %v3828 = vadd.f32 %v3787, %v3827
        %3829 = vmatmul.f32.gmra.mxu0 %v3703
        %v3830 = vpop.f32.mrf.mxu0
        %v3831 = vadd.f32 %v3790, %v3830
        %3832 = vmatmul.f32.gmra.mxu0 %v3707
        %v3833 = vpop.f32.mrf.mxu0
        %v3834 = vadd.f32 %v3793, %v3833
        %3835 = vmatmul.f32.gmra.mxu0 %v3711
        %v3836 = vpop.f32.mrf.mxu0
        %v3837 = vadd.f32 %v3796, %v3836
        %3838 = vmatmul.f32.gmra.mxu0 %v3715
        %v3839 = vpop.f32.mrf.mxu0
        %v3840 = vadd.f32 %v3799, %v3839
        %3841 = vmatmul.f32.gmra.mxu0 %v3719
        %v3842 = vpop.f32.mrf.mxu0
        %v3843 = vadd.f32 %v3802, %v3842
        %3844 = vmatmul.f32.gmra.mxu0 %v3723
        %v3845 = vpop.f32.mrf.mxu0
        %v3846 = vadd.f32 %v3805, %v3845
        %3847 = vdwg.mxu0
        %3848 = vmatpush.msra.mxu0 %v440
        %3849 = vmatpush.msra.mxu0 %v439
        %3850 = vmatpush.msra.mxu0 %v438
        %3851 = vmatpush.msra.mxu0 %v437
        %3852 = vmatpush.msra.mxu0 %v436
        %3853 = vmatpush.msra.mxu0 %v435
        %3854 = vmatpush.msra.mxu0 %v434
        %3855 = vmatpush.msra.mxu0 %v433
        %3856 = vmatpush.msra.mxu0 %v432
        %3857 = vmatpush.msra.mxu0 %v431
        %3858 = vmatpush.msra.mxu0 %v430
        %3859 = vmatpush.msra.mxu0 %v429
        %3860 = vmatpush.msra.mxu0 %v428
        %3861 = vmatpush.msra.mxu0 %v427
        %3862 = vmatpush.msra.mxu0 %v426
        %3863 = vmatpush.msra.mxu0 %v425
        %3864 = vmatmul.f32.gmra.mxu0 %v3696
        %v3865 = vpop.f32.mrf.mxu0
        %v3866 = vadd.f32 %v3825, %v3865
        %3867 = vmatmul.f32.gmra.mxu0 %v3700
        %v3868 = vpop.f32.mrf.mxu0
        %v3869 = vadd.f32 %v3828, %v3868
        %3870 = vmatmul.f32.gmra.mxu0 %v3704
        %v3871 = vpop.f32.mrf.mxu0
        %v3872 = vadd.f32 %v3831, %v3871
        %3873 = vmatmul.f32.gmra.mxu0 %v3708
        %v3874 = vpop.f32.mrf.mxu0
        %v3875 = vadd.f32 %v3834, %v3874
        %3876 = vmatmul.f32.gmra.mxu0 %v3712
        %v3877 = vpop.f32.mrf.mxu0
        %v3878 = vadd.f32 %v3837, %v3877
        %3879 = vmatmul.f32.gmra.mxu0 %v3716
        %v3880 = vpop.f32.mrf.mxu0
        %v3881 = vadd.f32 %v3840, %v3880
        %3882 = vmatmul.f32.gmra.mxu0 %v3720
        %v3883 = vpop.f32.mrf.mxu0
        %v3884 = vadd.f32 %v3843, %v3883
        %3885 = vmatmul.f32.gmra.mxu0 %v3724
        %v3886 = vpop.f32.mrf.mxu0
        %v3887 = vadd.f32 %v3846, %v3886
        %3888 = vdwg.mxu0
        %v3889 = vmul.f32 %v3670, 0.0078125
        %v3890 = vmul.f32 %v3673, 0.0078125
        %v3891 = vmul.f32 %v3676, 0.0078125
        %v3892 = vmul.f32 %v3679, 0.0078125
        %v3893 = vmul.f32 %v3682, 0.0078125
        %v3894 = vmul.f32 %v3685, 0.0078125
        %v3895 = vmul.f32 %v3688, 0.0078125
        %v3896 = vmul.f32 %v3691, 0.0078125
        %v3897 = vmul.f32 %v3866, 0.0078125
        %v3898 = vmul.f32 %v3869, 0.0078125
        %v3899 = vmul.f32 %v3872, 0.0078125
        %v3900 = vmul.f32 %v3875, 0.0078125
        %v3901 = vmul.f32 %v3878, 0.0078125
        %v3902 = vmul.f32 %v3881, 0.0078125
        %v3903 = vmul.f32 %v3884, 0.0078125
        %v3904 = vmul.f32 %v3887, 0.0078125
        %v3905 = vmul.f32 %v3889, %v3889
        %v3906 = vmul.f32 %v3890, %v3890
        %v3907 = vmul.f32 %v3891, %v3891
        %v3908 = vmul.f32 %v3892, %v3892
        %v3909 = vmul.f32 %v3893, %v3893
        %v3910 = vmul.f32 %v3894, %v3894
        %v3911 = vmul.f32 %v3895, %v3895
        %v3912 = vmul.f32 %v3896, %v3896
        %v3913 = vsub.f32 %v3897, %v3905
        %v3914 = vsub.f32 %v3898, %v3906
        %v3915 = vsub.f32 %v3899, %v3907
        %v3916 = vsub.f32 %v3900, %v3908
        %v3917 = vsub.f32 %v3901, %v3909
        %v3918 = vsub.f32 %v3902, %v3910
        %v3919 = vsub.f32 %v3903, %v3911
        %v3920 = vsub.f32 %v3904, %v3912
        %v3921 = vmax.f32 %v3913, 0.0
        %v3922 = vmax.f32 %v3914, 0.0
        %v3923 = vmax.f32 %v3915, 0.0
        %v3924 = vmax.f32 %v3916, 0.0
        %v3925 = vmax.f32 %v3917, 0.0
        %v3926 = vmax.f32 %v3918, 0.0
        %v3927 = vmax.f32 %v3919, 0.0
        %v3928 = vmax.f32 %v3920, 0.0
        %v3929 = vadd.f32 %v3921, 1e-05
        %v3930 = vadd.f32 %v3922, 1e-05
        %v3931 = vadd.f32 %v3923, 1e-05
        %v3932 = vadd.f32 %v3924, 1e-05
        %v3933 = vadd.f32 %v3925, 1e-05
        %v3934 = vadd.f32 %v3926, 1e-05
        %v3935 = vadd.f32 %v3927, 1e-05
        %v3936 = vadd.f32 %v3928, 1e-05
        %v3937 = vrsqrt.pop %v3929
        %v3938 = vmul.f32 %v3937, %v3929
        %v3939 = vmul.f32 %v3938, %v3937
        %v3940 = vmul.f32 0.5, %v3939
        %v3941 = vsub.f32 1.5, %v3940
        %v3942 = vmul.f32 %v3937, %v3941
        %vm3943 = vweird.f32 %v3929
        %vm3944 = vweird.f32 %v3937
        %vm3945 = vmor %vm3943, %vm3944
        %v3946 = vsel %vm3945, %v3937, %v3942
        %v3947 = vrsqrt.pop %v3930
        %v3948 = vmul.f32 %v3947, %v3930
        %v3949 = vmul.f32 %v3948, %v3947
        %v3950 = vmul.f32 0.5, %v3949
        %v3951 = vsub.f32 1.5, %v3950
        %v3952 = vmul.f32 %v3947, %v3951
        %vm3953 = vweird.f32 %v3930
        %vm3954 = vweird.f32 %v3947
        %vm3955 = vmor %vm3953, %vm3954
        %v3956 = vsel %vm3955, %v3947, %v3952
        %v3957 = vrsqrt.pop %v3931
        %v3958 = vmul.f32 %v3957, %v3931
        %v3959 = vmul.f32 %v3958, %v3957
        %v3960 = vmul.f32 0.5, %v3959
        %v3961 = vsub.f32 1.5, %v3960
        %v3962 = vmul.f32 %v3957, %v3961
        %vm3963 = vweird.f32 %v3931
        %vm3964 = vweird.f32 %v3957
        %vm3965 = vmor %vm3963, %vm3964
        %v3966 = vsel %vm3965, %v3957, %v3962
        %v3967 = vrsqrt.pop %v3932
        %v3968 = vmul.f32 %v3967, %v3932
        %v3969 = vmul.f32 %v3968, %v3967
        %v3970 = vmul.f32 0.5, %v3969
        %v3971 = vsub.f32 1.5, %v3970
        %v3972 = vmul.f32 %v3967, %v3971
        %vm3973 = vweird.f32 %v3932
        %vm3974 = vweird.f32 %v3967
        %vm3975 = vmor %vm3973, %vm3974
        %v3976 = vsel %vm3975, %v3967, %v3972
        %v3977 = vrsqrt.pop %v3933
        %v3978 = vmul.f32 %v3977, %v3933
        %v3979 = vmul.f32 %v3978, %v3977
        %v3980 = vmul.f32 0.5, %v3979
        %v3981 = vsub.f32 1.5, %v3980
        %v3982 = vmul.f32 %v3977, %v3981
        %vm3983 = vweird.f32 %v3933
        %vm3984 = vweird.f32 %v3977
        %vm3985 = vmor %vm3983, %vm3984
        %v3986 = vsel %vm3985, %v3977, %v3982
        %v3987 = vrsqrt.pop %v3934
        %v3988 = vmul.f32 %v3987, %v3934
        %v3989 = vmul.f32 %v3988, %v3987
        %v3990 = vmul.f32 0.5, %v3989
        %v3991 = vsub.f32 1.5, %v3990
        %v3992 = vmul.f32 %v3987, %v3991
        %vm3993 = vweird.f32 %v3934
        %vm3994 = vweird.f32 %v3987
        %vm3995 = vmor %vm3993, %vm3994
        %v3996 = vsel %vm3995, %v3987, %v3992
        %v3997 = vrsqrt.pop %v3935
        %v3998 = vmul.f32 %v3997, %v3935
        %v3999 = vmul.f32 %v3998, %v3997
        %v4000 = vmul.f32 0.5, %v3999
        %v4001 = vsub.f32 1.5, %v4000
        %v4002 = vmul.f32 %v3997, %v4001
        %vm4003 = vweird.f32 %v3935
        %vm4004 = vweird.f32 %v3997
        %vm4005 = vmor %vm4003, %vm4004
        %v4006 = vsel %vm4005, %v3997, %v4002
        %v4007 = vrsqrt.pop %v3936
        %v4008 = vmul.f32 %v4007, %v3936
        %v4009 = vmul.f32 %v4008, %v4007
        %v4010 = vmul.f32 0.5, %v4009
        %v4011 = vsub.f32 1.5, %v4010
        %v4012 = vmul.f32 %v4007, %v4011
        %vm4013 = vweird.f32 %v3936
        %vm4014 = vweird.f32 %v4007
        %vm4015 = vmor %vm4013, %vm4014
        %v4016 = vsel %vm4015, %v4007, %v4012
        %4017 = vset.pattern.permute.xlu0 4
        %4018 = vperm.xlu0 %4017, %v369
        %v4019 = vpop.permute.xlu0 %4018
        %4021 = vset.pattern.permute.xlu0 4
        %4022 = vperm.xlu0 %4021, %v370
        %v4023 = vpop.permute.xlu0 %4022
        %4025 = vset.pattern.permute.xlu0 4
        %4026 = vperm.xlu0 %4025, %v371
        %v4027 = vpop.permute.xlu0 %4026
        %4029 = vset.pattern.permute.xlu0 4
        %4030 = vperm.xlu0 %4029, %v372
        %v4031 = vpop.permute.xlu0 %4030
        %4033 = vset.pattern.permute.xlu0 4
        %4034 = vperm.xlu0 %4033, %v373
        %v4035 = vpop.permute.xlu0 %4034
        %4037 = vset.pattern.permute.xlu0 4
        %4038 = vperm.xlu0 %4037, %v374
        %v4039 = vpop.permute.xlu0 %4038
        %4041 = vset.pattern.permute.xlu0 4
        %4042 = vperm.xlu0 %4041, %v375
        %v4043 = vpop.permute.xlu0 %4042
        %4045 = vset.pattern.permute.xlu0 4
        %4046 = vperm.xlu0 %4045, %v376
        %v4047 = vpop.permute.xlu0 %4046
        %v4049 = vmul.f32 %v4019, %v3946
        %v4050 = vmul.f32 %v4023, %v3956
        %v4051 = vmul.f32 %v4027, %v3966
        %v4052 = vmul.f32 %v4031, %v3976
        %v4053 = vmul.f32 %v4035, %v3986
        %v4054 = vmul.f32 %v4039, %v3996
        %v4055 = vmul.f32 %v4043, %v4006
        %v4056 = vmul.f32 %v4047, %v4016
        %v4057 = vmul.f32 %v3889, %v4049
        %v4058 = vmul.f32 %v3890, %v4050
        %v4059 = vmul.f32 %v3891, %v4051
        %v4060 = vmul.f32 %v3892, %v4052
        %v4061 = vmul.f32 %v3893, %v4053
        %v4062 = vmul.f32 %v3894, %v4054
        %v4063 = vmul.f32 %v3895, %v4055
        %v4064 = vmul.f32 %v3896, %v4056
        %4065 = vset.pattern.permute.xlu0 5
        %4066 = vperm.xlu0 %4065, %v369
        %v4067 = vpop.permute.xlu0 %4066
        %4069 = vset.pattern.permute.xlu0 5
        %4070 = vperm.xlu0 %4069, %v370
        %v4071 = vpop.permute.xlu0 %4070
        %4073 = vset.pattern.permute.xlu0 5
        %4074 = vperm.xlu0 %4073, %v371
        %v4075 = vpop.permute.xlu0 %4074
        %4077 = vset.pattern.permute.xlu0 5
        %4078 = vperm.xlu0 %4077, %v372
        %v4079 = vpop.permute.xlu0 %4078
        %4081 = vset.pattern.permute.xlu0 5
        %4082 = vperm.xlu0 %4081, %v373
        %v4083 = vpop.permute.xlu0 %4082
        %4085 = vset.pattern.permute.xlu0 5
        %4086 = vperm.xlu0 %4085, %v374
        %v4087 = vpop.permute.xlu0 %4086
        %4089 = vset.pattern.permute.xlu0 5
        %4090 = vperm.xlu0 %4089, %v375
        %v4091 = vpop.permute.xlu0 %4090
        %4093 = vset.pattern.permute.xlu0 5
        %4094 = vperm.xlu0 %4093, %v376
        %v4095 = vpop.permute.xlu0 %4094
        %v4097 = vsub.f32 %v4067, %v4057
        %v4098 = vsub.f32 %v4071, %v4058
        %v4099 = vsub.f32 %v4075, %v4059
        %v4100 = vsub.f32 %v4079, %v4060
        %v4101 = vsub.f32 %v4083, %v4061
        %v4102 = vsub.f32 %v4087, %v4062
        %v4103 = vsub.f32 %v4091, %v4063
        %v4104 = vsub.f32 %v4095, %v4064
        %v4106 = vsel %vm1399, %v4049, 0
        %v4109 = vsel %vm1399, %v4050, 0
        %v4112 = vsel %vm1399, %v4051, 0
        %v4115 = vsel %vm1399, %v4052, 0
        %v4118 = vsel %vm1399, %v4053, 0
        %v4121 = vsel %vm1399, %v4054, 0
        %v4124 = vsel %vm1399, %v4055, 0
        %v4127 = vsel %vm1399, %v4056, 0
        %4129 = vmatpush.msra.mxu0 0.0
        %4130 = vmatpush.msra.mxu0 0.0
        %4131 = vmatpush.msra.mxu0 0.0
        %4132 = vmatpush.msra.mxu0 0.0
        %4133 = vmatpush.msra.mxu0 0.0
        %4134 = vmatpush.msra.mxu0 0.0
        %4135 = vmatpush.msra.mxu0 0.0
        %4136 = vmatpush.msra.mxu0 0.0
        %4137 = vmatpush.msra.mxu0 0.0
        %4138 = vmatpush.msra.mxu0 0.0
        %4139 = vmatpush.msra.mxu0 0.0
        %4140 = vmatpush.msra.mxu0 0.0
        %4141 = vmatpush.msra.mxu0 0.0
        %4142 = vmatpush.msra.mxu0 0.0
        %4143 = vmatpush.msra.mxu0 0.0
        %4144 = vmatpush.msra.mxu0 %v441
        %4145 = vmatmul.f32.gmra.mxu0 %v4106
        %v4146 = vpop.f32.mrf.mxu0
        %v4147 = vadd.f32 0.0, %v4146
        %4148 = vmatmul.f32.gmra.mxu0 %v4109
        %v4149 = vpop.f32.mrf.mxu0
        %v4150 = vadd.f32 0.0, %v4149
        %4151 = vmatmul.f32.gmra.mxu0 %v4112
        %v4152 = vpop.f32.mrf.mxu0
        %v4153 = vadd.f32 0.0, %v4152
        %4154 = vmatmul.f32.gmra.mxu0 %v4115
        %v4155 = vpop.f32.mrf.mxu0
        %v4156 = vadd.f32 0.0, %v4155
        %4157 = vmatmul.f32.gmra.mxu0 %v4118
        %v4158 = vpop.f32.mrf.mxu0
        %v4159 = vadd.f32 0.0, %v4158
        %4160 = vmatmul.f32.gmra.mxu0 %v4121
        %v4161 = vpop.f32.mrf.mxu0
        %v4162 = vadd.f32 0.0, %v4161
        %4163 = vmatmul.f32.gmra.mxu0 %v4124
        %v4164 = vpop.f32.mrf.mxu0
        %v4165 = vadd.f32 0.0, %v4164
        %4166 = vmatmul.f32.gmra.mxu0 %v4127
        %v4167 = vpop.f32.mrf.mxu0
        %v4168 = vadd.f32 0.0, %v4167
        %4169 = vdwg.mxu0
        %4170 = vmatpush.msra.mxu0 0.0
        %4171 = vmatpush.msra.mxu0 0.0
        %4172 = vmatpush.msra.mxu0 0.0
        %4173 = vmatpush.msra.mxu0 0.0
        %4174 = vmatpush.msra.mxu0 0.0
        %4175 = vmatpush.msra.mxu0 0.0
        %4176 = vmatpush.msra.mxu0 0.0
        %4177 = vmatpush.msra.mxu0 0.0
        %4178 = vmatpush.msra.mxu0 0.0
        %4179 = vmatpush.msra.mxu0 0.0
        %4180 = vmatpush.msra.mxu0 0.0
        %4181 = vmatpush.msra.mxu0 0.0
        %4182 = vmatpush.msra.mxu0 0.0
        %4183 = vmatpush.msra.mxu0 0.0
        %4184 = vmatpush.msra.mxu0 0.0
        %4185 = vmatpush.msra.mxu0 %v442
        %4186 = vmatmul.f32.gmra.mxu0 %v4106
        %v4187 = vpop.f32.mrf.mxu0
        %v4188 = vadd.f32 0.0, %v4187
        %4189 = vmatmul.f32.gmra.mxu0 %v4109
        %v4190 = vpop.f32.mrf.mxu0
        %v4191 = vadd.f32 0.0, %v4190
        %4192 = vmatmul.f32.gmra.mxu0 %v4112
        %v4193 = vpop.f32.mrf.mxu0
        %v4194 = vadd.f32 0.0, %v4193
        %4195 = vmatmul.f32.gmra.mxu0 %v4115
        %v4196 = vpop.f32.mrf.mxu0
        %v4197 = vadd.f32 0.0, %v4196
        %4198 = vmatmul.f32.gmra.mxu0 %v4118
        %v4199 = vpop.f32.mrf.mxu0
        %v4200 = vadd.f32 0.0, %v4199
        %4201 = vmatmul.f32.gmra.mxu0 %v4121
        %v4202 = vpop.f32.mrf.mxu0
        %v4203 = vadd.f32 0.0, %v4202
        %4204 = vmatmul.f32.gmra.mxu0 %v4124
        %v4205 = vpop.f32.mrf.mxu0
        %v4206 = vadd.f32 0.0, %v4205
        %4207 = vmatmul.f32.gmra.mxu0 %v4127
        %v4208 = vpop.f32.mrf.mxu0
        %v4209 = vadd.f32 0.0, %v4208
        %4210 = vdwg.mxu0
        %4211 = vmatpush.msra.mxu0 0.0
        %4212 = vmatpush.msra.mxu0 0.0
        %4213 = vmatpush.msra.mxu0 0.0
        %4214 = vmatpush.msra.mxu0 0.0
        %4215 = vmatpush.msra.mxu0 0.0
        %4216 = vmatpush.msra.mxu0 0.0
        %4217 = vmatpush.msra.mxu0 0.0
        %4218 = vmatpush.msra.mxu0 0.0
        %4219 = vmatpush.msra.mxu0 0.0
        %4220 = vmatpush.msra.mxu0 0.0
        %4221 = vmatpush.msra.mxu0 0.0
        %4222 = vmatpush.msra.mxu0 0.0
        %4223 = vmatpush.msra.mxu0 0.0
        %4224 = vmatpush.msra.mxu0 0.0
        %4225 = vmatpush.msra.mxu0 0.0
        %4226 = vmatpush.msra.mxu0 %v443
        %4227 = vmatmul.f32.gmra.mxu0 %v4106
        %v4228 = vpop.f32.mrf.mxu0
        %v4229 = vadd.f32 0.0, %v4228
        %4230 = vmatmul.f32.gmra.mxu0 %v4109
        %v4231 = vpop.f32.mrf.mxu0
        %v4232 = vadd.f32 0.0, %v4231
        %4233 = vmatmul.f32.gmra.mxu0 %v4112
        %v4234 = vpop.f32.mrf.mxu0
        %v4235 = vadd.f32 0.0, %v4234
        %4236 = vmatmul.f32.gmra.mxu0 %v4115
        %v4237 = vpop.f32.mrf.mxu0
        %v4238 = vadd.f32 0.0, %v4237
        %4239 = vmatmul.f32.gmra.mxu0 %v4118
        %v4240 = vpop.f32.mrf.mxu0
        %v4241 = vadd.f32 0.0, %v4240
        %4242 = vmatmul.f32.gmra.mxu0 %v4121
        %v4243 = vpop.f32.mrf.mxu0
        %v4244 = vadd.f32 0.0, %v4243
        %4245 = vmatmul.f32.gmra.mxu0 %v4124
        %v4246 = vpop.f32.mrf.mxu0
        %v4247 = vadd.f32 0.0, %v4246
        %4248 = vmatmul.f32.gmra.mxu0 %v4127
        %v4249 = vpop.f32.mrf.mxu0
        %v4250 = vadd.f32 0.0, %v4249
        %4251 = vdwg.mxu0
        %4252 = vmatpush.msra.mxu0 0.0
        %4253 = vmatpush.msra.mxu0 0.0
        %4254 = vmatpush.msra.mxu0 0.0
        %4255 = vmatpush.msra.mxu0 0.0
        %4256 = vmatpush.msra.mxu0 0.0
        %4257 = vmatpush.msra.mxu0 0.0
        %4258 = vmatpush.msra.mxu0 0.0
        %4259 = vmatpush.msra.mxu0 0.0
        %4260 = vmatpush.msra.mxu0 0.0
        %4261 = vmatpush.msra.mxu0 0.0
        %4262 = vmatpush.msra.mxu0 0.0
        %4263 = vmatpush.msra.mxu0 0.0
        %4264 = vmatpush.msra.mxu0 0.0
        %4265 = vmatpush.msra.mxu0 0.0
        %4266 = vmatpush.msra.mxu0 0.0
        %4267 = vmatpush.msra.mxu0 %v444
        %4268 = vmatmul.f32.gmra.mxu0 %v4106
        %v4269 = vpop.f32.mrf.mxu0
        %v4270 = vadd.f32 0.0, %v4269
        %4271 = vmatmul.f32.gmra.mxu0 %v4109
        %v4272 = vpop.f32.mrf.mxu0
        %v4273 = vadd.f32 0.0, %v4272
        %4274 = vmatmul.f32.gmra.mxu0 %v4112
        %v4275 = vpop.f32.mrf.mxu0
        %v4276 = vadd.f32 0.0, %v4275
        %4277 = vmatmul.f32.gmra.mxu0 %v4115
        %v4278 = vpop.f32.mrf.mxu0
        %v4279 = vadd.f32 0.0, %v4278
        %4280 = vmatmul.f32.gmra.mxu0 %v4118
        %v4281 = vpop.f32.mrf.mxu0
        %v4282 = vadd.f32 0.0, %v4281
        %4283 = vmatmul.f32.gmra.mxu0 %v4121
        %v4284 = vpop.f32.mrf.mxu0
        %v4285 = vadd.f32 0.0, %v4284
        %4286 = vmatmul.f32.gmra.mxu0 %v4124
        %v4287 = vpop.f32.mrf.mxu0
        %v4288 = vadd.f32 0.0, %v4287
        %4289 = vmatmul.f32.gmra.mxu0 %v4127
        %v4290 = vpop.f32.mrf.mxu0
        %v4291 = vadd.f32 0.0, %v4290
        %4292 = vdwg.mxu0
        %v4294 = vsel %vm1399, %v4097, 0
        %v4297 = vsel %vm1399, %v4098, 0
        %v4300 = vsel %vm1399, %v4099, 0
        %v4303 = vsel %vm1399, %v4100, 0
        %v4306 = vsel %vm1399, %v4101, 0
        %v4309 = vsel %vm1399, %v4102, 0
        %v4312 = vsel %vm1399, %v4103, 0
        %v4315 = vsel %vm1399, %v4104, 0
        %4317 = vmatpush.msra.mxu0 0.0
        %4318 = vmatpush.msra.mxu0 0.0
        %4319 = vmatpush.msra.mxu0 0.0
        %4320 = vmatpush.msra.mxu0 0.0
        %4321 = vmatpush.msra.mxu0 0.0
        %4322 = vmatpush.msra.mxu0 0.0
        %4323 = vmatpush.msra.mxu0 0.0
        %4324 = vmatpush.msra.mxu0 0.0
        %4325 = vmatpush.msra.mxu0 0.0
        %4326 = vmatpush.msra.mxu0 0.0
        %4327 = vmatpush.msra.mxu0 0.0
        %4328 = vmatpush.msra.mxu0 0.0
        %4329 = vmatpush.msra.mxu0 0.0
        %4330 = vmatpush.msra.mxu0 0.0
        %4331 = vmatpush.msra.mxu0 0.0
        %4332 = vmatpush.msra.mxu0 %v441
        %4333 = vmatmul.f32.gmra.mxu0 %v4294
        %v4334 = vpop.f32.mrf.mxu0
        %v4335 = vadd.f32 0.0, %v4334
        %4336 = vmatmul.f32.gmra.mxu0 %v4297
        %v4337 = vpop.f32.mrf.mxu0
        %v4338 = vadd.f32 0.0, %v4337
        %4339 = vmatmul.f32.gmra.mxu0 %v4300
        %v4340 = vpop.f32.mrf.mxu0
        %v4341 = vadd.f32 0.0, %v4340
        %4342 = vmatmul.f32.gmra.mxu0 %v4303
        %v4343 = vpop.f32.mrf.mxu0
        %v4344 = vadd.f32 0.0, %v4343
        %4345 = vmatmul.f32.gmra.mxu0 %v4306
        %v4346 = vpop.f32.mrf.mxu0
        %v4347 = vadd.f32 0.0, %v4346
        %4348 = vmatmul.f32.gmra.mxu0 %v4309
        %v4349 = vpop.f32.mrf.mxu0
        %v4350 = vadd.f32 0.0, %v4349
        %4351 = vmatmul.f32.gmra.mxu0 %v4312
        %v4352 = vpop.f32.mrf.mxu0
        %v4353 = vadd.f32 0.0, %v4352
        %4354 = vmatmul.f32.gmra.mxu0 %v4315
        %v4355 = vpop.f32.mrf.mxu0
        %v4356 = vadd.f32 0.0, %v4355
        %4357 = vdwg.mxu0
        %4358 = vmatpush.msra.mxu0 0.0
        %4359 = vmatpush.msra.mxu0 0.0
        %4360 = vmatpush.msra.mxu0 0.0
        %4361 = vmatpush.msra.mxu0 0.0
        %4362 = vmatpush.msra.mxu0 0.0
        %4363 = vmatpush.msra.mxu0 0.0
        %4364 = vmatpush.msra.mxu0 0.0
        %4365 = vmatpush.msra.mxu0 0.0
        %4366 = vmatpush.msra.mxu0 0.0
        %4367 = vmatpush.msra.mxu0 0.0
        %4368 = vmatpush.msra.mxu0 0.0
        %4369 = vmatpush.msra.mxu0 0.0
        %4370 = vmatpush.msra.mxu0 0.0
        %4371 = vmatpush.msra.mxu0 0.0
        %4372 = vmatpush.msra.mxu0 0.0
        %4373 = vmatpush.msra.mxu0 %v442
        %4374 = vmatmul.f32.gmra.mxu0 %v4294
        %v4375 = vpop.f32.mrf.mxu0
        %v4376 = vadd.f32 0.0, %v4375
        %4377 = vmatmul.f32.gmra.mxu0 %v4297
        %v4378 = vpop.f32.mrf.mxu0
        %v4379 = vadd.f32 0.0, %v4378
        %4380 = vmatmul.f32.gmra.mxu0 %v4300
        %v4381 = vpop.f32.mrf.mxu0
        %v4382 = vadd.f32 0.0, %v4381
        %4383 = vmatmul.f32.gmra.mxu0 %v4303
        %v4384 = vpop.f32.mrf.mxu0
        %v4385 = vadd.f32 0.0, %v4384
        %4386 = vmatmul.f32.gmra.mxu0 %v4306
        %v4387 = vpop.f32.mrf.mxu0
        %v4388 = vadd.f32 0.0, %v4387
        %4389 = vmatmul.f32.gmra.mxu0 %v4309
        %v4390 = vpop.f32.mrf.mxu0
        %v4391 = vadd.f32 0.0, %v4390
        %4392 = vmatmul.f32.gmra.mxu0 %v4312
        %v4393 = vpop.f32.mrf.mxu0
        %v4394 = vadd.f32 0.0, %v4393
        %4395 = vmatmul.f32.gmra.mxu0 %v4315
        %v4396 = vpop.f32.mrf.mxu0
        %v4397 = vadd.f32 0.0, %v4396
        %4398 = vdwg.mxu0
        %4399 = vmatpush.msra.mxu0 0.0
        %4400 = vmatpush.msra.mxu0 0.0
        %4401 = vmatpush.msra.mxu0 0.0
        %4402 = vmatpush.msra.mxu0 0.0
        %4403 = vmatpush.msra.mxu0 0.0
        %4404 = vmatpush.msra.mxu0 0.0
        %4405 = vmatpush.msra.mxu0 0.0
        %4406 = vmatpush.msra.mxu0 0.0
        %4407 = vmatpush.msra.mxu0 0.0
        %4408 = vmatpush.msra.mxu0 0.0
        %4409 = vmatpush.msra.mxu0 0.0
        %4410 = vmatpush.msra.mxu0 0.0
        %4411 = vmatpush.msra.mxu0 0.0
        %4412 = vmatpush.msra.mxu0 0.0
        %4413 = vmatpush.msra.mxu0 0.0
        %4414 = vmatpush.msra.mxu0 %v443
        %4415 = vmatmul.f32.gmra.mxu0 %v4294
        %v4416 = vpop.f32.mrf.mxu0
        %v4417 = vadd.f32 0.0, %v4416
        %4418 = vmatmul.f32.gmra.mxu0 %v4297
        %v4419 = vpop.f32.mrf.mxu0
        %v4420 = vadd.f32 0.0, %v4419
        %4421 = vmatmul.f32.gmra.mxu0 %v4300
        %v4422 = vpop.f32.mrf.mxu0
        %v4423 = vadd.f32 0.0, %v4422
        %4424 = vmatmul.f32.gmra.mxu0 %v4303
        %v4425 = vpop.f32.mrf.mxu0
        %v4426 = vadd.f32 0.0, %v4425
        %4427 = vmatmul.f32.gmra.mxu0 %v4306
        %v4428 = vpop.f32.mrf.mxu0
        %v4429 = vadd.f32 0.0, %v4428
        %4430 = vmatmul.f32.gmra.mxu0 %v4309
        %v4431 = vpop.f32.mrf.mxu0
        %v4432 = vadd.f32 0.0, %v4431
        %4433 = vmatmul.f32.gmra.mxu0 %v4312
        %v4434 = vpop.f32.mrf.mxu0
        %v4435 = vadd.f32 0.0, %v4434
        %4436 = vmatmul.f32.gmra.mxu0 %v4315
        %v4437 = vpop.f32.mrf.mxu0
        %v4438 = vadd.f32 0.0, %v4437
        %4439 = vdwg.mxu0
        %4440 = vmatpush.msra.mxu0 0.0
        %4441 = vmatpush.msra.mxu0 0.0
        %4442 = vmatpush.msra.mxu0 0.0
        %4443 = vmatpush.msra.mxu0 0.0
        %4444 = vmatpush.msra.mxu0 0.0
        %4445 = vmatpush.msra.mxu0 0.0
        %4446 = vmatpush.msra.mxu0 0.0
        %4447 = vmatpush.msra.mxu0 0.0
        %4448 = vmatpush.msra.mxu0 0.0
        %4449 = vmatpush.msra.mxu0 0.0
        %4450 = vmatpush.msra.mxu0 0.0
        %4451 = vmatpush.msra.mxu0 0.0
        %4452 = vmatpush.msra.mxu0 0.0
        %4453 = vmatpush.msra.mxu0 0.0
        %4454 = vmatpush.msra.mxu0 0.0
        %4455 = vmatpush.msra.mxu0 %v444
        %4456 = vmatmul.f32.gmra.mxu0 %v4294
        %v4457 = vpop.f32.mrf.mxu0
        %v4458 = vadd.f32 0.0, %v4457
        %4459 = vmatmul.f32.gmra.mxu0 %v4297
        %v4460 = vpop.f32.mrf.mxu0
        %v4461 = vadd.f32 0.0, %v4460
        %4462 = vmatmul.f32.gmra.mxu0 %v4300
        %v4463 = vpop.f32.mrf.mxu0
        %v4464 = vadd.f32 0.0, %v4463
        %4465 = vmatmul.f32.gmra.mxu0 %v4303
        %v4466 = vpop.f32.mrf.mxu0
        %v4467 = vadd.f32 0.0, %v4466
        %4468 = vmatmul.f32.gmra.mxu0 %v4306
        %v4469 = vpop.f32.mrf.mxu0
        %v4470 = vadd.f32 0.0, %v4469
        %4471 = vmatmul.f32.gmra.mxu0 %v4309
        %v4472 = vpop.f32.mrf.mxu0
        %v4473 = vadd.f32 0.0, %v4472
        %4474 = vmatmul.f32.gmra.mxu0 %v4312
        %v4475 = vpop.f32.mrf.mxu0
        %v4476 = vadd.f32 0.0, %v4475
        %4477 = vmatmul.f32.gmra.mxu0 %v4315
        %v4478 = vpop.f32.mrf.mxu0
        %v4479 = vadd.f32 0.0, %v4478
        %4480 = vdwg.mxu0
        %v4481 = vmul.f32 %v3497, %v4147
        %v4482 = vmul.f32 %v3498, %v4188
        %v4483 = vmul.f32 %v3499, %v4229
        %v4484 = vmul.f32 %v3500, %v4270
        %v4485 = vmul.f32 %v3501, %v4150
        %v4486 = vmul.f32 %v3502, %v4191
        %v4487 = vmul.f32 %v3503, %v4232
        %v4488 = vmul.f32 %v3504, %v4273
        %v4489 = vmul.f32 %v3505, %v4153
        %v4490 = vmul.f32 %v3506, %v4194
        %v4491 = vmul.f32 %v3507, %v4235
        %v4492 = vmul.f32 %v3508, %v4276
        %v4493 = vmul.f32 %v3509, %v4156
        %v4494 = vmul.f32 %v3510, %v4197
        %v4495 = vmul.f32 %v3511, %v4238
        %v4496 = vmul.f32 %v3512, %v4279
        %v4497 = vmul.f32 %v3513, %v4159
        %v4498 = vmul.f32 %v3514, %v4200
        %v4499 = vmul.f32 %v3515, %v4241
        %v4500 = vmul.f32 %v3516, %v4282
        %v4501 = vmul.f32 %v3517, %v4162
        %v4502 = vmul.f32 %v3518, %v4203
        %v4503 = vmul.f32 %v3519, %v4244
        %v4504 = vmul.f32 %v3520, %v4285
        %v4505 = vmul.f32 %v3521, %v4165
        %v4506 = vmul.f32 %v3522, %v4206
        %v4507 = vmul.f32 %v3523, %v4247
        %v4508 = vmul.f32 %v3524, %v4288
        %v4509 = vmul.f32 %v3525, %v4168
        %v4510 = vmul.f32 %v3526, %v4209
        %v4511 = vmul.f32 %v3527, %v4250
        %v4512 = vmul.f32 %v3528, %v4291
        %v4513 = vadd.f32 %v4481, %v4335
        %v4514 = vadd.f32 %v4482, %v4376
        %v4515 = vadd.f32 %v4483, %v4417
        %v4516 = vadd.f32 %v4484, %v4458
        %v4517 = vadd.f32 %v4485, %v4338
        %v4518 = vadd.f32 %v4486, %v4379
        %v4519 = vadd.f32 %v4487, %v4420
        %v4520 = vadd.f32 %v4488, %v4461
        %v4521 = vadd.f32 %v4489, %v4341
        %v4522 = vadd.f32 %v4490, %v4382
        %v4523 = vadd.f32 %v4491, %v4423
        %v4524 = vadd.f32 %v4492, %v4464
        %v4525 = vadd.f32 %v4493, %v4344
        %v4526 = vadd.f32 %v4494, %v4385
        %v4527 = vadd.f32 %v4495, %v4426
        %v4528 = vadd.f32 %v4496, %v4467
        %v4529 = vadd.f32 %v4497, %v4347
        %v4530 = vadd.f32 %v4498, %v4388
        %v4531 = vadd.f32 %v4499, %v4429
        %v4532 = vadd.f32 %v4500, %v4470
        %v4533 = vadd.f32 %v4501, %v4350
        %v4534 = vadd.f32 %v4502, %v4391
        %v4535 = vadd.f32 %v4503, %v4432
        %v4536 = vadd.f32 %v4504, %v4473
        %v4537 = vadd.f32 %v4505, %v4353
        %v4538 = vadd.f32 %v4506, %v4394
        %v4539 = vadd.f32 %v4507, %v4435
        %v4540 = vadd.f32 %v4508, %v4476
        %v4541 = vadd.f32 %v4509, %v4356
        %v4542 = vadd.f32 %v4510, %v4397
        %v4543 = vadd.f32 %v4511, %v4438
        %v4544 = vadd.f32 %v4512, %v4479
        %4545 = vrot.lane.b32.xlu0 %v4513, 8
        %v4546 = vpop.permute.xlu0 %4545
        %4547 = vrot.lane.b32.xlu0 %v4517, 8
        %v4548 = vpop.permute.xlu0 %4547
        %4549 = vrot.lane.b32.xlu0 %v4521, 8
        %v4550 = vpop.permute.xlu0 %4549
        %4551 = vrot.lane.b32.xlu0 %v4525, 8
        %v4552 = vpop.permute.xlu0 %4551
        %4553 = vrot.lane.b32.xlu0 %v4529, 8
        %v4554 = vpop.permute.xlu0 %4553
        %4555 = vrot.lane.b32.xlu0 %v4533, 8
        %v4556 = vpop.permute.xlu0 %4555
        %4557 = vrot.lane.b32.xlu0 %v4537, 8
        %v4558 = vpop.permute.xlu0 %4557
        %4559 = vrot.lane.b32.xlu0 %v4541, 8
        %v4560 = vpop.permute.xlu0 %4559
        %4561 = vrot.lane.b32.xlu0 %v4514, 8
        %v4562 = vpop.permute.xlu0 %4561
        %4563 = vrot.lane.b32.xlu0 %v4518, 8
        %v4564 = vpop.permute.xlu0 %4563
        %4565 = vrot.lane.b32.xlu0 %v4522, 8
        %v4566 = vpop.permute.xlu0 %4565
        %4567 = vrot.lane.b32.xlu0 %v4526, 8
        %v4568 = vpop.permute.xlu0 %4567
        %4569 = vrot.lane.b32.xlu0 %v4530, 8
        %v4570 = vpop.permute.xlu0 %4569
        %4571 = vrot.lane.b32.xlu0 %v4534, 8
        %v4572 = vpop.permute.xlu0 %4571
        %4573 = vrot.lane.b32.xlu0 %v4538, 8
        %v4574 = vpop.permute.xlu0 %4573
        %4575 = vrot.lane.b32.xlu0 %v4542, 8
        %v4576 = vpop.permute.xlu0 %4575
        %4577 = vrot.lane.b32.xlu0 %v4515, 8
        %v4578 = vpop.permute.xlu0 %4577
        %4579 = vrot.lane.b32.xlu0 %v4519, 8
        %v4580 = vpop.permute.xlu0 %4579
        %4581 = vrot.lane.b32.xlu0 %v4523, 8
        %v4582 = vpop.permute.xlu0 %4581
        %4583 = vrot.lane.b32.xlu0 %v4527, 8
        %v4584 = vpop.permute.xlu0 %4583
        %4585 = vrot.lane.b32.xlu0 %v4531, 8
        %v4586 = vpop.permute.xlu0 %4585
        %4587 = vrot.lane.b32.xlu0 %v4535, 8
        %v4588 = vpop.permute.xlu0 %4587
        %4589 = vrot.lane.b32.xlu0 %v4539, 8
        %v4590 = vpop.permute.xlu0 %4589
        %4591 = vrot.lane.b32.xlu0 %v4543, 8
        %v4592 = vpop.permute.xlu0 %4591
        %4593 = vrot.lane.b32.xlu0 %v4516, 8
        %v4594 = vpop.permute.xlu0 %4593
        %4595 = vrot.lane.b32.xlu0 %v4520, 8
        %v4596 = vpop.permute.xlu0 %4595
        %4597 = vrot.lane.b32.xlu0 %v4524, 8
        %v4598 = vpop.permute.xlu0 %4597
        %4599 = vrot.lane.b32.xlu0 %v4528, 8
        %v4600 = vpop.permute.xlu0 %4599
        %4601 = vrot.lane.b32.xlu0 %v4532, 8
        %v4602 = vpop.permute.xlu0 %4601
        %4603 = vrot.lane.b32.xlu0 %v4536, 8
        %v4604 = vpop.permute.xlu0 %4603
        %4605 = vrot.lane.b32.xlu0 %v4540, 8
        %v4606 = vpop.permute.xlu0 %4605
        %4607 = vrot.lane.b32.xlu0 %v4544, 8
        %v4608 = vpop.permute.xlu0 %4607
        %v4609 = vsel %vm1904, %v4578, %v4594
        %v4610 = vsel %vm1904, %v4580, %v4596
        %v4611 = vsel %vm1904, %v4582, %v4598
        %v4612 = vsel %vm1904, %v4584, %v4600
        %v4613 = vsel %vm1904, %v4586, %v4602
        %v4614 = vsel %vm1904, %v4588, %v4604
        %v4615 = vsel %vm1904, %v4590, %v4606
        %v4616 = vsel %vm1904, %v4592, %v4608
        %v4617 = vsel %vm1904, %v4562, %v4578
        %v4618 = vsel %vm1904, %v4564, %v4580
        %v4619 = vsel %vm1904, %v4566, %v4582
        %v4620 = vsel %vm1904, %v4568, %v4584
        %v4621 = vsel %vm1904, %v4570, %v4586
        %v4622 = vsel %vm1904, %v4572, %v4588
        %v4623 = vsel %vm1904, %v4574, %v4590
        %v4624 = vsel %vm1904, %v4576, %v4592
        %v4625 = vsel %vm1904, %v4546, %v4562
        %v4626 = vsel %vm1904, %v4548, %v4564
        %v4627 = vsel %vm1904, %v4550, %v4566
        %v4628 = vsel %vm1904, %v4552, %v4568
        %v4629 = vsel %vm1904, %v4554, %v4570
        %v4630 = vsel %vm1904, %v4556, %v4572
        %v4631 = vsel %vm1904, %v4558, %v4574
        %v4632 = vsel %vm1904, %v4560, %v4576
        %v4633 = vsel %vm1904, %v4594, %v4546
        %v4634 = vsel %vm1904, %v4596, %v4548
        %v4635 = vsel %vm1904, %v4598, %v4550
        %v4636 = vsel %vm1904, %v4600, %v4552
        %v4637 = vsel %vm1904, %v4602, %v4554
        %v4638 = vsel %vm1904, %v4604, %v4556
        %v4639 = vsel %vm1904, %v4606, %v4558
        %v4640 = vsel %vm1904, %v4608, %v4560
        %v4641 = vsel %vm510, %v4633, 0.0
        %v4642 = vsel %vm511, %v4625, 0.0
        %v4643 = vsel %vm512, %v4617, 0.0
        %v4644 = vsel %vm513, %v4609, 0.0
        %v4645 = vsel %vm510, %v4634, 0.0
        %v4646 = vsel %vm511, %v4626, 0.0
        %v4647 = vsel %vm512, %v4618, 0.0
        %v4648 = vsel %vm513, %v4610, 0.0
        %v4649 = vsel %vm510, %v4635, 0.0
        %v4650 = vsel %vm511, %v4627, 0.0
        %v4651 = vsel %vm512, %v4619, 0.0
        %v4652 = vsel %vm513, %v4611, 0.0
        %v4653 = vsel %vm510, %v4636, 0.0
        %v4654 = vsel %vm511, %v4628, 0.0
        %v4655 = vsel %vm512, %v4620, 0.0
        %v4656 = vsel %vm513, %v4612, 0.0
        %v4657 = vsel %vm510, %v4637, 0.0
        %v4658 = vsel %vm511, %v4629, 0.0
        %v4659 = vsel %vm512, %v4621, 0.0
        %v4660 = vsel %vm513, %v4613, 0.0
        %v4661 = vsel %vm510, %v4638, 0.0
        %v4662 = vsel %vm511, %v4630, 0.0
        %v4663 = vsel %vm512, %v4622, 0.0
        %v4664 = vsel %vm513, %v4614, 0.0
        %v4665 = vsel %vm510, %v4639, 0.0
        %v4666 = vsel %vm511, %v4631, 0.0
        %v4667 = vsel %vm512, %v4623, 0.0
        %v4668 = vsel %vm513, %v4615, 0.0
        %v4669 = vsel %vm510, %v4640, 0.0
        %v4670 = vsel %vm511, %v4632, 0.0
        %v4671 = vsel %vm512, %v4624, 0.0
        %v4672 = vsel %vm513, %v4616, 0.0
        %v4673 = vpack.c.bf16 %v4642, %v4641
        %v4674 = vpack.c.bf16 %v4644, %v4643
        %v4675 = vpack.c.bf16 %v4646, %v4645
        %v4676 = vpack.c.bf16 %v4648, %v4647
        %v4677 = vpack.c.bf16 %v4650, %v4649
        %v4678 = vpack.c.bf16 %v4652, %v4651
        %v4679 = vpack.c.bf16 %v4654, %v4653
        %v4680 = vpack.c.bf16 %v4656, %v4655
        %v4681 = vpack.c.bf16 %v4658, %v4657
        %v4682 = vpack.c.bf16 %v4660, %v4659
        %v4683 = vpack.c.bf16 %v4662, %v4661
        %v4684 = vpack.c.bf16 %v4664, %v4663
        %v4685 = vpack.c.bf16 %v4666, %v4665
        %v4686 = vpack.c.bf16 %v4668, %v4667
        %v4687 = vpack.c.bf16 %v4670, %v4669
        %v4688 = vpack.c.bf16 %v4672, %v4671
        %4689 = vst [vmem:[#allocation3] sm:$0xff] %v4673
        %4690 = vst [vmem:[#allocation3 + $0x8] sm:$0xff] %v4674
        %4691 = vst [vmem:[#allocation3 + $0x10] sm:$0xff] %v4675
        %4692 = vst [vmem:[#allocation3 + $0x18] sm:$0xff] %v4676
        %4693 = vst [vmem:[#allocation3 + $0x20] sm:$0xff] %v4677
        %4694 = vst [vmem:[#allocation3 + $0x28] sm:$0xff] %v4678
        %4695 = vst [vmem:[#allocation3 + $0x30] sm:$0xff] %v4679
        %4696 = vst [vmem:[#allocation3 + $0x38] sm:$0xff] %v4680
        %4697 = vst [vmem:[#allocation3 + $0x40] sm:$0xff] %v4681
        %4698 = vst [vmem:[#allocation3 + $0x48] sm:$0xff] %v4682
        %4699 = vst [vmem:[#allocation3 + $0x50] sm:$0xff] %v4683
        %4700 = vst [vmem:[#allocation3 + $0x58] sm:$0xff] %v4684
        %4701 = vst [vmem:[#allocation3 + $0x60] sm:$0xff] %v4685
        %4702 = vst [vmem:[#allocation3 + $0x68] sm:$0xff] %v4686
        %4703 = vst [vmem:[#allocation3 + $0x70] sm:$0xff] %v4687
        %4704 = vst [vmem:[#allocation3 + $0x78] sm:$0xff] %v4688
        %4705 = vrot.lane.b32.xlu0 %v4513, 6
        %v4706 = vpop.permute.xlu0 %4705
        %4707 = vrot.lane.b32.xlu0 %v4517, 6
        %v4708 = vpop.permute.xlu0 %4707
        %4709 = vrot.lane.b32.xlu0 %v4521, 6
        %v4710 = vpop.permute.xlu0 %4709
        %4711 = vrot.lane.b32.xlu0 %v4525, 6
        %v4712 = vpop.permute.xlu0 %4711
        %4713 = vrot.lane.b32.xlu0 %v4529, 6
        %v4714 = vpop.permute.xlu0 %4713
        %4715 = vrot.lane.b32.xlu0 %v4533, 6
        %v4716 = vpop.permute.xlu0 %4715
        %4717 = vrot.lane.b32.xlu0 %v4537, 6
        %v4718 = vpop.permute.xlu0 %4717
        %4719 = vrot.lane.b32.xlu0 %v4541, 6
        %v4720 = vpop.permute.xlu0 %4719
        %4721 = vrot.lane.b32.xlu0 %v4514, 6
        %v4722 = vpop.permute.xlu0 %4721
        %4723 = vrot.lane.b32.xlu0 %v4518, 6
        %v4724 = vpop.permute.xlu0 %4723
        %4725 = vrot.lane.b32.xlu0 %v4522, 6
        %v4726 = vpop.permute.xlu0 %4725
        %4727 = vrot.lane.b32.xlu0 %v4526, 6
        %v4728 = vpop.permute.xlu0 %4727
        %4729 = vrot.lane.b32.xlu0 %v4530, 6
        %v4730 = vpop.permute.xlu0 %4729
        %4731 = vrot.lane.b32.xlu0 %v4534, 6
        %v4732 = vpop.permute.xlu0 %4731
        %4733 = vrot.lane.b32.xlu0 %v4538, 6
        %v4734 = vpop.permute.xlu0 %4733
        %4735 = vrot.lane.b32.xlu0 %v4542, 6
        %v4736 = vpop.permute.xlu0 %4735
        %4737 = vrot.lane.b32.xlu0 %v4515, 6
        %v4738 = vpop.permute.xlu0 %4737
        %4739 = vrot.lane.b32.xlu0 %v4519, 6
        %v4740 = vpop.permute.xlu0 %4739
        %4741 = vrot.lane.b32.xlu0 %v4523, 6
        %v4742 = vpop.permute.xlu0 %4741
        %4743 = vrot.lane.b32.xlu0 %v4527, 6
        %v4744 = vpop.permute.xlu0 %4743
        %4745 = vrot.lane.b32.xlu0 %v4531, 6
        %v4746 = vpop.permute.xlu0 %4745
        %4747 = vrot.lane.b32.xlu0 %v4535, 6
        %v4748 = vpop.permute.xlu0 %4747
        %4749 = vrot.lane.b32.xlu0 %v4539, 6
        %v4750 = vpop.permute.xlu0 %4749
        %4751 = vrot.lane.b32.xlu0 %v4543, 6
        %v4752 = vpop.permute.xlu0 %4751
        %4753 = vrot.lane.b32.xlu0 %v4516, 6
        %v4754 = vpop.permute.xlu0 %4753
        %4755 = vrot.lane.b32.xlu0 %v4520, 6
        %v4756 = vpop.permute.xlu0 %4755
        %4757 = vrot.lane.b32.xlu0 %v4524, 6
        %v4758 = vpop.permute.xlu0 %4757
        %4759 = vrot.lane.b32.xlu0 %v4528, 6
        %v4760 = vpop.permute.xlu0 %4759
        %4761 = vrot.lane.b32.xlu0 %v4532, 6
        %v4762 = vpop.permute.xlu0 %4761
        %4763 = vrot.lane.b32.xlu0 %v4536, 6
        %v4764 = vpop.permute.xlu0 %4763
        %4765 = vrot.lane.b32.xlu0 %v4540, 6
        %v4766 = vpop.permute.xlu0 %4765
        %4767 = vrot.lane.b32.xlu0 %v4544, 6
        %v4768 = vpop.permute.xlu0 %4767
        %v4769 = vsel %vm2065, %v4738, %v4754
        %v4770 = vsel %vm2065, %v4740, %v4756
        %v4771 = vsel %vm2065, %v4742, %v4758
        %v4772 = vsel %vm2065, %v4744, %v4760
        %v4773 = vsel %vm2065, %v4746, %v4762
        %v4774 = vsel %vm2065, %v4748, %v4764
        %v4775 = vsel %vm2065, %v4750, %v4766
        %v4776 = vsel %vm2065, %v4752, %v4768
        %v4777 = vsel %vm2065, %v4722, %v4738
        %v4778 = vsel %vm2065, %v4724, %v4740
        %v4779 = vsel %vm2065, %v4726, %v4742
        %v4780 = vsel %vm2065, %v4728, %v4744
        %v4781 = vsel %vm2065, %v4730, %v4746
        %v4782 = vsel %vm2065, %v4732, %v4748
        %v4783 = vsel %vm2065, %v4734, %v4750
        %v4784 = vsel %vm2065, %v4736, %v4752
        %v4785 = vsel %vm2065, %v4706, %v4722
        %v4786 = vsel %vm2065, %v4708, %v4724
        %v4787 = vsel %vm2065, %v4710, %v4726
        %v4788 = vsel %vm2065, %v4712, %v4728
        %v4789 = vsel %vm2065, %v4714, %v4730
        %v4790 = vsel %vm2065, %v4716, %v4732
        %v4791 = vsel %vm2065, %v4718, %v4734
        %v4792 = vsel %vm2065, %v4720, %v4736
        %v4793 = vsel %vm2065, %v4754, %v4706
        %v4794 = vsel %vm2065, %v4756, %v4708
        %v4795 = vsel %vm2065, %v4758, %v4710
        %v4796 = vsel %vm2065, %v4760, %v4712
        %v4797 = vsel %vm2065, %v4762, %v4714
        %v4798 = vsel %vm2065, %v4764, %v4716
        %v4799 = vsel %vm2065, %v4766, %v4718
        %v4800 = vsel %vm2065, %v4768, %v4720
        %v4801 = vsel %vm506, %v4793, 0.0
        %v4802 = vsel %vm507, %v4785, 0.0
        %v4803 = vsel %vm508, %v4777, 0.0
        %v4804 = vsel %vm509, %v4769, 0.0
        %v4805 = vsel %vm506, %v4794, 0.0
        %v4806 = vsel %vm507, %v4786, 0.0
        %v4807 = vsel %vm508, %v4778, 0.0
        %v4808 = vsel %vm509, %v4770, 0.0
        %v4809 = vsel %vm506, %v4795, 0.0
        %v4810 = vsel %vm507, %v4787, 0.0
        %v4811 = vsel %vm508, %v4779, 0.0
        %v4812 = vsel %vm509, %v4771, 0.0
        %v4813 = vsel %vm506, %v4796, 0.0
        %v4814 = vsel %vm507, %v4788, 0.0
        %v4815 = vsel %vm508, %v4780, 0.0
        %v4816 = vsel %vm509, %v4772, 0.0
        %v4817 = vsel %vm506, %v4797, 0.0
        %v4818 = vsel %vm507, %v4789, 0.0
        %v4819 = vsel %vm508, %v4781, 0.0
        %v4820 = vsel %vm509, %v4773, 0.0
        %v4821 = vsel %vm506, %v4798, 0.0
        %v4822 = vsel %vm507, %v4790, 0.0
        %v4823 = vsel %vm508, %v4782, 0.0
        %v4824 = vsel %vm509, %v4774, 0.0
        %v4825 = vsel %vm506, %v4799, 0.0
        %v4826 = vsel %vm507, %v4791, 0.0
        %v4827 = vsel %vm508, %v4783, 0.0
        %v4828 = vsel %vm509, %v4775, 0.0
        %v4829 = vsel %vm506, %v4800, 0.0
        %v4830 = vsel %vm507, %v4792, 0.0
        %v4831 = vsel %vm508, %v4784, 0.0
        %v4832 = vsel %vm509, %v4776, 0.0
        %v4833 = vpack.c.bf16 %v4802, %v4801
        %v4834 = vpack.c.bf16 %v4804, %v4803
        %v4835 = vpack.c.bf16 %v4806, %v4805
        %v4836 = vpack.c.bf16 %v4808, %v4807
        %v4837 = vpack.c.bf16 %v4810, %v4809
        %v4838 = vpack.c.bf16 %v4812, %v4811
        %v4839 = vpack.c.bf16 %v4814, %v4813
        %v4840 = vpack.c.bf16 %v4816, %v4815
        %v4841 = vpack.c.bf16 %v4818, %v4817
        %v4842 = vpack.c.bf16 %v4820, %v4819
        %v4843 = vpack.c.bf16 %v4822, %v4821
        %v4844 = vpack.c.bf16 %v4824, %v4823
        %v4845 = vpack.c.bf16 %v4826, %v4825
        %v4846 = vpack.c.bf16 %v4828, %v4827
        %v4847 = vpack.c.bf16 %v4830, %v4829
        %v4848 = vpack.c.bf16 %v4832, %v4831
        %4849 = vst [vmem:[#allocation3 + $0x80] sm:$0xff] %v4833
        %4850 = vst [vmem:[#allocation3 + $0x88] sm:$0xff] %v4834
        %4851 = vst [vmem:[#allocation3 + $0x90] sm:$0xff] %v4835
        %4852 = vst [vmem:[#allocation3 + $0x98] sm:$0xff] %v4836
        %4853 = vst [vmem:[#allocation3 + $0xa0] sm:$0xff] %v4837
        %4854 = vst [vmem:[#allocation3 + $0xa8] sm:$0xff] %v4838
        %4855 = vst [vmem:[#allocation3 + $0xb0] sm:$0xff] %v4839
        %4856 = vst [vmem:[#allocation3 + $0xb8] sm:$0xff] %v4840
        %4857 = vst [vmem:[#allocation3 + $0xc0] sm:$0xff] %v4841
        %4858 = vst [vmem:[#allocation3 + $0xc8] sm:$0xff] %v4842
        %4859 = vst [vmem:[#allocation3 + $0xd0] sm:$0xff] %v4843
        %4860 = vst [vmem:[#allocation3 + $0xd8] sm:$0xff] %v4844
        %4861 = vst [vmem:[#allocation3 + $0xe0] sm:$0xff] %v4845
        %4862 = vst [vmem:[#allocation3 + $0xe8] sm:$0xff] %v4846
        %4863 = vst [vmem:[#allocation3 + $0xf0] sm:$0xff] %v4847
        %4864 = vst [vmem:[#allocation3 + $0xf8] sm:$0xff] %v4848
        %4865 = vrot.lane.b32.xlu0 %v4513, 4
        %v4866 = vpop.permute.xlu0 %4865
        %4867 = vrot.lane.b32.xlu0 %v4517, 4
        %v4868 = vpop.permute.xlu0 %4867
        %4869 = vrot.lane.b32.xlu0 %v4521, 4
        %v4870 = vpop.permute.xlu0 %4869
        %4871 = vrot.lane.b32.xlu0 %v4525, 4
        %v4872 = vpop.permute.xlu0 %4871
        %4873 = vrot.lane.b32.xlu0 %v4529, 4
        %v4874 = vpop.permute.xlu0 %4873
        %4875 = vrot.lane.b32.xlu0 %v4533, 4
        %v4876 = vpop.permute.xlu0 %4875
        %4877 = vrot.lane.b32.xlu0 %v4537, 4
        %v4878 = vpop.permute.xlu0 %4877
        %4879 = vrot.lane.b32.xlu0 %v4541, 4
        %v4880 = vpop.permute.xlu0 %4879
        %4881 = vrot.lane.b32.xlu0 %v4514, 4
        %v4882 = vpop.permute.xlu0 %4881
        %4883 = vrot.lane.b32.xlu0 %v4518, 4
        %v4884 = vpop.permute.xlu0 %4883
        %4885 = vrot.lane.b32.xlu0 %v4522, 4
        %v4886 = vpop.permute.xlu0 %4885
        %4887 = vrot.lane.b32.xlu0 %v4526, 4
        %v4888 = vpop.permute.xlu0 %4887
        %4889 = vrot.lane.b32.xlu0 %v4530, 4
        %v4890 = vpop.permute.xlu0 %4889
        %4891 = vrot.lane.b32.xlu0 %v4534, 4
        %v4892 = vpop.permute.xlu0 %4891
        %4893 = vrot.lane.b32.xlu0 %v4538, 4
        %v4894 = vpop.permute.xlu0 %4893
        %4895 = vrot.lane.b32.xlu0 %v4542, 4
        %v4896 = vpop.permute.xlu0 %4895
        %4897 = vrot.lane.b32.xlu0 %v4515, 4
        %v4898 = vpop.permute.xlu0 %4897
        %4899 = vrot.lane.b32.xlu0 %v4519, 4
        %v4900 = vpop.permute.xlu0 %4899
        %4901 = vrot.lane.b32.xlu0 %v4523, 4
        %v4902 = vpop.permute.xlu0 %4901
        %4903 = vrot.lane.b32.xlu0 %v4527, 4
        %v4904 = vpop.permute.xlu0 %4903
        %4905 = vrot.lane.b32.xlu0 %v4531, 4
        %v4906 = vpop.permute.xlu0 %4905
        %4907 = vrot.lane.b32.xlu0 %v4535, 4
        %v4908 = vpop.permute.xlu0 %4907
        %4909 = vrot.lane.b32.xlu0 %v4539, 4
        %v4910 = vpop.permute.xlu0 %4909
        %4911 = vrot.lane.b32.xlu0 %v4543, 4
        %v4912 = vpop.permute.xlu0 %4911
        %4913 = vrot.lane.b32.xlu0 %v4516, 4
        %v4914 = vpop.permute.xlu0 %4913
        %4915 = vrot.lane.b32.xlu0 %v4520, 4
        %v4916 = vpop.permute.xlu0 %4915
        %4917 = vrot.lane.b32.xlu0 %v4524, 4
        %v4918 = vpop.permute.xlu0 %4917
        %4919 = vrot.lane.b32.xlu0 %v4528, 4
        %v4920 = vpop.permute.xlu0 %4919
        %4921 = vrot.lane.b32.xlu0 %v4532, 4
        %v4922 = vpop.permute.xlu0 %4921
        %4923 = vrot.lane.b32.xlu0 %v4536, 4
        %v4924 = vpop.permute.xlu0 %4923
        %4925 = vrot.lane.b32.xlu0 %v4540, 4
        %v4926 = vpop.permute.xlu0 %4925
        %4927 = vrot.lane.b32.xlu0 %v4544, 4
        %v4928 = vpop.permute.xlu0 %4927
        %v4929 = vsel %vm2226, %v4898, %v4914
        %v4930 = vsel %vm2226, %v4900, %v4916
        %v4931 = vsel %vm2226, %v4902, %v4918
        %v4932 = vsel %vm2226, %v4904, %v4920
        %v4933 = vsel %vm2226, %v4906, %v4922
        %v4934 = vsel %vm2226, %v4908, %v4924
        %v4935 = vsel %vm2226, %v4910, %v4926
        %v4936 = vsel %vm2226, %v4912, %v4928
        %v4937 = vsel %vm2226, %v4882, %v4898
        %v4938 = vsel %vm2226, %v4884, %v4900
        %v4939 = vsel %vm2226, %v4886, %v4902
        %v4940 = vsel %vm2226, %v4888, %v4904
        %v4941 = vsel %vm2226, %v4890, %v4906
        %v4942 = vsel %vm2226, %v4892, %v4908
        %v4943 = vsel %vm2226, %v4894, %v4910
        %v4944 = vsel %vm2226, %v4896, %v4912
        %v4945 = vsel %vm2226, %v4866, %v4882
        %v4946 = vsel %vm2226, %v4868, %v4884
        %v4947 = vsel %vm2226, %v4870, %v4886
        %v4948 = vsel %vm2226, %v4872, %v4888
        %v4949 = vsel %vm2226, %v4874, %v4890
        %v4950 = vsel %vm2226, %v4876, %v4892
        %v4951 = vsel %vm2226, %v4878, %v4894
        %v4952 = vsel %vm2226, %v4880, %v4896
        %v4953 = vsel %vm2226, %v4914, %v4866
        %v4954 = vsel %vm2226, %v4916, %v4868
        %v4955 = vsel %vm2226, %v4918, %v4870
        %v4956 = vsel %vm2226, %v4920, %v4872
        %v4957 = vsel %vm2226, %v4922, %v4874
        %v4958 = vsel %vm2226, %v4924, %v4876
        %v4959 = vsel %vm2226, %v4926, %v4878
        %v4960 = vsel %vm2226, %v4928, %v4880
        %v4961 = vsel %vm502, %v4953, 0.0
        %v4962 = vsel %vm503, %v4945, 0.0
        %v4963 = vsel %vm504, %v4937, 0.0
        %v4964 = vsel %vm505, %v4929, 0.0
        %v4965 = vsel %vm502, %v4954, 0.0
        %v4966 = vsel %vm503, %v4946, 0.0
        %v4967 = vsel %vm504, %v4938, 0.0
        %v4968 = vsel %vm505, %v4930, 0.0
        %v4969 = vsel %vm502, %v4955, 0.0
        %v4970 = vsel %vm503, %v4947, 0.0
        %v4971 = vsel %vm504, %v4939, 0.0
        %v4972 = vsel %vm505, %v4931, 0.0
        %v4973 = vsel %vm502, %v4956, 0.0
        %v4974 = vsel %vm503, %v4948, 0.0
        %v4975 = vsel %vm504, %v4940, 0.0
        %v4976 = vsel %vm505, %v4932, 0.0
        %v4977 = vsel %vm502, %v4957, 0.0
        %v4978 = vsel %vm503, %v4949, 0.0
        %v4979 = vsel %vm504, %v4941, 0.0
        %v4980 = vsel %vm505, %v4933, 0.0
        %v4981 = vsel %vm502, %v4958, 0.0
        %v4982 = vsel %vm503, %v4950, 0.0
        %v4983 = vsel %vm504, %v4942, 0.0
        %v4984 = vsel %vm505, %v4934, 0.0
        %v4985 = vsel %vm502, %v4959, 0.0
        %v4986 = vsel %vm503, %v4951, 0.0
        %v4987 = vsel %vm504, %v4943, 0.0
        %v4988 = vsel %vm505, %v4935, 0.0
        %v4989 = vsel %vm502, %v4960, 0.0
        %v4990 = vsel %vm503, %v4952, 0.0
        %v4991 = vsel %vm504, %v4944, 0.0
        %v4992 = vsel %vm505, %v4936, 0.0
        %v4993 = vpack.c.bf16 %v4962, %v4961
        %v4994 = vpack.c.bf16 %v4964, %v4963
        %v4995 = vpack.c.bf16 %v4966, %v4965
        %v4996 = vpack.c.bf16 %v4968, %v4967
        %v4997 = vpack.c.bf16 %v4970, %v4969
        %v4998 = vpack.c.bf16 %v4972, %v4971
        %v4999 = vpack.c.bf16 %v4974, %v4973
        %v5000 = vpack.c.bf16 %v4976, %v4975
        %v5001 = vpack.c.bf16 %v4978, %v4977
        %v5002 = vpack.c.bf16 %v4980, %v4979
        %v5003 = vpack.c.bf16 %v4982, %v4981
        %v5004 = vpack.c.bf16 %v4984, %v4983
        %v5005 = vpack.c.bf16 %v4986, %v4985
        %v5006 = vpack.c.bf16 %v4988, %v4987
        %v5007 = vpack.c.bf16 %v4990, %v4989
        %v5008 = vpack.c.bf16 %v4992, %v4991
        %5009 = vst [vmem:[#allocation3 + $0x100] sm:$0xff] %v4993
        %5010 = vst [vmem:[#allocation3 + $0x108] sm:$0xff] %v4994
        %5011 = vst [vmem:[#allocation3 + $0x110] sm:$0xff] %v4995
        %5012 = vst [vmem:[#allocation3 + $0x118] sm:$0xff] %v4996
        %5013 = vst [vmem:[#allocation3 + $0x120] sm:$0xff] %v4997
        %5014 = vst [vmem:[#allocation3 + $0x128] sm:$0xff] %v4998
        %5015 = vst [vmem:[#allocation3 + $0x130] sm:$0xff] %v4999
        %5016 = vst [vmem:[#allocation3 + $0x138] sm:$0xff] %v5000
        %5017 = vst [vmem:[#allocation3 + $0x140] sm:$0xff] %v5001
        %5018 = vst [vmem:[#allocation3 + $0x148] sm:$0xff] %v5002
        %5019 = vst [vmem:[#allocation3 + $0x150] sm:$0xff] %v5003
        %5020 = vst [vmem:[#allocation3 + $0x158] sm:$0xff] %v5004
        %5021 = vst [vmem:[#allocation3 + $0x160] sm:$0xff] %v5005
        %5022 = vst [vmem:[#allocation3 + $0x168] sm:$0xff] %v5006
        %5023 = vst [vmem:[#allocation3 + $0x170] sm:$0xff] %v5007
        %5024 = vst [vmem:[#allocation3 + $0x178] sm:$0xff] %v5008
        %5025 = vrot.lane.b32.xlu0 %v4513, 2
        %v5026 = vpop.permute.xlu0 %5025
        %5027 = vrot.lane.b32.xlu0 %v4517, 2
        %v5028 = vpop.permute.xlu0 %5027
        %5029 = vrot.lane.b32.xlu0 %v4521, 2
        %v5030 = vpop.permute.xlu0 %5029
        %5031 = vrot.lane.b32.xlu0 %v4525, 2
        %v5032 = vpop.permute.xlu0 %5031
        %5033 = vrot.lane.b32.xlu0 %v4529, 2
        %v5034 = vpop.permute.xlu0 %5033
        %5035 = vrot.lane.b32.xlu0 %v4533, 2
        %v5036 = vpop.permute.xlu0 %5035
        %5037 = vrot.lane.b32.xlu0 %v4537, 2
        %v5038 = vpop.permute.xlu0 %5037
        %5039 = vrot.lane.b32.xlu0 %v4541, 2
        %v5040 = vpop.permute.xlu0 %5039
        %5041 = vrot.lane.b32.xlu0 %v4514, 2
        %v5042 = vpop.permute.xlu0 %5041
        %5043 = vrot.lane.b32.xlu0 %v4518, 2
        %v5044 = vpop.permute.xlu0 %5043
        %5045 = vrot.lane.b32.xlu0 %v4522, 2
        %v5046 = vpop.permute.xlu0 %5045
        %5047 = vrot.lane.b32.xlu0 %v4526, 2
        %v5048 = vpop.permute.xlu0 %5047
        %5049 = vrot.lane.b32.xlu0 %v4530, 2
        %v5050 = vpop.permute.xlu0 %5049
        %5051 = vrot.lane.b32.xlu0 %v4534, 2
        %v5052 = vpop.permute.xlu0 %5051
        %5053 = vrot.lane.b32.xlu0 %v4538, 2
        %v5054 = vpop.permute.xlu0 %5053
        %5055 = vrot.lane.b32.xlu0 %v4542, 2
        %v5056 = vpop.permute.xlu0 %5055
        %5057 = vrot.lane.b32.xlu0 %v4515, 2
        %v5058 = vpop.permute.xlu0 %5057
        %5059 = vrot.lane.b32.xlu0 %v4519, 2
        %v5060 = vpop.permute.xlu0 %5059
        %5061 = vrot.lane.b32.xlu0 %v4523, 2
        %v5062 = vpop.permute.xlu0 %5061
        %5063 = vrot.lane.b32.xlu0 %v4527, 2
        %v5064 = vpop.permute.xlu0 %5063
        %5065 = vrot.lane.b32.xlu0 %v4531, 2
        %v5066 = vpop.permute.xlu0 %5065
        %5067 = vrot.lane.b32.xlu0 %v4535, 2
        %v5068 = vpop.permute.xlu0 %5067
        %5069 = vrot.lane.b32.xlu0 %v4539, 2
        %v5070 = vpop.permute.xlu0 %5069
        %5071 = vrot.lane.b32.xlu0 %v4543, 2
        %v5072 = vpop.permute.xlu0 %5071
        %5073 = vrot.lane.b32.xlu0 %v4516, 2
        %v5074 = vpop.permute.xlu0 %5073
        %5075 = vrot.lane.b32.xlu0 %v4520, 2
        %v5076 = vpop.permute.xlu0 %5075
        %5077 = vrot.lane.b32.xlu0 %v4524, 2
        %v5078 = vpop.permute.xlu0 %5077
        %5079 = vrot.lane.b32.xlu0 %v4528, 2
        %v5080 = vpop.permute.xlu0 %5079
        %5081 = vrot.lane.b32.xlu0 %v4532, 2
        %v5082 = vpop.permute.xlu0 %5081
        %5083 = vrot.lane.b32.xlu0 %v4536, 2
        %v5084 = vpop.permute.xlu0 %5083
        %5085 = vrot.lane.b32.xlu0 %v4540, 2
        %v5086 = vpop.permute.xlu0 %5085
        %5087 = vrot.lane.b32.xlu0 %v4544, 2
        %v5088 = vpop.permute.xlu0 %5087
        %v5089 = vsel %vm2387, %v5058, %v5074
        %v5090 = vsel %vm2387, %v5060, %v5076
        %v5091 = vsel %vm2387, %v5062, %v5078
        %v5092 = vsel %vm2387, %v5064, %v5080
        %v5093 = vsel %vm2387, %v5066, %v5082
        %v5094 = vsel %vm2387, %v5068, %v5084
        %v5095 = vsel %vm2387, %v5070, %v5086
        %v5096 = vsel %vm2387, %v5072, %v5088
        %v5097 = vsel %vm2387, %v5042, %v5058
        %v5098 = vsel %vm2387, %v5044, %v5060
        %v5099 = vsel %vm2387, %v5046, %v5062
        %v5100 = vsel %vm2387, %v5048, %v5064
        %v5101 = vsel %vm2387, %v5050, %v5066
        %v5102 = vsel %vm2387, %v5052, %v5068
        %v5103 = vsel %vm2387, %v5054, %v5070
        %v5104 = vsel %vm2387, %v5056, %v5072
        %v5105 = vsel %vm2387, %v5026, %v5042
        %v5106 = vsel %vm2387, %v5028, %v5044
        %v5107 = vsel %vm2387, %v5030, %v5046
        %v5108 = vsel %vm2387, %v5032, %v5048
        %v5109 = vsel %vm2387, %v5034, %v5050
        %v5110 = vsel %vm2387, %v5036, %v5052
        %v5111 = vsel %vm2387, %v5038, %v5054
        %v5112 = vsel %vm2387, %v5040, %v5056
        %v5113 = vsel %vm2387, %v5074, %v5026
        %v5114 = vsel %vm2387, %v5076, %v5028
        %v5115 = vsel %vm2387, %v5078, %v5030
        %v5116 = vsel %vm2387, %v5080, %v5032
        %v5117 = vsel %vm2387, %v5082, %v5034
        %v5118 = vsel %vm2387, %v5084, %v5036
        %v5119 = vsel %vm2387, %v5086, %v5038
        %v5120 = vsel %vm2387, %v5088, %v5040
        %v5121 = vsel %vm498, %v5113, 0.0
        %v5122 = vsel %vm499, %v5105, 0.0
        %v5123 = vsel %vm500, %v5097, 0.0
        %v5124 = vsel %vm501, %v5089, 0.0
        %v5125 = vsel %vm498, %v5114, 0.0
        %v5126 = vsel %vm499, %v5106, 0.0
        %v5127 = vsel %vm500, %v5098, 0.0
        %v5128 = vsel %vm501, %v5090, 0.0
        %v5129 = vsel %vm498, %v5115, 0.0
        %v5130 = vsel %vm499, %v5107, 0.0
        %v5131 = vsel %vm500, %v5099, 0.0
        %v5132 = vsel %vm501, %v5091, 0.0
        %v5133 = vsel %vm498, %v5116, 0.0
        %v5134 = vsel %vm499, %v5108, 0.0
        %v5135 = vsel %vm500, %v5100, 0.0
        %v5136 = vsel %vm501, %v5092, 0.0
        %v5137 = vsel %vm498, %v5117, 0.0
        %v5138 = vsel %vm499, %v5109, 0.0
        %v5139 = vsel %vm500, %v5101, 0.0
        %v5140 = vsel %vm501, %v5093, 0.0
        %v5141 = vsel %vm498, %v5118, 0.0
        %v5142 = vsel %vm499, %v5110, 0.0
        %v5143 = vsel %vm500, %v5102, 0.0
        %v5144 = vsel %vm501, %v5094, 0.0
        %v5145 = vsel %vm498, %v5119, 0.0
        %v5146 = vsel %vm499, %v5111, 0.0
        %v5147 = vsel %vm500, %v5103, 0.0
        %v5148 = vsel %vm501, %v5095, 0.0
        %v5149 = vsel %vm498, %v5120, 0.0
        %v5150 = vsel %vm499, %v5112, 0.0
        %v5151 = vsel %vm500, %v5104, 0.0
        %v5152 = vsel %vm501, %v5096, 0.0
        %v5153 = vpack.c.bf16 %v5122, %v5121
        %v5154 = vpack.c.bf16 %v5124, %v5123
        %v5155 = vpack.c.bf16 %v5126, %v5125
        %v5156 = vpack.c.bf16 %v5128, %v5127
        %v5157 = vpack.c.bf16 %v5130, %v5129
        %v5158 = vpack.c.bf16 %v5132, %v5131
        %v5159 = vpack.c.bf16 %v5134, %v5133
        %v5160 = vpack.c.bf16 %v5136, %v5135
        %v5161 = vpack.c.bf16 %v5138, %v5137
        %v5162 = vpack.c.bf16 %v5140, %v5139
        %v5163 = vpack.c.bf16 %v5142, %v5141
        %v5164 = vpack.c.bf16 %v5144, %v5143
        %v5165 = vpack.c.bf16 %v5146, %v5145
        %v5166 = vpack.c.bf16 %v5148, %v5147
        %v5167 = vpack.c.bf16 %v5150, %v5149
        %v5168 = vpack.c.bf16 %v5152, %v5151
        %5169 = vst [vmem:[#allocation3 + $0x180] sm:$0xff] %v5153
        %5170 = vst [vmem:[#allocation3 + $0x188] sm:$0xff] %v5154
        %5171 = vst [vmem:[#allocation3 + $0x190] sm:$0xff] %v5155
        %5172 = vst [vmem:[#allocation3 + $0x198] sm:$0xff] %v5156
        %5173 = vst [vmem:[#allocation3 + $0x1a0] sm:$0xff] %v5157
        %5174 = vst [vmem:[#allocation3 + $0x1a8] sm:$0xff] %v5158
        %5175 = vst [vmem:[#allocation3 + $0x1b0] sm:$0xff] %v5159
        %5176 = vst [vmem:[#allocation3 + $0x1b8] sm:$0xff] %v5160
        %5177 = vst [vmem:[#allocation3 + $0x1c0] sm:$0xff] %v5161
        %5178 = vst [vmem:[#allocation3 + $0x1c8] sm:$0xff] %v5162
        %5179 = vst [vmem:[#allocation3 + $0x1d0] sm:$0xff] %v5163
        %5180 = vst [vmem:[#allocation3 + $0x1d8] sm:$0xff] %v5164
        %5181 = vst [vmem:[#allocation3 + $0x1e0] sm:$0xff] %v5165
        %5182 = vst [vmem:[#allocation3 + $0x1e8] sm:$0xff] %v5166
        %5183 = vst [vmem:[#allocation3 + $0x1f0] sm:$0xff] %v5167
        %5184 = vst [vmem:[#allocation3 + $0x1f8] sm:$0xff] %v5168
        %v5185 = vpack.c.bf16 %v4514, %v4513
        %v5186 = vpack.c.bf16 %v4516, %v4515
        %v5187 = vpack.c.bf16 %v4518, %v4517
        %v5188 = vpack.c.bf16 %v4520, %v4519
        %v5189 = vpack.c.bf16 %v4522, %v4521
        %v5190 = vpack.c.bf16 %v4524, %v4523
        %v5191 = vpack.c.bf16 %v4526, %v4525
        %v5192 = vpack.c.bf16 %v4528, %v4527
        %v5193 = vpack.c.bf16 %v4530, %v4529
        %v5194 = vpack.c.bf16 %v4532, %v4531
        %v5195 = vpack.c.bf16 %v4534, %v4533
        %v5196 = vpack.c.bf16 %v4536, %v4535
        %v5197 = vpack.c.bf16 %v4538, %v4537
        %v5198 = vpack.c.bf16 %v4540, %v4539
        %v5199 = vpack.c.bf16 %v4542, %v4541
        %v5200 = vpack.c.bf16 %v4544, %v4543
        %5201 = vst [vmem:[#allocation3 + $0x200] sm:$0xff] %v5185
        %5202 = vst [vmem:[#allocation3 + $0x208] sm:$0xff] %v5186
        %5203 = vst [vmem:[#allocation3 + $0x210] sm:$0xff] %v5187
        %5204 = vst [vmem:[#allocation3 + $0x218] sm:$0xff] %v5188
        %5205 = vst [vmem:[#allocation3 + $0x220] sm:$0xff] %v5189
        %5206 = vst [vmem:[#allocation3 + $0x228] sm:$0xff] %v5190
        %5207 = vst [vmem:[#allocation3 + $0x230] sm:$0xff] %v5191
        %5208 = vst [vmem:[#allocation3 + $0x238] sm:$0xff] %v5192
        %5209 = vst [vmem:[#allocation3 + $0x240] sm:$0xff] %v5193
        %5210 = vst [vmem:[#allocation3 + $0x248] sm:$0xff] %v5194
        %5211 = vst [vmem:[#allocation3 + $0x250] sm:$0xff] %v5195
        %5212 = vst [vmem:[#allocation3 + $0x258] sm:$0xff] %v5196
        %5213 = vst [vmem:[#allocation3 + $0x260] sm:$0xff] %v5197
        %5214 = vst [vmem:[#allocation3 + $0x268] sm:$0xff] %v5198
        %5215 = vst [vmem:[#allocation3 + $0x270] sm:$0xff] %v5199
        %5216 = vst [vmem:[#allocation3 + $0x278] sm:$0xff] %v5200
        %v5217 = vld [vmem:[%s3] sm:$0xff]
        %v5218 = vld [vmem:[%s3 + $0x8] sm:$0xf]
        %v5219 = vld [vmem:[%s3 + $0xc] sm:$0xff]
        %v5220 = vld [vmem:[%s3 + $0x14] sm:$0xf]
        %v5221 = vld [vmem:[%s3 + $0x18] sm:$0xff]
        %v5222 = vld [vmem:[%s3 + $0x20] sm:$0xf]
        %v5223 = vld [vmem:[%s3 + $0x24] sm:$0xff]
        %v5224 = vld [vmem:[%s3 + $0x2c] sm:$0xf]
        %v5225 = vld [vmem:[%s3 + $0x30] sm:$0xff]
        %v5226 = vld [vmem:[%s3 + $0x38] sm:$0xf]
        %v5227 = vld [vmem:[%s3 + $0x3c] sm:$0xff]
        %v5228 = vld [vmem:[%s3 + $0x44] sm:$0xf]
        %v5229 = vld [vmem:[%s3 + $0x48] sm:$0xff]
        %v5230 = vld [vmem:[%s3 + $0x50] sm:$0xf]
        %v5231 = vld [vmem:[%s3 + $0x54] sm:$0xff]
        %v5232 = vld [vmem:[%s3 + $0x5c] sm:$0xf]
        %v5233 = vld [vmem:[#allocation3] sm:$0xff]
        %v5234 = vld [vmem:[#allocation3 + $0x8] sm:$0xff]
        %v5235 = vld [vmem:[#allocation3 + $0x10] sm:$0xff]
        %v5236 = vld [vmem:[#allocation3 + $0x18] sm:$0xff]
        %v5237 = vld [vmem:[#allocation3 + $0x20] sm:$0xff]
        %v5238 = vld [vmem:[#allocation3 + $0x28] sm:$0xff]
        %v5239 = vld [vmem:[#allocation3 + $0x30] sm:$0xff]
        %v5240 = vld [vmem:[#allocation3 + $0x38] sm:$0xff]
        %v5241 = vld [vmem:[#allocation3 + $0x40] sm:$0xff]
        %v5242 = vld [vmem:[#allocation3 + $0x48] sm:$0xff]
        %v5243 = vld [vmem:[#allocation3 + $0x50] sm:$0xff]
        %v5244 = vld [vmem:[#allocation3 + $0x58] sm:$0xff]
        %v5245 = vld [vmem:[#allocation3 + $0x60] sm:$0xff]
        %v5246 = vld [vmem:[#allocation3 + $0x68] sm:$0xff]
        %v5247 = vld [vmem:[#allocation3 + $0x70] sm:$0xff]
        %v5248 = vld [vmem:[#allocation3 + $0x78] sm:$0xff]
        %v5249 = vld [vmem:[#allocation3 + $0x80] sm:$0xff]
        %v5250 = vld [vmem:[#allocation3 + $0x88] sm:$0xff]
        %v5251 = vld [vmem:[#allocation3 + $0x90] sm:$0xff]
        %v5252 = vld [vmem:[#allocation3 + $0x98] sm:$0xff]
        %v5253 = vld [vmem:[#allocation3 + $0xa0] sm:$0xff]
        %v5254 = vld [vmem:[#allocation3 + $0xa8] sm:$0xff]
        %v5255 = vld [vmem:[#allocation3 + $0xb0] sm:$0xff]
        %v5256 = vld [vmem:[#allocation3 + $0xb8] sm:$0xff]
        %v5257 = vld [vmem:[#allocation3 + $0xc0] sm:$0xff]
        %v5258 = vld [vmem:[#allocation3 + $0xc8] sm:$0xff]
        %v5259 = vld [vmem:[#allocation3 + $0xd0] sm:$0xff]
        %v5260 = vld [vmem:[#allocation3 + $0xd8] sm:$0xff]
        %v5261 = vld [vmem:[#allocation3 + $0xe0] sm:$0xff]
        %v5262 = vld [vmem:[#allocation3 + $0xe8] sm:$0xff]
        %v5263 = vld [vmem:[#allocation3 + $0xf0] sm:$0xff]
        %v5264 = vld [vmem:[#allocation3 + $0xf8] sm:$0xff]
        %v5265 = vld [vmem:[#allocation3 + $0x100] sm:$0xff]
        %v5266 = vld [vmem:[#allocation3 + $0x108] sm:$0xff]
        %v5267 = vld [vmem:[#allocation3 + $0x110] sm:$0xff]
        %v5268 = vld [vmem:[#allocation3 + $0x118] sm:$0xff]
        %v5269 = vld [vmem:[#allocation3 + $0x120] sm:$0xff]
        %v5270 = vld [vmem:[#allocation3 + $0x128] sm:$0xff]
        %v5271 = vld [vmem:[#allocation3 + $0x130] sm:$0xff]
        %v5272 = vld [vmem:[#allocation3 + $0x138] sm:$0xff]
        %v5273 = vld [vmem:[#allocation3 + $0x140] sm:$0xff]
        %v5274 = vld [vmem:[#allocation3 + $0x148] sm:$0xff]
        %v5275 = vld [vmem:[#allocation3 + $0x150] sm:$0xff]
        %v5276 = vld [vmem:[#allocation3 + $0x158] sm:$0xff]
        %v5277 = vld [vmem:[#allocation3 + $0x160] sm:$0xff]
        %v5278 = vld [vmem:[#allocation3 + $0x168] sm:$0xff]
        %v5279 = vld [vmem:[#allocation3 + $0x170] sm:$0xff]
        %v5280 = vld [vmem:[#allocation3 + $0x178] sm:$0xff]
        %v5281 = vld [vmem:[#allocation3 + $0x180] sm:$0xff]
        %v5282 = vld [vmem:[#allocation3 + $0x188] sm:$0xff]
        %v5283 = vld [vmem:[#allocation3 + $0x190] sm:$0xff]
        %v5284 = vld [vmem:[#allocation3 + $0x198] sm:$0xff]
        %v5285 = vld [vmem:[#allocation3 + $0x1a0] sm:$0xff]
        %v5286 = vld [vmem:[#allocation3 + $0x1a8] sm:$0xff]
        %v5287 = vld [vmem:[#allocation3 + $0x1b0] sm:$0xff]
        %v5288 = vld [vmem:[#allocation3 + $0x1b8] sm:$0xff]
        %v5289 = vld [vmem:[#allocation3 + $0x1c0] sm:$0xff]
        %v5290 = vld [vmem:[#allocation3 + $0x1c8] sm:$0xff]
        %v5291 = vld [vmem:[#allocation3 + $0x1d0] sm:$0xff]
        %v5292 = vld [vmem:[#allocation3 + $0x1d8] sm:$0xff]
        %v5293 = vld [vmem:[#allocation3 + $0x1e0] sm:$0xff]
        %v5294 = vld [vmem:[#allocation3 + $0x1e8] sm:$0xff]
        %v5295 = vld [vmem:[#allocation3 + $0x1f0] sm:$0xff]
        %v5296 = vld [vmem:[#allocation3 + $0x1f8] sm:$0xff]
        %v5297 = vld [vmem:[#allocation3 + $0x200] sm:$0xff]
        %v5298 = vld [vmem:[#allocation3 + $0x208] sm:$0xff]
        %v5299 = vld [vmem:[#allocation3 + $0x210] sm:$0xff]
        %v5300 = vld [vmem:[#allocation3 + $0x218] sm:$0xff]
        %v5301 = vld [vmem:[#allocation3 + $0x220] sm:$0xff]
        %v5302 = vld [vmem:[#allocation3 + $0x228] sm:$0xff]
        %v5303 = vld [vmem:[#allocation3 + $0x230] sm:$0xff]
        %v5304 = vld [vmem:[#allocation3 + $0x238] sm:$0xff]
        %v5305 = vld [vmem:[#allocation3 + $0x240] sm:$0xff]
        %v5306 = vld [vmem:[#allocation3 + $0x248] sm:$0xff]
        %v5307 = vld [vmem:[#allocation3 + $0x250] sm:$0xff]
        %v5308 = vld [vmem:[#allocation3 + $0x258] sm:$0xff]
        %v5309 = vld [vmem:[#allocation3 + $0x260] sm:$0xff]
        %v5310 = vld [vmem:[#allocation3 + $0x268] sm:$0xff]
        %v5311 = vld [vmem:[#allocation3 + $0x270] sm:$0xff]
        %v5312 = vld [vmem:[#allocation3 + $0x278] sm:$0xff]
        %v5329 = vunpack.c.l.b16 %v5217
        %v5330 = vunpack.c.h.b16 %v5217
        %v5331 = vunpack.c.l.b16 %v5218
        %v5332 = vunpack.c.l.b16 %v5219
        %v5333 = vunpack.c.h.b16 %v5219
        %v5334 = vunpack.c.l.b16 %v5220
        %v5335 = vunpack.c.l.b16 %v5221
        %v5336 = vunpack.c.h.b16 %v5221
        %v5337 = vunpack.c.l.b16 %v5222
        %v5338 = vunpack.c.l.b16 %v5223
        %v5339 = vunpack.c.h.b16 %v5223
        %v5340 = vunpack.c.l.b16 %v5224
        %v5341 = vunpack.c.l.b16 %v5225
        %v5342 = vunpack.c.h.b16 %v5225
        %v5343 = vunpack.c.l.b16 %v5226
        %v5344 = vunpack.c.l.b16 %v5227
        %v5345 = vunpack.c.h.b16 %v5227
        %v5346 = vunpack.c.l.b16 %v5228
        %v5347 = vunpack.c.l.b16 %v5229
        %v5348 = vunpack.c.h.b16 %v5229
        %v5349 = vunpack.c.l.b16 %v5230
        %v5350 = vunpack.c.l.b16 %v5231
        %v5351 = vunpack.c.h.b16 %v5231
        %v5352 = vunpack.c.l.b16 %v5232
        %v5353 = vpack.c.b16 %v5332, %v5329
        %v5354 = vpack.c.b16 %v5333, %v5330
        %v5355 = vpack.c.b16 %v5334, %v5331
        %v5356 = vpack.c.b16 %v5338, %v5335
        %v5357 = vpack.c.b16 %v5339, %v5336
        %v5358 = vpack.c.b16 %v5340, %v5337
        %v5359 = vpack.c.b16 %v5344, %v5341
        %v5360 = vpack.c.b16 %v5345, %v5342
        %v5361 = vpack.c.b16 %v5346, %v5343
        %v5362 = vpack.c.b16 %v5350, %v5347
        %v5363 = vpack.c.b16 %v5351, %v5348
        %v5364 = vpack.c.b16 %v5352, %v5349
        %v5453 = vunpack.c.l.b16 %v5233
        %v5454 = vunpack.c.h.b16 %v5233
        %v5455 = vunpack.c.l.b16 %v5234
        %v5456 = vunpack.c.h.b16 %v5234
        %v5457 = vunpack.c.l.b16 %v5235
        %v5458 = vunpack.c.h.b16 %v5235
        %v5459 = vunpack.c.l.b16 %v5236
        %v5460 = vunpack.c.h.b16 %v5236
        %v5461 = vunpack.c.l.b16 %v5237
        %v5462 = vunpack.c.h.b16 %v5237
        %v5463 = vunpack.c.l.b16 %v5238
        %v5464 = vunpack.c.h.b16 %v5238
        %v5465 = vunpack.c.l.b16 %v5239
        %v5466 = vunpack.c.h.b16 %v5239
        %v5467 = vunpack.c.l.b16 %v5240
        %v5468 = vunpack.c.h.b16 %v5240
        %v5469 = vunpack.c.l.b16 %v5241
        %v5470 = vunpack.c.h.b16 %v5241
        %v5471 = vunpack.c.l.b16 %v5242
        %v5472 = vunpack.c.h.b16 %v5242
        %v5473 = vunpack.c.l.b16 %v5243
        %v5474 = vunpack.c.h.b16 %v5243
        %v5475 = vunpack.c.l.b16 %v5244
        %v5476 = vunpack.c.h.b16 %v5244
        %v5477 = vunpack.c.l.b16 %v5245
        %v5478 = vunpack.c.h.b16 %v5245
        %v5479 = vunpack.c.l.b16 %v5246
        %v5480 = vunpack.c.h.b16 %v5246
        %v5481 = vunpack.c.l.b16 %v5247
        %v5482 = vunpack.c.h.b16 %v5247
        %v5483 = vunpack.c.l.b16 %v5248
        %v5484 = vunpack.c.h.b16 %v5248
        %v5485 = vunpack.c.l.b16 %v5249
        %v5486 = vunpack.c.h.b16 %v5249
        %v5487 = vunpack.c.l.b16 %v5250
        %v5488 = vunpack.c.h.b16 %v5250
        %v5489 = vunpack.c.l.b16 %v5251
        %v5490 = vunpack.c.h.b16 %v5251
        %v5491 = vunpack.c.l.b16 %v5252
        %v5492 = vunpack.c.h.b16 %v5252
        %v5493 = vunpack.c.l.b16 %v5253
        %v5494 = vunpack.c.h.b16 %v5253
        %v5495 = vunpack.c.l.b16 %v5254
        %v5496 = vunpack.c.h.b16 %v5254
        %v5497 = vunpack.c.l.b16 %v5255
        %v5498 = vunpack.c.h.b16 %v5255
        %v5499 = vunpack.c.l.b16 %v5256
        %v5500 = vunpack.c.h.b16 %v5256
        %v5501 = vunpack.c.l.b16 %v5257
        %v5502 = vunpack.c.h.b16 %v5257
        %v5503 = vunpack.c.l.b16 %v5258
        %v5504 = vunpack.c.h.b16 %v5258
        %v5505 = vunpack.c.l.b16 %v5259
        %v5506 = vunpack.c.h.b16 %v5259
        %v5507 = vunpack.c.l.b16 %v5260
        %v5508 = vunpack.c.h.b16 %v5260
        %v5509 = vunpack.c.l.b16 %v5261
        %v5510 = vunpack.c.h.b16 %v5261
        %v5511 = vunpack.c.l.b16 %v5262
        %v5512 = vunpack.c.h.b16 %v5262
        %v5513 = vunpack.c.l.b16 %v5263
        %v5514 = vunpack.c.h.b16 %v5263
        %v5515 = vunpack.c.l.b16 %v5264
        %v5516 = vunpack.c.h.b16 %v5264
        %v5517 = vunpack.c.l.b16 %v5265
        %v5518 = vunpack.c.h.b16 %v5265
        %v5519 = vunpack.c.l.b16 %v5266
        %v5520 = vunpack.c.h.b16 %v5266
        %v5521 = vunpack.c.l.b16 %v5267
        %v5522 = vunpack.c.h.b16 %v5267
        %v5523 = vunpack.c.l.b16 %v5268
        %v5524 = vunpack.c.h.b16 %v5268
        %v5525 = vunpack.c.l.b16 %v5269
        %v5526 = vunpack.c.h.b16 %v5269
        %v5527 = vunpack.c.l.b16 %v5270
        %v5528 = vunpack.c.h.b16 %v5270
        %v5529 = vunpack.c.l.b16 %v5271
        %v5530 = vunpack.c.h.b16 %v5271
        %v5531 = vunpack.c.l.b16 %v5272
        %v5532 = vunpack.c.h.b16 %v5272
        %v5533 = vunpack.c.l.b16 %v5273
        %v5534 = vunpack.c.h.b16 %v5273
        %v5535 = vunpack.c.l.b16 %v5274
        %v5536 = vunpack.c.h.b16 %v5274
        %v5537 = vunpack.c.l.b16 %v5275
        %v5538 = vunpack.c.h.b16 %v5275
        %v5539 = vunpack.c.l.b16 %v5276
        %v5540 = vunpack.c.h.b16 %v5276
        %v5541 = vunpack.c.l.b16 %v5277
        %v5542 = vunpack.c.h.b16 %v5277
        %v5543 = vunpack.c.l.b16 %v5278
        %v5544 = vunpack.c.h.b16 %v5278
        %v5545 = vunpack.c.l.b16 %v5279
        %v5546 = vunpack.c.h.b16 %v5279
        %v5547 = vunpack.c.l.b16 %v5280
        %v5548 = vunpack.c.h.b16 %v5280
        %v5549 = vunpack.c.l.b16 %v5281
        %v5550 = vunpack.c.h.b16 %v5281
        %v5551 = vunpack.c.l.b16 %v5282
        %v5552 = vunpack.c.h.b16 %v5282
        %v5553 = vunpack.c.l.b16 %v5283
        %v5554 = vunpack.c.h.b16 %v5283
        %v5555 = vunpack.c.l.b16 %v5284
        %v5556 = vunpack.c.h.b16 %v5284
        %v5557 = vunpack.c.l.b16 %v5285
        %v5558 = vunpack.c.h.b16 %v5285
        %v5559 = vunpack.c.l.b16 %v5286
        %v5560 = vunpack.c.h.b16 %v5286
        %v5561 = vunpack.c.l.b16 %v5287
        %v5562 = vunpack.c.h.b16 %v5287
        %v5563 = vunpack.c.l.b16 %v5288
        %v5564 = vunpack.c.h.b16 %v5288
        %v5565 = vunpack.c.l.b16 %v5289
        %v5566 = vunpack.c.h.b16 %v5289
        %v5567 = vunpack.c.l.b16 %v5290
        %v5568 = vunpack.c.h.b16 %v5290
        %v5569 = vunpack.c.l.b16 %v5291
        %v5570 = vunpack.c.h.b16 %v5291
        %v5571 = vunpack.c.l.b16 %v5292
        %v5572 = vunpack.c.h.b16 %v5292
        %v5573 = vunpack.c.l.b16 %v5293
        %v5574 = vunpack.c.h.b16 %v5293
        %v5575 = vunpack.c.l.b16 %v5294
        %v5576 = vunpack.c.h.b16 %v5294
        %v5577 = vunpack.c.l.b16 %v5295
        %v5578 = vunpack.c.h.b16 %v5295
        %v5579 = vunpack.c.l.b16 %v5296
        %v5580 = vunpack.c.h.b16 %v5296
        %v5581 = vunpack.c.l.b16 %v5297
        %v5582 = vunpack.c.h.b16 %v5297
        %v5583 = vunpack.c.l.b16 %v5298
        %v5584 = vunpack.c.h.b16 %v5298
        %v5585 = vunpack.c.l.b16 %v5299
        %v5586 = vunpack.c.h.b16 %v5299
        %v5587 = vunpack.c.l.b16 %v5300
        %v5588 = vunpack.c.h.b16 %v5300
        %v5589 = vunpack.c.l.b16 %v5301
        %v5590 = vunpack.c.h.b16 %v5301
        %v5591 = vunpack.c.l.b16 %v5302
        %v5592 = vunpack.c.h.b16 %v5302
        %v5593 = vunpack.c.l.b16 %v5303
        %v5594 = vunpack.c.h.b16 %v5303
        %v5595 = vunpack.c.l.b16 %v5304
        %v5596 = vunpack.c.h.b16 %v5304
        %v5597 = vunpack.c.l.b16 %v5305
        %v5598 = vunpack.c.h.b16 %v5305
        %v5599 = vunpack.c.l.b16 %v5306
        %v5600 = vunpack.c.h.b16 %v5306
        %v5601 = vunpack.c.l.b16 %v5307
        %v5602 = vunpack.c.h.b16 %v5307
        %v5603 = vunpack.c.l.b16 %v5308
        %v5604 = vunpack.c.h.b16 %v5308
        %v5605 = vunpack.c.l.b16 %v5309
        %v5606 = vunpack.c.h.b16 %v5309
        %v5607 = vunpack.c.l.b16 %v5310
        %v5608 = vunpack.c.h.b16 %v5310
        %v5609 = vunpack.c.l.b16 %v5311
        %v5610 = vunpack.c.h.b16 %v5311
        %v5611 = vunpack.c.l.b16 %v5312
        %v5612 = vunpack.c.h.b16 %v5312
        %v5613 = vpack.c.b16 %v5457, %v5453
        %v5614 = vpack.c.b16 %v5458, %v5454
        %v5615 = vpack.c.b16 %v5459, %v5455
        %v5616 = vpack.c.b16 %v5460, %v5456
        %v5617 = vpack.c.b16 %v5465, %v5461
        %v5618 = vpack.c.b16 %v5466, %v5462
        %v5619 = vpack.c.b16 %v5467, %v5463
        %v5620 = vpack.c.b16 %v5468, %v5464
        %v5621 = vpack.c.b16 %v5473, %v5469
        %v5622 = vpack.c.b16 %v5474, %v5470
        %v5623 = vpack.c.b16 %v5475, %v5471
        %v5624 = vpack.c.b16 %v5476, %v5472
        %v5625 = vpack.c.b16 %v5481, %v5477
        %v5626 = vpack.c.b16 %v5482, %v5478
        %v5627 = vpack.c.b16 %v5483, %v5479
        %v5628 = vpack.c.b16 %v5484, %v5480
        %v5629 = vpack.c.b16 %v5489, %v5485
        %v5630 = vpack.c.b16 %v5490, %v5486
        %v5631 = vpack.c.b16 %v5491, %v5487
        %v5632 = vpack.c.b16 %v5492, %v5488
        %v5633 = vpack.c.b16 %v5497, %v5493
        %v5634 = vpack.c.b16 %v5498, %v5494
        %v5635 = vpack.c.b16 %v5499, %v5495
        %v5636 = vpack.c.b16 %v5500, %v5496
        %v5637 = vpack.c.b16 %v5505, %v5501
        %v5638 = vpack.c.b16 %v5506, %v5502
        %v5639 = vpack.c.b16 %v5507, %v5503
        %v5640 = vpack.c.b16 %v5508, %v5504
        %v5641 = vpack.c.b16 %v5513, %v5509
        %v5642 = vpack.c.b16 %v5514, %v5510
        %v5643 = vpack.c.b16 %v5515, %v5511
        %v5644 = vpack.c.b16 %v5516, %v5512
        %v5645 = vpack.c.b16 %v5521, %v5517
        %v5646 = vpack.c.b16 %v5522, %v5518
        %v5647 = vpack.c.b16 %v5523, %v5519
        %v5648 = vpack.c.b16 %v5524, %v5520
        %v5649 = vpack.c.b16 %v5529, %v5525
        %v5650 = vpack.c.b16 %v5530, %v5526
        %v5651 = vpack.c.b16 %v5531, %v5527
        %v5652 = vpack.c.b16 %v5532, %v5528
        %v5653 = vpack.c.b16 %v5537, %v5533
        %v5654 = vpack.c.b16 %v5538, %v5534
        %v5655 = vpack.c.b16 %v5539, %v5535
        %v5656 = vpack.c.b16 %v5540, %v5536
        %v5657 = vpack.c.b16 %v5545, %v5541
        %v5658 = vpack.c.b16 %v5546, %v5542
        %v5659 = vpack.c.b16 %v5547, %v5543
        %v5660 = vpack.c.b16 %v5548, %v5544
        %v5661 = vpack.c.b16 %v5553, %v5549
        %v5662 = vpack.c.b16 %v5554, %v5550
        %v5663 = vpack.c.b16 %v5555, %v5551
        %v5664 = vpack.c.b16 %v5556, %v5552
        %v5665 = vpack.c.b16 %v5561, %v5557
        %v5666 = vpack.c.b16 %v5562, %v5558
        %v5667 = vpack.c.b16 %v5563, %v5559
        %v5668 = vpack.c.b16 %v5564, %v5560
        %v5669 = vpack.c.b16 %v5569, %v5565
        %v5670 = vpack.c.b16 %v5570, %v5566
        %v5671 = vpack.c.b16 %v5571, %v5567
        %v5672 = vpack.c.b16 %v5572, %v5568
        %v5673 = vpack.c.b16 %v5577, %v5573
        %v5674 = vpack.c.b16 %v5578, %v5574
        %v5675 = vpack.c.b16 %v5579, %v5575
        %v5676 = vpack.c.b16 %v5580, %v5576
        %v5677 = vpack.c.b16 %v5585, %v5581
        %v5678 = vpack.c.b16 %v5586, %v5582
        %v5679 = vpack.c.b16 %v5587, %v5583
        %v5680 = vpack.c.b16 %v5588, %v5584
        %v5681 = vpack.c.b16 %v5593, %v5589
        %v5682 = vpack.c.b16 %v5594, %v5590
        %v5683 = vpack.c.b16 %v5595, %v5591
        %v5684 = vpack.c.b16 %v5596, %v5592
        %v5685 = vpack.c.b16 %v5601, %v5597
        %v5686 = vpack.c.b16 %v5602, %v5598
        %v5687 = vpack.c.b16 %v5603, %v5599
        %v5688 = vpack.c.b16 %v5604, %v5600
        %v5689 = vpack.c.b16 %v5609, %v5605
        %v5690 = vpack.c.b16 %v5610, %v5606
        %v5691 = vpack.c.b16 %v5611, %v5607
        %v5692 = vpack.c.b16 %v5612, %v5608
        %v5774 = vsel %vm3072, %v5355, 0
        %v5777 = vsel %vm3072, %v5358, 0
        %v5780 = vsel %vm3072, %v5361, 0
        %v5783 = vsel %vm3072, %v5364, 0
        %5785 = vmatpush.bf16.msra.mxu0 %v5641
        %5786 = vmatpush.bf16.msra.mxu0 %v5637
        %5787 = vmatpush.bf16.msra.mxu0 %v5633
        %5788 = vmatpush.bf16.msra.mxu0 %v5629
        %5789 = vmatpush.bf16.msra.mxu0 %v5625
        %5790 = vmatpush.bf16.msra.mxu0 %v5621
        %5791 = vmatpush.bf16.msra.mxu0 %v5617
        %5792 = vmatpush.bf16.msra.mxu0 %v5613
        %5793 = vmatmul.bf16.gmra.mxu0 %v5353
        %v5794 = vpop.f32.mrf.mxu0
        %v5795 = vadd.f32 0.0, %v5794
        %v5796 = vpop.f32.mrf.mxu0
        %v5797 = vadd.f32 0.0, %v5796
        %5798 = vmatmul.bf16.gmra.mxu0 %v5356
        %v5799 = vpop.f32.mrf.mxu0
        %v5800 = vadd.f32 0.0, %v5799
        %v5801 = vpop.f32.mrf.mxu0
        %v5802 = vadd.f32 0.0, %v5801
        %5803 = vmatmul.bf16.gmra.mxu0 %v5359
        %v5804 = vpop.f32.mrf.mxu0
        %v5805 = vadd.f32 0.0, %v5804
        %v5806 = vpop.f32.mrf.mxu0
        %v5807 = vadd.f32 0.0, %v5806
        %5808 = vmatmul.bf16.gmra.mxu0 %v5362
        %v5809 = vpop.f32.mrf.mxu0
        %v5810 = vadd.f32 0.0, %v5809
        %v5811 = vpop.f32.mrf.mxu0
        %v5812 = vadd.f32 0.0, %v5811
        %5813 = vdwg.mxu0
        %5814 = vmatpush.bf16.msra.mxu0 %v5673
        %5815 = vmatpush.bf16.msra.mxu0 %v5669
        %5816 = vmatpush.bf16.msra.mxu0 %v5665
        %5817 = vmatpush.bf16.msra.mxu0 %v5661
        %5818 = vmatpush.bf16.msra.mxu0 %v5657
        %5819 = vmatpush.bf16.msra.mxu0 %v5653
        %5820 = vmatpush.bf16.msra.mxu0 %v5649
        %5821 = vmatpush.bf16.msra.mxu0 %v5645
        %5822 = vmatmul.bf16.gmra.mxu0 %v5354
        %v5823 = vpop.f32.mrf.mxu0
        %v5824 = vadd.f32 %v5795, %v5823
        %v5825 = vpop.f32.mrf.mxu0
        %v5826 = vadd.f32 %v5797, %v5825
        %5827 = vmatmul.bf16.gmra.mxu0 %v5357
        %v5828 = vpop.f32.mrf.mxu0
        %v5829 = vadd.f32 %v5800, %v5828
        %v5830 = vpop.f32.mrf.mxu0
        %v5831 = vadd.f32 %v5802, %v5830
        %5832 = vmatmul.bf16.gmra.mxu0 %v5360
        %v5833 = vpop.f32.mrf.mxu0
        %v5834 = vadd.f32 %v5805, %v5833
        %v5835 = vpop.f32.mrf.mxu0
        %v5836 = vadd.f32 %v5807, %v5835
        %5837 = vmatmul.bf16.gmra.mxu0 %v5363
        %v5838 = vpop.f32.mrf.mxu0
        %v5839 = vadd.f32 %v5810, %v5838
        %v5840 = vpop.f32.mrf.mxu0
        %v5841 = vadd.f32 %v5812, %v5840
        %5842 = vdwg.mxu0
        %5843 = vmatpush.bf16.msra.mxu0 0
        %5844 = vmatpush.bf16.msra.mxu0 0
        %5845 = vmatpush.bf16.msra.mxu0 0
        %5846 = vmatpush.bf16.msra.mxu0 0
        %5847 = vmatpush.bf16.msra.mxu0 %v5689
        %5848 = vmatpush.bf16.msra.mxu0 %v5685
        %5849 = vmatpush.bf16.msra.mxu0 %v5681
        %5850 = vmatpush.bf16.msra.mxu0 %v5677
        %5851 = vmatmul.bf16.gmra.mxu0 %v5774
        %v5852 = vpop.f32.mrf.mxu0
        %v5853 = vadd.f32 %v5824, %v5852
        %v5854 = vpop.f32.mrf.mxu0
        %v5855 = vadd.f32 %v5826, %v5854
        %5856 = vmatmul.bf16.gmra.mxu0 %v5777
        %v5857 = vpop.f32.mrf.mxu0
        %v5858 = vadd.f32 %v5829, %v5857
        %v5859 = vpop.f32.mrf.mxu0
        %v5860 = vadd.f32 %v5831, %v5859
        %5861 = vmatmul.bf16.gmra.mxu0 %v5780
        %v5862 = vpop.f32.mrf.mxu0
        %v5863 = vadd.f32 %v5834, %v5862
        %v5864 = vpop.f32.mrf.mxu0
        %v5865 = vadd.f32 %v5836, %v5864
        %5866 = vmatmul.bf16.gmra.mxu0 %v5783
        %v5867 = vpop.f32.mrf.mxu0
        %v5868 = vadd.f32 %v5839, %v5867
        %v5869 = vpop.f32.mrf.mxu0
        %v5870 = vadd.f32 %v5841, %v5869
        %5871 = vdwg.mxu0
        %5872 = vmatpush.bf16.msra.mxu0 %v5642
        %5873 = vmatpush.bf16.msra.mxu0 %v5638
        %5874 = vmatpush.bf16.msra.mxu0 %v5634
        %5875 = vmatpush.bf16.msra.mxu0 %v5630
        %5876 = vmatpush.bf16.msra.mxu0 %v5626
        %5877 = vmatpush.bf16.msra.mxu0 %v5622
        %5878 = vmatpush.bf16.msra.mxu0 %v5618
        %5879 = vmatpush.bf16.msra.mxu0 %v5614
        %5880 = vmatmul.bf16.gmra.mxu0 %v5353
        %v5881 = vpop.f32.mrf.mxu0
        %v5882 = vadd.f32 0.0, %v5881
        %v5883 = vpop.f32.mrf.mxu0
        %v5884 = vadd.f32 0.0, %v5883
        %5885 = vmatmul.bf16.gmra.mxu0 %v5356
        %v5886 = vpop.f32.mrf.mxu0
        %v5887 = vadd.f32 0.0, %v5886
        %v5888 = vpop.f32.mrf.mxu0
        %v5889 = vadd.f32 0.0, %v5888
        %5890 = vmatmul.bf16.gmra.mxu0 %v5359
        %v5891 = vpop.f32.mrf.mxu0
        %v5892 = vadd.f32 0.0, %v5891
        %v5893 = vpop.f32.mrf.mxu0
        %v5894 = vadd.f32 0.0, %v5893
        %5895 = vmatmul.bf16.gmra.mxu0 %v5362
        %v5896 = vpop.f32.mrf.mxu0
        %v5897 = vadd.f32 0.0, %v5896
        %v5898 = vpop.f32.mrf.mxu0
        %v5899 = vadd.f32 0.0, %v5898
        %5900 = vdwg.mxu0
        %5901 = vmatpush.bf16.msra.mxu0 %v5674
        %5902 = vmatpush.bf16.msra.mxu0 %v5670
        %5903 = vmatpush.bf16.msra.mxu0 %v5666
        %5904 = vmatpush.bf16.msra.mxu0 %v5662
        %5905 = vmatpush.bf16.msra.mxu0 %v5658
        %5906 = vmatpush.bf16.msra.mxu0 %v5654
        %5907 = vmatpush.bf16.msra.mxu0 %v5650
        %5908 = vmatpush.bf16.msra.mxu0 %v5646
        %5909 = vmatmul.bf16.gmra.mxu0 %v5354
        %v5910 = vpop.f32.mrf.mxu0
        %v5911 = vadd.f32 %v5882, %v5910
        %v5912 = vpop.f32.mrf.mxu0
        %v5913 = vadd.f32 %v5884, %v5912
        %5914 = vmatmul.bf16.gmra.mxu0 %v5357
        %v5915 = vpop.f32.mrf.mxu0
        %v5916 = vadd.f32 %v5887, %v5915
        %v5917 = vpop.f32.mrf.mxu0
        %v5918 = vadd.f32 %v5889, %v5917
        %5919 = vmatmul.bf16.gmra.mxu0 %v5360
        %v5920 = vpop.f32.mrf.mxu0
        %v5921 = vadd.f32 %v5892, %v5920
        %v5922 = vpop.f32.mrf.mxu0
        %v5923 = vadd.f32 %v5894, %v5922
        %5924 = vmatmul.bf16.gmra.mxu0 %v5363
        %v5925 = vpop.f32.mrf.mxu0
        %v5926 = vadd.f32 %v5897, %v5925
        %v5927 = vpop.f32.mrf.mxu0
        %v5928 = vadd.f32 %v5899, %v5927
        %5929 = vdwg.mxu0
        %5930 = vmatpush.bf16.msra.mxu0 0
        %5931 = vmatpush.bf16.msra.mxu0 0
        %5932 = vmatpush.bf16.msra.mxu0 0
        %5933 = vmatpush.bf16.msra.mxu0 0
        %5934 = vmatpush.bf16.msra.mxu0 %v5690
        %5935 = vmatpush.bf16.msra.mxu0 %v5686
        %5936 = vmatpush.bf16.msra.mxu0 %v5682
        %5937 = vmatpush.bf16.msra.mxu0 %v5678
        %5938 = vmatmul.bf16.gmra.mxu0 %v5774
        %v5939 = vpop.f32.mrf.mxu0
        %v5940 = vadd.f32 %v5911, %v5939
        %v5941 = vpop.f32.mrf.mxu0
        %v5942 = vadd.f32 %v5913, %v5941
        %5943 = vmatmul.bf16.gmra.mxu0 %v5777
        %v5944 = vpop.f32.mrf.mxu0
        %v5945 = vadd.f32 %v5916, %v5944
        %v5946 = vpop.f32.mrf.mxu0
        %v5947 = vadd.f32 %v5918, %v5946
        %5948 = vmatmul.bf16.gmra.mxu0 %v5780
        %v5949 = vpop.f32.mrf.mxu0
        %v5950 = vadd.f32 %v5921, %v5949
        %v5951 = vpop.f32.mrf.mxu0
        %v5952 = vadd.f32 %v5923, %v5951
        %5953 = vmatmul.bf16.gmra.mxu0 %v5783
        %v5954 = vpop.f32.mrf.mxu0
        %v5955 = vadd.f32 %v5926, %v5954
        %v5956 = vpop.f32.mrf.mxu0
        %v5957 = vadd.f32 %v5928, %v5956
        %5958 = vdwg.mxu0
        %5959 = vmatpush.bf16.msra.mxu0 %v5643
        %5960 = vmatpush.bf16.msra.mxu0 %v5639
        %5961 = vmatpush.bf16.msra.mxu0 %v5635
        %5962 = vmatpush.bf16.msra.mxu0 %v5631
        %5963 = vmatpush.bf16.msra.mxu0 %v5627
        %5964 = vmatpush.bf16.msra.mxu0 %v5623
        %5965 = vmatpush.bf16.msra.mxu0 %v5619
        %5966 = vmatpush.bf16.msra.mxu0 %v5615
        %5967 = vmatmul.bf16.gmra.mxu0 %v5353
        %v5968 = vpop.f32.mrf.mxu0
        %v5969 = vadd.f32 0.0, %v5968
        %v5970 = vpop.f32.mrf.mxu0
        %v5971 = vadd.f32 0.0, %v5970
        %5972 = vmatmul.bf16.gmra.mxu0 %v5356
        %v5973 = vpop.f32.mrf.mxu0
        %v5974 = vadd.f32 0.0, %v5973
        %v5975 = vpop.f32.mrf.mxu0
        %v5976 = vadd.f32 0.0, %v5975
        %5977 = vmatmul.bf16.gmra.mxu0 %v5359
        %v5978 = vpop.f32.mrf.mxu0
        %v5979 = vadd.f32 0.0, %v5978
        %v5980 = vpop.f32.mrf.mxu0
        %v5981 = vadd.f32 0.0, %v5980
        %5982 = vmatmul.bf16.gmra.mxu0 %v5362
        %v5983 = vpop.f32.mrf.mxu0
        %v5984 = vadd.f32 0.0, %v5983
        %v5985 = vpop.f32.mrf.mxu0
        %v5986 = vadd.f32 0.0, %v5985
        %5987 = vdwg.mxu0
        %5988 = vmatpush.bf16.msra.mxu0 %v5675
        %5989 = vmatpush.bf16.msra.mxu0 %v5671
        %5990 = vmatpush.bf16.msra.mxu0 %v5667
        %5991 = vmatpush.bf16.msra.mxu0 %v5663
        %5992 = vmatpush.bf16.msra.mxu0 %v5659
        %5993 = vmatpush.bf16.msra.mxu0 %v5655
        %5994 = vmatpush.bf16.msra.mxu0 %v5651
        %5995 = vmatpush.bf16.msra.mxu0 %v5647
        %5996 = vmatmul.bf16.gmra.mxu0 %v5354
        %v5997 = vpop.f32.mrf.mxu0
        %v5998 = vadd.f32 %v5969, %v5997
        %v5999 = vpop.f32.mrf.mxu0
        %v6000 = vadd.f32 %v5971, %v5999
        %6001 = vmatmul.bf16.gmra.mxu0 %v5357
        %v6002 = vpop.f32.mrf.mxu0
        %v6003 = vadd.f32 %v5974, %v6002
        %v6004 = vpop.f32.mrf.mxu0
        %v6005 = vadd.f32 %v5976, %v6004
        %6006 = vmatmul.bf16.gmra.mxu0 %v5360
        %v6007 = vpop.f32.mrf.mxu0
        %v6008 = vadd.f32 %v5979, %v6007
        %v6009 = vpop.f32.mrf.mxu0
        %v6010 = vadd.f32 %v5981, %v6009
        %6011 = vmatmul.bf16.gmra.mxu0 %v5363
        %v6012 = vpop.f32.mrf.mxu0
        %v6013 = vadd.f32 %v5984, %v6012
        %v6014 = vpop.f32.mrf.mxu0
        %v6015 = vadd.f32 %v5986, %v6014
        %6016 = vdwg.mxu0
        %6017 = vmatpush.bf16.msra.mxu0 0
        %6018 = vmatpush.bf16.msra.mxu0 0
        %6019 = vmatpush.bf16.msra.mxu0 0
        %6020 = vmatpush.bf16.msra.mxu0 0
        %6021 = vmatpush.bf16.msra.mxu0 %v5691
        %6022 = vmatpush.bf16.msra.mxu0 %v5687
        %6023 = vmatpush.bf16.msra.mxu0 %v5683
        %6024 = vmatpush.bf16.msra.mxu0 %v5679
        %6025 = vmatmul.bf16.gmra.mxu0 %v5774
        %v6026 = vpop.f32.mrf.mxu0
        %v6027 = vadd.f32 %v5998, %v6026
        %v6028 = vpop.f32.mrf.mxu0
        %v6029 = vadd.f32 %v6000, %v6028
        %6030 = vmatmul.bf16.gmra.mxu0 %v5777
        %v6031 = vpop.f32.mrf.mxu0
        %v6032 = vadd.f32 %v6003, %v6031
        %v6033 = vpop.f32.mrf.mxu0
        %v6034 = vadd.f32 %v6005, %v6033
        %6035 = vmatmul.bf16.gmra.mxu0 %v5780
        %v6036 = vpop.f32.mrf.mxu0
        %v6037 = vadd.f32 %v6008, %v6036
        %v6038 = vpop.f32.mrf.mxu0
        %v6039 = vadd.f32 %v6010, %v6038
        %6040 = vmatmul.bf16.gmra.mxu0 %v5783
        %v6041 = vpop.f32.mrf.mxu0
        %v6042 = vadd.f32 %v6013, %v6041
        %v6043 = vpop.f32.mrf.mxu0
        %v6044 = vadd.f32 %v6015, %v6043
        %6045 = vdwg.mxu0
        %6046 = vmatpush.bf16.msra.mxu0 %v5644
        %6047 = vmatpush.bf16.msra.mxu0 %v5640
        %6048 = vmatpush.bf16.msra.mxu0 %v5636
        %6049 = vmatpush.bf16.msra.mxu0 %v5632
        %6050 = vmatpush.bf16.msra.mxu0 %v5628
        %6051 = vmatpush.bf16.msra.mxu0 %v5624
        %6052 = vmatpush.bf16.msra.mxu0 %v5620
        %6053 = vmatpush.bf16.msra.mxu0 %v5616
        %6054 = vmatmul.bf16.gmra.mxu0 %v5353
        %v6055 = vpop.f32.mrf.mxu0
        %v6056 = vadd.f32 0.0, %v6055
        %v6057 = vpop.f32.mrf.mxu0
        %v6058 = vadd.f32 0.0, %v6057
        %6059 = vmatmul.bf16.gmra.mxu0 %v5356
        %v6060 = vpop.f32.mrf.mxu0
        %v6061 = vadd.f32 0.0, %v6060
        %v6062 = vpop.f32.mrf.mxu0
        %v6063 = vadd.f32 0.0, %v6062
        %6064 = vmatmul.bf16.gmra.mxu0 %v5359
        %v6065 = vpop.f32.mrf.mxu0
        %v6066 = vadd.f32 0.0, %v6065
        %v6067 = vpop.f32.mrf.mxu0
        %v6068 = vadd.f32 0.0, %v6067
        %6069 = vmatmul.bf16.gmra.mxu0 %v5362
        %v6070 = vpop.f32.mrf.mxu0
        %v6071 = vadd.f32 0.0, %v6070
        %v6072 = vpop.f32.mrf.mxu0
        %v6073 = vadd.f32 0.0, %v6072
        %6074 = vdwg.mxu0
        %6075 = vmatpush.bf16.msra.mxu0 %v5676
        %6076 = vmatpush.bf16.msra.mxu0 %v5672
        %6077 = vmatpush.bf16.msra.mxu0 %v5668
        %6078 = vmatpush.bf16.msra.mxu0 %v5664
        %6079 = vmatpush.bf16.msra.mxu0 %v5660
        %6080 = vmatpush.bf16.msra.mxu0 %v5656
        %6081 = vmatpush.bf16.msra.mxu0 %v5652
        %6082 = vmatpush.bf16.msra.mxu0 %v5648
        %6083 = vmatmul.bf16.gmra.mxu0 %v5354
        %v6084 = vpop.f32.mrf.mxu0
        %v6085 = vadd.f32 %v6056, %v6084
        %v6086 = vpop.f32.mrf.mxu0
        %v6087 = vadd.f32 %v6058, %v6086
        %6088 = vmatmul.bf16.gmra.mxu0 %v5357
        %v6089 = vpop.f32.mrf.mxu0
        %v6090 = vadd.f32 %v6061, %v6089
        %v6091 = vpop.f32.mrf.mxu0
        %v6092 = vadd.f32 %v6063, %v6091
        %6093 = vmatmul.bf16.gmra.mxu0 %v5360
        %v6094 = vpop.f32.mrf.mxu0
        %v6095 = vadd.f32 %v6066, %v6094
        %v6096 = vpop.f32.mrf.mxu0
        %v6097 = vadd.f32 %v6068, %v6096
        %6098 = vmatmul.bf16.gmra.mxu0 %v5363
        %v6099 = vpop.f32.mrf.mxu0
        %v6100 = vadd.f32 %v6071, %v6099
        %v6101 = vpop.f32.mrf.mxu0
        %v6102 = vadd.f32 %v6073, %v6101
        %6103 = vdwg.mxu0
        %6104 = vmatpush.bf16.msra.mxu0 0
        %6105 = vmatpush.bf16.msra.mxu0 0
        %6106 = vmatpush.bf16.msra.mxu0 0
        %6107 = vmatpush.bf16.msra.mxu0 0
        %6108 = vmatpush.bf16.msra.mxu0 %v5692
        %6109 = vmatpush.bf16.msra.mxu0 %v5688
        %6110 = vmatpush.bf16.msra.mxu0 %v5684
        %6111 = vmatpush.bf16.msra.mxu0 %v5680
        %6112 = vmatmul.bf16.gmra.mxu0 %v5774
        %v6113 = vpop.f32.mrf.mxu0
        %v6114 = vadd.f32 %v6085, %v6113
        %v6115 = vpop.f32.mrf.mxu0
        %v6116 = vadd.f32 %v6087, %v6115
        %6117 = vmatmul.bf16.gmra.mxu0 %v5777
        %v6118 = vpop.f32.mrf.mxu0
        %v6119 = vadd.f32 %v6090, %v6118
        %v6120 = vpop.f32.mrf.mxu0
        %v6121 = vadd.f32 %v6092, %v6120
        %6122 = vmatmul.bf16.gmra.mxu0 %v5780
        %v6123 = vpop.f32.mrf.mxu0
        %v6124 = vadd.f32 %v6095, %v6123
        %v6125 = vpop.f32.mrf.mxu0
        %v6126 = vadd.f32 %v6097, %v6125
        %6127 = vmatmul.bf16.gmra.mxu0 %v5783
        %v6128 = vpop.f32.mrf.mxu0
        %v6129 = vadd.f32 %v6100, %v6128
        %v6130 = vpop.f32.mrf.mxu0
        %v6131 = vadd.f32 %v6102, %v6130
        %6132 = vdwg.mxu0
        %v6133 = vxor.u32 %v5853, 2147483648
        %v6134 = vxor.u32 %v5940, 2147483648
        %v6135 = vxor.u32 %v6027, 2147483648
        %v6136 = vxor.u32 %v6114, 2147483648
        %v6137 = vxor.u32 %v5855, 2147483648
        %v6138 = vxor.u32 %v5942, 2147483648
        %v6139 = vxor.u32 %v6029, 2147483648
        %v6140 = vxor.u32 %v6116, 2147483648
        %v6141 = vxor.u32 %v5858, 2147483648
        %v6142 = vxor.u32 %v5945, 2147483648
        %v6143 = vxor.u32 %v6032, 2147483648
        %v6144 = vxor.u32 %v6119, 2147483648
        %v6145 = vxor.u32 %v5860, 2147483648
        %v6146 = vxor.u32 %v5947, 2147483648
        %v6147 = vxor.u32 %v6034, 2147483648
        %v6148 = vxor.u32 %v6121, 2147483648
        %v6149 = vxor.u32 %v5863, 2147483648
        %v6150 = vxor.u32 %v5950, 2147483648
        %v6151 = vxor.u32 %v6037, 2147483648
        %v6152 = vxor.u32 %v6124, 2147483648
        %v6153 = vxor.u32 %v5865, 2147483648
        %v6154 = vxor.u32 %v5952, 2147483648
        %v6155 = vxor.u32 %v6039, 2147483648
        %v6156 = vxor.u32 %v6126, 2147483648
        %v6157 = vxor.u32 %v5868, 2147483648
        %v6158 = vxor.u32 %v5955, 2147483648
        %v6159 = vxor.u32 %v6042, 2147483648
        %v6160 = vxor.u32 %v6129, 2147483648
        %v6161 = vxor.u32 %v5870, 2147483648
        %v6162 = vxor.u32 %v5957, 2147483648
        %v6163 = vxor.u32 %v6044, 2147483648
        %v6164 = vxor.u32 %v6131, 2147483648
        %v6165 = vmul.f32 %v6133, 1.442695
        %v6166 = vpow.pop %v6165
        %v6167 = vmul.f32 %v6134, 1.442695
        %v6168 = vpow.pop %v6167
        %v6169 = vmul.f32 %v6135, 1.442695
        %v6170 = vpow.pop %v6169
        %v6171 = vmul.f32 %v6136, 1.442695
        %v6172 = vpow.pop %v6171
        %v6173 = vmul.f32 %v6137, 1.442695
        %v6174 = vpow.pop %v6173
        %v6175 = vmul.f32 %v6138, 1.442695
        %v6176 = vpow.pop %v6175
        %v6177 = vmul.f32 %v6139, 1.442695
        %v6178 = vpow.pop %v6177
        %v6179 = vmul.f32 %v6140, 1.442695
        %v6180 = vpow.pop %v6179
        %v6181 = vmul.f32 %v6141, 1.442695
        %v6182 = vpow.pop %v6181
        %v6183 = vmul.f32 %v6142, 1.442695
        %v6184 = vpow.pop %v6183
        %v6185 = vmul.f32 %v6143, 1.442695
        %v6186 = vpow.pop %v6185
        %v6187 = vmul.f32 %v6144, 1.442695
        %v6188 = vpow.pop %v6187
        %v6189 = vmul.f32 %v6145, 1.442695
        %v6190 = vpow.pop %v6189
        %v6191 = vmul.f32 %v6146, 1.442695
        %v6192 = vpow.pop %v6191
        %v6193 = vmul.f32 %v6147, 1.442695
        %v6194 = vpow.pop %v6193
        %v6195 = vmul.f32 %v6148, 1.442695
        %v6196 = vpow.pop %v6195
        %v6197 = vmul.f32 %v6149, 1.442695
        %v6198 = vpow.pop %v6197
        %v6199 = vmul.f32 %v6150, 1.442695
        %v6200 = vpow.pop %v6199
        %v6201 = vmul.f32 %v6151, 1.442695
        %v6202 = vpow.pop %v6201
        %v6203 = vmul.f32 %v6152, 1.442695
        %v6204 = vpow.pop %v6203
        %v6205 = vmul.f32 %v6153, 1.442695
        %v6206 = vpow.pop %v6205
        %v6207 = vmul.f32 %v6154, 1.442695
        %v6208 = vpow.pop %v6207
        %v6209 = vmul.f32 %v6155, 1.442695
        %v6210 = vpow.pop %v6209
        %v6211 = vmul.f32 %v6156, 1.442695
        %v6212 = vpow.pop %v6211
        %v6213 = vmul.f32 %v6157, 1.442695
        %v6214 = vpow.pop %v6213
        %v6215 = vmul.f32 %v6158, 1.442695
        %v6216 = vpow.pop %v6215
        %v6217 = vmul.f32 %v6159, 1.442695
        %v6218 = vpow.pop %v6217
        %v6219 = vmul.f32 %v6160, 1.442695
        %v6220 = vpow.pop %v6219
        %v6221 = vmul.f32 %v6161, 1.442695
        %v6222 = vpow.pop %v6221
        %v6223 = vmul.f32 %v6162, 1.442695
        %v6224 = vpow.pop %v6223
        %v6225 = vmul.f32 %v6163, 1.442695
        %v6226 = vpow.pop %v6225
        %v6227 = vmul.f32 %v6164, 1.442695
        %v6228 = vpow.pop %v6227
        %v6229 = vadd.f32 %v6166, 1.0
        %v6230 = vadd.f32 %v6168, 1.0
        %v6231 = vadd.f32 %v6170, 1.0
        %v6232 = vadd.f32 %v6172, 1.0
        %v6233 = vadd.f32 %v6174, 1.0
        %v6234 = vadd.f32 %v6176, 1.0
        %v6235 = vadd.f32 %v6178, 1.0
        %v6236 = vadd.f32 %v6180, 1.0
        %v6237 = vadd.f32 %v6182, 1.0
        %v6238 = vadd.f32 %v6184, 1.0
        %v6239 = vadd.f32 %v6186, 1.0
        %v6240 = vadd.f32 %v6188, 1.0
        %v6241 = vadd.f32 %v6190, 1.0
        %v6242 = vadd.f32 %v6192, 1.0
        %v6243 = vadd.f32 %v6194, 1.0
        %v6244 = vadd.f32 %v6196, 1.0
        %v6245 = vadd.f32 %v6198, 1.0
        %v6246 = vadd.f32 %v6200, 1.0
        %v6247 = vadd.f32 %v6202, 1.0
        %v6248 = vadd.f32 %v6204, 1.0
        %v6249 = vadd.f32 %v6206, 1.0
        %v6250 = vadd.f32 %v6208, 1.0
        %v6251 = vadd.f32 %v6210, 1.0
        %v6252 = vadd.f32 %v6212, 1.0
        %v6253 = vadd.f32 %v6214, 1.0
        %v6254 = vadd.f32 %v6216, 1.0
        %v6255 = vadd.f32 %v6218, 1.0
        %v6256 = vadd.f32 %v6220, 1.0
        %v6257 = vadd.f32 %v6222, 1.0
        %v6258 = vadd.f32 %v6224, 1.0
        %v6259 = vadd.f32 %v6226, 1.0
        %v6260 = vadd.f32 %v6228, 1.0
        %v6261 = vrcp.pop %v6229
        %v6262 = vmul.f32 %v6229, %v6261
        %v6263 = vsub.f32 1.0, %v6262
        %v6264 = vmul.f32 %v6261, %v6263
        %v6265 = vadd.f32 %v6261, %v6264
        %vm6266 = vweird.f32 %v6229
        %vm6267 = vweird.f32 %v6261
        %vm6268 = vmor %vm6266, %vm6267
        %v6269 = vsel %vm6268, %v6261, %v6265
        %v6270 = vand.u32 2147483647, %v6229
        %vm6271 = vcmp.eq.f32.partialorder %v6270, 8.507059e+37
        %v6272 = vand.u32 %v6229, 2147483648
        %v6273 = vor.u32 1.1754944e-38, %v6272
        %v6274 = vsel %vm6271, %v6273, %v6269
        %v6275 = vmul.f32 1.0, %v6274
        %v6276 = vrcp.pop %v6230
        %v6277 = vmul.f32 %v6230, %v6276
        %v6278 = vsub.f32 1.0, %v6277
        %v6279 = vmul.f32 %v6276, %v6278
        %v6280 = vadd.f32 %v6276, %v6279
        %vm6281 = vweird.f32 %v6230
        %vm6282 = vweird.f32 %v6276
        %vm6283 = vmor %vm6281, %vm6282
        %v6284 = vsel %vm6283, %v6276, %v6280
        %v6285 = vand.u32 2147483647, %v6230
        %vm6286 = vcmp.eq.f32.partialorder %v6285, 8.507059e+37
        %v6287 = vand.u32 %v6230, 2147483648
        %v6288 = vor.u32 1.1754944e-38, %v6287
        %v6289 = vsel %vm6286, %v6288, %v6284
        %v6290 = vmul.f32 1.0, %v6289
        %v6291 = vrcp.pop %v6231
        %v6292 = vmul.f32 %v6231, %v6291
        %v6293 = vsub.f32 1.0, %v6292
        %v6294 = vmul.f32 %v6291, %v6293
        %v6295 = vadd.f32 %v6291, %v6294
        %vm6296 = vweird.f32 %v6231
        %vm6297 = vweird.f32 %v6291
        %vm6298 = vmor %vm6296, %vm6297
        %v6299 = vsel %vm6298, %v6291, %v6295
        %v6300 = vand.u32 2147483647, %v6231
        %vm6301 = vcmp.eq.f32.partialorder %v6300, 8.507059e+37
        %v6302 = vand.u32 %v6231, 2147483648
        %v6303 = vor.u32 1.1754944e-38, %v6302
        %v6304 = vsel %vm6301, %v6303, %v6299
        %v6305 = vmul.f32 1.0, %v6304
        %v6306 = vrcp.pop %v6232
        %v6307 = vmul.f32 %v6232, %v6306
        %v6308 = vsub.f32 1.0, %v6307
        %v6309 = vmul.f32 %v6306, %v6308
        %v6310 = vadd.f32 %v6306, %v6309
        %vm6311 = vweird.f32 %v6232
        %vm6312 = vweird.f32 %v6306
        %vm6313 = vmor %vm6311, %vm6312
        %v6314 = vsel %vm6313, %v6306, %v6310
        %v6315 = vand.u32 2147483647, %v6232
        %vm6316 = vcmp.eq.f32.partialorder %v6315, 8.507059e+37
        %v6317 = vand.u32 %v6232, 2147483648
        %v6318 = vor.u32 1.1754944e-38, %v6317
        %v6319 = vsel %vm6316, %v6318, %v6314
        %v6320 = vmul.f32 1.0, %v6319
        %v6321 = vrcp.pop %v6233
        %v6322 = vmul.f32 %v6233, %v6321
        %v6323 = vsub.f32 1.0, %v6322
        %v6324 = vmul.f32 %v6321, %v6323
        %v6325 = vadd.f32 %v6321, %v6324
        %vm6326 = vweird.f32 %v6233
        %vm6327 = vweird.f32 %v6321
        %vm6328 = vmor %vm6326, %vm6327
        %v6329 = vsel %vm6328, %v6321, %v6325
        %v6330 = vand.u32 2147483647, %v6233
        %vm6331 = vcmp.eq.f32.partialorder %v6330, 8.507059e+37
        %v6332 = vand.u32 %v6233, 2147483648
        %v6333 = vor.u32 1.1754944e-38, %v6332
        %v6334 = vsel %vm6331, %v6333, %v6329
        %v6335 = vmul.f32 1.0, %v6334
        %v6336 = vrcp.pop %v6234
        %v6337 = vmul.f32 %v6234, %v6336
        %v6338 = vsub.f32 1.0, %v6337
        %v6339 = vmul.f32 %v6336, %v6338
        %v6340 = vadd.f32 %v6336, %v6339
        %vm6341 = vweird.f32 %v6234
        %vm6342 = vweird.f32 %v6336
        %vm6343 = vmor %vm6341, %vm6342
        %v6344 = vsel %vm6343, %v6336, %v6340
        %v6345 = vand.u32 2147483647, %v6234
        %vm6346 = vcmp.eq.f32.partialorder %v6345, 8.507059e+37
        %v6347 = vand.u32 %v6234, 2147483648
        %v6348 = vor.u32 1.1754944e-38, %v6347
        %v6349 = vsel %vm6346, %v6348, %v6344
        %v6350 = vmul.f32 1.0, %v6349
        %v6351 = vrcp.pop %v6235
        %v6352 = vmul.f32 %v6235, %v6351
        %v6353 = vsub.f32 1.0, %v6352
        %v6354 = vmul.f32 %v6351, %v6353
        %v6355 = vadd.f32 %v6351, %v6354
        %vm6356 = vweird.f32 %v6235
        %vm6357 = vweird.f32 %v6351
        %vm6358 = vmor %vm6356, %vm6357
        %v6359 = vsel %vm6358, %v6351, %v6355
        %v6360 = vand.u32 2147483647, %v6235
        %vm6361 = vcmp.eq.f32.partialorder %v6360, 8.507059e+37
        %v6362 = vand.u32 %v6235, 2147483648
        %v6363 = vor.u32 1.1754944e-38, %v6362
        %v6364 = vsel %vm6361, %v6363, %v6359
        %v6365 = vmul.f32 1.0, %v6364
        %v6366 = vrcp.pop %v6236
        %v6367 = vmul.f32 %v6236, %v6366
        %v6368 = vsub.f32 1.0, %v6367
        %v6369 = vmul.f32 %v6366, %v6368
        %v6370 = vadd.f32 %v6366, %v6369
        %vm6371 = vweird.f32 %v6236
        %vm6372 = vweird.f32 %v6366
        %vm6373 = vmor %vm6371, %vm6372
        %v6374 = vsel %vm6373, %v6366, %v6370
        %v6375 = vand.u32 2147483647, %v6236
        %vm6376 = vcmp.eq.f32.partialorder %v6375, 8.507059e+37
        %v6377 = vand.u32 %v6236, 2147483648
        %v6378 = vor.u32 1.1754944e-38, %v6377
        %v6379 = vsel %vm6376, %v6378, %v6374
        %v6380 = vmul.f32 1.0, %v6379
        %v6381 = vrcp.pop %v6237
        %v6382 = vmul.f32 %v6237, %v6381
        %v6383 = vsub.f32 1.0, %v6382
        %v6384 = vmul.f32 %v6381, %v6383
        %v6385 = vadd.f32 %v6381, %v6384
        %vm6386 = vweird.f32 %v6237
        %vm6387 = vweird.f32 %v6381
        %vm6388 = vmor %vm6386, %vm6387
        %v6389 = vsel %vm6388, %v6381, %v6385
        %v6390 = vand.u32 2147483647, %v6237
        %vm6391 = vcmp.eq.f32.partialorder %v6390, 8.507059e+37
        %v6392 = vand.u32 %v6237, 2147483648
        %v6393 = vor.u32 1.1754944e-38, %v6392
        %v6394 = vsel %vm6391, %v6393, %v6389
        %v6395 = vmul.f32 1.0, %v6394
        %v6396 = vrcp.pop %v6238
        %v6397 = vmul.f32 %v6238, %v6396
        %v6398 = vsub.f32 1.0, %v6397
        %v6399 = vmul.f32 %v6396, %v6398
        %v6400 = vadd.f32 %v6396, %v6399
        %vm6401 = vweird.f32 %v6238
        %vm6402 = vweird.f32 %v6396
        %vm6403 = vmor %vm6401, %vm6402
        %v6404 = vsel %vm6403, %v6396, %v6400
        %v6405 = vand.u32 2147483647, %v6238
        %vm6406 = vcmp.eq.f32.partialorder %v6405, 8.507059e+37
        %v6407 = vand.u32 %v6238, 2147483648
        %v6408 = vor.u32 1.1754944e-38, %v6407
        %v6409 = vsel %vm6406, %v6408, %v6404
        %v6410 = vmul.f32 1.0, %v6409
        %v6411 = vrcp.pop %v6239
        %v6412 = vmul.f32 %v6239, %v6411
        %v6413 = vsub.f32 1.0, %v6412
        %v6414 = vmul.f32 %v6411, %v6413
        %v6415 = vadd.f32 %v6411, %v6414
        %vm6416 = vweird.f32 %v6239
        %vm6417 = vweird.f32 %v6411
        %vm6418 = vmor %vm6416, %vm6417
        %v6419 = vsel %vm6418, %v6411, %v6415
        %v6420 = vand.u32 2147483647, %v6239
        %vm6421 = vcmp.eq.f32.partialorder %v6420, 8.507059e+37
        %v6422 = vand.u32 %v6239, 2147483648
        %v6423 = vor.u32 1.1754944e-38, %v6422
        %v6424 = vsel %vm6421, %v6423, %v6419
        %v6425 = vmul.f32 1.0, %v6424
        %v6426 = vrcp.pop %v6240
        %v6427 = vmul.f32 %v6240, %v6426
        %v6428 = vsub.f32 1.0, %v6427
        %v6429 = vmul.f32 %v6426, %v6428
        %v6430 = vadd.f32 %v6426, %v6429
        %vm6431 = vweird.f32 %v6240
        %vm6432 = vweird.f32 %v6426
        %vm6433 = vmor %vm6431, %vm6432
        %v6434 = vsel %vm6433, %v6426, %v6430
        %v6435 = vand.u32 2147483647, %v6240
        %vm6436 = vcmp.eq.f32.partialorder %v6435, 8.507059e+37
        %v6437 = vand.u32 %v6240, 2147483648
        %v6438 = vor.u32 1.1754944e-38, %v6437
        %v6439 = vsel %vm6436, %v6438, %v6434
        %v6440 = vmul.f32 1.0, %v6439
        %v6441 = vrcp.pop %v6241
        %v6442 = vmul.f32 %v6241, %v6441
        %v6443 = vsub.f32 1.0, %v6442
        %v6444 = vmul.f32 %v6441, %v6443
        %v6445 = vadd.f32 %v6441, %v6444
        %vm6446 = vweird.f32 %v6241
        %vm6447 = vweird.f32 %v6441
        %vm6448 = vmor %vm6446, %vm6447
        %v6449 = vsel %vm6448, %v6441, %v6445
        %v6450 = vand.u32 2147483647, %v6241
        %vm6451 = vcmp.eq.f32.partialorder %v6450, 8.507059e+37
        %v6452 = vand.u32 %v6241, 2147483648
        %v6453 = vor.u32 1.1754944e-38, %v6452
        %v6454 = vsel %vm6451, %v6453, %v6449
        %v6455 = vmul.f32 1.0, %v6454
        %v6456 = vrcp.pop %v6242
        %v6457 = vmul.f32 %v6242, %v6456
        %v6458 = vsub.f32 1.0, %v6457
        %v6459 = vmul.f32 %v6456, %v6458
        %v6460 = vadd.f32 %v6456, %v6459
        %vm6461 = vweird.f32 %v6242
        %vm6462 = vweird.f32 %v6456
        %vm6463 = vmor %vm6461, %vm6462
        %v6464 = vsel %vm6463, %v6456, %v6460
        %v6465 = vand.u32 2147483647, %v6242
        %vm6466 = vcmp.eq.f32.partialorder %v6465, 8.507059e+37
        %v6467 = vand.u32 %v6242, 2147483648
        %v6468 = vor.u32 1.1754944e-38, %v6467
        %v6469 = vsel %vm6466, %v6468, %v6464
        %v6470 = vmul.f32 1.0, %v6469
        %v6471 = vrcp.pop %v6243
        %v6472 = vmul.f32 %v6243, %v6471
        %v6473 = vsub.f32 1.0, %v6472
        %v6474 = vmul.f32 %v6471, %v6473
        %v6475 = vadd.f32 %v6471, %v6474
        %vm6476 = vweird.f32 %v6243
        %vm6477 = vweird.f32 %v6471
        %vm6478 = vmor %vm6476, %vm6477
        %v6479 = vsel %vm6478, %v6471, %v6475
        %v6480 = vand.u32 2147483647, %v6243
        %vm6481 = vcmp.eq.f32.partialorder %v6480, 8.507059e+37
        %v6482 = vand.u32 %v6243, 2147483648
        %v6483 = vor.u32 1.1754944e-38, %v6482
        %v6484 = vsel %vm6481, %v6483, %v6479
        %v6485 = vmul.f32 1.0, %v6484
        %v6486 = vrcp.pop %v6244
        %v6487 = vmul.f32 %v6244, %v6486
        %v6488 = vsub.f32 1.0, %v6487
        %v6489 = vmul.f32 %v6486, %v6488
        %v6490 = vadd.f32 %v6486, %v6489
        %vm6491 = vweird.f32 %v6244
        %vm6492 = vweird.f32 %v6486
        %vm6493 = vmor %vm6491, %vm6492
        %v6494 = vsel %vm6493, %v6486, %v6490
        %v6495 = vand.u32 2147483647, %v6244
        %vm6496 = vcmp.eq.f32.partialorder %v6495, 8.507059e+37
        %v6497 = vand.u32 %v6244, 2147483648
        %v6498 = vor.u32 1.1754944e-38, %v6497
        %v6499 = vsel %vm6496, %v6498, %v6494
        %v6500 = vmul.f32 1.0, %v6499
        %v6501 = vrcp.pop %v6245
        %v6502 = vmul.f32 %v6245, %v6501
        %v6503 = vsub.f32 1.0, %v6502
        %v6504 = vmul.f32 %v6501, %v6503
        %v6505 = vadd.f32 %v6501, %v6504
        %vm6506 = vweird.f32 %v6245
        %vm6507 = vweird.f32 %v6501
        %vm6508 = vmor %vm6506, %vm6507
        %v6509 = vsel %vm6508, %v6501, %v6505
        %v6510 = vand.u32 2147483647, %v6245
        %vm6511 = vcmp.eq.f32.partialorder %v6510, 8.507059e+37
        %v6512 = vand.u32 %v6245, 2147483648
        %v6513 = vor.u32 1.1754944e-38, %v6512
        %v6514 = vsel %vm6511, %v6513, %v6509
        %v6515 = vmul.f32 1.0, %v6514
        %v6516 = vrcp.pop %v6246
        %v6517 = vmul.f32 %v6246, %v6516
        %v6518 = vsub.f32 1.0, %v6517
        %v6519 = vmul.f32 %v6516, %v6518
        %v6520 = vadd.f32 %v6516, %v6519
        %vm6521 = vweird.f32 %v6246
        %vm6522 = vweird.f32 %v6516
        %vm6523 = vmor %vm6521, %vm6522
        %v6524 = vsel %vm6523, %v6516, %v6520
        %v6525 = vand.u32 2147483647, %v6246
        %vm6526 = vcmp.eq.f32.partialorder %v6525, 8.507059e+37
        %v6527 = vand.u32 %v6246, 2147483648
        %v6528 = vor.u32 1.1754944e-38, %v6527
        %v6529 = vsel %vm6526, %v6528, %v6524
        %v6530 = vmul.f32 1.0, %v6529
        %v6531 = vrcp.pop %v6247
        %v6532 = vmul.f32 %v6247, %v6531
        %v6533 = vsub.f32 1.0, %v6532
        %v6534 = vmul.f32 %v6531, %v6533
        %v6535 = vadd.f32 %v6531, %v6534
        %vm6536 = vweird.f32 %v6247
        %vm6537 = vweird.f32 %v6531
        %vm6538 = vmor %vm6536, %vm6537
        %v6539 = vsel %vm6538, %v6531, %v6535
        %v6540 = vand.u32 2147483647, %v6247
        %vm6541 = vcmp.eq.f32.partialorder %v6540, 8.507059e+37
        %v6542 = vand.u32 %v6247, 2147483648
        %v6543 = vor.u32 1.1754944e-38, %v6542
        %v6544 = vsel %vm6541, %v6543, %v6539
        %v6545 = vmul.f32 1.0, %v6544
        %v6546 = vrcp.pop %v6248
        %v6547 = vmul.f32 %v6248, %v6546
        %v6548 = vsub.f32 1.0, %v6547
        %v6549 = vmul.f32 %v6546, %v6548
        %v6550 = vadd.f32 %v6546, %v6549
        %vm6551 = vweird.f32 %v6248
        %vm6552 = vweird.f32 %v6546
        %vm6553 = vmor %vm6551, %vm6552
        %v6554 = vsel %vm6553, %v6546, %v6550
        %v6555 = vand.u32 2147483647, %v6248
        %vm6556 = vcmp.eq.f32.partialorder %v6555, 8.507059e+37
        %v6557 = vand.u32 %v6248, 2147483648
        %v6558 = vor.u32 1.1754944e-38, %v6557
        %v6559 = vsel %vm6556, %v6558, %v6554
        %v6560 = vmul.f32 1.0, %v6559
        %v6561 = vrcp.pop %v6249
        %v6562 = vmul.f32 %v6249, %v6561
        %v6563 = vsub.f32 1.0, %v6562
        %v6564 = vmul.f32 %v6561, %v6563
        %v6565 = vadd.f32 %v6561, %v6564
        %vm6566 = vweird.f32 %v6249
        %vm6567 = vweird.f32 %v6561
        %vm6568 = vmor %vm6566, %vm6567
        %v6569 = vsel %vm6568, %v6561, %v6565
        %v6570 = vand.u32 2147483647, %v6249
        %vm6571 = vcmp.eq.f32.partialorder %v6570, 8.507059e+37
        %v6572 = vand.u32 %v6249, 2147483648
        %v6573 = vor.u32 1.1754944e-38, %v6572
        %v6574 = vsel %vm6571, %v6573, %v6569
        %v6575 = vmul.f32 1.0, %v6574
        %v6576 = vrcp.pop %v6250
        %v6577 = vmul.f32 %v6250, %v6576
        %v6578 = vsub.f32 1.0, %v6577
        %v6579 = vmul.f32 %v6576, %v6578
        %v6580 = vadd.f32 %v6576, %v6579
        %vm6581 = vweird.f32 %v6250
        %vm6582 = vweird.f32 %v6576
        %vm6583 = vmor %vm6581, %vm6582
        %v6584 = vsel %vm6583, %v6576, %v6580
        %v6585 = vand.u32 2147483647, %v6250
        %vm6586 = vcmp.eq.f32.partialorder %v6585, 8.507059e+37
        %v6587 = vand.u32 %v6250, 2147483648
        %v6588 = vor.u32 1.1754944e-38, %v6587
        %v6589 = vsel %vm6586, %v6588, %v6584
        %v6590 = vmul.f32 1.0, %v6589
        %v6591 = vrcp.pop %v6251
        %v6592 = vmul.f32 %v6251, %v6591
        %v6593 = vsub.f32 1.0, %v6592
        %v6594 = vmul.f32 %v6591, %v6593
        %v6595 = vadd.f32 %v6591, %v6594
        %vm6596 = vweird.f32 %v6251
        %vm6597 = vweird.f32 %v6591
        %vm6598 = vmor %vm6596, %vm6597
        %v6599 = vsel %vm6598, %v6591, %v6595
        %v6600 = vand.u32 2147483647, %v6251
        %vm6601 = vcmp.eq.f32.partialorder %v6600, 8.507059e+37
        %v6602 = vand.u32 %v6251, 2147483648
        %v6603 = vor.u32 1.1754944e-38, %v6602
        %v6604 = vsel %vm6601, %v6603, %v6599
        %v6605 = vmul.f32 1.0, %v6604
        %v6606 = vrcp.pop %v6252
        %v6607 = vmul.f32 %v6252, %v6606
        %v6608 = vsub.f32 1.0, %v6607
        %v6609 = vmul.f32 %v6606, %v6608
        %v6610 = vadd.f32 %v6606, %v6609
        %vm6611 = vweird.f32 %v6252
        %vm6612 = vweird.f32 %v6606
        %vm6613 = vmor %vm6611, %vm6612
        %v6614 = vsel %vm6613, %v6606, %v6610
        %v6615 = vand.u32 2147483647, %v6252
        %vm6616 = vcmp.eq.f32.partialorder %v6615, 8.507059e+37
        %v6617 = vand.u32 %v6252, 2147483648
        %v6618 = vor.u32 1.1754944e-38, %v6617
        %v6619 = vsel %vm6616, %v6618, %v6614
        %v6620 = vmul.f32 1.0, %v6619
        %v6621 = vrcp.pop %v6253
        %v6622 = vmul.f32 %v6253, %v6621
        %v6623 = vsub.f32 1.0, %v6622
        %v6624 = vmul.f32 %v6621, %v6623
        %v6625 = vadd.f32 %v6621, %v6624
        %vm6626 = vweird.f32 %v6253
        %vm6627 = vweird.f32 %v6621
        %vm6628 = vmor %vm6626, %vm6627
        %v6629 = vsel %vm6628, %v6621, %v6625
        %v6630 = vand.u32 2147483647, %v6253
        %vm6631 = vcmp.eq.f32.partialorder %v6630, 8.507059e+37
        %v6632 = vand.u32 %v6253, 2147483648
        %v6633 = vor.u32 1.1754944e-38, %v6632
        %v6634 = vsel %vm6631, %v6633, %v6629
        %v6635 = vmul.f32 1.0, %v6634
        %v6636 = vrcp.pop %v6254
        %v6637 = vmul.f32 %v6254, %v6636
        %v6638 = vsub.f32 1.0, %v6637
        %v6639 = vmul.f32 %v6636, %v6638
        %v6640 = vadd.f32 %v6636, %v6639
        %vm6641 = vweird.f32 %v6254
        %vm6642 = vweird.f32 %v6636
        %vm6643 = vmor %vm6641, %vm6642
        %v6644 = vsel %vm6643, %v6636, %v6640
        %v6645 = vand.u32 2147483647, %v6254
        %vm6646 = vcmp.eq.f32.partialorder %v6645, 8.507059e+37
        %v6647 = vand.u32 %v6254, 2147483648
        %v6648 = vor.u32 1.1754944e-38, %v6647
        %v6649 = vsel %vm6646, %v6648, %v6644
        %v6650 = vmul.f32 1.0, %v6649
        %v6651 = vrcp.pop %v6255
        %v6652 = vmul.f32 %v6255, %v6651
        %v6653 = vsub.f32 1.0, %v6652
        %v6654 = vmul.f32 %v6651, %v6653
        %v6655 = vadd.f32 %v6651, %v6654
        %vm6656 = vweird.f32 %v6255
        %vm6657 = vweird.f32 %v6651
        %vm6658 = vmor %vm6656, %vm6657
        %v6659 = vsel %vm6658, %v6651, %v6655
        %v6660 = vand.u32 2147483647, %v6255
        %vm6661 = vcmp.eq.f32.partialorder %v6660, 8.507059e+37
        %v6662 = vand.u32 %v6255, 2147483648
        %v6663 = vor.u32 1.1754944e-38, %v6662
        %v6664 = vsel %vm6661, %v6663, %v6659
        %v6665 = vmul.f32 1.0, %v6664
        %v6666 = vrcp.pop %v6256
        %v6667 = vmul.f32 %v6256, %v6666
        %v6668 = vsub.f32 1.0, %v6667
        %v6669 = vmul.f32 %v6666, %v6668
        %v6670 = vadd.f32 %v6666, %v6669
        %vm6671 = vweird.f32 %v6256
        %vm6672 = vweird.f32 %v6666
        %vm6673 = vmor %vm6671, %vm6672
        %v6674 = vsel %vm6673, %v6666, %v6670
        %v6675 = vand.u32 2147483647, %v6256
        %vm6676 = vcmp.eq.f32.partialorder %v6675, 8.507059e+37
        %v6677 = vand.u32 %v6256, 2147483648
        %v6678 = vor.u32 1.1754944e-38, %v6677
        %v6679 = vsel %vm6676, %v6678, %v6674
        %v6680 = vmul.f32 1.0, %v6679
        %v6681 = vrcp.pop %v6257
        %v6682 = vmul.f32 %v6257, %v6681
        %v6683 = vsub.f32 1.0, %v6682
        %v6684 = vmul.f32 %v6681, %v6683
        %v6685 = vadd.f32 %v6681, %v6684
        %vm6686 = vweird.f32 %v6257
        %vm6687 = vweird.f32 %v6681
        %vm6688 = vmor %vm6686, %vm6687
        %v6689 = vsel %vm6688, %v6681, %v6685
        %v6690 = vand.u32 2147483647, %v6257
        %vm6691 = vcmp.eq.f32.partialorder %v6690, 8.507059e+37
        %v6692 = vand.u32 %v6257, 2147483648
        %v6693 = vor.u32 1.1754944e-38, %v6692
        %v6694 = vsel %vm6691, %v6693, %v6689
        %v6695 = vmul.f32 1.0, %v6694
        %v6696 = vrcp.pop %v6258
        %v6697 = vmul.f32 %v6258, %v6696
        %v6698 = vsub.f32 1.0, %v6697
        %v6699 = vmul.f32 %v6696, %v6698
        %v6700 = vadd.f32 %v6696, %v6699
        %vm6701 = vweird.f32 %v6258
        %vm6702 = vweird.f32 %v6696
        %vm6703 = vmor %vm6701, %vm6702
        %v6704 = vsel %vm6703, %v6696, %v6700
        %v6705 = vand.u32 2147483647, %v6258
        %vm6706 = vcmp.eq.f32.partialorder %v6705, 8.507059e+37
        %v6707 = vand.u32 %v6258, 2147483648
        %v6708 = vor.u32 1.1754944e-38, %v6707
        %v6709 = vsel %vm6706, %v6708, %v6704
        %v6710 = vmul.f32 1.0, %v6709
        %v6711 = vrcp.pop %v6259
        %v6712 = vmul.f32 %v6259, %v6711
        %v6713 = vsub.f32 1.0, %v6712
        %v6714 = vmul.f32 %v6711, %v6713
        %v6715 = vadd.f32 %v6711, %v6714
        %vm6716 = vweird.f32 %v6259
        %vm6717 = vweird.f32 %v6711
        %vm6718 = vmor %vm6716, %vm6717
        %v6719 = vsel %vm6718, %v6711, %v6715
        %v6720 = vand.u32 2147483647, %v6259
        %vm6721 = vcmp.eq.f32.partialorder %v6720, 8.507059e+37
        %v6722 = vand.u32 %v6259, 2147483648
        %v6723 = vor.u32 1.1754944e-38, %v6722
        %v6724 = vsel %vm6721, %v6723, %v6719
        %v6725 = vmul.f32 1.0, %v6724
        %v6726 = vrcp.pop %v6260
        %v6727 = vmul.f32 %v6260, %v6726
        %v6728 = vsub.f32 1.0, %v6727
        %v6729 = vmul.f32 %v6726, %v6728
        %v6730 = vadd.f32 %v6726, %v6729
        %vm6731 = vweird.f32 %v6260
        %vm6732 = vweird.f32 %v6726
        %vm6733 = vmor %vm6731, %vm6732
        %v6734 = vsel %vm6733, %v6726, %v6730
        %v6735 = vand.u32 2147483647, %v6260
        %vm6736 = vcmp.eq.f32.partialorder %v6735, 8.507059e+37
        %v6737 = vand.u32 %v6260, 2147483648
        %v6738 = vor.u32 1.1754944e-38, %v6737
        %v6739 = vsel %vm6736, %v6738, %v6734
        %v6740 = vmul.f32 1.0, %v6739
        %v6741 = vmul.f32 %v3153, %v6275
        %v6742 = vmul.f32 %v3240, %v6290
        %v6743 = vmul.f32 %v3327, %v6305
        %v6744 = vmul.f32 %v3414, %v6320
        %v6745 = vmul.f32 %v3155, %v6335
        %v6746 = vmul.f32 %v3242, %v6350
        %v6747 = vmul.f32 %v3329, %v6365
        %v6748 = vmul.f32 %v3416, %v6380
        %v6749 = vmul.f32 %v3158, %v6395
        %v6750 = vmul.f32 %v3245, %v6410
        %v6751 = vmul.f32 %v3332, %v6425
        %v6752 = vmul.f32 %v3419, %v6440
        %v6753 = vmul.f32 %v3160, %v6455
        %v6754 = vmul.f32 %v3247, %v6470
        %v6755 = vmul.f32 %v3334, %v6485
        %v6756 = vmul.f32 %v3421, %v6500
        %v6757 = vmul.f32 %v3163, %v6515
        %v6758 = vmul.f32 %v3250, %v6530
        %v6759 = vmul.f32 %v3337, %v6545
        %v6760 = vmul.f32 %v3424, %v6560
        %v6761 = vmul.f32 %v3165, %v6575
        %v6762 = vmul.f32 %v3252, %v6590
        %v6763 = vmul.f32 %v3339, %v6605
        %v6764 = vmul.f32 %v3426, %v6620
        %v6765 = vmul.f32 %v3168, %v6635
        %v6766 = vmul.f32 %v3255, %v6650
        %v6767 = vmul.f32 %v3342, %v6665
        %v6768 = vmul.f32 %v3429, %v6680
        %v6769 = vmul.f32 %v3170, %v6695
        %v6770 = vmul.f32 %v3257, %v6710
        %v6771 = vmul.f32 %v3344, %v6725
        %v6772 = vmul.f32 %v3431, %v6740
        %vm6773 = vcmp.ge.f32.partialorder %v6741, 0.0
        %vm6774 = vcmp.ge.f32.partialorder %v6742, 0.0
        %vm6775 = vcmp.ge.f32.partialorder %v6743, 0.0
        %vm6776 = vcmp.ge.f32.partialorder %v6744, 0.0
        %vm6777 = vcmp.ge.f32.partialorder %v6745, 0.0
        %vm6778 = vcmp.ge.f32.partialorder %v6746, 0.0
        %vm6779 = vcmp.ge.f32.partialorder %v6747, 0.0
        %vm6780 = vcmp.ge.f32.partialorder %v6748, 0.0
        %vm6781 = vcmp.ge.f32.partialorder %v6749, 0.0
        %vm6782 = vcmp.ge.f32.partialorder %v6750, 0.0
        %vm6783 = vcmp.ge.f32.partialorder %v6751, 0.0
        %vm6784 = vcmp.ge.f32.partialorder %v6752, 0.0
        %vm6785 = vcmp.ge.f32.partialorder %v6753, 0.0
        %vm6786 = vcmp.ge.f32.partialorder %v6754, 0.0
        %vm6787 = vcmp.ge.f32.partialorder %v6755, 0.0
        %vm6788 = vcmp.ge.f32.partialorder %v6756, 0.0
        %vm6789 = vcmp.ge.f32.partialorder %v6757, 0.0
        %vm6790 = vcmp.ge.f32.partialorder %v6758, 0.0
        %vm6791 = vcmp.ge.f32.partialorder %v6759, 0.0
        %vm6792 = vcmp.ge.f32.partialorder %v6760, 0.0
        %vm6793 = vcmp.ge.f32.partialorder %v6761, 0.0
        %vm6794 = vcmp.ge.f32.partialorder %v6762, 0.0
        %vm6795 = vcmp.ge.f32.partialorder %v6763, 0.0
        %vm6796 = vcmp.ge.f32.partialorder %v6764, 0.0
        %vm6797 = vcmp.ge.f32.partialorder %v6765, 0.0
        %vm6798 = vcmp.ge.f32.partialorder %v6766, 0.0
        %vm6799 = vcmp.ge.f32.partialorder %v6767, 0.0
        %vm6800 = vcmp.ge.f32.partialorder %v6768, 0.0
        %vm6801 = vcmp.ge.f32.partialorder %v6769, 0.0
        %vm6802 = vcmp.ge.f32.partialorder %v6770, 0.0
        %vm6803 = vcmp.ge.f32.partialorder %v6771, 0.0
        %vm6804 = vcmp.ge.f32.partialorder %v6772, 0.0
        %6805 = vset.pattern.permute.xlu0 6
        %6806 = vperm.xlu0 %6805, %v369
        %v6807 = vpop.permute.xlu0 %6806
        %6809 = vset.pattern.permute.xlu0 6
        %6810 = vperm.xlu0 %6809, %v370
        %v6811 = vpop.permute.xlu0 %6810
        %6813 = vset.pattern.permute.xlu0 6
        %6814 = vperm.xlu0 %6813, %v371
        %v6815 = vpop.permute.xlu0 %6814
        %6817 = vset.pattern.permute.xlu0 6
        %6818 = vperm.xlu0 %6817, %v372
        %v6819 = vpop.permute.xlu0 %6818
        %6821 = vset.pattern.permute.xlu0 6
        %6822 = vperm.xlu0 %6821, %v373
        %v6823 = vpop.permute.xlu0 %6822
        %6825 = vset.pattern.permute.xlu0 6
        %6826 = vperm.xlu0 %6825, %v374
        %v6827 = vpop.permute.xlu0 %6826
        %6829 = vset.pattern.permute.xlu0 6
        %6830 = vperm.xlu0 %6829, %v375
        %v6831 = vpop.permute.xlu0 %6830
        %6833 = vset.pattern.permute.xlu0 6
        %6834 = vperm.xlu0 %6833, %v376
        %v6835 = vpop.permute.xlu0 %6834
        %v6837 = vmul.f32 %v6807, %v6741
        %v6838 = vmul.f32 %v6807, %v6742
        %v6839 = vmul.f32 %v6807, %v6743
        %v6840 = vmul.f32 %v6807, %v6744
        %v6841 = vmul.f32 %v6811, %v6745
        %v6842 = vmul.f32 %v6811, %v6746
        %v6843 = vmul.f32 %v6811, %v6747
        %v6844 = vmul.f32 %v6811, %v6748
        %v6845 = vmul.f32 %v6815, %v6749
        %v6846 = vmul.f32 %v6815, %v6750
        %v6847 = vmul.f32 %v6815, %v6751
        %v6848 = vmul.f32 %v6815, %v6752
        %v6849 = vmul.f32 %v6819, %v6753
        %v6850 = vmul.f32 %v6819, %v6754
        %v6851 = vmul.f32 %v6819, %v6755
        %v6852 = vmul.f32 %v6819, %v6756
        %v6853 = vmul.f32 %v6823, %v6757
        %v6854 = vmul.f32 %v6823, %v6758
        %v6855 = vmul.f32 %v6823, %v6759
        %v6856 = vmul.f32 %v6823, %v6760
        %v6857 = vmul.f32 %v6827, %v6761
        %v6858 = vmul.f32 %v6827, %v6762
        %v6859 = vmul.f32 %v6827, %v6763
        %v6860 = vmul.f32 %v6827, %v6764
        %v6861 = vmul.f32 %v6831, %v6765
        %v6862 = vmul.f32 %v6831, %v6766
        %v6863 = vmul.f32 %v6831, %v6767
        %v6864 = vmul.f32 %v6831, %v6768
        %v6865 = vmul.f32 %v6835, %v6769
        %v6866 = vmul.f32 %v6835, %v6770
        %v6867 = vmul.f32 %v6835, %v6771
        %v6868 = vmul.f32 %v6835, %v6772
        %v6869 = vsel %vm6773, %v6741, %v6837
        %v6870 = vsel %vm6774, %v6742, %v6838
        %v6871 = vsel %vm6775, %v6743, %v6839
        %v6872 = vsel %vm6776, %v6744, %v6840
        %v6873 = vsel %vm6777, %v6745, %v6841
        %v6874 = vsel %vm6778, %v6746, %v6842
        %v6875 = vsel %vm6779, %v6747, %v6843
        %v6876 = vsel %vm6780, %v6748, %v6844
        %v6877 = vsel %vm6781, %v6749, %v6845
        %v6878 = vsel %vm6782, %v6750, %v6846
        %v6879 = vsel %vm6783, %v6751, %v6847
        %v6880 = vsel %vm6784, %v6752, %v6848
        %v6881 = vsel %vm6785, %v6753, %v6849
        %v6882 = vsel %vm6786, %v6754, %v6850
        %v6883 = vsel %vm6787, %v6755, %v6851
        %v6884 = vsel %vm6788, %v6756, %v6852
        %v6885 = vsel %vm6789, %v6757, %v6853
        %v6886 = vsel %vm6790, %v6758, %v6854
        %v6887 = vsel %vm6791, %v6759, %v6855
        %v6888 = vsel %vm6792, %v6760, %v6856
        %v6889 = vsel %vm6793, %v6761, %v6857
        %v6890 = vsel %vm6794, %v6762, %v6858
        %v6891 = vsel %vm6795, %v6763, %v6859
        %v6892 = vsel %vm6796, %v6764, %v6860
        %v6893 = vsel %vm6797, %v6765, %v6861
        %v6894 = vsel %vm6798, %v6766, %v6862
        %v6895 = vsel %vm6799, %v6767, %v6863
        %v6896 = vsel %vm6800, %v6768, %v6864
        %v6897 = vsel %vm6801, %v6769, %v6865
        %v6898 = vsel %vm6802, %v6770, %v6866
        %v6899 = vsel %vm6803, %v6771, %v6867
        %v6900 = vsel %vm6804, %v6772, %v6868
        %6901 = vmatpush.msra.mxu0 %v392
        %6902 = vmatpush.msra.mxu0 %v391
        %6903 = vmatpush.msra.mxu0 %v390
        %6904 = vmatpush.msra.mxu0 %v389
        %6905 = vmatpush.msra.mxu0 %v388
        %6906 = vmatpush.msra.mxu0 %v387
        %6907 = vmatpush.msra.mxu0 %v386
        %6908 = vmatpush.msra.mxu0 %v385
        %6909 = vmatpush.msra.mxu0 %v384
        %6910 = vmatpush.msra.mxu0 %v383
        %6911 = vmatpush.msra.mxu0 %v382
        %6912 = vmatpush.msra.mxu0 %v381
        %6913 = vmatpush.msra.mxu0 %v380
        %6914 = vmatpush.msra.mxu0 %v379
        %6915 = vmatpush.msra.mxu0 %v378
        %6916 = vmatpush.msra.mxu0 %v377
        %6917 = vmatmul.f32.gmra.mxu0 %v6869
        %v6918 = vpop.f32.mrf.mxu0
        %v6919 = vadd.f32 0.0, %v6918
        %6920 = vmatmul.f32.gmra.mxu0 %v6873
        %v6921 = vpop.f32.mrf.mxu0
        %v6922 = vadd.f32 0.0, %v6921
        %6923 = vmatmul.f32.gmra.mxu0 %v6877
        %v6924 = vpop.f32.mrf.mxu0
        %v6925 = vadd.f32 0.0, %v6924
        %6926 = vmatmul.f32.gmra.mxu0 %v6881
        %v6927 = vpop.f32.mrf.mxu0
        %v6928 = vadd.f32 0.0, %v6927
        %6929 = vmatmul.f32.gmra.mxu0 %v6885
        %v6930 = vpop.f32.mrf.mxu0
        %v6931 = vadd.f32 0.0, %v6930
        %6932 = vmatmul.f32.gmra.mxu0 %v6889
        %v6933 = vpop.f32.mrf.mxu0
        %v6934 = vadd.f32 0.0, %v6933
        %6935 = vmatmul.f32.gmra.mxu0 %v6893
        %v6936 = vpop.f32.mrf.mxu0
        %v6937 = vadd.f32 0.0, %v6936
        %6938 = vmatmul.f32.gmra.mxu0 %v6897
        %v6939 = vpop.f32.mrf.mxu0
        %v6940 = vadd.f32 0.0, %v6939
        %6941 = vdwg.mxu0
        %6942 = vmatpush.msra.mxu0 %v408
        %6943 = vmatpush.msra.mxu0 %v407
        %6944 = vmatpush.msra.mxu0 %v406
        %6945 = vmatpush.msra.mxu0 %v405
        %6946 = vmatpush.msra.mxu0 %v404
        %6947 = vmatpush.msra.mxu0 %v403
        %6948 = vmatpush.msra.mxu0 %v402
        %6949 = vmatpush.msra.mxu0 %v401
        %6950 = vmatpush.msra.mxu0 %v400
        %6951 = vmatpush.msra.mxu0 %v399
        %6952 = vmatpush.msra.mxu0 %v398
        %6953 = vmatpush.msra.mxu0 %v397
        %6954 = vmatpush.msra.mxu0 %v396
        %6955 = vmatpush.msra.mxu0 %v395
        %6956 = vmatpush.msra.mxu0 %v394
        %6957 = vmatpush.msra.mxu0 %v393
        %6958 = vmatmul.f32.gmra.mxu0 %v6870
        %v6959 = vpop.f32.mrf.mxu0
        %v6960 = vadd.f32 %v6919, %v6959
        %6961 = vmatmul.f32.gmra.mxu0 %v6874
        %v6962 = vpop.f32.mrf.mxu0
        %v6963 = vadd.f32 %v6922, %v6962
        %6964 = vmatmul.f32.gmra.mxu0 %v6878
        %v6965 = vpop.f32.mrf.mxu0
        %v6966 = vadd.f32 %v6925, %v6965
        %6967 = vmatmul.f32.gmra.mxu0 %v6882
        %v6968 = vpop.f32.mrf.mxu0
        %v6969 = vadd.f32 %v6928, %v6968
        %6970 = vmatmul.f32.gmra.mxu0 %v6886
        %v6971 = vpop.f32.mrf.mxu0
        %v6972 = vadd.f32 %v6931, %v6971
        %6973 = vmatmul.f32.gmra.mxu0 %v6890
        %v6974 = vpop.f32.mrf.mxu0
        %v6975 = vadd.f32 %v6934, %v6974
        %6976 = vmatmul.f32.gmra.mxu0 %v6894
        %v6977 = vpop.f32.mrf.mxu0
        %v6978 = vadd.f32 %v6937, %v6977
        %6979 = vmatmul.f32.gmra.mxu0 %v6898
        %v6980 = vpop.f32.mrf.mxu0
        %v6981 = vadd.f32 %v6940, %v6980
        %6982 = vdwg.mxu0
        %6983 = vmatpush.msra.mxu0 %v424
        %6984 = vmatpush.msra.mxu0 %v423
        %6985 = vmatpush.msra.mxu0 %v422
        %6986 = vmatpush.msra.mxu0 %v421
        %6987 = vmatpush.msra.mxu0 %v420
        %6988 = vmatpush.msra.mxu0 %v419
        %6989 = vmatpush.msra.mxu0 %v418
        %6990 = vmatpush.msra.mxu0 %v417
        %6991 = vmatpush.msra.mxu0 %v416
        %6992 = vmatpush.msra.mxu0 %v415
        %6993 = vmatpush.msra.mxu0 %v414
        %6994 = vmatpush.msra.mxu0 %v413
        %6995 = vmatpush.msra.mxu0 %v412
        %6996 = vmatpush.msra.mxu0 %v411
        %6997 = vmatpush.msra.mxu0 %v410
        %6998 = vmatpush.msra.mxu0 %v409
        %6999 = vmatmul.f32.gmra.mxu0 %v6871
        %v7000 = vpop.f32.mrf.mxu0
        %v7001 = vadd.f32 %v6960, %v7000
        %7002 = vmatmul.f32.gmra.mxu0 %v6875
        %v7003 = vpop.f32.mrf.mxu0
        %v7004 = vadd.f32 %v6963, %v7003
        %7005 = vmatmul.f32.gmra.mxu0 %v6879
        %v7006 = vpop.f32.mrf.mxu0
        %v7007 = vadd.f32 %v6966, %v7006
        %7008 = vmatmul.f32.gmra.mxu0 %v6883
        %v7009 = vpop.f32.mrf.mxu0
        %v7010 = vadd.f32 %v6969, %v7009
        %7011 = vmatmul.f32.gmra.mxu0 %v6887
        %v7012 = vpop.f32.mrf.mxu0
        %v7013 = vadd.f32 %v6972, %v7012
        %7014 = vmatmul.f32.gmra.mxu0 %v6891
        %v7015 = vpop.f32.mrf.mxu0
        %v7016 = vadd.f32 %v6975, %v7015
        %7017 = vmatmul.f32.gmra.mxu0 %v6895
        %v7018 = vpop.f32.mrf.mxu0
        %v7019 = vadd.f32 %v6978, %v7018
        %7020 = vmatmul.f32.gmra.mxu0 %v6899
        %v7021 = vpop.f32.mrf.mxu0
        %v7022 = vadd.f32 %v6981, %v7021
        %7023 = vdwg.mxu0
        %7024 = vmatpush.msra.mxu0 %v440
        %7025 = vmatpush.msra.mxu0 %v439
        %7026 = vmatpush.msra.mxu0 %v438
        %7027 = vmatpush.msra.mxu0 %v437
        %7028 = vmatpush.msra.mxu0 %v436
        %7029 = vmatpush.msra.mxu0 %v435
        %7030 = vmatpush.msra.mxu0 %v434
        %7031 = vmatpush.msra.mxu0 %v433
        %7032 = vmatpush.msra.mxu0 %v432
        %7033 = vmatpush.msra.mxu0 %v431
        %7034 = vmatpush.msra.mxu0 %v430
        %7035 = vmatpush.msra.mxu0 %v429
        %7036 = vmatpush.msra.mxu0 %v428
        %7037 = vmatpush.msra.mxu0 %v427
        %7038 = vmatpush.msra.mxu0 %v426
        %7039 = vmatpush.msra.mxu0 %v425
        %7040 = vmatmul.f32.gmra.mxu0 %v6872
        %v7041 = vpop.f32.mrf.mxu0
        %v7042 = vadd.f32 %v7001, %v7041
        %7043 = vmatmul.f32.gmra.mxu0 %v6876
        %v7044 = vpop.f32.mrf.mxu0
        %v7045 = vadd.f32 %v7004, %v7044
        %7046 = vmatmul.f32.gmra.mxu0 %v6880
        %v7047 = vpop.f32.mrf.mxu0
        %v7048 = vadd.f32 %v7007, %v7047
        %7049 = vmatmul.f32.gmra.mxu0 %v6884
        %v7050 = vpop.f32.mrf.mxu0
        %v7051 = vadd.f32 %v7010, %v7050
        %7052 = vmatmul.f32.gmra.mxu0 %v6888
        %v7053 = vpop.f32.mrf.mxu0
        %v7054 = vadd.f32 %v7013, %v7053
        %7055 = vmatmul.f32.gmra.mxu0 %v6892
        %v7056 = vpop.f32.mrf.mxu0
        %v7057 = vadd.f32 %v7016, %v7056
        %7058 = vmatmul.f32.gmra.mxu0 %v6896
        %v7059 = vpop.f32.mrf.mxu0
        %v7060 = vadd.f32 %v7019, %v7059
        %7061 = vmatmul.f32.gmra.mxu0 %v6900
        %v7062 = vpop.f32.mrf.mxu0
        %v7063 = vadd.f32 %v7022, %v7062
        %7064 = vdwg.mxu0
        %v7065 = vmul.f32 %v6869, %v6869
        %v7066 = vmul.f32 %v6870, %v6870
        %v7067 = vmul.f32 %v6871, %v6871
        %v7068 = vmul.f32 %v6872, %v6872
        %v7069 = vmul.f32 %v6873, %v6873
        %v7070 = vmul.f32 %v6874, %v6874
        %v7071 = vmul.f32 %v6875, %v6875
        %v7072 = vmul.f32 %v6876, %v6876
        %v7073 = vmul.f32 %v6877, %v6877
        %v7074 = vmul.f32 %v6878, %v6878
        %v7075 = vmul.f32 %v6879, %v6879
        %v7076 = vmul.f32 %v6880, %v6880
        %v7077 = vmul.f32 %v6881, %v6881
        %v7078 = vmul.f32 %v6882, %v6882
        %v7079 = vmul.f32 %v6883, %v6883
        %v7080 = vmul.f32 %v6884, %v6884
        %v7081 = vmul.f32 %v6885, %v6885
        %v7082 = vmul.f32 %v6886, %v6886
        %v7083 = vmul.f32 %v6887, %v6887
        %v7084 = vmul.f32 %v6888, %v6888
        %v7085 = vmul.f32 %v6889, %v6889
        %v7086 = vmul.f32 %v6890, %v6890
        %v7087 = vmul.f32 %v6891, %v6891
        %v7088 = vmul.f32 %v6892, %v6892
        %v7089 = vmul.f32 %v6893, %v6893
        %v7090 = vmul.f32 %v6894, %v6894
        %v7091 = vmul.f32 %v6895, %v6895
        %v7092 = vmul.f32 %v6896, %v6896
        %v7093 = vmul.f32 %v6897, %v6897
        %v7094 = vmul.f32 %v6898, %v6898
        %v7095 = vmul.f32 %v6899, %v6899
        %v7096 = vmul.f32 %v6900, %v6900
        %7097 = vmatpush.msra.mxu0 %v392
        %7098 = vmatpush.msra.mxu0 %v391
        %7099 = vmatpush.msra.mxu0 %v390
        %7100 = vmatpush.msra.mxu0 %v389
        %7101 = vmatpush.msra.mxu0 %v388
        %7102 = vmatpush.msra.mxu0 %v387
        %7103 = vmatpush.msra.mxu0 %v386
        %7104 = vmatpush.msra.mxu0 %v385
        %7105 = vmatpush.msra.mxu0 %v384
        %7106 = vmatpush.msra.mxu0 %v383
        %7107 = vmatpush.msra.mxu0 %v382
        %7108 = vmatpush.msra.mxu0 %v381
        %7109 = vmatpush.msra.mxu0 %v380
        %7110 = vmatpush.msra.mxu0 %v379
        %7111 = vmatpush.msra.mxu0 %v378
        %7112 = vmatpush.msra.mxu0 %v377
        %7113 = vmatmul.f32.gmra.mxu0 %v7065
        %v7114 = vpop.f32.mrf.mxu0
        %v7115 = vadd.f32 0.0, %v7114
        %7116 = vmatmul.f32.gmra.mxu0 %v7069
        %v7117 = vpop.f32.mrf.mxu0
        %v7118 = vadd.f32 0.0, %v7117
        %7119 = vmatmul.f32.gmra.mxu0 %v7073
        %v7120 = vpop.f32.mrf.mxu0
        %v7121 = vadd.f32 0.0, %v7120
        %7122 = vmatmul.f32.gmra.mxu0 %v7077
        %v7123 = vpop.f32.mrf.mxu0
        %v7124 = vadd.f32 0.0, %v7123
        %7125 = vmatmul.f32.gmra.mxu0 %v7081
        %v7126 = vpop.f32.mrf.mxu0
        %v7127 = vadd.f32 0.0, %v7126
        %7128 = vmatmul.f32.gmra.mxu0 %v7085
        %v7129 = vpop.f32.mrf.mxu0
        %v7130 = vadd.f32 0.0, %v7129
        %7131 = vmatmul.f32.gmra.mxu0 %v7089
        %v7132 = vpop.f32.mrf.mxu0
        %v7133 = vadd.f32 0.0, %v7132
        %7134 = vmatmul.f32.gmra.mxu0 %v7093
        %v7135 = vpop.f32.mrf.mxu0
        %v7136 = vadd.f32 0.0, %v7135
        %7137 = vdwg.mxu0
        %7138 = vmatpush.msra.mxu0 %v408
        %7139 = vmatpush.msra.mxu0 %v407
        %7140 = vmatpush.msra.mxu0 %v406
        %7141 = vmatpush.msra.mxu0 %v405
        %7142 = vmatpush.msra.mxu0 %v404
        %7143 = vmatpush.msra.mxu0 %v403
        %7144 = vmatpush.msra.mxu0 %v402
        %7145 = vmatpush.msra.mxu0 %v401
        %7146 = vmatpush.msra.mxu0 %v400
        %7147 = vmatpush.msra.mxu0 %v399
        %7148 = vmatpush.msra.mxu0 %v398
        %7149 = vmatpush.msra.mxu0 %v397
        %7150 = vmatpush.msra.mxu0 %v396
        %7151 = vmatpush.msra.mxu0 %v395
        %7152 = vmatpush.msra.mxu0 %v394
        %7153 = vmatpush.msra.mxu0 %v393
        %7154 = vmatmul.f32.gmra.mxu0 %v7066
        %v7155 = vpop.f32.mrf.mxu0
        %v7156 = vadd.f32 %v7115, %v7155
        %7157 = vmatmul.f32.gmra.mxu0 %v7070
        %v7158 = vpop.f32.mrf.mxu0
        %v7159 = vadd.f32 %v7118, %v7158
        %7160 = vmatmul.f32.gmra.mxu0 %v7074
        %v7161 = vpop.f32.mrf.mxu0
        %v7162 = vadd.f32 %v7121, %v7161
        %7163 = vmatmul.f32.gmra.mxu0 %v7078
        %v7164 = vpop.f32.mrf.mxu0
        %v7165 = vadd.f32 %v7124, %v7164
        %7166 = vmatmul.f32.gmra.mxu0 %v7082
        %v7167 = vpop.f32.mrf.mxu0
        %v7168 = vadd.f32 %v7127, %v7167
        %7169 = vmatmul.f32.gmra.mxu0 %v7086
        %v7170 = vpop.f32.mrf.mxu0
        %v7171 = vadd.f32 %v7130, %v7170
        %7172 = vmatmul.f32.gmra.mxu0 %v7090
        %v7173 = vpop.f32.mrf.mxu0
        %v7174 = vadd.f32 %v7133, %v7173
        %7175 = vmatmul.f32.gmra.mxu0 %v7094
        %v7176 = vpop.f32.mrf.mxu0
        %v7177 = vadd.f32 %v7136, %v7176
        %7178 = vdwg.mxu0
        %7179 = vmatpush.msra.mxu0 %v424
        %7180 = vmatpush.msra.mxu0 %v423
        %7181 = vmatpush.msra.mxu0 %v422
        %7182 = vmatpush.msra.mxu0 %v421
        %7183 = vmatpush.msra.mxu0 %v420
        %7184 = vmatpush.msra.mxu0 %v419
        %7185 = vmatpush.msra.mxu0 %v418
        %7186 = vmatpush.msra.mxu0 %v417
        %7187 = vmatpush.msra.mxu0 %v416
        %7188 = vmatpush.msra.mxu0 %v415
        %7189 = vmatpush.msra.mxu0 %v414
        %7190 = vmatpush.msra.mxu0 %v413
        %7191 = vmatpush.msra.mxu0 %v412
        %7192 = vmatpush.msra.mxu0 %v411
        %7193 = vmatpush.msra.mxu0 %v410
        %7194 = vmatpush.msra.mxu0 %v409
        %7195 = vmatmul.f32.gmra.mxu0 %v7067
        %v7196 = vpop.f32.mrf.mxu0
        %v7197 = vadd.f32 %v7156, %v7196
        %7198 = vmatmul.f32.gmra.mxu0 %v7071
        %v7199 = vpop.f32.mrf.mxu0
        %v7200 = vadd.f32 %v7159, %v7199
        %7201 = vmatmul.f32.gmra.mxu0 %v7075
        %v7202 = vpop.f32.mrf.mxu0
        %v7203 = vadd.f32 %v7162, %v7202
        %7204 = vmatmul.f32.gmra.mxu0 %v7079
        %v7205 = vpop.f32.mrf.mxu0
        %v7206 = vadd.f32 %v7165, %v7205
        %7207 = vmatmul.f32.gmra.mxu0 %v7083
        %v7208 = vpop.f32.mrf.mxu0
        %v7209 = vadd.f32 %v7168, %v7208
        %7210 = vmatmul.f32.gmra.mxu0 %v7087
        %v7211 = vpop.f32.mrf.mxu0
        %v7212 = vadd.f32 %v7171, %v7211
        %7213 = vmatmul.f32.gmra.mxu0 %v7091
        %v7214 = vpop.f32.mrf.mxu0
        %v7215 = vadd.f32 %v7174, %v7214
        %7216 = vmatmul.f32.gmra.mxu0 %v7095
        %v7217 = vpop.f32.mrf.mxu0
        %v7218 = vadd.f32 %v7177, %v7217
        %7219 = vdwg.mxu0
        %7220 = vmatpush.msra.mxu0 %v440
        %7221 = vmatpush.msra.mxu0 %v439
        %7222 = vmatpush.msra.mxu0 %v438
        %7223 = vmatpush.msra.mxu0 %v437
        %7224 = vmatpush.msra.mxu0 %v436
        %7225 = vmatpush.msra.mxu0 %v435
        %7226 = vmatpush.msra.mxu0 %v434
        %7227 = vmatpush.msra.mxu0 %v433
        %7228 = vmatpush.msra.mxu0 %v432
        %7229 = vmatpush.msra.mxu0 %v431
        %7230 = vmatpush.msra.mxu0 %v430
        %7231 = vmatpush.msra.mxu0 %v429
        %7232 = vmatpush.msra.mxu0 %v428
        %7233 = vmatpush.msra.mxu0 %v427
        %7234 = vmatpush.msra.mxu0 %v426
        %7235 = vmatpush.msra.mxu0 %v425
        %7236 = vmatmul.f32.gmra.mxu0 %v7068
        %v7237 = vpop.f32.mrf.mxu0
        %v7238 = vadd.f32 %v7197, %v7237
        %7239 = vmatmul.f32.gmra.mxu0 %v7072
        %v7240 = vpop.f32.mrf.mxu0
        %v7241 = vadd.f32 %v7200, %v7240
        %7242 = vmatmul.f32.gmra.mxu0 %v7076
        %v7243 = vpop.f32.mrf.mxu0
        %v7244 = vadd.f32 %v7203, %v7243
        %7245 = vmatmul.f32.gmra.mxu0 %v7080
        %v7246 = vpop.f32.mrf.mxu0
        %v7247 = vadd.f32 %v7206, %v7246
        %7248 = vmatmul.f32.gmra.mxu0 %v7084
        %v7249 = vpop.f32.mrf.mxu0
        %v7250 = vadd.f32 %v7209, %v7249
        %7251 = vmatmul.f32.gmra.mxu0 %v7088
        %v7252 = vpop.f32.mrf.mxu0
        %v7253 = vadd.f32 %v7212, %v7252
        %7254 = vmatmul.f32.gmra.mxu0 %v7092
        %v7255 = vpop.f32.mrf.mxu0
        %v7256 = vadd.f32 %v7215, %v7255
        %7257 = vmatmul.f32.gmra.mxu0 %v7096
        %v7258 = vpop.f32.mrf.mxu0
        %v7259 = vadd.f32 %v7218, %v7258
        %7260 = vdwg.mxu0
        %v7261 = vmul.f32 %v7042, 0.0078125
        %v7262 = vmul.f32 %v7045, 0.0078125
        %v7263 = vmul.f32 %v7048, 0.0078125
        %v7264 = vmul.f32 %v7051, 0.0078125
        %v7265 = vmul.f32 %v7054, 0.0078125
        %v7266 = vmul.f32 %v7057, 0.0078125
        %v7267 = vmul.f32 %v7060, 0.0078125
        %v7268 = vmul.f32 %v7063, 0.0078125
        %v7269 = vmul.f32 %v7238, 0.0078125
        %v7270 = vmul.f32 %v7241, 0.0078125
        %v7271 = vmul.f32 %v7244, 0.0078125
        %v7272 = vmul.f32 %v7247, 0.0078125
        %v7273 = vmul.f32 %v7250, 0.0078125
        %v7274 = vmul.f32 %v7253, 0.0078125
        %v7275 = vmul.f32 %v7256, 0.0078125
        %v7276 = vmul.f32 %v7259, 0.0078125
        %v7277 = vmul.f32 %v7261, %v7261
        %v7278 = vmul.f32 %v7262, %v7262
        %v7279 = vmul.f32 %v7263, %v7263
        %v7280 = vmul.f32 %v7264, %v7264
        %v7281 = vmul.f32 %v7265, %v7265
        %v7282 = vmul.f32 %v7266, %v7266
        %v7283 = vmul.f32 %v7267, %v7267
        %v7284 = vmul.f32 %v7268, %v7268
        %v7285 = vsub.f32 %v7269, %v7277
        %v7286 = vsub.f32 %v7270, %v7278
        %v7287 = vsub.f32 %v7271, %v7279
        %v7288 = vsub.f32 %v7272, %v7280
        %v7289 = vsub.f32 %v7273, %v7281
        %v7290 = vsub.f32 %v7274, %v7282
        %v7291 = vsub.f32 %v7275, %v7283
        %v7292 = vsub.f32 %v7276, %v7284
        %v7293 = vmax.f32 %v7285, 0.0
        %v7294 = vmax.f32 %v7286, 0.0
        %v7295 = vmax.f32 %v7287, 0.0
        %v7296 = vmax.f32 %v7288, 0.0
        %v7297 = vmax.f32 %v7289, 0.0
        %v7298 = vmax.f32 %v7290, 0.0
        %v7299 = vmax.f32 %v7291, 0.0
        %v7300 = vmax.f32 %v7292, 0.0
        %v7301 = vadd.f32 %v7293, 1e-05
        %v7302 = vadd.f32 %v7294, 1e-05
        %v7303 = vadd.f32 %v7295, 1e-05
        %v7304 = vadd.f32 %v7296, 1e-05
        %v7305 = vadd.f32 %v7297, 1e-05
        %v7306 = vadd.f32 %v7298, 1e-05
        %v7307 = vadd.f32 %v7299, 1e-05
        %v7308 = vadd.f32 %v7300, 1e-05
        %v7309 = vrsqrt.pop %v7301
        %v7310 = vmul.f32 %v7309, %v7301
        %v7311 = vmul.f32 %v7310, %v7309
        %v7312 = vmul.f32 0.5, %v7311
        %v7313 = vsub.f32 1.5, %v7312
        %v7314 = vmul.f32 %v7309, %v7313
        %vm7315 = vweird.f32 %v7301
        %vm7316 = vweird.f32 %v7309
        %vm7317 = vmor %vm7315, %vm7316
        %v7318 = vsel %vm7317, %v7309, %v7314
        %v7319 = vrsqrt.pop %v7302
        %v7320 = vmul.f32 %v7319, %v7302
        %v7321 = vmul.f32 %v7320, %v7319
        %v7322 = vmul.f32 0.5, %v7321
        %v7323 = vsub.f32 1.5, %v7322
        %v7324 = vmul.f32 %v7319, %v7323
        %vm7325 = vweird.f32 %v7302
        %vm7326 = vweird.f32 %v7319
        %vm7327 = vmor %vm7325, %vm7326
        %v7328 = vsel %vm7327, %v7319, %v7324
        %v7329 = vrsqrt.pop %v7303
        %v7330 = vmul.f32 %v7329, %v7303
        %v7331 = vmul.f32 %v7330, %v7329
        %v7332 = vmul.f32 0.5, %v7331
        %v7333 = vsub.f32 1.5, %v7332
        %v7334 = vmul.f32 %v7329, %v7333
        %vm7335 = vweird.f32 %v7303
        %vm7336 = vweird.f32 %v7329
        %vm7337 = vmor %vm7335, %vm7336
        %v7338 = vsel %vm7337, %v7329, %v7334
        %v7339 = vrsqrt.pop %v7304
        %v7340 = vmul.f32 %v7339, %v7304
        %v7341 = vmul.f32 %v7340, %v7339
        %v7342 = vmul.f32 0.5, %v7341
        %v7343 = vsub.f32 1.5, %v7342
        %v7344 = vmul.f32 %v7339, %v7343
        %vm7345 = vweird.f32 %v7304
        %vm7346 = vweird.f32 %v7339
        %vm7347 = vmor %vm7345, %vm7346
        %v7348 = vsel %vm7347, %v7339, %v7344
        %v7349 = vrsqrt.pop %v7305
        %v7350 = vmul.f32 %v7349, %v7305
        %v7351 = vmul.f32 %v7350, %v7349
        %v7352 = vmul.f32 0.5, %v7351
        %v7353 = vsub.f32 1.5, %v7352
        %v7354 = vmul.f32 %v7349, %v7353
        %vm7355 = vweird.f32 %v7305
        %vm7356 = vweird.f32 %v7349
        %vm7357 = vmor %vm7355, %vm7356
        %v7358 = vsel %vm7357, %v7349, %v7354
        %v7359 = vrsqrt.pop %v7306
        %v7360 = vmul.f32 %v7359, %v7306
        %v7361 = vmul.f32 %v7360, %v7359
        %v7362 = vmul.f32 0.5, %v7361
        %v7363 = vsub.f32 1.5, %v7362
        %v7364 = vmul.f32 %v7359, %v7363
        %vm7365 = vweird.f32 %v7306
        %vm7366 = vweird.f32 %v7359
        %vm7367 = vmor %vm7365, %vm7366
        %v7368 = vsel %vm7367, %v7359, %v7364
        %v7369 = vrsqrt.pop %v7307
        %v7370 = vmul.f32 %v7369, %v7307
        %v7371 = vmul.f32 %v7370, %v7369
        %v7372 = vmul.f32 0.5, %v7371
        %v7373 = vsub.f32 1.5, %v7372
        %v7374 = vmul.f32 %v7369, %v7373
        %vm7375 = vweird.f32 %v7307
        %vm7376 = vweird.f32 %v7369
        %vm7377 = vmor %vm7375, %vm7376
        %v7378 = vsel %vm7377, %v7369, %v7374
        %v7379 = vrsqrt.pop %v7308
        %v7380 = vmul.f32 %v7379, %v7308
        %v7381 = vmul.f32 %v7380, %v7379
        %v7382 = vmul.f32 0.5, %v7381
        %v7383 = vsub.f32 1.5, %v7382
        %v7384 = vmul.f32 %v7379, %v7383
        %vm7385 = vweird.f32 %v7308
        %vm7386 = vweird.f32 %v7379
        %vm7387 = vmor %vm7385, %vm7386
        %v7388 = vsel %vm7387, %v7379, %v7384
        %7389 = vset.pattern.permute.xlu0 7
        %7390 = vperm.xlu0 %7389, %v369
        %v7391 = vpop.permute.xlu0 %7390
        %7393 = vset.pattern.permute.xlu0 7
        %7394 = vperm.xlu0 %7393, %v370
        %v7395 = vpop.permute.xlu0 %7394
        %7397 = vset.pattern.permute.xlu0 7
        %7398 = vperm.xlu0 %7397, %v371
        %v7399 = vpop.permute.xlu0 %7398
        %7401 = vset.pattern.permute.xlu0 7
        %7402 = vperm.xlu0 %7401, %v372
        %v7403 = vpop.permute.xlu0 %7402
        %7405 = vset.pattern.permute.xlu0 7
        %7406 = vperm.xlu0 %7405, %v373
        %v7407 = vpop.permute.xlu0 %7406
        %7409 = vset.pattern.permute.xlu0 7
        %7410 = vperm.xlu0 %7409, %v374
        %v7411 = vpop.permute.xlu0 %7410
        %7413 = vset.pattern.permute.xlu0 7
        %7414 = vperm.xlu0 %7413, %v375
        %v7415 = vpop.permute.xlu0 %7414
        %7417 = vset.pattern.permute.xlu0 7
        %7418 = vperm.xlu0 %7417, %v376
        %v7419 = vpop.permute.xlu0 %7418
        %v7421 = vmul.f32 %v7391, %v7318
        %v7422 = vmul.f32 %v7395, %v7328
        %v7423 = vmul.f32 %v7399, %v7338
        %v7424 = vmul.f32 %v7403, %v7348
        %v7425 = vmul.f32 %v7407, %v7358
        %v7426 = vmul.f32 %v7411, %v7368
        %v7427 = vmul.f32 %v7415, %v7378
        %v7428 = vmul.f32 %v7419, %v7388
        %v7429 = vmul.f32 %v7261, %v7421
        %v7430 = vmul.f32 %v7262, %v7422
        %v7431 = vmul.f32 %v7263, %v7423
        %v7432 = vmul.f32 %v7264, %v7424
        %v7433 = vmul.f32 %v7265, %v7425
        %v7434 = vmul.f32 %v7266, %v7426
        %v7435 = vmul.f32 %v7267, %v7427
        %v7436 = vmul.f32 %v7268, %v7428
        %7437 = vset.pattern.permute.xlu0 8
        %7438 = vperm.xlu0 %7437, %v369
        %v7439 = vpop.permute.xlu0 %7438
        %7441 = vset.pattern.permute.xlu0 8
        %7442 = vperm.xlu0 %7441, %v370
        %v7443 = vpop.permute.xlu0 %7442
        %7445 = vset.pattern.permute.xlu0 8
        %7446 = vperm.xlu0 %7445, %v371
        %v7447 = vpop.permute.xlu0 %7446
        %7449 = vset.pattern.permute.xlu0 8
        %7450 = vperm.xlu0 %7449, %v372
        %v7451 = vpop.permute.xlu0 %7450
        %7453 = vset.pattern.permute.xlu0 8
        %7454 = vperm.xlu0 %7453, %v373
        %v7455 = vpop.permute.xlu0 %7454
        %7457 = vset.pattern.permute.xlu0 8
        %7458 = vperm.xlu0 %7457, %v374
        %v7459 = vpop.permute.xlu0 %7458
        %7461 = vset.pattern.permute.xlu0 8
        %7462 = vperm.xlu0 %7461, %v375
        %v7463 = vpop.permute.xlu0 %7462
        %7465 = vset.pattern.permute.xlu0 8
        %7466 = vperm.xlu0 %7465, %v376
        %v7467 = vpop.permute.xlu0 %7466
        %v7469 = vsub.f32 %v7439, %v7429
        %v7470 = vsub.f32 %v7443, %v7430
        %v7471 = vsub.f32 %v7447, %v7431
        %v7472 = vsub.f32 %v7451, %v7432
        %v7473 = vsub.f32 %v7455, %v7433
        %v7474 = vsub.f32 %v7459, %v7434
        %v7475 = vsub.f32 %v7463, %v7435
        %v7476 = vsub.f32 %v7467, %v7436
        %v7478 = vsel %vm1399, %v7421, 0
        %v7481 = vsel %vm1399, %v7422, 0
        %v7484 = vsel %vm1399, %v7423, 0
        %v7487 = vsel %vm1399, %v7424, 0
        %v7490 = vsel %vm1399, %v7425, 0
        %v7493 = vsel %vm1399, %v7426, 0
        %v7496 = vsel %vm1399, %v7427, 0
        %v7499 = vsel %vm1399, %v7428, 0
        %7501 = vmatpush.msra.mxu0 0.0
        %7502 = vmatpush.msra.mxu0 0.0
        %7503 = vmatpush.msra.mxu0 0.0
        %7504 = vmatpush.msra.mxu0 0.0
        %7505 = vmatpush.msra.mxu0 0.0
        %7506 = vmatpush.msra.mxu0 0.0
        %7507 = vmatpush.msra.mxu0 0.0
        %7508 = vmatpush.msra.mxu0 0.0
        %7509 = vmatpush.msra.mxu0 0.0
        %7510 = vmatpush.msra.mxu0 0.0
        %7511 = vmatpush.msra.mxu0 0.0
        %7512 = vmatpush.msra.mxu0 0.0
        %7513 = vmatpush.msra.mxu0 0.0
        %7514 = vmatpush.msra.mxu0 0.0
        %7515 = vmatpush.msra.mxu0 0.0
        %7516 = vmatpush.msra.mxu0 %v441
        %7517 = vmatmul.f32.gmra.mxu0 %v7478
        %v7518 = vpop.f32.mrf.mxu0
        %v7519 = vadd.f32 0.0, %v7518
        %7520 = vmatmul.f32.gmra.mxu0 %v7481
        %v7521 = vpop.f32.mrf.mxu0
        %v7522 = vadd.f32 0.0, %v7521
        %7523 = vmatmul.f32.gmra.mxu0 %v7484
        %v7524 = vpop.f32.mrf.mxu0
        %v7525 = vadd.f32 0.0, %v7524
        %7526 = vmatmul.f32.gmra.mxu0 %v7487
        %v7527 = vpop.f32.mrf.mxu0
        %v7528 = vadd.f32 0.0, %v7527
        %7529 = vmatmul.f32.gmra.mxu0 %v7490
        %v7530 = vpop.f32.mrf.mxu0
        %v7531 = vadd.f32 0.0, %v7530
        %7532 = vmatmul.f32.gmra.mxu0 %v7493
        %v7533 = vpop.f32.mrf.mxu0
        %v7534 = vadd.f32 0.0, %v7533
        %7535 = vmatmul.f32.gmra.mxu0 %v7496
        %v7536 = vpop.f32.mrf.mxu0
        %v7537 = vadd.f32 0.0, %v7536
        %7538 = vmatmul.f32.gmra.mxu0 %v7499
        %v7539 = vpop.f32.mrf.mxu0
        %v7540 = vadd.f32 0.0, %v7539
        %7541 = vdwg.mxu0
        %7542 = vmatpush.msra.mxu0 0.0
        %7543 = vmatpush.msra.mxu0 0.0
        %7544 = vmatpush.msra.mxu0 0.0
        %7545 = vmatpush.msra.mxu0 0.0
        %7546 = vmatpush.msra.mxu0 0.0
        %7547 = vmatpush.msra.mxu0 0.0
        %7548 = vmatpush.msra.mxu0 0.0
        %7549 = vmatpush.msra.mxu0 0.0
        %7550 = vmatpush.msra.mxu0 0.0
        %7551 = vmatpush.msra.mxu0 0.0
        %7552 = vmatpush.msra.mxu0 0.0
        %7553 = vmatpush.msra.mxu0 0.0
        %7554 = vmatpush.msra.mxu0 0.0
        %7555 = vmatpush.msra.mxu0 0.0
        %7556 = vmatpush.msra.mxu0 0.0
        %7557 = vmatpush.msra.mxu0 %v442
        %7558 = vmatmul.f32.gmra.mxu0 %v7478
        %v7559 = vpop.f32.mrf.mxu0
        %v7560 = vadd.f32 0.0, %v7559
        %7561 = vmatmul.f32.gmra.mxu0 %v7481
        %v7562 = vpop.f32.mrf.mxu0
        %v7563 = vadd.f32 0.0, %v7562
        %7564 = vmatmul.f32.gmra.mxu0 %v7484
        %v7565 = vpop.f32.mrf.mxu0
        %v7566 = vadd.f32 0.0, %v7565
        %7567 = vmatmul.f32.gmra.mxu0 %v7487
        %v7568 = vpop.f32.mrf.mxu0
        %v7569 = vadd.f32 0.0, %v7568
        %7570 = vmatmul.f32.gmra.mxu0 %v7490
        %v7571 = vpop.f32.mrf.mxu0
        %v7572 = vadd.f32 0.0, %v7571
        %7573 = vmatmul.f32.gmra.mxu0 %v7493
        %v7574 = vpop.f32.mrf.mxu0
        %v7575 = vadd.f32 0.0, %v7574
        %7576 = vmatmul.f32.gmra.mxu0 %v7496
        %v7577 = vpop.f32.mrf.mxu0
        %v7578 = vadd.f32 0.0, %v7577
        %7579 = vmatmul.f32.gmra.mxu0 %v7499
        %v7580 = vpop.f32.mrf.mxu0
        %v7581 = vadd.f32 0.0, %v7580
        %7582 = vdwg.mxu0
        %7583 = vmatpush.msra.mxu0 0.0
        %7584 = vmatpush.msra.mxu0 0.0
        %7585 = vmatpush.msra.mxu0 0.0
        %7586 = vmatpush.msra.mxu0 0.0
        %7587 = vmatpush.msra.mxu0 0.0
        %7588 = vmatpush.msra.mxu0 0.0
        %7589 = vmatpush.msra.mxu0 0.0
        %7590 = vmatpush.msra.mxu0 0.0
        %7591 = vmatpush.msra.mxu0 0.0
        %7592 = vmatpush.msra.mxu0 0.0
        %7593 = vmatpush.msra.mxu0 0.0
        %7594 = vmatpush.msra.mxu0 0.0
        %7595 = vmatpush.msra.mxu0 0.0
        %7596 = vmatpush.msra.mxu0 0.0
        %7597 = vmatpush.msra.mxu0 0.0
        %7598 = vmatpush.msra.mxu0 %v443
        %7599 = vmatmul.f32.gmra.mxu0 %v7478
        %v7600 = vpop.f32.mrf.mxu0
        %v7601 = vadd.f32 0.0, %v7600
        %7602 = vmatmul.f32.gmra.mxu0 %v7481
        %v7603 = vpop.f32.mrf.mxu0
        %v7604 = vadd.f32 0.0, %v7603
        %7605 = vmatmul.f32.gmra.mxu0 %v7484
        %v7606 = vpop.f32.mrf.mxu0
        %v7607 = vadd.f32 0.0, %v7606
        %7608 = vmatmul.f32.gmra.mxu0 %v7487
        %v7609 = vpop.f32.mrf.mxu0
        %v7610 = vadd.f32 0.0, %v7609
        %7611 = vmatmul.f32.gmra.mxu0 %v7490
        %v7612 = vpop.f32.mrf.mxu0
        %v7613 = vadd.f32 0.0, %v7612
        %7614 = vmatmul.f32.gmra.mxu0 %v7493
        %v7615 = vpop.f32.mrf.mxu0
        %v7616 = vadd.f32 0.0, %v7615
        %7617 = vmatmul.f32.gmra.mxu0 %v7496
        %v7618 = vpop.f32.mrf.mxu0
        %v7619 = vadd.f32 0.0, %v7618
        %7620 = vmatmul.f32.gmra.mxu0 %v7499
        %v7621 = vpop.f32.mrf.mxu0
        %v7622 = vadd.f32 0.0, %v7621
        %7623 = vdwg.mxu0
        %7624 = vmatpush.msra.mxu0 0.0
        %7625 = vmatpush.msra.mxu0 0.0
        %7626 = vmatpush.msra.mxu0 0.0
        %7627 = vmatpush.msra.mxu0 0.0
        %7628 = vmatpush.msra.mxu0 0.0
        %7629 = vmatpush.msra.mxu0 0.0
        %7630 = vmatpush.msra.mxu0 0.0
        %7631 = vmatpush.msra.mxu0 0.0
        %7632 = vmatpush.msra.mxu0 0.0
        %7633 = vmatpush.msra.mxu0 0.0
        %7634 = vmatpush.msra.mxu0 0.0
        %7635 = vmatpush.msra.mxu0 0.0
        %7636 = vmatpush.msra.mxu0 0.0
        %7637 = vmatpush.msra.mxu0 0.0
        %7638 = vmatpush.msra.mxu0 0.0
        %7639 = vmatpush.msra.mxu0 %v444
        %7640 = vmatmul.f32.gmra.mxu0 %v7478
        %v7641 = vpop.f32.mrf.mxu0
        %v7642 = vadd.f32 0.0, %v7641
        %7643 = vmatmul.f32.gmra.mxu0 %v7481
        %v7644 = vpop.f32.mrf.mxu0
        %v7645 = vadd.f32 0.0, %v7644
        %7646 = vmatmul.f32.gmra.mxu0 %v7484
        %v7647 = vpop.f32.mrf.mxu0
        %v7648 = vadd.f32 0.0, %v7647
        %7649 = vmatmul.f32.gmra.mxu0 %v7487
        %v7650 = vpop.f32.mrf.mxu0
        %v7651 = vadd.f32 0.0, %v7650
        %7652 = vmatmul.f32.gmra.mxu0 %v7490
        %v7653 = vpop.f32.mrf.mxu0
        %v7654 = vadd.f32 0.0, %v7653
        %7655 = vmatmul.f32.gmra.mxu0 %v7493
        %v7656 = vpop.f32.mrf.mxu0
        %v7657 = vadd.f32 0.0, %v7656
        %7658 = vmatmul.f32.gmra.mxu0 %v7496
        %v7659 = vpop.f32.mrf.mxu0
        %v7660 = vadd.f32 0.0, %v7659
        %7661 = vmatmul.f32.gmra.mxu0 %v7499
        %v7662 = vpop.f32.mrf.mxu0
        %v7663 = vadd.f32 0.0, %v7662
        %7664 = vdwg.mxu0
        %v7666 = vsel %vm1399, %v7469, 0
        %v7669 = vsel %vm1399, %v7470, 0
        %v7672 = vsel %vm1399, %v7471, 0
        %v7675 = vsel %vm1399, %v7472, 0
        %v7678 = vsel %vm1399, %v7473, 0
        %v7681 = vsel %vm1399, %v7474, 0
        %v7684 = vsel %vm1399, %v7475, 0
        %v7687 = vsel %vm1399, %v7476, 0
        %7689 = vmatpush.msra.mxu0 0.0
        %7690 = vmatpush.msra.mxu0 0.0
        %7691 = vmatpush.msra.mxu0 0.0
        %7692 = vmatpush.msra.mxu0 0.0
        %7693 = vmatpush.msra.mxu0 0.0
        %7694 = vmatpush.msra.mxu0 0.0
        %7695 = vmatpush.msra.mxu0 0.0
        %7696 = vmatpush.msra.mxu0 0.0
        %7697 = vmatpush.msra.mxu0 0.0
        %7698 = vmatpush.msra.mxu0 0.0
        %7699 = vmatpush.msra.mxu0 0.0
        %7700 = vmatpush.msra.mxu0 0.0
        %7701 = vmatpush.msra.mxu0 0.0
        %7702 = vmatpush.msra.mxu0 0.0
        %7703 = vmatpush.msra.mxu0 0.0
        %7704 = vmatpush.msra.mxu0 %v441
        %7705 = vmatmul.f32.gmra.mxu0 %v7666
        %v7706 = vpop.f32.mrf.mxu0
        %v7707 = vadd.f32 0.0, %v7706
        %7708 = vmatmul.f32.gmra.mxu0 %v7669
        %v7709 = vpop.f32.mrf.mxu0
        %v7710 = vadd.f32 0.0, %v7709
        %7711 = vmatmul.f32.gmra.mxu0 %v7672
        %v7712 = vpop.f32.mrf.mxu0
        %v7713 = vadd.f32 0.0, %v7712
        %7714 = vmatmul.f32.gmra.mxu0 %v7675
        %v7715 = vpop.f32.mrf.mxu0
        %v7716 = vadd.f32 0.0, %v7715
        %7717 = vmatmul.f32.gmra.mxu0 %v7678
        %v7718 = vpop.f32.mrf.mxu0
        %v7719 = vadd.f32 0.0, %v7718
        %7720 = vmatmul.f32.gmra.mxu0 %v7681
        %v7721 = vpop.f32.mrf.mxu0
        %v7722 = vadd.f32 0.0, %v7721
        %7723 = vmatmul.f32.gmra.mxu0 %v7684
        %v7724 = vpop.f32.mrf.mxu0
        %v7725 = vadd.f32 0.0, %v7724
        %7726 = vmatmul.f32.gmra.mxu0 %v7687
        %v7727 = vpop.f32.mrf.mxu0
        %v7728 = vadd.f32 0.0, %v7727
        %7729 = vdwg.mxu0
        %7730 = vmatpush.msra.mxu0 0.0
        %7731 = vmatpush.msra.mxu0 0.0
        %7732 = vmatpush.msra.mxu0 0.0
        %7733 = vmatpush.msra.mxu0 0.0
        %7734 = vmatpush.msra.mxu0 0.0
        %7735 = vmatpush.msra.mxu0 0.0
        %7736 = vmatpush.msra.mxu0 0.0
        %7737 = vmatpush.msra.mxu0 0.0
        %7738 = vmatpush.msra.mxu0 0.0
        %7739 = vmatpush.msra.mxu0 0.0
        %7740 = vmatpush.msra.mxu0 0.0
        %7741 = vmatpush.msra.mxu0 0.0
        %7742 = vmatpush.msra.mxu0 0.0
        %7743 = vmatpush.msra.mxu0 0.0
        %7744 = vmatpush.msra.mxu0 0.0
        %7745 = vmatpush.msra.mxu0 %v442
        %7746 = vmatmul.f32.gmra.mxu0 %v7666
        %v7747 = vpop.f32.mrf.mxu0
        %v7748 = vadd.f32 0.0, %v7747
        %7749 = vmatmul.f32.gmra.mxu0 %v7669
        %v7750 = vpop.f32.mrf.mxu0
        %v7751 = vadd.f32 0.0, %v7750
        %7752 = vmatmul.f32.gmra.mxu0 %v7672
        %v7753 = vpop.f32.mrf.mxu0
        %v7754 = vadd.f32 0.0, %v7753
        %7755 = vmatmul.f32.gmra.mxu0 %v7675
        %v7756 = vpop.f32.mrf.mxu0
        %v7757 = vadd.f32 0.0, %v7756
        %7758 = vmatmul.f32.gmra.mxu0 %v7678
        %v7759 = vpop.f32.mrf.mxu0
        %v7760 = vadd.f32 0.0, %v7759
        %7761 = vmatmul.f32.gmra.mxu0 %v7681
        %v7762 = vpop.f32.mrf.mxu0
        %v7763 = vadd.f32 0.0, %v7762
        %7764 = vmatmul.f32.gmra.mxu0 %v7684
        %v7765 = vpop.f32.mrf.mxu0
        %v7766 = vadd.f32 0.0, %v7765
        %7767 = vmatmul.f32.gmra.mxu0 %v7687
        %v7768 = vpop.f32.mrf.mxu0
        %v7769 = vadd.f32 0.0, %v7768
        %7770 = vdwg.mxu0
        %7771 = vmatpush.msra.mxu0 0.0
        %7772 = vmatpush.msra.mxu0 0.0
        %7773 = vmatpush.msra.mxu0 0.0
        %7774 = vmatpush.msra.mxu0 0.0
        %7775 = vmatpush.msra.mxu0 0.0
        %7776 = vmatpush.msra.mxu0 0.0
        %7777 = vmatpush.msra.mxu0 0.0
        %7778 = vmatpush.msra.mxu0 0.0
        %7779 = vmatpush.msra.mxu0 0.0
        %7780 = vmatpush.msra.mxu0 0.0
        %7781 = vmatpush.msra.mxu0 0.0
        %7782 = vmatpush.msra.mxu0 0.0
        %7783 = vmatpush.msra.mxu0 0.0
        %7784 = vmatpush.msra.mxu0 0.0
        %7785 = vmatpush.msra.mxu0 0.0
        %7786 = vmatpush.msra.mxu0 %v443
        %7787 = vmatmul.f32.gmra.mxu0 %v7666
        %v7788 = vpop.f32.mrf.mxu0
        %v7789 = vadd.f32 0.0, %v7788
        %7790 = vmatmul.f32.gmra.mxu0 %v7669
        %v7791 = vpop.f32.mrf.mxu0
        %v7792 = vadd.f32 0.0, %v7791
        %7793 = vmatmul.f32.gmra.mxu0 %v7672
        %v7794 = vpop.f32.mrf.mxu0
        %v7795 = vadd.f32 0.0, %v7794
        %7796 = vmatmul.f32.gmra.mxu0 %v7675
        %v7797 = vpop.f32.mrf.mxu0
        %v7798 = vadd.f32 0.0, %v7797
        %7799 = vmatmul.f32.gmra.mxu0 %v7678
        %v7800 = vpop.f32.mrf.mxu0
        %v7801 = vadd.f32 0.0, %v7800
        %7802 = vmatmul.f32.gmra.mxu0 %v7681
        %v7803 = vpop.f32.mrf.mxu0
        %v7804 = vadd.f32 0.0, %v7803
        %7805 = vmatmul.f32.gmra.mxu0 %v7684
        %v7806 = vpop.f32.mrf.mxu0
        %v7807 = vadd.f32 0.0, %v7806
        %7808 = vmatmul.f32.gmra.mxu0 %v7687
        %v7809 = vpop.f32.mrf.mxu0
        %v7810 = vadd.f32 0.0, %v7809
        %7811 = vdwg.mxu0
        %7812 = vmatpush.msra.mxu0 0.0
        %7813 = vmatpush.msra.mxu0 0.0
        %7814 = vmatpush.msra.mxu0 0.0
        %7815 = vmatpush.msra.mxu0 0.0
        %7816 = vmatpush.msra.mxu0 0.0
        %7817 = vmatpush.msra.mxu0 0.0
        %7818 = vmatpush.msra.mxu0 0.0
        %7819 = vmatpush.msra.mxu0 0.0
        %7820 = vmatpush.msra.mxu0 0.0
        %7821 = vmatpush.msra.mxu0 0.0
        %7822 = vmatpush.msra.mxu0 0.0
        %7823 = vmatpush.msra.mxu0 0.0
        %7824 = vmatpush.msra.mxu0 0.0
        %7825 = vmatpush.msra.mxu0 0.0
        %7826 = vmatpush.msra.mxu0 0.0
        %7827 = vmatpush.msra.mxu0 %v444
        %7828 = vmatmul.f32.gmra.mxu0 %v7666
        %v7829 = vpop.f32.mrf.mxu0
        %v7830 = vadd.f32 0.0, %v7829
        %7831 = vmatmul.f32.gmra.mxu0 %v7669
        %v7832 = vpop.f32.mrf.mxu0
        %v7833 = vadd.f32 0.0, %v7832
        %7834 = vmatmul.f32.gmra.mxu0 %v7672
        %v7835 = vpop.f32.mrf.mxu0
        %v7836 = vadd.f32 0.0, %v7835
        %7837 = vmatmul.f32.gmra.mxu0 %v7675
        %v7838 = vpop.f32.mrf.mxu0
        %v7839 = vadd.f32 0.0, %v7838
        %7840 = vmatmul.f32.gmra.mxu0 %v7678
        %v7841 = vpop.f32.mrf.mxu0
        %v7842 = vadd.f32 0.0, %v7841
        %7843 = vmatmul.f32.gmra.mxu0 %v7681
        %v7844 = vpop.f32.mrf.mxu0
        %v7845 = vadd.f32 0.0, %v7844
        %7846 = vmatmul.f32.gmra.mxu0 %v7684
        %v7847 = vpop.f32.mrf.mxu0
        %v7848 = vadd.f32 0.0, %v7847
        %7849 = vmatmul.f32.gmra.mxu0 %v7687
        %v7850 = vpop.f32.mrf.mxu0
        %v7851 = vadd.f32 0.0, %v7850
        %7852 = vdwg.mxu0
        %v7853 = vmul.f32 %v6869, %v7519
        %v7854 = vmul.f32 %v6870, %v7560
        %v7855 = vmul.f32 %v6871, %v7601
        %v7856 = vmul.f32 %v6872, %v7642
        %v7857 = vmul.f32 %v6873, %v7522
        %v7858 = vmul.f32 %v6874, %v7563
        %v7859 = vmul.f32 %v6875, %v7604
        %v7860 = vmul.f32 %v6876, %v7645
        %v7861 = vmul.f32 %v6877, %v7525
        %v7862 = vmul.f32 %v6878, %v7566
        %v7863 = vmul.f32 %v6879, %v7607
        %v7864 = vmul.f32 %v6880, %v7648
        %v7865 = vmul.f32 %v6881, %v7528
        %v7866 = vmul.f32 %v6882, %v7569
        %v7867 = vmul.f32 %v6883, %v7610
        %v7868 = vmul.f32 %v6884, %v7651
        %v7869 = vmul.f32 %v6885, %v7531
        %v7870 = vmul.f32 %v6886, %v7572
        %v7871 = vmul.f32 %v6887, %v7613
        %v7872 = vmul.f32 %v6888, %v7654
        %v7873 = vmul.f32 %v6889, %v7534
        %v7874 = vmul.f32 %v6890, %v7575
        %v7875 = vmul.f32 %v6891, %v7616
        %v7876 = vmul.f32 %v6892, %v7657
        %v7877 = vmul.f32 %v6893, %v7537
        %v7878 = vmul.f32 %v6894, %v7578
        %v7879 = vmul.f32 %v6895, %v7619
        %v7880 = vmul.f32 %v6896, %v7660
        %v7881 = vmul.f32 %v6897, %v7540
        %v7882 = vmul.f32 %v6898, %v7581
        %v7883 = vmul.f32 %v6899, %v7622
        %v7884 = vmul.f32 %v6900, %v7663
        %v7885 = vadd.f32 %v7853, %v7707
        %v7886 = vadd.f32 %v7854, %v7748
        %v7887 = vadd.f32 %v7855, %v7789
        %v7888 = vadd.f32 %v7856, %v7830
        %v7889 = vadd.f32 %v7857, %v7710
        %v7890 = vadd.f32 %v7858, %v7751
        %v7891 = vadd.f32 %v7859, %v7792
        %v7892 = vadd.f32 %v7860, %v7833
        %v7893 = vadd.f32 %v7861, %v7713
        %v7894 = vadd.f32 %v7862, %v7754
        %v7895 = vadd.f32 %v7863, %v7795
        %v7896 = vadd.f32 %v7864, %v7836
        %v7897 = vadd.f32 %v7865, %v7716
        %v7898 = vadd.f32 %v7866, %v7757
        %v7899 = vadd.f32 %v7867, %v7798
        %v7900 = vadd.f32 %v7868, %v7839
        %v7901 = vadd.f32 %v7869, %v7719
        %v7902 = vadd.f32 %v7870, %v7760
        %v7903 = vadd.f32 %v7871, %v7801
        %v7904 = vadd.f32 %v7872, %v7842
        %v7905 = vadd.f32 %v7873, %v7722
        %v7906 = vadd.f32 %v7874, %v7763
        %v7907 = vadd.f32 %v7875, %v7804
        %v7908 = vadd.f32 %v7876, %v7845
        %v7909 = vadd.f32 %v7877, %v7725
        %v7910 = vadd.f32 %v7878, %v7766
        %v7911 = vadd.f32 %v7879, %v7807
        %v7912 = vadd.f32 %v7880, %v7848
        %v7913 = vadd.f32 %v7881, %v7728
        %v7914 = vadd.f32 %v7882, %v7769
        %v7915 = vadd.f32 %v7883, %v7810
        %v7916 = vadd.f32 %v7884, %v7851
        %v7917 = vpack.c.bf16 %v7889, %v7885
        %v7918 = vpack.c.bf16 %v7890, %v7886
        %v7919 = vpack.c.bf16 %v7891, %v7887
        %v7920 = vpack.c.bf16 %v7892, %v7888
        %v7921 = vpack.c.bf16 %v7897, %v7893
        %v7922 = vpack.c.bf16 %v7898, %v7894
        %v7923 = vpack.c.bf16 %v7899, %v7895
        %v7924 = vpack.c.bf16 %v7900, %v7896
        %v7925 = vpack.c.bf16 %v7905, %v7901
        %v7926 = vpack.c.bf16 %v7906, %v7902
        %v7927 = vpack.c.bf16 %v7907, %v7903
        %v7928 = vpack.c.bf16 %v7908, %v7904
        %v7929 = vpack.c.bf16 %v7913, %v7909
        %v7930 = vpack.c.bf16 %v7914, %v7910
        %v7931 = vpack.c.bf16 %v7915, %v7911
        %v7932 = vpack.c.bf16 %v7916, %v7912
        %v7933 = vld [vmem:[%s323] sm:$0xff]
        %v7934 = vld [vmem:[%s323 + $0x8] sm:$0xff]
        %v7935 = vld [vmem:[%s323 + $0x10] sm:$0xff]
        %v7936 = vld [vmem:[%s323 + $0x18] sm:$0xff]
        %v7937 = vld [vmem:[%s323 + $0x20] sm:$0xff]
        %v7938 = vld [vmem:[%s323 + $0x28] sm:$0xff]
        %v7939 = vld [vmem:[%s323 + $0x30] sm:$0xff]
        %v7940 = vld [vmem:[%s323 + $0x38] sm:$0xff]
        %v7941 = vld [vmem:[%s323 + $0x40] sm:$0xff]
        %v7942 = vld [vmem:[%s323 + $0x48] sm:$0xff]
        %v7943 = vld [vmem:[%s323 + $0x50] sm:$0xff]
        %v7944 = vld [vmem:[%s323 + $0x58] sm:$0xff]
        %v7945 = vld [vmem:[%s323 + $0x60] sm:$0xff]
        %v7946 = vld [vmem:[%s323 + $0x68] sm:$0xff]
        %v7947 = vld [vmem:[%s323 + $0x70] sm:$0xff]
        %v7948 = vld [vmem:[%s323 + $0x78] sm:$0xff]
        %v7953 = vunpack.c.l.b16 %v365
        %v7954 = vunpack.c.l.b16 %v366
        %v7955 = vunpack.c.l.b16 %v367
        %v7956 = vunpack.c.l.b16 %v368
        %v7957 = vpack.c.b16 %v7954, %v7953
        %v7958 = vpack.c.b16 %v7956, %v7955
        %v7960 = vsel %vm3072, %v7957, 0
        %v7963 = vsel %vm3072, %v7958, 0
        %7965 = vmatpush.bf16.msra.mxu0 0
        %7966 = vmatpush.bf16.msra.mxu0 0
        %7967 = vmatpush.bf16.msra.mxu0 0
        %7968 = vmatpush.bf16.msra.mxu0 0
        %7969 = vmatpush.bf16.msra.mxu0 %v7929
        %7970 = vmatpush.bf16.msra.mxu0 %v7925
        %7971 = vmatpush.bf16.msra.mxu0 %v7921
        %7972 = vmatpush.bf16.msra.mxu0 %v7917
        %7973 = vmatmul.bf16.gmra.mxu0 %v7960
        %v7974 = vpop.f32.mrf.mxu0
        %v7975 = vadd.f32 %v7933, %v7974
        %v7976 = vpop.f32.mrf.mxu0
        %v7977 = vadd.f32 %v7937, %v7976
        %7978 = vmatmul.bf16.gmra.mxu0 %v7963
        %v7979 = vpop.f32.mrf.mxu0
        %v7980 = vadd.f32 %v7941, %v7979
        %v7981 = vpop.f32.mrf.mxu0
        %v7982 = vadd.f32 %v7945, %v7981
        %7983 = vdwg.mxu0
        %7984 = vmatpush.bf16.msra.mxu0 0
        %7985 = vmatpush.bf16.msra.mxu0 0
        %7986 = vmatpush.bf16.msra.mxu0 0
        %7987 = vmatpush.bf16.msra.mxu0 0
        %7988 = vmatpush.bf16.msra.mxu0 %v7930
        %7989 = vmatpush.bf16.msra.mxu0 %v7926
        %7990 = vmatpush.bf16.msra.mxu0 %v7922
        %7991 = vmatpush.bf16.msra.mxu0 %v7918
        %7992 = vmatmul.bf16.gmra.mxu0 %v7960
        %v7993 = vpop.f32.mrf.mxu0
        %v7994 = vadd.f32 %v7934, %v7993
        %v7995 = vpop.f32.mrf.mxu0
        %v7996 = vadd.f32 %v7938, %v7995
        %7997 = vmatmul.bf16.gmra.mxu0 %v7963
        %v7998 = vpop.f32.mrf.mxu0
        %v7999 = vadd.f32 %v7942, %v7998
        %v8000 = vpop.f32.mrf.mxu0
        %v8001 = vadd.f32 %v7946, %v8000
        %8002 = vdwg.mxu0
        %8003 = vmatpush.bf16.msra.mxu0 0
        %8004 = vmatpush.bf16.msra.mxu0 0
        %8005 = vmatpush.bf16.msra.mxu0 0
        %8006 = vmatpush.bf16.msra.mxu0 0
        %8007 = vmatpush.bf16.msra.mxu0 %v7931
        %8008 = vmatpush.bf16.msra.mxu0 %v7927
        %8009 = vmatpush.bf16.msra.mxu0 %v7923
        %8010 = vmatpush.bf16.msra.mxu0 %v7919
        %8011 = vmatmul.bf16.gmra.mxu0 %v7960
        %v8012 = vpop.f32.mrf.mxu0
        %v8013 = vadd.f32 %v7935, %v8012
        %v8014 = vpop.f32.mrf.mxu0
        %v8015 = vadd.f32 %v7939, %v8014
        %8016 = vmatmul.bf16.gmra.mxu0 %v7963
        %v8017 = vpop.f32.mrf.mxu0
        %v8018 = vadd.f32 %v7943, %v8017
        %v8019 = vpop.f32.mrf.mxu0
        %v8020 = vadd.f32 %v7947, %v8019
        %8021 = vdwg.mxu0
        %8022 = vmatpush.bf16.msra.mxu0 0
        %8023 = vmatpush.bf16.msra.mxu0 0
        %8024 = vmatpush.bf16.msra.mxu0 0
        %8025 = vmatpush.bf16.msra.mxu0 0
        %8026 = vmatpush.bf16.msra.mxu0 %v7932
        %8027 = vmatpush.bf16.msra.mxu0 %v7928
        %8028 = vmatpush.bf16.msra.mxu0 %v7924
        %8029 = vmatpush.bf16.msra.mxu0 %v7920
        %8030 = vmatmul.bf16.gmra.mxu0 %v7960
        %v8031 = vpop.f32.mrf.mxu0
        %v8032 = vadd.f32 %v7936, %v8031
        %v8033 = vpop.f32.mrf.mxu0
        %v8034 = vadd.f32 %v7940, %v8033
        %8035 = vmatmul.bf16.gmra.mxu0 %v7963
        %v8036 = vpop.f32.mrf.mxu0
        %v8037 = vadd.f32 %v7944, %v8036
        %v8038 = vpop.f32.mrf.mxu0
        %v8039 = vadd.f32 %v7948, %v8038
        %8040 = vdwg.mxu0
        %8041 = vst [vmem:[%s353] sm:$0xff] %v7975
        %8042 = vst [vmem:[%s353 + $0x8] sm:$0xff] %v7994
        %8043 = vst [vmem:[%s353 + $0x10] sm:$0xff] %v8013
        %8044 = vst [vmem:[%s353 + $0x18] sm:$0xff] %v8032
        %8045 = vst [vmem:[%s353 + $0x20] sm:$0xff] %v7977
        %8046 = vst [vmem:[%s353 + $0x28] sm:$0xff] %v7996
        %8047 = vst [vmem:[%s353 + $0x30] sm:$0xff] %v8015
        %8048 = vst [vmem:[%s353 + $0x38] sm:$0xff] %v8034
        %8049 = vst [vmem:[%s353 + $0x40] sm:$0xff] %v7980
        %8050 = vst [vmem:[%s353 + $0x48] sm:$0xff] %v7999
        %8051 = vst [vmem:[%s353 + $0x50] sm:$0xff] %v8018
        %8052 = vst [vmem:[%s353 + $0x58] sm:$0xff] %v8037
        %8053 = vst [vmem:[%s353 + $0x60] sm:$0xff] %v7982
        %8054 = vst [vmem:[%s353 + $0x68] sm:$0xff] %v8001
        %8055 = vst [vmem:[%s353 + $0x70] sm:$0xff] %v8020
        %8056 = vst [vmem:[%s353 + $0x78] sm:$0xff] %v8039
        %s8057 = sand.u32 %s203, 1
        %s8058 = scalar_lea.sflag [#allocation6], %s8057
        %s8059 = sand.u32 %s203, 1
        %s8060 = smul.addr %s8059, 128
        %s8061 = scalar_lea.vmem [#allocation5], %s8060
        // Predicated region
        $region76: #{tpu_custom_call.1} parent=70 // pred_check
          %p8062 = pneg %p213
        $region77: #{tpu_custom_call.1} parent=70 // pred_check_branch
          %8064 = sbr.rel (%p8062) target = $region79
        $region78: #{tpu_custom_call.1} parent=70 // pred_region
          %s8065 = smul.u32 4, %s22
          %8067 = vsyncadd %s8058, 0
          %s8068 = smul.addr %s8065, 8
          %s8069 = scalar_lea.hbm %s8, %s8068
          %s8070 = sshll.u32 %s8061, 4
          %s8071 = int_to_ptr.vmem [resolvable:$true] %s8070
          %s8072 = sshll.u32 %s8069, 4
          %s8073 = int_to_ptr.hbm [resolvable:$true] %s8072
          %8078 = dma.vmem_to_hbm [thread:$0]  %s8071, 2048, %s8073, %s8058, 512, 1024, 32
        $region79: #{tpu_custom_call.1} parent=70 // pred_fallthru
          _
      $region71: #{tpu_custom_call.1} parent=5 // pred_fallthru
        _
      %p8079 = scmp.le.s32.totalorder 2, %s17
      // Predicated region
      $region80: #{tpu_custom_call.1} parent=5 // pred_check
        %p8080 = pneg %p8079
      $region81: #{tpu_custom_call.1} parent=5 // pred_check_branch
        %8082 = sbr.rel (%p8080) target = $region83
      $region82: #{tpu_custom_call.1} parent=5 // pred_region
        %s8083 = ssub.s32 %s17, 2
        // Predicated region
        $region84: #{tpu_custom_call.1} parent=82 // pred_check
          %p8084 = pneg %p219
        $region85: #{tpu_custom_call.1} parent=82 // pred_check_branch
          %8086 = sbr.rel (%p8084) target = $region87
        $region86: #{tpu_custom_call.1} parent=82 // pred_region
          %s8087 = sand.u32 %s204, 1
          %s8088 = scalar_lea.sflag [#allocation6], %s8087
          %s8089 = sand.u32 %s204, 1
          %s8090 = smul.addr %s8089, 128
          %s8091 = scalar_lea.vmem [#allocation5], %s8090
          %8093 = dma.done %s8088, 2048
        $region87: #{tpu_custom_call.1} parent=82 // pred_fallthru
          _
      $region83: #{tpu_custom_call.1} parent=5 // pred_fallthru
        _
    $region6: #{tpu_custom_call.1} parent=1 // loop_footer
      %s21 = sadd.s32 1, %s17
    $region7: #{tpu_custom_call.1} parent=1 // loop_footer_branch
      %16 = sbr.rel target = $region3
    $region8: #{tpu_custom_call.1} parent=1 // loop_exit
      _
    %8094 = vsyncpa [#allocation6], 1
    %s8095 = scalar_lea.sflag [#allocation6], 1
    %8096 = vsyncpa %s8095, 1

</llo_original>
